<compile_context>
chip_gen: v7x
topology: tpu7x:2x2x1
jax: 0.10.0
libtpu: 0.0.40
codegen_flags: <defaults>
</compile_context>

<pallas_src>
import functools

import jax
import jax.numpy as jnp
from jax.experimental import pallas as pl
from jax.experimental.pallas import tpu as pltpu


def _round_up(x, m):
    return -(-x // m) * m


# ----------------------------------------------------------------------------
# Kernel
# ----------------------------------------------------------------------------
def _attention_kernel(s_ref, enc_ref, wa_s_ref, wa_e_ref, v_ref, out_ref,
                      sproj_ref, score_ref, *, src_len, tanh_dtype):
    # s_ref:     [Bt, dec_hid]        bf16  (constant along the src axis)
    # enc_ref:   [Lc, Bt, enc2]       bf16  (native [src, batch, 2*enc_hid] layout)
    # wa_s_ref:  [dec_hid, dec_hid]   bf16
    # wa_e_ref:  [enc2, dec_hid]      bf16
    # v_ref:     [1, dec_hid]         bf16
    # out_ref:   [Bt, Lp]             f32   (Lp = src_len padded to 128)
    # sproj_ref: [Bt, dec_hid]        f32   scratch, persists across src chunks
    # score_ref: [Lp, Bt]             f32   scratch, persists across src chunks
    l = pl.program_id(1)
    n_l = pl.num_programs(1)
    lc, bt, enc2 = enc_ref.shape
    dec_hid = wa_s_ref.shape[1]

    # s @ Wa_s is src-chunk independent: compute once per batch tile.
    @pl.when(l == 0)
    def _():
        sproj_ref[...] = jnp.dot(s_ref[...], wa_s_ref[...],
                                 preferred_element_type=jnp.float32)

    # enc_chunk @ Wa_e -> [Lc*Bt, dec_hid]  (MXU, f32 accumulation).
    # The (Lc, Bt) collapse is a layout view: Bt is a multiple of the bf16
    # sublane tile (16), so no hidden VMEM copy even when enc2 % 128 != 0.
    e_proj = jnp.dot(enc_ref[...].reshape(lc * bt, enc2), wa_e_ref[...],
                     preferred_element_type=jnp.float32)
    energy = e_proj.reshape(lc, bt, dec_hid) + sproj_ref[...][None, :, :]
    # bf16 tanh on chips with a bf16 EUP (v6e/v7x): ~2x EUP throughput and the
    # largest live intermediate halves.  Kept f32 on v5e (no bf16 EUP/VPU).
    energy = jnp.tanh(energy.astype(tanh_dtype))

    # v projection: VPU multiply + lane reduce (f32 accumulate).  The MXU has
    # plenty of slack here; switch this to an (L*Bt, dec) @ (dec, 1) matmul
    # only if a bundle dump shows the XLU slot saturating.
    v_f32 = v_ref[...].astype(jnp.float32)                              # [1, dec]
    att = jnp.sum(energy.astype(jnp.float32) * v_f32[None, :, :], axis=-1)  # [Lc, Bt]

    # Park this chunk's scores in the src-major scratch (aligned sublane DUS).
    start = pl.multiple_of(l * lc, 128)
    score_ref[pl.ds(start, lc), :] = att

    # Deferred softmax over the full (padded) src axis, once per batch tile.
    @pl.when(l == n_l - 1)
    def _():
        # The only place PyTorch's `enc_output.transpose(0,1)` materialises:
        # one small XLU transpose of the f32 score tile.
        scores = score_ref[...].T                                      # [Bt, Lp]
        lp = scores.shape[-1]
        if src_len < lp:   # static: mask padded src lanes out of the softmax
            lane = jax.lax.broadcasted_iota(jnp.int32, scores.shape, 1)
            scores = jnp.where(lane < src_len, scores, jnp.float32(-1e30))
        m = jnp.max(scores, axis=-1, keepdims=True)
        e = jnp.exp(scores - m)
        denom = jnp.sum(e, axis=-1, keepdims=True)
        # exact normalisation: runs once per batch tile, rows sum to 1 exactly.
        out_ref[...] = (e / denom).astype(out_ref.dtype)


# ----------------------------------------------------------------------------
# Tiling / generation heuristics
# ----------------------------------------------------------------------------
_MIB = 1024 * 1024
_VMEM_BUDGETS = {
    # generation: (tile_budget_bytes, vmem_limit_bytes)
    "v7x": (40 * _MIB, 60 * _MIB),    # 64 MiB physical VMEM
    "v6e": (80 * _MIB, 100 * _MIB),   # 128 MiB physical
    "v5e": (64 * _MIB, 96 * _MIB),
    "v5p": (80 * _MIB, 100 * _MIB),
    "unknown": (40 * _MIB, None),
}


def _tpu_generation():
    try:
        kind = jax.devices()[0].device_kind.lower()
    except Exception:
        return "unknown"
    if "7" in kind:
        return "v7x"
    if "v6" in kind:
        return "v6e"
    if "v5" in kind and ("lite" in kind or "v5e" in kind):
        return "v5e"
    if "v5" in kind or "v4" in kind:
        return "v5p"
    return "unknown"


def _estimate_vmem_bytes(bt, lc, lp, dec_hid, enc2, energy_bytes):
    lane = lambda n: _round_up(max(int(n), 1), 128)
    enc_blk = 2 * lc * bt * lane(enc2) * 2            # double-buffered enc tile
    s_blk = 2 * bt * lane(dec_hid) * 2
    weights = (dec_hid + enc2 + 16) * lane(dec_hid) * 2   # single-buffered
    out_blk = 2 * bt * lp * 4
    scratch = bt * lane(dec_hid) * 4 + lp * bt * 4
    interm = lc * bt * lane(dec_hid) * (4 + energy_bytes)  # e_proj f32 + energy
    return enc_blk + s_blk + weights + out_blk + scratch + interm


# ----------------------------------------------------------------------------
# Host-side wrapper
# ----------------------------------------------------------------------------
def prepare_attention_params(attn_weight, v_weight, dtype=jnp.bfloat16):
    """One-time parameter prep (split / transpose / cast), outside the call path.

    attn_weight: [dec_hid, dec_hid + 2*enc_hid]  (nn.Linear weight; cat is (s, enc))
    v_weight:    [1, dec_hid]
    """
    dec_hid = attn_weight.shape[0]
    wa_s = jnp.asarray(attn_weight[:, :dec_hid].T, dtype=dtype)   # [dec_hid, dec_hid]
    wa_e = jnp.asarray(attn_weight[:, dec_hid:].T, dtype=dtype)   # [2*enc_hid, dec_hid]
    v_row = jnp.asarray(v_weight, dtype=dtype)                    # [1, dec_hid]
    return wa_s, wa_e, v_row


def attention_forward(s, enc_output, wa_s, wa_e, v_row, *, block_b=128):
    """
    s:          [batch, dec_hid]
    enc_output: [src_len, batch, 2*enc_hid]   (NATIVE PyTorch layout)
    returns:    [batch, src_len]  float32 softmax attention
    """
    batch, dec_hid = s.shape
    src_len, batch_e, enc2 = enc_output.shape
    assert batch_e == batch
    assert wa_s.shape == (dec_hid, dec_hid)
    assert wa_e.shape == (enc2, dec_hid)

    gen = _tpu_generation()
    tile_budget, vmem_limit = _VMEM_BUDGETS[gen]
    tanh_dtype = jnp.bfloat16 if gen in ("v6e", "v7x") else jnp.float32
    energy_bytes = 2 if tanh_dtype == jnp.bfloat16 else 4

    compute_dtype = wa_e.dtype
    s = s.astype(compute_dtype)
    enc_output = enc_output.astype(compute_dtype)

    # ---- batch tile: multiple of 16 (bf16 sublane tile), target 128 --------
    bp16 = _round_up(batch, 16)
    bt = min(_round_up(max(int(block_b), 16), 16), bp16)
    # Megacore (v7x has 2 TCs): keep >=2 parallel grid steps when batch allows.
    if bp16 // bt < 2 and bp16 >= 32:
        bt = _round_up(-(-bp16 // 2), 16)
    lp = _round_up(src_len, 128)          # lane-dense output / score width
    # Shrink Bt if even the smallest src chunk would blow the VMEM budget.
    while bt > 16 and _estimate_vmem_bytes(bt, min(128, lp), lp, dec_hid, enc2,
                                           energy_bytes) > tile_budget:
        bt = _round_up(bt // 2, 16)
    bp = _round_up(batch, bt)

    # ---- src chunk: largest 128-multiple divisor of Lp fitting the budget --
    cands = [c for c in range(lp, 0, -128) if lp % c == 0]
    if bp // bt < 2 and lp >= 256:
        # With a 1-step batch grid, force >=2 src chunks so enc DMA overlaps.
        cands = [c for c in cands if c <= lp // 2] or [128]
    lc = cands[-1]
    for c in cands:
        if _estimate_vmem_bytes(bt, c, lp, dec_hid, enc2, energy_bytes) <= tile_budget:
            lc = c
            break

    # ---- zero padding (padded rows/lanes are masked or sliced away) --------
    if bp != batch or lp != src_len:
        s = jnp.pad(s, ((0, bp - batch), (0, 0)))
        enc_output = jnp.pad(enc_output,
                             ((0, lp - src_len), (0, bp - batch), (0, 0)))

    grid = (bp // bt, lp // lc)
    kernel = functools.partial(_attention_kernel, src_len=src_len,
                               tanh_dtype=tanh_dtype)

    def build(use_pipeline_hints):
        enc_kwargs, w_kwargs = {}, {}
        if use_pipeline_hints:
            # Grid-invariant weights: a second buffer is pure VMEM waste.
            w_kwargs = dict(pipeline_mode=pl.Buffered(1))
            if gen == "v5e":
                # Deeper buffering hides the strided enc DMA on v5e's slower HBM.
                enc_kwargs = dict(pipeline_mode=pl.Buffered(3))
        grid_spec = pltpu.PrefetchScalarGridSpec(
            num_scalar_prefetch=0,
            grid=grid,
            in_specs=[
                pl.BlockSpec((bt, dec_hid), lambda b, l: (b, 0)),
                # enc stays in native [src, batch, 2*enc_hid] layout.
                pl.BlockSpec((lc, bt, enc2), lambda b, l: (l, b, 0), **enc_kwargs),
                pl.BlockSpec((dec_hid, dec_hid), lambda b, l: (0, 0), **w_kwargs),
                pl.BlockSpec((enc2, dec_hid), lambda b, l: (0, 0), **w_kwargs),
                pl.BlockSpec((1, dec_hid), lambda b, l: (0, 0), **w_kwargs),
            ],
            out_specs=pl.BlockSpec((bt, lp), lambda b, l: (b, 0)),
            scratch_shapes=[
                pltpu.VMEM((bt, dec_hid), jnp.float32),   # s @ Wa_s
                pltpu.VMEM((lp, bt), jnp.float32),        # src-major score tile
            ],
        )
        cp = dict(dimension_semantics=("parallel", "arbitrary"))
        if vmem_limit is not None:
            cp["vmem_limit_bytes"] = int(vmem_limit)
        return pl.pallas_call(
            kernel,
            out_shape=jax.ShapeDtypeStruct((bp, lp), jnp.float32),
            grid_spec=grid_spec,
            compiler_params=pltpu.CompilerParams(**cp),
        )

    try:
        out = build(True)(s, enc_output, wa_s, wa_e, v_row)
    except Exception:
        # Portability fallback: identical kernel without pipeline-depth hints.
        out = build(False)(s, enc_output, wa_s, wa_e, v_row)

    return out[:batch, :src_len]


# ----------------------------------------------------------------------------
# Pure-JAX reference (f32 mirror of the PyTorch forward)
# ----------------------------------------------------------------------------
def _reference(s, enc_output, attn_weight, v_weight):
    src_len = enc_output.shape[0]
    s_rep = jnp.repeat(s[:, None, :], src_len, axis=1)          # [B, L, dec]
    enc = jnp.transpose(enc_output, (1, 0, 2))                  # [B, L, 2*enc]
    cat = jnp.concatenate([s_rep, enc], axis=2)                 # [B, L, dec+2*enc]
    energy = jnp.tanh(cat @ attn_weight.T)                      # [B, L, dec]
    attention = (energy @ v_weight.T)[..., 0]                   # [B, L]
    return jax.nn.softmax(attention, axis=1)


if __name__ == "__main__":
    enc_hid_dim = 16
    dec_hid_dim = 32
    batch = 2
    src_len = 8

    key = jax.random.PRNGKey(0)
    k1, k2, k3, k4 = jax.random.split(key, 4)

    # "parameters" (shapes follow nn.Linear(..., bias=False) in __init__)
    attn_weight = jax.random.normal(
        k1, (dec_hid_dim, enc_hid_dim * 2 + dec_hid_dim), dtype=jnp.float32) * 0.1
    v_weight = jax.random.normal(k2, (1, dec_hid_dim), dtype=jnp.float32) * 0.1

    # deterministic inputs
    s = jax.random.normal(k3, (batch, dec_hid_dim), dtype=jnp.float32)
    enc_output = jax.random.normal(
        k4, (src_len, batch, enc_hid_dim * 2), dtype=jnp.float32)

    # one-time weight prep (outside the per-call path)
    wa_s, wa_e, v_row = prepare_attention_params(attn_weight, v_weight)

    out = attention_forward(s, enc_output, wa_s, wa_e, v_row)
    out = jax.block_until_ready(out)

    ref = _reference(s, enc_output, attn_weight, v_weight)
    assert out.shape == (batch, src_len)
    assert jnp.allclose(out, ref, atol=2e-2, rtol=2e-2), "mismatch vs reference"
    assert jnp.allclose(out.sum(axis=1), 1.0, atol=1e-3), "rows must sum to 1"

    print("KERNEL_OK")
</pallas_src>

<mosaic_0001>
module attributes {stable_mosaic.version = 11 : i64} {
  func.func @_attention_kernel(%arg0: i32, %arg1: i32, %arg2: memref<16x32xbf16, #tpu.memory_space<vmem>>, %arg3: memref<128x16x32xbf16, #tpu.memory_space<vmem>>, %arg4: memref<32x32xbf16, #tpu.memory_space<vmem>>, %arg5: memref<32x32xbf16, #tpu.memory_space<vmem>>, %arg6: memref<1x32xbf16, #tpu.memory_space<vmem>>, %arg7: memref<16x128xf32, #tpu.memory_space<vmem>>, %arg8: memref<16x32xf32, #tpu.memory_space<vmem>>, %arg9: memref<128x16xf32, #tpu.memory_space<vmem>>) attributes {dimension_semantics = [#tpu.dimension_semantics<parallel>, #tpu.dimension_semantics<arbitrary>], iteration_bounds = array<i64: 1, 1>, scalar_prefetch = 0 : i64, scratch_operands = 2 : i64, tpu.core_type = #tpu.core_type<tc>, window_params = [{transform_indices = @transform_0, window_bounds = array<i64: 16, 32>}, {transform_indices = @transform_1, window_bounds = array<i64: 128, 16, 32>}, {pipeline_mode = #tpu.pipeline_mode<synchronous>, transform_indices = @transform_2, window_bounds = array<i64: 32, 32>}, {pipeline_mode = #tpu.pipeline_mode<synchronous>, transform_indices = @transform_3, window_bounds = array<i64: 32, 32>}, {pipeline_mode = #tpu.pipeline_mode<synchronous>, transform_indices = @transform_4, window_bounds = array<i64: 1, 32>}, {transform_indices = @transform_5, window_bounds = array<i64: 16, 128>}]} {
    %c0_i32 = arith.constant 0 : i32
    %0 = arith.cmpi eq, %arg1, %c0_i32 : i32
    %1 = arith.extui %0 : i1 to i32
    %c0_i32_0 = arith.constant 0 : i32
    %2 = arith.cmpi ne, %1, %c0_i32_0 : i32
    scf.if %2 {
      %c0_13 = arith.constant 0 : index
      %c0_14 = arith.constant 0 : index
      %26 = vector.load %arg2[%c0_13, %c0_14] : memref<16x32xbf16, #tpu.memory_space<vmem>>, vector<16x32xbf16>
      %c0_15 = arith.constant 0 : index
      %c0_16 = arith.constant 0 : index
      %27 = vector.load %arg4[%c0_15, %c0_16] : memref<32x32xbf16, #tpu.memory_space<vmem>>, vector<32x32xbf16>
      %cst_17 = arith.constant dense<0.000000e+00> : vector<16x32xf32>
      %28 = tpu.matmul %26, %27, %cst_17 {dimension_numbers = #tpu.dot_dimension_numbers<[1], [0], [0], [1], [0, 0, 1, 1], [], []>} : vector<16x32xbf16>, vector<32x32xbf16>, vector<16x32xf32> -> vector<16x32xf32>
      %c0_18 = arith.constant 0 : index
      %c0_19 = arith.constant 0 : index
      %29 = vector.load %arg8[%c0_18, %c0_19] : memref<16x32xf32, #tpu.memory_space<vmem>>, vector<16x32xf32>
      tpu.vector_store %arg8[%c0_18, %c0_19], %28 {strides = array<i32>} : memref<16x32xf32, #tpu.memory_space<vmem>>, vector<16x32xf32>,
    } else {
    }
    %c0 = arith.constant 0 : index
    %c0_1 = arith.constant 0 : index
    %c0_2 = arith.constant 0 : index
    %3 = vector.load %arg3[%c0, %c0_1, %c0_2] : memref<128x16x32xbf16, #tpu.memory_space<vmem>>, vector<128x16x32xbf16>
    %4 = vector.shape_cast %3 : vector<128x16x32xbf16> to vector<2048x32xbf16>
    %c0_3 = arith.constant 0 : index
    %c0_4 = arith.constant 0 : index
    %5 = vector.load %arg5[%c0_3, %c0_4] : memref<32x32xbf16, #tpu.memory_space<vmem>>, vector<32x32xbf16>
    %cst = arith.constant dense<0.000000e+00> : vector<2048x32xf32>
    %6 = tpu.matmul %4, %5, %cst {dimension_numbers = #tpu.dot_dimension_numbers<[1], [0], [0], [1], [0, 0, 1, 1], [], []>} : vector<2048x32xbf16>, vector<32x32xbf16>, vector<2048x32xf32> -> vector<2048x32xf32>
    %7 = vector.shape_cast %6 : vector<2048x32xf32> to vector<128x16x32xf32>
    %c0_5 = arith.constant 0 : index
    %c0_6 = arith.constant 0 : index
    %8 = vector.load %arg8[%c0_5, %c0_6] : memref<16x32xf32, #tpu.memory_space<vmem>>, vector<16x32xf32>
    %9 = vector.shape_cast %8 : vector<16x32xf32> to vector<1x16x32xf32>
    %10 = vector.broadcast %9 : vector<1x16x32xf32> to vector<128x16x32xf32>
    %11 = arith.addf %7, %10 : vector<128x16x32xf32>
    %12 = math.tanh %11 : vector<128x16x32xf32>
    %c0_7 = arith.constant 0 : index
    %c0_8 = arith.constant 0 : index
    %13 = vector.load %arg6[%c0_7, %c0_8] : memref<1x32xbf16, #tpu.memory_space<vmem>>, vector<1x32xbf16>
    %14 = arith.extf %13 : vector<1x32xbf16> to vector<1x32xf32>
    %15 = vector.shape_cast %14 : vector<1x32xf32> to vector<1x1x32xf32>
    %16 = vector.broadcast %15 : vector<1x1x32xf32> to vector<128x16x32xf32>
    %17 = arith.mulf %12, %16 : vector<128x16x32xf32>
    %cst_9 = arith.constant dense<0.000000e+00> : vector<128x16xf32>
    %18 = vector.multi_reduction <add>, %17, %cst_9 [2] : vector<128x16x32xf32> to vector<128x16xf32>
    %c128_i32 = arith.constant 128 : i32
    %19 = arith.muli %arg1, %c128_i32 : i32
    %20 = tpu.assume_multiple %19, 128 : i32
    %21 = arith.index_cast %20 : i32 to index
    %c0_10 = arith.constant 0 : index
    %22 = vector.load %arg9[%21, %c0_10] : memref<128x16xf32, #tpu.memory_space<vmem>>, vector<128x16xf32>
    tpu.vector_store %arg9[%21, %c0_10], %18 {strides = array<i32>} : memref<128x16xf32, #tpu.memory_space<vmem>>, vector<128x16xf32>,
    %c0_i32_11 = arith.constant 0 : i32
    %23 = arith.cmpi eq, %arg1, %c0_i32_11 : i32
    %24 = arith.extui %23 : i1 to i32
    %c0_i32_12 = arith.constant 0 : i32
    %25 = arith.cmpi ne, %24, %c0_i32_12 : i32
    scf.if %25 {
      %c0_13 = arith.constant 0 : index
      %c0_14 = arith.constant 0 : index
      %26 = vector.load %arg9[%c0_13, %c0_14] : memref<128x16xf32, #tpu.memory_space<vmem>>, vector<128x16xf32>
      %27 = tpu.transpose %26, [1, 0] : vector<128x16xf32> -> vector<16x128xf32>
      %28 = tpu.iota {dimensions = array<i32: 1>} : vector<16x128xi32>
      %c8_i32 = arith.constant 8 : i32
      %29 = vector.broadcast %c8_i32 : i32 to vector<16x128xi32>
      %30 = arith.cmpi slt, %28, %29 : vector<16x128xi32>
      %cst_15 = arith.constant -1.000000e+30 : f32
      %31 = vector.broadcast %cst_15 : f32 to vector<16x128xf32>
      %32 = arith.select %30, %27, %31 : vector<16x128xi1>, vector<16x128xf32>
      %cst_16 = arith.constant dense<0xFF800000> : vector<16xf32>
      %33 = vector.multi_reduction <maximumf>, %32, %cst_16 [1] : vector<16x128xf32> to vector<16xf32>
      %34 = vector.shape_cast %33 : vector<16xf32> to vector<16x1xf32>
      %35 = vector.broadcast %34 : vector<16x1xf32> to vector<16x128xf32>
      %36 = arith.subf %32, %35 : vector<16x128xf32>
      %37 = math.exp %36 : vector<16x128xf32>
      %cst_17 = arith.constant dense<0.000000e+00> : vector<16xf32>
      %38 = vector.multi_reduction <add>, %37, %cst_17 [1] : vector<16x128xf32> to vector<16xf32>
      %39 = vector.shape_cast %38 : vector<16xf32> to vector<16x1xf32>
      %40 = vector.broadcast %39 : vector<16x1xf32> to vector<16x128xf32>
      %41 = arith.divf %37, %40 : vector<16x128xf32>
      %c0_18 = arith.constant 0 : index
      %c0_19 = arith.constant 0 : index
      %42 = vector.load %arg7[%c0_18, %c0_19] : memref<16x128xf32, #tpu.memory_space<vmem>>, vector<16x128xf32>
      tpu.vector_store %arg7[%c0_18, %c0_19], %41 {strides = array<i32>} : memref<16x128xf32, #tpu.memory_space<vmem>>, vector<16x128xf32>,
    } else {
    }
    return
  }
  func.func @transform_0(%arg0: i32, %arg1: i32) -> (i32, i32) {
    %c0_i32 = arith.constant 0 : i32
    %c0_i32_0 = arith.constant 0 : i32
    return %arg0, %c0_i32 : i32, i32
  }
  func.func @transform_1(%arg0: i32, %arg1: i32) -> (i32, i32, i32) {
    %c0_i32 = arith.constant 0 : i32
    %c0_i32_0 = arith.constant 0 : i32
    return %arg1, %arg0, %c0_i32 : i32, i32, i32
  }
  func.func @transform_2(%arg0: i32, %arg1: i32) -> (i32, i32) {
    %c0_i32 = arith.constant 0 : i32
    %c0_i32_0 = arith.constant 0 : i32
    %c0_i32_1 = arith.constant 0 : i32
    return %c0_i32, %c0_i32_0 : i32, i32
  }
  func.func @transform_3(%arg0: i32, %arg1: i32) -> (i32, i32) {
    %c0_i32 = arith.constant 0 : i32
    %c0_i32_0 = arith.constant 0 : i32
    %c0_i32_1 = arith.constant 0 : i32
    return %c0_i32, %c0_i32_0 : i32, i32
  }
  func.func @transform_4(%arg0: i32, %arg1: i32) -> (i32, i32) {
    %c0_i32 = arith.constant 0 : i32
    %c0_i32_0 = arith.constant 0 : i32
    %c0_i32_1 = arith.constant 0 : i32
    return %c0_i32, %c0_i32_0 : i32, i32
  }
  func.func @transform_5(%arg0: i32, %arg1: i32) -> (i32, i32) {
    %c0_i32 = arith.constant 0 : i32
    %c0_i32_0 = arith.constant 0 : i32
    return %arg0, %c0_i32 : i32, i32
  }
}

module attributes {stable_mosaic.version = 11 : i64} {
  func.func @_attention_kernel(%arg0: i32, %arg1: i32, %arg2: memref<16x32xbf16, #tpu.memory_space<vmem>>, %arg3: memref<128x16x32xbf16, #tpu.memory_space<vmem>>, %arg4: memref<32x32xbf16, #tpu.memory_space<vmem>>, %arg5: memref<32x32xbf16, #tpu.memory_space<vmem>>, %arg6: memref<1x32xbf16, #tpu.memory_space<vmem>>, %arg7: memref<16x128xf32, #tpu.memory_space<vmem>>, %arg8: memref<16x32xf32, #tpu.memory_space<vmem>>, %arg9: memref<128x16xf32, #tpu.memory_space<vmem>>) attributes {dimension_semantics = [#tpu.dimension_semantics<parallel>, #tpu.dimension_semantics<arbitrary>], iteration_bounds = array<i64: 1, 1>, scalar_prefetch = 0 : i64, scratch_operands = 2 : i64, tpu.core_type = #tpu.core_type<tc>, window_params = [{transform_indices = @transform_0, window_bounds = array<i64: 16, 32>}, {transform_indices = @transform_1, window_bounds = array<i64: 128, 16, 32>}, {pipeline_mode = #tpu.pipeline_mode<synchronous>, transform_indices = @transform_2, window_bounds = array<i64: 32, 32>}, {pipeline_mode = #tpu.pipeline_mode<synchronous>, transform_indices = @transform_3, window_bounds = array<i64: 32, 32>}, {pipeline_mode = #tpu.pipeline_mode<synchronous>, transform_indices = @transform_4, window_bounds = array<i64: 1, 32>}, {transform_indices = @transform_5, window_bounds = array<i64: 16, 128>}]} {
    %c0_i32 = arith.constant 0 : i32
    %0 = arith.cmpi eq, %arg1, %c0_i32 : i32
    %1 = arith.extui %0 : i1 to i32
    %c0_i32_0 = arith.constant 0 : i32
    %2 = arith.cmpi ne, %1, %c0_i32_0 : i32
    scf.if %2 {
      %c0_13 = arith.constant 0 : index
      %c0_14 = arith.constant 0 : index
      %26 = vector.load %arg2[%c0_13, %c0_14] : memref<16x32xbf16, #tpu.memory_space<vmem>>, vector<16x32xbf16>
      %c0_15 = arith.constant 0 : index
      %c0_16 = arith.constant 0 : index
      %27 = vector.load %arg4[%c0_15, %c0_16] : memref<32x32xbf16, #tpu.memory_space<vmem>>, vector<32x32xbf16>
      %cst_17 = arith.constant dense<0.000000e+00> : vector<16x32xf32>
      %28 = tpu.matmul %26, %27, %cst_17 {dimension_numbers = #tpu.dot_dimension_numbers<[1], [0], [0], [1], [0, 0, 1, 1], [], []>} : vector<16x32xbf16>, vector<32x32xbf16>, vector<16x32xf32> -> vector<16x32xf32>
      %c0_18 = arith.constant 0 : index
      %c0_19 = arith.constant 0 : index
      %29 = vector.load %arg8[%c0_18, %c0_19] : memref<16x32xf32, #tpu.memory_space<vmem>>, vector<16x32xf32>
      tpu.vector_store %arg8[%c0_18, %c0_19], %28 {strides = array<i32>} : memref<16x32xf32, #tpu.memory_space<vmem>>, vector<16x32xf32>,
    } else {
    }
    %c0 = arith.constant 0 : index
    %c0_1 = arith.constant 0 : index
    %c0_2 = arith.constant 0 : index
    %3 = vector.load %arg3[%c0, %c0_1, %c0_2] : memref<128x16x32xbf16, #tpu.memory_space<vmem>>, vector<128x16x32xbf16>
    %4 = vector.shape_cast %3 : vector<128x16x32xbf16> to vector<2048x32xbf16>
    %c0_3 = arith.constant 0 : index
    %c0_4 = arith.constant 0 : index
    %5 = vector.load %arg5[%c0_3, %c0_4] : memref<32x32xbf16, #tpu.memory_space<vmem>>, vector<32x32xbf16>
    %cst = arith.constant dense<0.000000e+00> : vector<2048x32xf32>
    %6 = tpu.matmul %4, %5, %cst {dimension_numbers = #tpu.dot_dimension_numbers<[1], [0], [0], [1], [0, 0, 1, 1], [], []>} : vector<2048x32xbf16>, vector<32x32xbf16>, vector<2048x32xf32> -> vector<2048x32xf32>
    %7 = vector.shape_cast %6 : vector<2048x32xf32> to vector<128x16x32xf32>
    %c0_5 = arith.constant 0 : index
    %c0_6 = arith.constant 0 : index
    %8 = vector.load %arg8[%c0_5, %c0_6] : memref<16x32xf32, #tpu.memory_space<vmem>>, vector<16x32xf32>
    %9 = vector.shape_cast %8 : vector<16x32xf32> to vector<1x16x32xf32>
    %10 = vector.broadcast %9 : vector<1x16x32xf32> to vector<128x16x32xf32>
    %11 = arith.addf %7, %10 : vector<128x16x32xf32>
    %12 = math.tanh %11 : vector<128x16x32xf32>
    %c0_7 = arith.constant 0 : index
    %c0_8 = arith.constant 0 : index
    %13 = vector.load %arg6[%c0_7, %c0_8] : memref<1x32xbf16, #tpu.memory_space<vmem>>, vector<1x32xbf16>
    %14 = arith.extf %13 : vector<1x32xbf16> to vector<1x32xf32>
    %15 = vector.shape_cast %14 : vector<1x32xf32> to vector<1x1x32xf32>
    %16 = vector.broadcast %15 : vector<1x1x32xf32> to vector<128x16x32xf32>
    %17 = arith.mulf %12, %16 : vector<128x16x32xf32>
    %cst_9 = arith.constant dense<0.000000e+00> : vector<128x16xf32>
    %18 = vector.multi_reduction <add>, %17, %cst_9 [2] : vector<128x16x32xf32> to vector<128x16xf32>
    %c128_i32 = arith.constant 128 : i32
    %19 = arith.muli %arg1, %c128_i32 : i32
    %20 = tpu.assume_multiple %19, 128 : i32
    %21 = arith.index_cast %20 : i32 to index
    %c0_10 = arith.constant 0 : index
    %22 = vector.load %arg9[%21, %c0_10] : memref<128x16xf32, #tpu.memory_space<vmem>>, vector<128x16xf32>
    tpu.vector_store %arg9[%21, %c0_10], %18 {strides = array<i32>} : memref<128x16xf32, #tpu.memory_space<vmem>>, vector<128x16xf32>,
    %c0_i32_11 = arith.constant 0 : i32
    %23 = arith.cmpi eq, %arg1, %c0_i32_11 : i32
    %24 = arith.extui %23 : i1 to i32
    %c0_i32_12 = arith.constant 0 : i32
    %25 = arith.cmpi ne, %24, %c0_i32_12 : i32
    scf.if %25 {
      %c0_13 = arith.constant 0 : index
      %c0_14 = arith.constant 0 : index
      %26 = vector.load %arg9[%c0_13, %c0_14] : memref<128x16xf32, #tpu.memory_space<vmem>>, vector<128x16xf32>
      %27 = tpu.transpose %26, [1, 0] : vector<128x16xf32> -> vector<16x128xf32>
      %28 = tpu.iota {dimensions = array<i32: 1>} : vector<16x128xi32>
      %c8_i32 = arith.constant 8 : i32
      %29 = vector.broadcast %c8_i32 : i32 to vector<16x128xi32>
      %30 = arith.cmpi slt, %28, %29 : vector<16x128xi32>
      %cst_15 = arith.constant -1.000000e+30 : f32
      %31 = vector.broadcast %cst_15 : f32 to vector<16x128xf32>
      %32 = arith.select %30, %27, %31 : vector<16x128xi1>, vector<16x128xf32>
      %cst_16 = arith.constant dense<0xFF800000> : vector<16xf32>
      %33 = vector.multi_reduction <maximumf>, %32, %cst_16 [1] : vector<16x128xf32> to vector<16xf32>
      %34 = vector.shape_cast %33 : vector<16xf32> to vector<16x1xf32>
      %35 = vector.broadcast %34 : vector<16x1xf32> to vector<16x128xf32>
      %36 = arith.subf %32, %35 : vector<16x128xf32>
      %37 = math.exp %36 : vector<16x128xf32>
      %cst_17 = arith.constant dense<0.000000e+00> : vector<16xf32>
      %38 = vector.multi_reduction <add>, %37, %cst_17 [1] : vector<16x128xf32> to vector<16xf32>
      %39 = vector.shape_cast %38 : vector<16xf32> to vector<16x1xf32>
      %40 = vector.broadcast %39 : vector<16x1xf32> to vector<16x128xf32>
      %41 = arith.divf %37, %40 : vector<16x128xf32>
      %c0_18 = arith.constant 0 : index
      %c0_19 = arith.constant 0 : index
      %42 = vector.load %arg7[%c0_18, %c0_19] : memref<16x128xf32, #tpu.memory_space<vmem>>, vector<16x128xf32>
      tpu.vector_store %arg7[%c0_18, %c0_19], %41 {strides = array<i32>} : memref<16x128xf32, #tpu.memory_space<vmem>>, vector<16x128xf32>,
    } else {
    }
    return
  }
  func.func @transform_0(%arg0: i32, %arg1: i32) -> (i32, i32) {
    %c0_i32 = arith.constant 0 : i32
    %c0_i32_0 = arith.constant 0 : i32
    return %arg0, %c0_i32 : i32, i32
  }
  func.func @transform_1(%arg0: i32, %arg1: i32) -> (i32, i32, i32) {
    %c0_i32 = arith.constant 0 : i32
    %c0_i32_0 = arith.constant 0 : i32
    return %arg1, %arg0, %c0_i32 : i32, i32, i32
  }
  func.func @transform_2(%arg0: i32, %arg1: i32) -> (i32, i32) {
    %c0_i32 = arith.constant 0 : i32
    %c0_i32_0 = arith.constant 0 : i32
    %c0_i32_1 = arith.constant 0 : i32
    return %c0_i32, %c0_i32_0 : i32, i32
  }
  func.func @transform_3(%arg0: i32, %arg1: i32) -> (i32, i32) {
    %c0_i32 = arith.constant 0 : i32
    %c0_i32_0 = arith.constant 0 : i32
    %c0_i32_1 = arith.constant 0 : i32
    return %c0_i32, %c0_i32_0 : i32, i32
  }
  func.func @transform_4(%arg0: i32, %arg1: i32) -> (i32, i32) {
    %c0_i32 = arith.constant 0 : i32
    %c0_i32_0 = arith.constant 0 : i32
    %c0_i32_1 = arith.constant 0 : i32
    return %c0_i32, %c0_i32_0 : i32, i32
  }
  func.func @transform_5(%arg0: i32, %arg1: i32) -> (i32, i32) {
    %c0_i32 = arith.constant 0 : i32
    %c0_i32_0 = arith.constant 0 : i32
    return %arg0, %c0_i32 : i32, i32
  }
}

</mosaic_0001>

<llo_original>
// kernel: tpu_custom_call.1
$region0: #{tpu_custom_call.1}
  #allocation0 [shape = 'u32[]', space=smem, size = 0x4, offset = 0x4, fixed_abs, tag = 'smem constant byte address 0x4 - core index']
  #allocation1 [shape = 'u32[144,128]{1,0:T(1,128)}', space=vmem, size = 0x12000, scoped, tag = 'internal scratch']
  #allocation2 [shape = 'f32[16,32]{1,0:T(8,128)}', space=vmem, size = 0x2000, scoped, tag = 'scratch operand']
  #allocation3 [shape = 'f32[128,16]{1,0:T(8,128)}', space=vmem, size = 0x10000, scoped, tag = 'scratch operand']
  %s0 = inlined_call_operand.vmem [shape: bf16[16,32], index: 0, kind: input, shape index: {}]
  %s1 = inlined_call_operand.vmem [shape: bf16[128,16,32], index: 1, kind: input, shape index: {}]
  %s2 = inlined_call_operand.vmem [shape: bf16[32,32], index: 2, kind: input, shape index: {}]
  %s3 = inlined_call_operand.vmem [shape: bf16[32,32], index: 3, kind: input, shape index: {}]
  %s4 = inlined_call_operand.vmem [shape: bf16[1,32], index: 4, kind: input, shape index: {}]
  %s5 = inlined_call_operand.hbm [shape: f32[16,128], index: 5, kind: output, shape index: {}]
  %s6 = sld [smem:[#allocation0]]
  $region38: #{tpu_custom_call.1} parent=0
    _
  %s8 = ssub.s32 1, %s6
  %s9 = scalar_select 0, %s8, %s6
  $region1: #{tpu_custom_call.1} parent=0
    #allocation4 [shape = 'u8[8192]{0}', space=vmem, size = 0x2000, scoped, tag = 'output window, operand 0, single buffered']
    #allocation5 [shape = 's32[1]{0}', space=sflag, size = 0x4, scoped, tag = 'scoped memory for tpu_custom_call.1']
    %10 = vsyncpa [#allocation5], 0
    // Predicated region
    $region2: #{tpu_custom_call.1} parent=1 // pred_check
      _
    $region3: #{tpu_custom_call.1} parent=1 // pred_check_branch
      %12 = sbr.rel (0) target = $region5
    $region4: #{tpu_custom_call.1} parent=1 // pred_region
      _
    $region5: #{tpu_custom_call.1} parent=1 // pred_fallthru
      _
    // Predicated region
    $region6: #{tpu_custom_call.1} parent=1 // pred_check
      _
    $region7: #{tpu_custom_call.1} parent=1 // pred_check_branch
      %14 = sbr.rel (0) target = $region9
    $region8: #{tpu_custom_call.1} parent=1 // pred_region
      _
    $region9: #{tpu_custom_call.1} parent=1 // pred_fallthru
      _
    // Predicated region
    $region10: #{tpu_custom_call.1} parent=1 // pred_check
      _
    $region11: #{tpu_custom_call.1} parent=1 // pred_check_branch
      %16 = sbr.rel (0) target = $region13
    $region12: #{tpu_custom_call.1} parent=1 // pred_region
      _
    $region13: #{tpu_custom_call.1} parent=1 // pred_fallthru
      _
    // Predicated region
    $region14: #{tpu_custom_call.1} parent=1 // pred_check
      _
    $region15: #{tpu_custom_call.1} parent=1 // pred_check_branch
      %18 = sbr.rel (0) target = $region17
    $region16: #{tpu_custom_call.1} parent=1 // pred_region
      _
    $region17: #{tpu_custom_call.1} parent=1 // pred_fallthru
      _
    // Predicated region
    $region18: #{tpu_custom_call.1} parent=1 // pred_check
      _
    $region19: #{tpu_custom_call.1} parent=1 // pred_check_branch
      %20 = sbr.rel (0) target = $region21
    $region20: #{tpu_custom_call.1} parent=1 // pred_region
      _
    $region21: #{tpu_custom_call.1} parent=1 // pred_fallthru
      _
    %p22 = scmp.eq.s32.totalorder 0, 0
    // Predicated region
    $region22: #{tpu_custom_call.1} parent=1 // pred_check
      %p23 = pneg %p22
    $region23: #{tpu_custom_call.1} parent=1 // pred_check_branch
      %25 = sbr.rel (%p23) target = $region25
    $region24: #{tpu_custom_call.1} parent=1 // pred_region
      %v26 = vld [vmem:[%s0] sm:$0xf]
      %v27 = vld [vmem:[%s0 + $0x4] sm:$0xf]
      %v28 = vld [vmem:[%s2] sm:$0xf]
      %v29 = vld [vmem:[%s2 + $0x4] sm:$0xf]
      %v30 = vld [vmem:[%s2 + $0x8] sm:$0xf]
      %v31 = vld [vmem:[%s2 + $0xc] sm:$0xf]
      %v34 = vunpack.c.l.b16 %v26
      %v35 = vunpack.c.l.b16 %v27
      %v36 = vpack.c.b16 %v35, %v34
      %v41 = vunpack.c.l.b16 %v28
      %v42 = vunpack.c.l.b16 %v29
      %v43 = vunpack.c.l.b16 %v30
      %v44 = vunpack.c.l.b16 %v31
      %v45 = vpack.c.b16 %v42, %v41
      %v46 = vpack.c.b16 %v44, %v43
      %vm49 = vcmask 261120
      %v51 = vsel %vm49, %v36, 0
      %53 = vmatprep.subr.bf16.mxu0 0
      %54 = vmatpush1.bf16.msra.mxu0 %v45
      %55 = vmatprep.subr.bf16.mxu0 0
      %56 = vmatpush1.bf16.msra.mxu0 %v46
      %57 = vmatprep.subr.bf16.mxu0 0
      %58 = vmatpush1.bf16.msra.mxu0 0
      %59 = vmatprep.subr.bf16.mxu0 0
      %60 = vmatpush1.bf16.msra.mxu0 0
      %61 = vmatprep.subr.bf16.mxu0 0
      %62 = vmatpush1.bf16.msra.mxu0 0
      %63 = vmatprep.subr.bf16.mxu0 0
      %64 = vmatpush1.bf16.msra.mxu0 0
      %65 = vmatprep.subr.bf16.mxu0 0
      %66 = vmatpush1.bf16.msra.mxu0 0
      %67 = vmatprep.subr.bf16.mxu0 0
      %68 = vmatpush1.bf16.msra.mxu0 0
      %69 = vmatprep.subr.bf16.mxu0 0
      %70 = vmatpush1.bf16.msra.mxu0 0
      %71 = vmatprep.subr.bf16.mxu0 0
      %72 = vmatpush1.bf16.msra.mxu0 0
      %73 = vmatprep.subr.bf16.mxu0 0
      %74 = vmatpush1.bf16.msra.mxu0 0
      %75 = vmatprep.subr.bf16.mxu0 0
      %76 = vmatpush1.bf16.msra.mxu0 0
      %77 = vmatprep.subr.bf16.mxu0 0
      %78 = vmatpush1.bf16.msra.mxu0 0
      %79 = vmatprep.subr.bf16.mxu0 0
      %80 = vmatpush1.bf16.msra.mxu0 0
      %81 = vmatprep.subr.bf16.mxu0 0
      %82 = vmatpush1.bf16.msra.mxu0 0
      %83 = vmatprep.subr.bf16.mxu0 0
      %84 = vmatpush1.bf16.msra.mxu0 0
      %85 = vmatprep.mubr.bf16.mxu0 0
      %86 = vmatmul.mubr.bf16.gmra.mrb[0].mxu0 %v51
      %v87 = vpop.f32.mrb[0].mxu0
      %v88 = vadd.f32 0.0, %v87
      %v89 = vpop.f32.mrb[0].mxu0
      %v90 = vpop.f32.mrb[0].mxu0
      %v91 = vadd.f32 0.0, %v90
      %v92 = vpop.f32.mrb[0].mxu0
      %93 = vdwg.mxu0
      %94 = vst.msk [vmem:[#allocation2] sm:$0xff] %vm49, %v88
      %95 = vst.msk [vmem:[#allocation2 + $0x8] sm:$0xff] %vm49, %v91
    $region25: #{tpu_custom_call.1} parent=1 // pred_fallthru
      _
    %v96 = vld [vmem:[%s1] sm:$0xf]
    %v97 = vld [vmem:[%s1 + $0x4] sm:$0xf]
    %v98 = vld [vmem:[%s1 + $0x8] sm:$0xf]
    %v99 = vld [vmem:[%s1 + $0xc] sm:$0xf]
    %v100 = vld [vmem:[%s1 + $0x10] sm:$0xf]
    %v101 = vld [vmem:[%s1 + $0x14] sm:$0xf]
    %v102 = vld [vmem:[%s1 + $0x18] sm:$0xf]
    %v103 = vld [vmem:[%s1 + $0x1c] sm:$0xf]
    %v104 = vld [vmem:[%s1 + $0x20] sm:$0xf]
    %v105 = vld [vmem:[%s1 + $0x24] sm:$0xf]
    %v106 = vld [vmem:[%s1 + $0x28] sm:$0xf]
    %v107 = vld [vmem:[%s1 + $0x2c] sm:$0xf]
    %v108 = vld [vmem:[%s1 + $0x30] sm:$0xf]
    %v109 = vld [vmem:[%s1 + $0x34] sm:$0xf]
    %v110 = vld [vmem:[%s1 + $0x38] sm:$0xf]
    %v111 = vld [vmem:[%s1 + $0x3c] sm:$0xf]
    %v112 = vld [vmem:[%s1 + $0x40] sm:$0xf]
    %v113 = vld [vmem:[%s1 + $0x44] sm:$0xf]
    %v114 = vld [vmem:[%s1 + $0x48] sm:$0xf]
    %v115 = vld [vmem:[%s1 + $0x4c] sm:$0xf]
    %v116 = vld [vmem:[%s1 + $0x50] sm:$0xf]
    %v117 = vld [vmem:[%s1 + $0x54] sm:$0xf]
    %v118 = vld [vmem:[%s1 + $0x58] sm:$0xf]
    %v119 = vld [vmem:[%s1 + $0x5c] sm:$0xf]
    %v120 = vld [vmem:[%s1 + $0x60] sm:$0xf]
    %v121 = vld [vmem:[%s1 + $0x64] sm:$0xf]
    %v122 = vld [vmem:[%s1 + $0x68] sm:$0xf]
    %v123 = vld [vmem:[%s1 + $0x6c] sm:$0xf]
    %v124 = vld [vmem:[%s1 + $0x70] sm:$0xf]
    %v125 = vld [vmem:[%s1 + $0x74] sm:$0xf]
    %v126 = vld [vmem:[%s1 + $0x78] sm:$0xf]
    %v127 = vld [vmem:[%s1 + $0x7c] sm:$0xf]
    %v128 = vld [vmem:[%s1 + $0x80] sm:$0xf]
    %v129 = vld [vmem:[%s1 + $0x84] sm:$0xf]
    %v130 = vld [vmem:[%s1 + $0x88] sm:$0xf]
    %v131 = vld [vmem:[%s1 + $0x8c] sm:$0xf]
    %v132 = vld [vmem:[%s1 + $0x90] sm:$0xf]
    %v133 = vld [vmem:[%s1 + $0x94] sm:$0xf]
    %v134 = vld [vmem:[%s1 + $0x98] sm:$0xf]
    %v135 = vld [vmem:[%s1 + $0x9c] sm:$0xf]
    %v136 = vld [vmem:[%s1 + $0xa0] sm:$0xf]
    %v137 = vld [vmem:[%s1 + $0xa4] sm:$0xf]
    %v138 = vld [vmem:[%s1 + $0xa8] sm:$0xf]
    %v139 = vld [vmem:[%s1 + $0xac] sm:$0xf]
    %v140 = vld [vmem:[%s1 + $0xb0] sm:$0xf]
    %v141 = vld [vmem:[%s1 + $0xb4] sm:$0xf]
    %v142 = vld [vmem:[%s1 + $0xb8] sm:$0xf]
    %v143 = vld [vmem:[%s1 + $0xbc] sm:$0xf]
    %v144 = vld [vmem:[%s1 + $0xc0] sm:$0xf]
    %v145 = vld [vmem:[%s1 + $0xc4] sm:$0xf]
    %v146 = vld [vmem:[%s1 + $0xc8] sm:$0xf]
    %v147 = vld [vmem:[%s1 + $0xcc] sm:$0xf]
    %v148 = vld [vmem:[%s1 + $0xd0] sm:$0xf]
    %v149 = vld [vmem:[%s1 + $0xd4] sm:$0xf]
    %v150 = vld [vmem:[%s1 + $0xd8] sm:$0xf]
    %v151 = vld [vmem:[%s1 + $0xdc] sm:$0xf]
    %v152 = vld [vmem:[%s1 + $0xe0] sm:$0xf]
    %v153 = vld [vmem:[%s1 + $0xe4] sm:$0xf]
    %v154 = vld [vmem:[%s1 + $0xe8] sm:$0xf]
    %v155 = vld [vmem:[%s1 + $0xec] sm:$0xf]
    %v156 = vld [vmem:[%s1 + $0xf0] sm:$0xf]
    %v157 = vld [vmem:[%s1 + $0xf4] sm:$0xf]
    %v158 = vld [vmem:[%s1 + $0xf8] sm:$0xf]
    %v159 = vld [vmem:[%s1 + $0xfc] sm:$0xf]
    %v160 = vld [vmem:[%s1 + $0x100] sm:$0xf]
    %v161 = vld [vmem:[%s1 + $0x104] sm:$0xf]
    %v162 = vld [vmem:[%s1 + $0x108] sm:$0xf]
    %v163 = vld [vmem:[%s1 + $0x10c] sm:$0xf]
    %v164 = vld [vmem:[%s1 + $0x110] sm:$0xf]
    %v165 = vld [vmem:[%s1 + $0x114] sm:$0xf]
    %v166 = vld [vmem:[%s1 + $0x118] sm:$0xf]
    %v167 = vld [vmem:[%s1 + $0x11c] sm:$0xf]
    %v168 = vld [vmem:[%s1 + $0x120] sm:$0xf]
    %v169 = vld [vmem:[%s1 + $0x124] sm:$0xf]
    %v170 = vld [vmem:[%s1 + $0x128] sm:$0xf]
    %v171 = vld [vmem:[%s1 + $0x12c] sm:$0xf]
    %v172 = vld [vmem:[%s1 + $0x130] sm:$0xf]
    %v173 = vld [vmem:[%s1 + $0x134] sm:$0xf]
    %v174 = vld [vmem:[%s1 + $0x138] sm:$0xf]
    %v175 = vld [vmem:[%s1 + $0x13c] sm:$0xf]
    %v176 = vld [vmem:[%s1 + $0x140] sm:$0xf]
    %v177 = vld [vmem:[%s1 + $0x144] sm:$0xf]
    %v178 = vld [vmem:[%s1 + $0x148] sm:$0xf]
    %v179 = vld [vmem:[%s1 + $0x14c] sm:$0xf]
    %v180 = vld [vmem:[%s1 + $0x150] sm:$0xf]
    %v181 = vld [vmem:[%s1 + $0x154] sm:$0xf]
    %v182 = vld [vmem:[%s1 + $0x158] sm:$0xf]
    %v183 = vld [vmem:[%s1 + $0x15c] sm:$0xf]
    %v184 = vld [vmem:[%s1 + $0x160] sm:$0xf]
    %v185 = vld [vmem:[%s1 + $0x164] sm:$0xf]
    %v186 = vld [vmem:[%s1 + $0x168] sm:$0xf]
    %v187 = vld [vmem:[%s1 + $0x16c] sm:$0xf]
    %v188 = vld [vmem:[%s1 + $0x170] sm:$0xf]
    %v189 = vld [vmem:[%s1 + $0x174] sm:$0xf]
    %v190 = vld [vmem:[%s1 + $0x178] sm:$0xf]
    %v191 = vld [vmem:[%s1 + $0x17c] sm:$0xf]
    %v192 = vld [vmem:[%s1 + $0x180] sm:$0xf]
    %v193 = vld [vmem:[%s1 + $0x184] sm:$0xf]
    %v194 = vld [vmem:[%s1 + $0x188] sm:$0xf]
    %v195 = vld [vmem:[%s1 + $0x18c] sm:$0xf]
    %v196 = vld [vmem:[%s1 + $0x190] sm:$0xf]
    %v197 = vld [vmem:[%s1 + $0x194] sm:$0xf]
    %v198 = vld [vmem:[%s1 + $0x198] sm:$0xf]
    %v199 = vld [vmem:[%s1 + $0x19c] sm:$0xf]
    %v200 = vld [vmem:[%s1 + $0x1a0] sm:$0xf]
    %v201 = vld [vmem:[%s1 + $0x1a4] sm:$0xf]
    %v202 = vld [vmem:[%s1 + $0x1a8] sm:$0xf]
    %v203 = vld [vmem:[%s1 + $0x1ac] sm:$0xf]
    %v204 = vld [vmem:[%s1 + $0x1b0] sm:$0xf]
    %v205 = vld [vmem:[%s1 + $0x1b4] sm:$0xf]
    %v206 = vld [vmem:[%s1 + $0x1b8] sm:$0xf]
    %v207 = vld [vmem:[%s1 + $0x1bc] sm:$0xf]
    %v208 = vld [vmem:[%s1 + $0x1c0] sm:$0xf]
    %v209 = vld [vmem:[%s1 + $0x1c4] sm:$0xf]
    %v210 = vld [vmem:[%s1 + $0x1c8] sm:$0xf]
    %v211 = vld [vmem:[%s1 + $0x1cc] sm:$0xf]
    %v212 = vld [vmem:[%s1 + $0x1d0] sm:$0xf]
    %v213 = vld [vmem:[%s1 + $0x1d4] sm:$0xf]
    %v214 = vld [vmem:[%s1 + $0x1d8] sm:$0xf]
    %v215 = vld [vmem:[%s1 + $0x1dc] sm:$0xf]
    %v216 = vld [vmem:[%s1 + $0x1e0] sm:$0xf]
    %v217 = vld [vmem:[%s1 + $0x1e4] sm:$0xf]
    %v218 = vld [vmem:[%s1 + $0x1e8] sm:$0xf]
    %v219 = vld [vmem:[%s1 + $0x1ec] sm:$0xf]
    %v220 = vld [vmem:[%s1 + $0x1f0] sm:$0xf]
    %v221 = vld [vmem:[%s1 + $0x1f4] sm:$0xf]
    %v222 = vld [vmem:[%s1 + $0x1f8] sm:$0xf]
    %v223 = vld [vmem:[%s1 + $0x1fc] sm:$0xf]
    %v224 = vld [vmem:[%s1 + $0x200] sm:$0xf]
    %v225 = vld [vmem:[%s1 + $0x204] sm:$0xf]
    %v226 = vld [vmem:[%s1 + $0x208] sm:$0xf]
    %v227 = vld [vmem:[%s1 + $0x20c] sm:$0xf]
    %v228 = vld [vmem:[%s1 + $0x210] sm:$0xf]
    %v229 = vld [vmem:[%s1 + $0x214] sm:$0xf]
    %v230 = vld [vmem:[%s1 + $0x218] sm:$0xf]
    %v231 = vld [vmem:[%s1 + $0x21c] sm:$0xf]
    %v232 = vld [vmem:[%s1 + $0x220] sm:$0xf]
    %v233 = vld [vmem:[%s1 + $0x224] sm:$0xf]
    %v234 = vld [vmem:[%s1 + $0x228] sm:$0xf]
    %v235 = vld [vmem:[%s1 + $0x22c] sm:$0xf]
    %v236 = vld [vmem:[%s1 + $0x230] sm:$0xf]
    %v237 = vld [vmem:[%s1 + $0x234] sm:$0xf]
    %v238 = vld [vmem:[%s1 + $0x238] sm:$0xf]
    %v239 = vld [vmem:[%s1 + $0x23c] sm:$0xf]
    %v240 = vld [vmem:[%s1 + $0x240] sm:$0xf]
    %v241 = vld [vmem:[%s1 + $0x244] sm:$0xf]
    %v242 = vld [vmem:[%s1 + $0x248] sm:$0xf]
    %v243 = vld [vmem:[%s1 + $0x24c] sm:$0xf]
    %v244 = vld [vmem:[%s1 + $0x250] sm:$0xf]
    %v245 = vld [vmem:[%s1 + $0x254] sm:$0xf]
    %v246 = vld [vmem:[%s1 + $0x258] sm:$0xf]
    %v247 = vld [vmem:[%s1 + $0x25c] sm:$0xf]
    %v248 = vld [vmem:[%s1 + $0x260] sm:$0xf]
    %v249 = vld [vmem:[%s1 + $0x264] sm:$0xf]
    %v250 = vld [vmem:[%s1 + $0x268] sm:$0xf]
    %v251 = vld [vmem:[%s1 + $0x26c] sm:$0xf]
    %v252 = vld [vmem:[%s1 + $0x270] sm:$0xf]
    %v253 = vld [vmem:[%s1 + $0x274] sm:$0xf]
    %v254 = vld [vmem:[%s1 + $0x278] sm:$0xf]
    %v255 = vld [vmem:[%s1 + $0x27c] sm:$0xf]
    %v256 = vld [vmem:[%s1 + $0x280] sm:$0xf]
    %v257 = vld [vmem:[%s1 + $0x284] sm:$0xf]
    %v258 = vld [vmem:[%s1 + $0x288] sm:$0xf]
    %v259 = vld [vmem:[%s1 + $0x28c] sm:$0xf]
    %v260 = vld [vmem:[%s1 + $0x290] sm:$0xf]
    %v261 = vld [vmem:[%s1 + $0x294] sm:$0xf]
    %v262 = vld [vmem:[%s1 + $0x298] sm:$0xf]
    %v263 = vld [vmem:[%s1 + $0x29c] sm:$0xf]
    %v264 = vld [vmem:[%s1 + $0x2a0] sm:$0xf]
    %v265 = vld [vmem:[%s1 + $0x2a4] sm:$0xf]
    %v266 = vld [vmem:[%s1 + $0x2a8] sm:$0xf]
    %v267 = vld [vmem:[%s1 + $0x2ac] sm:$0xf]
    %v268 = vld [vmem:[%s1 + $0x2b0] sm:$0xf]
    %v269 = vld [vmem:[%s1 + $0x2b4] sm:$0xf]
    %v270 = vld [vmem:[%s1 + $0x2b8] sm:$0xf]
    %v271 = vld [vmem:[%s1 + $0x2bc] sm:$0xf]
    %v272 = vld [vmem:[%s1 + $0x2c0] sm:$0xf]
    %v273 = vld [vmem:[%s1 + $0x2c4] sm:$0xf]
    %v274 = vld [vmem:[%s1 + $0x2c8] sm:$0xf]
    %v275 = vld [vmem:[%s1 + $0x2cc] sm:$0xf]
    %v276 = vld [vmem:[%s1 + $0x2d0] sm:$0xf]
    %v277 = vld [vmem:[%s1 + $0x2d4] sm:$0xf]
    %v278 = vld [vmem:[%s1 + $0x2d8] sm:$0xf]
    %v279 = vld [vmem:[%s1 + $0x2dc] sm:$0xf]
    %v280 = vld [vmem:[%s1 + $0x2e0] sm:$0xf]
    %v281 = vld [vmem:[%s1 + $0x2e4] sm:$0xf]
    %v282 = vld [vmem:[%s1 + $0x2e8] sm:$0xf]
    %v283 = vld [vmem:[%s1 + $0x2ec] sm:$0xf]
    %v284 = vld [vmem:[%s1 + $0x2f0] sm:$0xf]
    %v285 = vld [vmem:[%s1 + $0x2f4] sm:$0xf]
    %v286 = vld [vmem:[%s1 + $0x2f8] sm:$0xf]
    %v287 = vld [vmem:[%s1 + $0x2fc] sm:$0xf]
    %v288 = vld [vmem:[%s1 + $0x300] sm:$0xf]
    %v289 = vld [vmem:[%s1 + $0x304] sm:$0xf]
    %v290 = vld [vmem:[%s1 + $0x308] sm:$0xf]
    %v291 = vld [vmem:[%s1 + $0x30c] sm:$0xf]
    %v292 = vld [vmem:[%s1 + $0x310] sm:$0xf]
    %v293 = vld [vmem:[%s1 + $0x314] sm:$0xf]
    %v294 = vld [vmem:[%s1 + $0x318] sm:$0xf]
    %v295 = vld [vmem:[%s1 + $0x31c] sm:$0xf]
    %v296 = vld [vmem:[%s1 + $0x320] sm:$0xf]
    %v297 = vld [vmem:[%s1 + $0x324] sm:$0xf]
    %v298 = vld [vmem:[%s1 + $0x328] sm:$0xf]
    %v299 = vld [vmem:[%s1 + $0x32c] sm:$0xf]
    %v300 = vld [vmem:[%s1 + $0x330] sm:$0xf]
    %v301 = vld [vmem:[%s1 + $0x334] sm:$0xf]
    %v302 = vld [vmem:[%s1 + $0x338] sm:$0xf]
    %v303 = vld [vmem:[%s1 + $0x33c] sm:$0xf]
    %v304 = vld [vmem:[%s1 + $0x340] sm:$0xf]
    %v305 = vld [vmem:[%s1 + $0x344] sm:$0xf]
    %v306 = vld [vmem:[%s1 + $0x348] sm:$0xf]
    %v307 = vld [vmem:[%s1 + $0x34c] sm:$0xf]
    %v308 = vld [vmem:[%s1 + $0x350] sm:$0xf]
    %v309 = vld [vmem:[%s1 + $0x354] sm:$0xf]
    %v310 = vld [vmem:[%s1 + $0x358] sm:$0xf]
    %v311 = vld [vmem:[%s1 + $0x35c] sm:$0xf]
    %v312 = vld [vmem:[%s1 + $0x360] sm:$0xf]
    %v313 = vld [vmem:[%s1 + $0x364] sm:$0xf]
    %v314 = vld [vmem:[%s1 + $0x368] sm:$0xf]
    %v315 = vld [vmem:[%s1 + $0x36c] sm:$0xf]
    %v316 = vld [vmem:[%s1 + $0x370] sm:$0xf]
    %v317 = vld [vmem:[%s1 + $0x374] sm:$0xf]
    %v318 = vld [vmem:[%s1 + $0x378] sm:$0xf]
    %v319 = vld [vmem:[%s1 + $0x37c] sm:$0xf]
    %v320 = vld [vmem:[%s1 + $0x380] sm:$0xf]
    %v321 = vld [vmem:[%s1 + $0x384] sm:$0xf]
    %v322 = vld [vmem:[%s1 + $0x388] sm:$0xf]
    %v323 = vld [vmem:[%s1 + $0x38c] sm:$0xf]
    %v324 = vld [vmem:[%s1 + $0x390] sm:$0xf]
    %v325 = vld [vmem:[%s1 + $0x394] sm:$0xf]
    %v326 = vld [vmem:[%s1 + $0x398] sm:$0xf]
    %v327 = vld [vmem:[%s1 + $0x39c] sm:$0xf]
    %v328 = vld [vmem:[%s1 + $0x3a0] sm:$0xf]
    %v329 = vld [vmem:[%s1 + $0x3a4] sm:$0xf]
    %v330 = vld [vmem:[%s1 + $0x3a8] sm:$0xf]
    %v331 = vld [vmem:[%s1 + $0x3ac] sm:$0xf]
    %v332 = vld [vmem:[%s1 + $0x3b0] sm:$0xf]
    %v333 = vld [vmem:[%s1 + $0x3b4] sm:$0xf]
    %v334 = vld [vmem:[%s1 + $0x3b8] sm:$0xf]
    %v335 = vld [vmem:[%s1 + $0x3bc] sm:$0xf]
    %v336 = vld [vmem:[%s1 + $0x3c0] sm:$0xf]
    %v337 = vld [vmem:[%s1 + $0x3c4] sm:$0xf]
    %v338 = vld [vmem:[%s1 + $0x3c8] sm:$0xf]
    %v339 = vld [vmem:[%s1 + $0x3cc] sm:$0xf]
    %v340 = vld [vmem:[%s1 + $0x3d0] sm:$0xf]
    %v341 = vld [vmem:[%s1 + $0x3d4] sm:$0xf]
    %v342 = vld [vmem:[%s1 + $0x3d8] sm:$0xf]
    %v343 = vld [vmem:[%s1 + $0x3dc] sm:$0xf]
    %v344 = vld [vmem:[%s1 + $0x3e0] sm:$0xf]
    %v345 = vld [vmem:[%s1 + $0x3e4] sm:$0xf]
    %v346 = vld [vmem:[%s1 + $0x3e8] sm:$0xf]
    %v347 = vld [vmem:[%s1 + $0x3ec] sm:$0xf]
    %v348 = vld [vmem:[%s1 + $0x3f0] sm:$0xf]
    %v349 = vld [vmem:[%s1 + $0x3f4] sm:$0xf]
    %v350 = vld [vmem:[%s1 + $0x3f8] sm:$0xf]
    %v351 = vld [vmem:[%s1 + $0x3fc] sm:$0xf]
    %v352 = vld [vmem:[%s3] sm:$0xf]
    %v353 = vld [vmem:[%s3 + $0x4] sm:$0xf]
    %v354 = vld [vmem:[%s3 + $0x8] sm:$0xf]
    %v355 = vld [vmem:[%s3 + $0xc] sm:$0xf]
    %v612 = vunpack.c.l.b16 %v96
    %v613 = vunpack.c.l.b16 %v97
    %v614 = vunpack.c.l.b16 %v98
    %v615 = vunpack.c.l.b16 %v99
    %v616 = vunpack.c.l.b16 %v100
    %v617 = vunpack.c.l.b16 %v101
    %v618 = vunpack.c.l.b16 %v102
    %v619 = vunpack.c.l.b16 %v103
    %v620 = vunpack.c.l.b16 %v104
    %v621 = vunpack.c.l.b16 %v105
    %v622 = vunpack.c.l.b16 %v106
    %v623 = vunpack.c.l.b16 %v107
    %v624 = vunpack.c.l.b16 %v108
    %v625 = vunpack.c.l.b16 %v109
    %v626 = vunpack.c.l.b16 %v110
    %v627 = vunpack.c.l.b16 %v111
    %v628 = vunpack.c.l.b16 %v112
    %v629 = vunpack.c.l.b16 %v113
    %v630 = vunpack.c.l.b16 %v114
    %v631 = vunpack.c.l.b16 %v115
    %v632 = vunpack.c.l.b16 %v116
    %v633 = vunpack.c.l.b16 %v117
    %v634 = vunpack.c.l.b16 %v118
    %v635 = vunpack.c.l.b16 %v119
    %v636 = vunpack.c.l.b16 %v120
    %v637 = vunpack.c.l.b16 %v121
    %v638 = vunpack.c.l.b16 %v122
    %v639 = vunpack.c.l.b16 %v123
    %v640 = vunpack.c.l.b16 %v124
    %v641 = vunpack.c.l.b16 %v125
    %v642 = vunpack.c.l.b16 %v126
    %v643 = vunpack.c.l.b16 %v127
    %v644 = vunpack.c.l.b16 %v128
    %v645 = vunpack.c.l.b16 %v129
    %v646 = vunpack.c.l.b16 %v130
    %v647 = vunpack.c.l.b16 %v131
    %v648 = vunpack.c.l.b16 %v132
    %v649 = vunpack.c.l.b16 %v133
    %v650 = vunpack.c.l.b16 %v134
    %v651 = vunpack.c.l.b16 %v135
    %v652 = vunpack.c.l.b16 %v136
    %v653 = vunpack.c.l.b16 %v137
    %v654 = vunpack.c.l.b16 %v138
    %v655 = vunpack.c.l.b16 %v139
    %v656 = vunpack.c.l.b16 %v140
    %v657 = vunpack.c.l.b16 %v141
    %v658 = vunpack.c.l.b16 %v142
    %v659 = vunpack.c.l.b16 %v143
    %v660 = vunpack.c.l.b16 %v144
    %v661 = vunpack.c.l.b16 %v145
    %v662 = vunpack.c.l.b16 %v146
    %v663 = vunpack.c.l.b16 %v147
    %v664 = vunpack.c.l.b16 %v148
    %v665 = vunpack.c.l.b16 %v149
    %v666 = vunpack.c.l.b16 %v150
    %v667 = vunpack.c.l.b16 %v151
    %v668 = vunpack.c.l.b16 %v152
    %v669 = vunpack.c.l.b16 %v153
    %v670 = vunpack.c.l.b16 %v154
    %v671 = vunpack.c.l.b16 %v155
    %v672 = vunpack.c.l.b16 %v156
    %v673 = vunpack.c.l.b16 %v157
    %v674 = vunpack.c.l.b16 %v158
    %v675 = vunpack.c.l.b16 %v159
    %v676 = vunpack.c.l.b16 %v160
    %v677 = vunpack.c.l.b16 %v161
    %v678 = vunpack.c.l.b16 %v162
    %v679 = vunpack.c.l.b16 %v163
    %v680 = vunpack.c.l.b16 %v164
    %v681 = vunpack.c.l.b16 %v165
    %v682 = vunpack.c.l.b16 %v166
    %v683 = vunpack.c.l.b16 %v167
    %v684 = vunpack.c.l.b16 %v168
    %v685 = vunpack.c.l.b16 %v169
    %v686 = vunpack.c.l.b16 %v170
    %v687 = vunpack.c.l.b16 %v171
    %v688 = vunpack.c.l.b16 %v172
    %v689 = vunpack.c.l.b16 %v173
    %v690 = vunpack.c.l.b16 %v174
    %v691 = vunpack.c.l.b16 %v175
    %v692 = vunpack.c.l.b16 %v176
    %v693 = vunpack.c.l.b16 %v177
    %v694 = vunpack.c.l.b16 %v178
    %v695 = vunpack.c.l.b16 %v179
    %v696 = vunpack.c.l.b16 %v180
    %v697 = vunpack.c.l.b16 %v181
    %v698 = vunpack.c.l.b16 %v182
    %v699 = vunpack.c.l.b16 %v183
    %v700 = vunpack.c.l.b16 %v184
    %v701 = vunpack.c.l.b16 %v185
    %v702 = vunpack.c.l.b16 %v186
    %v703 = vunpack.c.l.b16 %v187
    %v704 = vunpack.c.l.b16 %v188
    %v705 = vunpack.c.l.b16 %v189
    %v706 = vunpack.c.l.b16 %v190
    %v707 = vunpack.c.l.b16 %v191
    %v708 = vunpack.c.l.b16 %v192
    %v709 = vunpack.c.l.b16 %v193
    %v710 = vunpack.c.l.b16 %v194
    %v711 = vunpack.c.l.b16 %v195
    %v712 = vunpack.c.l.b16 %v196
    %v713 = vunpack.c.l.b16 %v197
    %v714 = vunpack.c.l.b16 %v198
    %v715 = vunpack.c.l.b16 %v199
    %v716 = vunpack.c.l.b16 %v200
    %v717 = vunpack.c.l.b16 %v201
    %v718 = vunpack.c.l.b16 %v202
    %v719 = vunpack.c.l.b16 %v203
    %v720 = vunpack.c.l.b16 %v204
    %v721 = vunpack.c.l.b16 %v205
    %v722 = vunpack.c.l.b16 %v206
    %v723 = vunpack.c.l.b16 %v207
    %v724 = vunpack.c.l.b16 %v208
    %v725 = vunpack.c.l.b16 %v209
    %v726 = vunpack.c.l.b16 %v210
    %v727 = vunpack.c.l.b16 %v211
    %v728 = vunpack.c.l.b16 %v212
    %v729 = vunpack.c.l.b16 %v213
    %v730 = vunpack.c.l.b16 %v214
    %v731 = vunpack.c.l.b16 %v215
    %v732 = vunpack.c.l.b16 %v216
    %v733 = vunpack.c.l.b16 %v217
    %v734 = vunpack.c.l.b16 %v218
    %v735 = vunpack.c.l.b16 %v219
    %v736 = vunpack.c.l.b16 %v220
    %v737 = vunpack.c.l.b16 %v221
    %v738 = vunpack.c.l.b16 %v222
    %v739 = vunpack.c.l.b16 %v223
    %v740 = vunpack.c.l.b16 %v224
    %v741 = vunpack.c.l.b16 %v225
    %v742 = vunpack.c.l.b16 %v226
    %v743 = vunpack.c.l.b16 %v227
    %v744 = vunpack.c.l.b16 %v228
    %v745 = vunpack.c.l.b16 %v229
    %v746 = vunpack.c.l.b16 %v230
    %v747 = vunpack.c.l.b16 %v231
    %v748 = vunpack.c.l.b16 %v232
    %v749 = vunpack.c.l.b16 %v233
    %v750 = vunpack.c.l.b16 %v234
    %v751 = vunpack.c.l.b16 %v235
    %v752 = vunpack.c.l.b16 %v236
    %v753 = vunpack.c.l.b16 %v237
    %v754 = vunpack.c.l.b16 %v238
    %v755 = vunpack.c.l.b16 %v239
    %v756 = vunpack.c.l.b16 %v240
    %v757 = vunpack.c.l.b16 %v241
    %v758 = vunpack.c.l.b16 %v242
    %v759 = vunpack.c.l.b16 %v243
    %v760 = vunpack.c.l.b16 %v244
    %v761 = vunpack.c.l.b16 %v245
    %v762 = vunpack.c.l.b16 %v246
    %v763 = vunpack.c.l.b16 %v247
    %v764 = vunpack.c.l.b16 %v248
    %v765 = vunpack.c.l.b16 %v249
    %v766 = vunpack.c.l.b16 %v250
    %v767 = vunpack.c.l.b16 %v251
    %v768 = vunpack.c.l.b16 %v252
    %v769 = vunpack.c.l.b16 %v253
    %v770 = vunpack.c.l.b16 %v254
    %v771 = vunpack.c.l.b16 %v255
    %v772 = vunpack.c.l.b16 %v256
    %v773 = vunpack.c.l.b16 %v257
    %v774 = vunpack.c.l.b16 %v258
    %v775 = vunpack.c.l.b16 %v259
    %v776 = vunpack.c.l.b16 %v260
    %v777 = vunpack.c.l.b16 %v261
    %v778 = vunpack.c.l.b16 %v262
    %v779 = vunpack.c.l.b16 %v263
    %v780 = vunpack.c.l.b16 %v264
    %v781 = vunpack.c.l.b16 %v265
    %v782 = vunpack.c.l.b16 %v266
    %v783 = vunpack.c.l.b16 %v267
    %v784 = vunpack.c.l.b16 %v268
    %v785 = vunpack.c.l.b16 %v269
    %v786 = vunpack.c.l.b16 %v270
    %v787 = vunpack.c.l.b16 %v271
    %v788 = vunpack.c.l.b16 %v272
    %v789 = vunpack.c.l.b16 %v273
    %v790 = vunpack.c.l.b16 %v274
    %v791 = vunpack.c.l.b16 %v275
    %v792 = vunpack.c.l.b16 %v276
    %v793 = vunpack.c.l.b16 %v277
    %v794 = vunpack.c.l.b16 %v278
    %v795 = vunpack.c.l.b16 %v279
    %v796 = vunpack.c.l.b16 %v280
    %v797 = vunpack.c.l.b16 %v281
    %v798 = vunpack.c.l.b16 %v282
    %v799 = vunpack.c.l.b16 %v283
    %v800 = vunpack.c.l.b16 %v284
    %v801 = vunpack.c.l.b16 %v285
    %v802 = vunpack.c.l.b16 %v286
    %v803 = vunpack.c.l.b16 %v287
    %v804 = vunpack.c.l.b16 %v288
    %v805 = vunpack.c.l.b16 %v289
    %v806 = vunpack.c.l.b16 %v290
    %v807 = vunpack.c.l.b16 %v291
    %v808 = vunpack.c.l.b16 %v292
    %v809 = vunpack.c.l.b16 %v293
    %v810 = vunpack.c.l.b16 %v294
    %v811 = vunpack.c.l.b16 %v295
    %v812 = vunpack.c.l.b16 %v296
    %v813 = vunpack.c.l.b16 %v297
    %v814 = vunpack.c.l.b16 %v298
    %v815 = vunpack.c.l.b16 %v299
    %v816 = vunpack.c.l.b16 %v300
    %v817 = vunpack.c.l.b16 %v301
    %v818 = vunpack.c.l.b16 %v302
    %v819 = vunpack.c.l.b16 %v303
    %v820 = vunpack.c.l.b16 %v304
    %v821 = vunpack.c.l.b16 %v305
    %v822 = vunpack.c.l.b16 %v306
    %v823 = vunpack.c.l.b16 %v307
    %v824 = vunpack.c.l.b16 %v308
    %v825 = vunpack.c.l.b16 %v309
    %v826 = vunpack.c.l.b16 %v310
    %v827 = vunpack.c.l.b16 %v311
    %v828 = vunpack.c.l.b16 %v312
    %v829 = vunpack.c.l.b16 %v313
    %v830 = vunpack.c.l.b16 %v314
    %v831 = vunpack.c.l.b16 %v315
    %v832 = vunpack.c.l.b16 %v316
    %v833 = vunpack.c.l.b16 %v317
    %v834 = vunpack.c.l.b16 %v318
    %v835 = vunpack.c.l.b16 %v319
    %v836 = vunpack.c.l.b16 %v320
    %v837 = vunpack.c.l.b16 %v321
    %v838 = vunpack.c.l.b16 %v322
    %v839 = vunpack.c.l.b16 %v323
    %v840 = vunpack.c.l.b16 %v324
    %v841 = vunpack.c.l.b16 %v325
    %v842 = vunpack.c.l.b16 %v326
    %v843 = vunpack.c.l.b16 %v327
    %v844 = vunpack.c.l.b16 %v328
    %v845 = vunpack.c.l.b16 %v329
    %v846 = vunpack.c.l.b16 %v330
    %v847 = vunpack.c.l.b16 %v331
    %v848 = vunpack.c.l.b16 %v332
    %v849 = vunpack.c.l.b16 %v333
    %v850 = vunpack.c.l.b16 %v334
    %v851 = vunpack.c.l.b16 %v335
    %v852 = vunpack.c.l.b16 %v336
    %v853 = vunpack.c.l.b16 %v337
    %v854 = vunpack.c.l.b16 %v338
    %v855 = vunpack.c.l.b16 %v339
    %v856 = vunpack.c.l.b16 %v340
    %v857 = vunpack.c.l.b16 %v341
    %v858 = vunpack.c.l.b16 %v342
    %v859 = vunpack.c.l.b16 %v343
    %v860 = vunpack.c.l.b16 %v344
    %v861 = vunpack.c.l.b16 %v345
    %v862 = vunpack.c.l.b16 %v346
    %v863 = vunpack.c.l.b16 %v347
    %v864 = vunpack.c.l.b16 %v348
    %v865 = vunpack.c.l.b16 %v349
    %v866 = vunpack.c.l.b16 %v350
    %v867 = vunpack.c.l.b16 %v351
    %v868 = vpack.c.b16 %v613, %v612
    %v869 = vpack.c.b16 %v615, %v614
    %v870 = vpack.c.b16 %v617, %v616
    %v871 = vpack.c.b16 %v619, %v618
    %v872 = vpack.c.b16 %v621, %v620
    %v873 = vpack.c.b16 %v623, %v622
    %v874 = vpack.c.b16 %v625, %v624
    %v875 = vpack.c.b16 %v627, %v626
    %v876 = vpack.c.b16 %v629, %v628
    %v877 = vpack.c.b16 %v631, %v630
    %v878 = vpack.c.b16 %v633, %v632
    %v879 = vpack.c.b16 %v635, %v634
    %v880 = vpack.c.b16 %v637, %v636
    %v881 = vpack.c.b16 %v639, %v638
    %v882 = vpack.c.b16 %v641, %v640
    %v883 = vpack.c.b16 %v643, %v642
    %v884 = vpack.c.b16 %v645, %v644
    %v885 = vpack.c.b16 %v647, %v646
    %v886 = vpack.c.b16 %v649, %v648
    %v887 = vpack.c.b16 %v651, %v650
    %v888 = vpack.c.b16 %v653, %v652
    %v889 = vpack.c.b16 %v655, %v654
    %v890 = vpack.c.b16 %v657, %v656
    %v891 = vpack.c.b16 %v659, %v658
    %v892 = vpack.c.b16 %v661, %v660
    %v893 = vpack.c.b16 %v663, %v662
    %v894 = vpack.c.b16 %v665, %v664
    %v895 = vpack.c.b16 %v667, %v666
    %v896 = vpack.c.b16 %v669, %v668
    %v897 = vpack.c.b16 %v671, %v670
    %v898 = vpack.c.b16 %v673, %v672
    %v899 = vpack.c.b16 %v675, %v674
    %v900 = vpack.c.b16 %v677, %v676
    %v901 = vpack.c.b16 %v679, %v678
    %v902 = vpack.c.b16 %v681, %v680
    %v903 = vpack.c.b16 %v683, %v682
    %v904 = vpack.c.b16 %v685, %v684
    %v905 = vpack.c.b16 %v687, %v686
    %v906 = vpack.c.b16 %v689, %v688
    %v907 = vpack.c.b16 %v691, %v690
    %v908 = vpack.c.b16 %v693, %v692
    %v909 = vpack.c.b16 %v695, %v694
    %v910 = vpack.c.b16 %v697, %v696
    %v911 = vpack.c.b16 %v699, %v698
    %v912 = vpack.c.b16 %v701, %v700
    %v913 = vpack.c.b16 %v703, %v702
    %v914 = vpack.c.b16 %v705, %v704
    %v915 = vpack.c.b16 %v707, %v706
    %v916 = vpack.c.b16 %v709, %v708
    %v917 = vpack.c.b16 %v711, %v710
    %v918 = vpack.c.b16 %v713, %v712
    %v919 = vpack.c.b16 %v715, %v714
    %v920 = vpack.c.b16 %v717, %v716
    %v921 = vpack.c.b16 %v719, %v718
    %v922 = vpack.c.b16 %v721, %v720
    %v923 = vpack.c.b16 %v723, %v722
    %v924 = vpack.c.b16 %v725, %v724
    %v925 = vpack.c.b16 %v727, %v726
    %v926 = vpack.c.b16 %v729, %v728
    %v927 = vpack.c.b16 %v731, %v730
    %v928 = vpack.c.b16 %v733, %v732
    %v929 = vpack.c.b16 %v735, %v734
    %v930 = vpack.c.b16 %v737, %v736
    %v931 = vpack.c.b16 %v739, %v738
    %v932 = vpack.c.b16 %v741, %v740
    %v933 = vpack.c.b16 %v743, %v742
    %v934 = vpack.c.b16 %v745, %v744
    %v935 = vpack.c.b16 %v747, %v746
    %v936 = vpack.c.b16 %v749, %v748
    %v937 = vpack.c.b16 %v751, %v750
    %v938 = vpack.c.b16 %v753, %v752
    %v939 = vpack.c.b16 %v755, %v754
    %v940 = vpack.c.b16 %v757, %v756
    %v941 = vpack.c.b16 %v759, %v758
    %v942 = vpack.c.b16 %v761, %v760
    %v943 = vpack.c.b16 %v763, %v762
    %v944 = vpack.c.b16 %v765, %v764
    %v945 = vpack.c.b16 %v767, %v766
    %v946 = vpack.c.b16 %v769, %v768
    %v947 = vpack.c.b16 %v771, %v770
    %v948 = vpack.c.b16 %v773, %v772
    %v949 = vpack.c.b16 %v775, %v774
    %v950 = vpack.c.b16 %v777, %v776
    %v951 = vpack.c.b16 %v779, %v778
    %v952 = vpack.c.b16 %v781, %v780
    %v953 = vpack.c.b16 %v783, %v782
    %v954 = vpack.c.b16 %v785, %v784
    %v955 = vpack.c.b16 %v787, %v786
    %v956 = vpack.c.b16 %v789, %v788
    %v957 = vpack.c.b16 %v791, %v790
    %v958 = vpack.c.b16 %v793, %v792
    %v959 = vpack.c.b16 %v795, %v794
    %v960 = vpack.c.b16 %v797, %v796
    %v961 = vpack.c.b16 %v799, %v798
    %v962 = vpack.c.b16 %v801, %v800
    %v963 = vpack.c.b16 %v803, %v802
    %v964 = vpack.c.b16 %v805, %v804
    %v965 = vpack.c.b16 %v807, %v806
    %v966 = vpack.c.b16 %v809, %v808
    %v967 = vpack.c.b16 %v811, %v810
    %v968 = vpack.c.b16 %v813, %v812
    %v969 = vpack.c.b16 %v815, %v814
    %v970 = vpack.c.b16 %v817, %v816
    %v971 = vpack.c.b16 %v819, %v818
    %v972 = vpack.c.b16 %v821, %v820
    %v973 = vpack.c.b16 %v823, %v822
    %v974 = vpack.c.b16 %v825, %v824
    %v975 = vpack.c.b16 %v827, %v826
    %v976 = vpack.c.b16 %v829, %v828
    %v977 = vpack.c.b16 %v831, %v830
    %v978 = vpack.c.b16 %v833, %v832
    %v979 = vpack.c.b16 %v835, %v834
    %v980 = vpack.c.b16 %v837, %v836
    %v981 = vpack.c.b16 %v839, %v838
    %v982 = vpack.c.b16 %v841, %v840
    %v983 = vpack.c.b16 %v843, %v842
    %v984 = vpack.c.b16 %v845, %v844
    %v985 = vpack.c.b16 %v847, %v846
    %v986 = vpack.c.b16 %v849, %v848
    %v987 = vpack.c.b16 %v851, %v850
    %v988 = vpack.c.b16 %v853, %v852
    %v989 = vpack.c.b16 %v855, %v854
    %v990 = vpack.c.b16 %v857, %v856
    %v991 = vpack.c.b16 %v859, %v858
    %v992 = vpack.c.b16 %v861, %v860
    %v993 = vpack.c.b16 %v863, %v862
    %v994 = vpack.c.b16 %v865, %v864
    %v995 = vpack.c.b16 %v867, %v866
    %v1000 = vunpack.c.l.b16 %v352
    %v1001 = vunpack.c.l.b16 %v353
    %v1002 = vunpack.c.l.b16 %v354
    %v1003 = vunpack.c.l.b16 %v355
    %v1004 = vpack.c.b16 %v1001, %v1000
    %v1005 = vpack.c.b16 %v1003, %v1002
    %vm1008 = vcmask 261120
    %v1010 = vsel %vm1008, %v868, 0
    %v1013 = vsel %vm1008, %v869, 0
    %v1016 = vsel %vm1008, %v870, 0
    %v1019 = vsel %vm1008, %v871, 0
    %v1022 = vsel %vm1008, %v872, 0
    %v1025 = vsel %vm1008, %v873, 0
    %v1028 = vsel %vm1008, %v874, 0
    %v1031 = vsel %vm1008, %v875, 0
    %v1034 = vsel %vm1008, %v876, 0
    %v1037 = vsel %vm1008, %v877, 0
    %v1040 = vsel %vm1008, %v878, 0
    %v1043 = vsel %vm1008, %v879, 0
    %v1046 = vsel %vm1008, %v880, 0
    %v1049 = vsel %vm1008, %v881, 0
    %v1052 = vsel %vm1008, %v882, 0
    %v1055 = vsel %vm1008, %v883, 0
    %v1058 = vsel %vm1008, %v884, 0
    %v1061 = vsel %vm1008, %v885, 0
    %v1064 = vsel %vm1008, %v886, 0
    %v1067 = vsel %vm1008, %v887, 0
    %v1070 = vsel %vm1008, %v888, 0
    %v1073 = vsel %vm1008, %v889, 0
    %v1076 = vsel %vm1008, %v890, 0
    %v1079 = vsel %vm1008, %v891, 0
    %v1082 = vsel %vm1008, %v892, 0
    %v1085 = vsel %vm1008, %v893, 0
    %v1088 = vsel %vm1008, %v894, 0
    %v1091 = vsel %vm1008, %v895, 0
    %v1094 = vsel %vm1008, %v896, 0
    %v1097 = vsel %vm1008, %v897, 0
    %v1100 = vsel %vm1008, %v898, 0
    %v1103 = vsel %vm1008, %v899, 0
    %v1106 = vsel %vm1008, %v900, 0
    %v1109 = vsel %vm1008, %v901, 0
    %v1112 = vsel %vm1008, %v902, 0
    %v1115 = vsel %vm1008, %v903, 0
    %v1118 = vsel %vm1008, %v904, 0
    %v1121 = vsel %vm1008, %v905, 0
    %v1124 = vsel %vm1008, %v906, 0
    %v1127 = vsel %vm1008, %v907, 0
    %v1130 = vsel %vm1008, %v908, 0
    %v1133 = vsel %vm1008, %v909, 0
    %v1136 = vsel %vm1008, %v910, 0
    %v1139 = vsel %vm1008, %v911, 0
    %v1142 = vsel %vm1008, %v912, 0
    %v1145 = vsel %vm1008, %v913, 0
    %v1148 = vsel %vm1008, %v914, 0
    %v1151 = vsel %vm1008, %v915, 0
    %v1154 = vsel %vm1008, %v916, 0
    %v1157 = vsel %vm1008, %v917, 0
    %v1160 = vsel %vm1008, %v918, 0
    %v1163 = vsel %vm1008, %v919, 0
    %v1166 = vsel %vm1008, %v920, 0
    %v1169 = vsel %vm1008, %v921, 0
    %v1172 = vsel %vm1008, %v922, 0
    %v1175 = vsel %vm1008, %v923, 0
    %v1178 = vsel %vm1008, %v924, 0
    %v1181 = vsel %vm1008, %v925, 0
    %v1184 = vsel %vm1008, %v926, 0
    %v1187 = vsel %vm1008, %v927, 0
    %v1190 = vsel %vm1008, %v928, 0
    %v1193 = vsel %vm1008, %v929, 0
    %v1196 = vsel %vm1008, %v930, 0
    %v1199 = vsel %vm1008, %v931, 0
    %v1202 = vsel %vm1008, %v932, 0
    %v1205 = vsel %vm1008, %v933, 0
    %v1208 = vsel %vm1008, %v934, 0
    %v1211 = vsel %vm1008, %v935, 0
    %v1214 = vsel %vm1008, %v936, 0
    %v1217 = vsel %vm1008, %v937, 0
    %v1220 = vsel %vm1008, %v938, 0
    %v1223 = vsel %vm1008, %v939, 0
    %v1226 = vsel %vm1008, %v940, 0
    %v1229 = vsel %vm1008, %v941, 0
    %v1232 = vsel %vm1008, %v942, 0
    %v1235 = vsel %vm1008, %v943, 0
    %v1238 = vsel %vm1008, %v944, 0
    %v1241 = vsel %vm1008, %v945, 0
    %v1244 = vsel %vm1008, %v946, 0
    %v1247 = vsel %vm1008, %v947, 0
    %v1250 = vsel %vm1008, %v948, 0
    %v1253 = vsel %vm1008, %v949, 0
    %v1256 = vsel %vm1008, %v950, 0
    %v1259 = vsel %vm1008, %v951, 0
    %v1262 = vsel %vm1008, %v952, 0
    %v1265 = vsel %vm1008, %v953, 0
    %v1268 = vsel %vm1008, %v954, 0
    %v1271 = vsel %vm1008, %v955, 0
    %v1274 = vsel %vm1008, %v956, 0
    %v1277 = vsel %vm1008, %v957, 0
    %v1280 = vsel %vm1008, %v958, 0
    %v1283 = vsel %vm1008, %v959, 0
    %v1286 = vsel %vm1008, %v960, 0
    %v1289 = vsel %vm1008, %v961, 0
    %v1292 = vsel %vm1008, %v962, 0
    %v1295 = vsel %vm1008, %v963, 0
    %v1298 = vsel %vm1008, %v964, 0
    %v1301 = vsel %vm1008, %v965, 0
    %v1304 = vsel %vm1008, %v966, 0
    %v1307 = vsel %vm1008, %v967, 0
    %v1310 = vsel %vm1008, %v968, 0
    %v1313 = vsel %vm1008, %v969, 0
    %v1316 = vsel %vm1008, %v970, 0
    %v1319 = vsel %vm1008, %v971, 0
    %v1322 = vsel %vm1008, %v972, 0
    %v1325 = vsel %vm1008, %v973, 0
    %v1328 = vsel %vm1008, %v974, 0
    %v1331 = vsel %vm1008, %v975, 0
    %v1334 = vsel %vm1008, %v976, 0
    %v1337 = vsel %vm1008, %v977, 0
    %v1340 = vsel %vm1008, %v978, 0
    %v1343 = vsel %vm1008, %v979, 0
    %v1346 = vsel %vm1008, %v980, 0
    %v1349 = vsel %vm1008, %v981, 0
    %v1352 = vsel %vm1008, %v982, 0
    %v1355 = vsel %vm1008, %v983, 0
    %v1358 = vsel %vm1008, %v984, 0
    %v1361 = vsel %vm1008, %v985, 0
    %v1364 = vsel %vm1008, %v986, 0
    %v1367 = vsel %vm1008, %v987, 0
    %v1370 = vsel %vm1008, %v988, 0
    %v1373 = vsel %vm1008, %v989, 0
    %v1376 = vsel %vm1008, %v990, 0
    %v1379 = vsel %vm1008, %v991, 0
    %v1382 = vsel %vm1008, %v992, 0
    %v1385 = vsel %vm1008, %v993, 0
    %v1388 = vsel %vm1008, %v994, 0
    %v1391 = vsel %vm1008, %v995, 0
    %1393 = vmatprep.subr.bf16.mxu0 0
    %1394 = vmatpush1.bf16.msra.mxu0 %v1004
    %1395 = vmatprep.subr.bf16.mxu0 0
    %1396 = vmatpush1.bf16.msra.mxu0 %v1005
    %1397 = vmatprep.subr.bf16.mxu0 0
    %1398 = vmatpush1.bf16.msra.mxu0 0
    %1399 = vmatprep.subr.bf16.mxu0 0
    %1400 = vmatpush1.bf16.msra.mxu0 0
    %1401 = vmatprep.subr.bf16.mxu0 0
    %1402 = vmatpush1.bf16.msra.mxu0 0
    %1403 = vmatprep.subr.bf16.mxu0 0
    %1404 = vmatpush1.bf16.msra.mxu0 0
    %1405 = vmatprep.subr.bf16.mxu0 0
    %1406 = vmatpush1.bf16.msra.mxu0 0
    %1407 = vmatprep.subr.bf16.mxu0 0
    %1408 = vmatpush1.bf16.msra.mxu0 0
    %1409 = vmatprep.subr.bf16.mxu0 0
    %1410 = vmatpush1.bf16.msra.mxu0 0
    %1411 = vmatprep.subr.bf16.mxu0 0
    %1412 = vmatpush1.bf16.msra.mxu0 0
    %1413 = vmatprep.subr.bf16.mxu0 0
    %1414 = vmatpush1.bf16.msra.mxu0 0
    %1415 = vmatprep.subr.bf16.mxu0 0
    %1416 = vmatpush1.bf16.msra.mxu0 0
    %1417 = vmatprep.subr.bf16.mxu0 0
    %1418 = vmatpush1.bf16.msra.mxu0 0
    %1419 = vmatprep.subr.bf16.mxu0 0
    %1420 = vmatpush1.bf16.msra.mxu0 0
    %1421 = vmatprep.subr.bf16.mxu0 0
    %1422 = vmatpush1.bf16.msra.mxu0 0
    %1423 = vmatprep.subr.bf16.mxu0 0
    %1424 = vmatpush1.bf16.msra.mxu0 0
    %1425 = vmatprep.mubr.bf16.mxu0 0
    %1426 = vmatmul.mubr.bf16.gmra.mrb[0].mxu0 %v1010
    %v1427 = vpop.f32.mrb[0].mxu0
    %v1428 = vadd.f32 0.0, %v1427
    %v1429 = vpop.f32.mrb[0].mxu0
    %v1430 = vpop.f32.mrb[0].mxu0
    %v1431 = vadd.f32 0.0, %v1430
    %v1432 = vpop.f32.mrb[0].mxu0
    %1433 = vmatprep.mubr.bf16.mxu0 0
    %1434 = vmatmul.mubr.bf16.gmra.mrb[0].mxu0 %v1013
    %v1435 = vpop.f32.mrb[0].mxu0
    %v1436 = vadd.f32 0.0, %v1435
    %v1437 = vpop.f32.mrb[0].mxu0
    %v1438 = vpop.f32.mrb[0].mxu0
    %v1439 = vadd.f32 0.0, %v1438
    %v1440 = vpop.f32.mrb[0].mxu0
    %1441 = vmatprep.mubr.bf16.mxu0 0
    %1442 = vmatmul.mubr.bf16.gmra.mrb[0].mxu0 %v1016
    %v1443 = vpop.f32.mrb[0].mxu0
    %v1444 = vadd.f32 0.0, %v1443
    %v1445 = vpop.f32.mrb[0].mxu0
    %v1446 = vpop.f32.mrb[0].mxu0
    %v1447 = vadd.f32 0.0, %v1446
    %v1448 = vpop.f32.mrb[0].mxu0
    %1449 = vmatprep.mubr.bf16.mxu0 0
    %1450 = vmatmul.mubr.bf16.gmra.mrb[0].mxu0 %v1019
    %v1451 = vpop.f32.mrb[0].mxu0
    %v1452 = vadd.f32 0.0, %v1451
    %v1453 = vpop.f32.mrb[0].mxu0
    %v1454 = vpop.f32.mrb[0].mxu0
    %v1455 = vadd.f32 0.0, %v1454
    %v1456 = vpop.f32.mrb[0].mxu0
    %1457 = vmatprep.mubr.bf16.mxu0 0
    %1458 = vmatmul.mubr.bf16.gmra.mrb[0].mxu0 %v1022
    %v1459 = vpop.f32.mrb[0].mxu0
    %v1460 = vadd.f32 0.0, %v1459
    %v1461 = vpop.f32.mrb[0].mxu0
    %v1462 = vpop.f32.mrb[0].mxu0
    %v1463 = vadd.f32 0.0, %v1462
    %v1464 = vpop.f32.mrb[0].mxu0
    %1465 = vmatprep.mubr.bf16.mxu0 0
    %1466 = vmatmul.mubr.bf16.gmra.mrb[0].mxu0 %v1025
    %v1467 = vpop.f32.mrb[0].mxu0
    %v1468 = vadd.f32 0.0, %v1467
    %v1469 = vpop.f32.mrb[0].mxu0
    %v1470 = vpop.f32.mrb[0].mxu0
    %v1471 = vadd.f32 0.0, %v1470
    %v1472 = vpop.f32.mrb[0].mxu0
    %1473 = vmatprep.mubr.bf16.mxu0 0
    %1474 = vmatmul.mubr.bf16.gmra.mrb[0].mxu0 %v1028
    %v1475 = vpop.f32.mrb[0].mxu0
    %v1476 = vadd.f32 0.0, %v1475
    %v1477 = vpop.f32.mrb[0].mxu0
    %v1478 = vpop.f32.mrb[0].mxu0
    %v1479 = vadd.f32 0.0, %v1478
    %v1480 = vpop.f32.mrb[0].mxu0
    %1481 = vmatprep.mubr.bf16.mxu0 0
    %1482 = vmatmul.mubr.bf16.gmra.mrb[0].mxu0 %v1031
    %v1483 = vpop.f32.mrb[0].mxu0
    %v1484 = vadd.f32 0.0, %v1483
    %v1485 = vpop.f32.mrb[0].mxu0
    %v1486 = vpop.f32.mrb[0].mxu0
    %v1487 = vadd.f32 0.0, %v1486
    %v1488 = vpop.f32.mrb[0].mxu0
    %1489 = vmatprep.mubr.bf16.mxu0 0
    %1490 = vmatmul.mubr.bf16.gmra.mrb[0].mxu0 %v1034
    %v1491 = vpop.f32.mrb[0].mxu0
    %v1492 = vadd.f32 0.0, %v1491
    %v1493 = vpop.f32.mrb[0].mxu0
    %v1494 = vpop.f32.mrb[0].mxu0
    %v1495 = vadd.f32 0.0, %v1494
    %v1496 = vpop.f32.mrb[0].mxu0
    %1497 = vmatprep.mubr.bf16.mxu0 0
    %1498 = vmatmul.mubr.bf16.gmra.mrb[0].mxu0 %v1037
    %v1499 = vpop.f32.mrb[0].mxu0
    %v1500 = vadd.f32 0.0, %v1499
    %v1501 = vpop.f32.mrb[0].mxu0
    %v1502 = vpop.f32.mrb[0].mxu0
    %v1503 = vadd.f32 0.0, %v1502
    %v1504 = vpop.f32.mrb[0].mxu0
    %1505 = vmatprep.mubr.bf16.mxu0 0
    %1506 = vmatmul.mubr.bf16.gmra.mrb[0].mxu0 %v1040
    %v1507 = vpop.f32.mrb[0].mxu0
    %v1508 = vadd.f32 0.0, %v1507
    %v1509 = vpop.f32.mrb[0].mxu0
    %v1510 = vpop.f32.mrb[0].mxu0
    %v1511 = vadd.f32 0.0, %v1510
    %v1512 = vpop.f32.mrb[0].mxu0
    %1513 = vmatprep.mubr.bf16.mxu0 0
    %1514 = vmatmul.mubr.bf16.gmra.mrb[0].mxu0 %v1043
    %v1515 = vpop.f32.mrb[0].mxu0
    %v1516 = vadd.f32 0.0, %v1515
    %v1517 = vpop.f32.mrb[0].mxu0
    %v1518 = vpop.f32.mrb[0].mxu0
    %v1519 = vadd.f32 0.0, %v1518
    %v1520 = vpop.f32.mrb[0].mxu0
    %1521 = vmatprep.mubr.bf16.mxu0 0
    %1522 = vmatmul.mubr.bf16.gmra.mrb[0].mxu0 %v1046
    %v1523 = vpop.f32.mrb[0].mxu0
    %v1524 = vadd.f32 0.0, %v1523
    %v1525 = vpop.f32.mrb[0].mxu0
    %v1526 = vpop.f32.mrb[0].mxu0
    %v1527 = vadd.f32 0.0, %v1526
    %v1528 = vpop.f32.mrb[0].mxu0
    %1529 = vmatprep.mubr.bf16.mxu0 0
    %1530 = vmatmul.mubr.bf16.gmra.mrb[0].mxu0 %v1049
    %v1531 = vpop.f32.mrb[0].mxu0
    %v1532 = vadd.f32 0.0, %v1531
    %v1533 = vpop.f32.mrb[0].mxu0
    %v1534 = vpop.f32.mrb[0].mxu0
    %v1535 = vadd.f32 0.0, %v1534
    %v1536 = vpop.f32.mrb[0].mxu0
    %1537 = vmatprep.mubr.bf16.mxu0 0
    %1538 = vmatmul.mubr.bf16.gmra.mrb[0].mxu0 %v1052
    %v1539 = vpop.f32.mrb[0].mxu0
    %v1540 = vadd.f32 0.0, %v1539
    %v1541 = vpop.f32.mrb[0].mxu0
    %v1542 = vpop.f32.mrb[0].mxu0
    %v1543 = vadd.f32 0.0, %v1542
    %v1544 = vpop.f32.mrb[0].mxu0
    %1545 = vmatprep.mubr.bf16.mxu0 0
    %1546 = vmatmul.mubr.bf16.gmra.mrb[0].mxu0 %v1055
    %v1547 = vpop.f32.mrb[0].mxu0
    %v1548 = vadd.f32 0.0, %v1547
    %v1549 = vpop.f32.mrb[0].mxu0
    %v1550 = vpop.f32.mrb[0].mxu0
    %v1551 = vadd.f32 0.0, %v1550
    %v1552 = vpop.f32.mrb[0].mxu0
    %1553 = vmatprep.mubr.bf16.mxu0 0
    %1554 = vmatmul.mubr.bf16.gmra.mrb[0].mxu0 %v1058
    %v1555 = vpop.f32.mrb[0].mxu0
    %v1556 = vadd.f32 0.0, %v1555
    %v1557 = vpop.f32.mrb[0].mxu0
    %v1558 = vpop.f32.mrb[0].mxu0
    %v1559 = vadd.f32 0.0, %v1558
    %v1560 = vpop.f32.mrb[0].mxu0
    %1561 = vmatprep.mubr.bf16.mxu0 0
    %1562 = vmatmul.mubr.bf16.gmra.mrb[0].mxu0 %v1061
    %v1563 = vpop.f32.mrb[0].mxu0
    %v1564 = vadd.f32 0.0, %v1563
    %v1565 = vpop.f32.mrb[0].mxu0
    %v1566 = vpop.f32.mrb[0].mxu0
    %v1567 = vadd.f32 0.0, %v1566
    %v1568 = vpop.f32.mrb[0].mxu0
    %1569 = vmatprep.mubr.bf16.mxu0 0
    %1570 = vmatmul.mubr.bf16.gmra.mrb[0].mxu0 %v1064
    %v1571 = vpop.f32.mrb[0].mxu0
    %v1572 = vadd.f32 0.0, %v1571
    %v1573 = vpop.f32.mrb[0].mxu0
    %v1574 = vpop.f32.mrb[0].mxu0
    %v1575 = vadd.f32 0.0, %v1574
    %v1576 = vpop.f32.mrb[0].mxu0
    %1577 = vmatprep.mubr.bf16.mxu0 0
    %1578 = vmatmul.mubr.bf16.gmra.mrb[0].mxu0 %v1067
    %v1579 = vpop.f32.mrb[0].mxu0
    %v1580 = vadd.f32 0.0, %v1579
    %v1581 = vpop.f32.mrb[0].mxu0
    %v1582 = vpop.f32.mrb[0].mxu0
    %v1583 = vadd.f32 0.0, %v1582
    %v1584 = vpop.f32.mrb[0].mxu0
    %1585 = vmatprep.mubr.bf16.mxu0 0
    %1586 = vmatmul.mubr.bf16.gmra.mrb[0].mxu0 %v1070
    %v1587 = vpop.f32.mrb[0].mxu0
    %v1588 = vadd.f32 0.0, %v1587
    %v1589 = vpop.f32.mrb[0].mxu0
    %v1590 = vpop.f32.mrb[0].mxu0
    %v1591 = vadd.f32 0.0, %v1590
    %v1592 = vpop.f32.mrb[0].mxu0
    %1593 = vmatprep.mubr.bf16.mxu0 0
    %1594 = vmatmul.mubr.bf16.gmra.mrb[0].mxu0 %v1073
    %v1595 = vpop.f32.mrb[0].mxu0
    %v1596 = vadd.f32 0.0, %v1595
    %v1597 = vpop.f32.mrb[0].mxu0
    %v1598 = vpop.f32.mrb[0].mxu0
    %v1599 = vadd.f32 0.0, %v1598
    %v1600 = vpop.f32.mrb[0].mxu0
    %1601 = vmatprep.mubr.bf16.mxu0 0
    %1602 = vmatmul.mubr.bf16.gmra.mrb[0].mxu0 %v1076
    %v1603 = vpop.f32.mrb[0].mxu0
    %v1604 = vadd.f32 0.0, %v1603
    %v1605 = vpop.f32.mrb[0].mxu0
    %v1606 = vpop.f32.mrb[0].mxu0
    %v1607 = vadd.f32 0.0, %v1606
    %v1608 = vpop.f32.mrb[0].mxu0
    %1609 = vmatprep.mubr.bf16.mxu0 0
    %1610 = vmatmul.mubr.bf16.gmra.mrb[0].mxu0 %v1079
    %v1611 = vpop.f32.mrb[0].mxu0
    %v1612 = vadd.f32 0.0, %v1611
    %v1613 = vpop.f32.mrb[0].mxu0
    %v1614 = vpop.f32.mrb[0].mxu0
    %v1615 = vadd.f32 0.0, %v1614
    %v1616 = vpop.f32.mrb[0].mxu0
    %1617 = vmatprep.mubr.bf16.mxu0 0
    %1618 = vmatmul.mubr.bf16.gmra.mrb[0].mxu0 %v1082
    %v1619 = vpop.f32.mrb[0].mxu0
    %v1620 = vadd.f32 0.0, %v1619
    %v1621 = vpop.f32.mrb[0].mxu0
    %v1622 = vpop.f32.mrb[0].mxu0
    %v1623 = vadd.f32 0.0, %v1622
    %v1624 = vpop.f32.mrb[0].mxu0
    %1625 = vmatprep.mubr.bf16.mxu0 0
    %1626 = vmatmul.mubr.bf16.gmra.mrb[0].mxu0 %v1085
    %v1627 = vpop.f32.mrb[0].mxu0
    %v1628 = vadd.f32 0.0, %v1627
    %v1629 = vpop.f32.mrb[0].mxu0
    %v1630 = vpop.f32.mrb[0].mxu0
    %v1631 = vadd.f32 0.0, %v1630
    %v1632 = vpop.f32.mrb[0].mxu0
    %1633 = vmatprep.mubr.bf16.mxu0 0
    %1634 = vmatmul.mubr.bf16.gmra.mrb[0].mxu0 %v1088
    %v1635 = vpop.f32.mrb[0].mxu0
    %v1636 = vadd.f32 0.0, %v1635
    %v1637 = vpop.f32.mrb[0].mxu0
    %v1638 = vpop.f32.mrb[0].mxu0
    %v1639 = vadd.f32 0.0, %v1638
    %v1640 = vpop.f32.mrb[0].mxu0
    %1641 = vmatprep.mubr.bf16.mxu0 0
    %1642 = vmatmul.mubr.bf16.gmra.mrb[0].mxu0 %v1091
    %v1643 = vpop.f32.mrb[0].mxu0
    %v1644 = vadd.f32 0.0, %v1643
    %v1645 = vpop.f32.mrb[0].mxu0
    %v1646 = vpop.f32.mrb[0].mxu0
    %v1647 = vadd.f32 0.0, %v1646
    %v1648 = vpop.f32.mrb[0].mxu0
    %1649 = vmatprep.mubr.bf16.mxu0 0
    %1650 = vmatmul.mubr.bf16.gmra.mrb[0].mxu0 %v1094
    %v1651 = vpop.f32.mrb[0].mxu0
    %v1652 = vadd.f32 0.0, %v1651
    %v1653 = vpop.f32.mrb[0].mxu0
    %v1654 = vpop.f32.mrb[0].mxu0
    %v1655 = vadd.f32 0.0, %v1654
    %v1656 = vpop.f32.mrb[0].mxu0
    %1657 = vmatprep.mubr.bf16.mxu0 0
    %1658 = vmatmul.mubr.bf16.gmra.mrb[0].mxu0 %v1097
    %v1659 = vpop.f32.mrb[0].mxu0
    %v1660 = vadd.f32 0.0, %v1659
    %v1661 = vpop.f32.mrb[0].mxu0
    %v1662 = vpop.f32.mrb[0].mxu0
    %v1663 = vadd.f32 0.0, %v1662
    %v1664 = vpop.f32.mrb[0].mxu0
    %1665 = vmatprep.mubr.bf16.mxu0 0
    %1666 = vmatmul.mubr.bf16.gmra.mrb[0].mxu0 %v1100
    %v1667 = vpop.f32.mrb[0].mxu0
    %v1668 = vadd.f32 0.0, %v1667
    %v1669 = vpop.f32.mrb[0].mxu0
    %v1670 = vpop.f32.mrb[0].mxu0
    %v1671 = vadd.f32 0.0, %v1670
    %v1672 = vpop.f32.mrb[0].mxu0
    %1673 = vmatprep.mubr.bf16.mxu0 0
    %1674 = vmatmul.mubr.bf16.gmra.mrb[0].mxu0 %v1103
    %v1675 = vpop.f32.mrb[0].mxu0
    %v1676 = vadd.f32 0.0, %v1675
    %v1677 = vpop.f32.mrb[0].mxu0
    %v1678 = vpop.f32.mrb[0].mxu0
    %v1679 = vadd.f32 0.0, %v1678
    %v1680 = vpop.f32.mrb[0].mxu0
    %1681 = vmatprep.mubr.bf16.mxu0 0
    %1682 = vmatmul.mubr.bf16.gmra.mrb[0].mxu0 %v1106
    %v1683 = vpop.f32.mrb[0].mxu0
    %v1684 = vadd.f32 0.0, %v1683
    %v1685 = vpop.f32.mrb[0].mxu0
    %v1686 = vpop.f32.mrb[0].mxu0
    %v1687 = vadd.f32 0.0, %v1686
    %v1688 = vpop.f32.mrb[0].mxu0
    %1689 = vmatprep.mubr.bf16.mxu0 0
    %1690 = vmatmul.mubr.bf16.gmra.mrb[0].mxu0 %v1109
    %v1691 = vpop.f32.mrb[0].mxu0
    %v1692 = vadd.f32 0.0, %v1691
    %v1693 = vpop.f32.mrb[0].mxu0
    %v1694 = vpop.f32.mrb[0].mxu0
    %v1695 = vadd.f32 0.0, %v1694
    %v1696 = vpop.f32.mrb[0].mxu0
    %1697 = vmatprep.mubr.bf16.mxu0 0
    %1698 = vmatmul.mubr.bf16.gmra.mrb[0].mxu0 %v1112
    %v1699 = vpop.f32.mrb[0].mxu0
    %v1700 = vadd.f32 0.0, %v1699
    %v1701 = vpop.f32.mrb[0].mxu0
    %v1702 = vpop.f32.mrb[0].mxu0
    %v1703 = vadd.f32 0.0, %v1702
    %v1704 = vpop.f32.mrb[0].mxu0
    %1705 = vmatprep.mubr.bf16.mxu0 0
    %1706 = vmatmul.mubr.bf16.gmra.mrb[0].mxu0 %v1115
    %v1707 = vpop.f32.mrb[0].mxu0
    %v1708 = vadd.f32 0.0, %v1707
    %v1709 = vpop.f32.mrb[0].mxu0
    %v1710 = vpop.f32.mrb[0].mxu0
    %v1711 = vadd.f32 0.0, %v1710
    %v1712 = vpop.f32.mrb[0].mxu0
    %1713 = vmatprep.mubr.bf16.mxu0 0
    %1714 = vmatmul.mubr.bf16.gmra.mrb[0].mxu0 %v1118
    %v1715 = vpop.f32.mrb[0].mxu0
    %v1716 = vadd.f32 0.0, %v1715
    %v1717 = vpop.f32.mrb[0].mxu0
    %v1718 = vpop.f32.mrb[0].mxu0
    %v1719 = vadd.f32 0.0, %v1718
    %v1720 = vpop.f32.mrb[0].mxu0
    %1721 = vmatprep.mubr.bf16.mxu0 0
    %1722 = vmatmul.mubr.bf16.gmra.mrb[0].mxu0 %v1121
    %v1723 = vpop.f32.mrb[0].mxu0
    %v1724 = vadd.f32 0.0, %v1723
    %v1725 = vpop.f32.mrb[0].mxu0
    %v1726 = vpop.f32.mrb[0].mxu0
    %v1727 = vadd.f32 0.0, %v1726
    %v1728 = vpop.f32.mrb[0].mxu0
    %1729 = vmatprep.mubr.bf16.mxu0 0
    %1730 = vmatmul.mubr.bf16.gmra.mrb[0].mxu0 %v1124
    %v1731 = vpop.f32.mrb[0].mxu0
    %v1732 = vadd.f32 0.0, %v1731
    %v1733 = vpop.f32.mrb[0].mxu0
    %v1734 = vpop.f32.mrb[0].mxu0
    %v1735 = vadd.f32 0.0, %v1734
    %v1736 = vpop.f32.mrb[0].mxu0
    %1737 = vmatprep.mubr.bf16.mxu0 0
    %1738 = vmatmul.mubr.bf16.gmra.mrb[0].mxu0 %v1127
    %v1739 = vpop.f32.mrb[0].mxu0
    %v1740 = vadd.f32 0.0, %v1739
    %v1741 = vpop.f32.mrb[0].mxu0
    %v1742 = vpop.f32.mrb[0].mxu0
    %v1743 = vadd.f32 0.0, %v1742
    %v1744 = vpop.f32.mrb[0].mxu0
    %1745 = vmatprep.mubr.bf16.mxu0 0
    %1746 = vmatmul.mubr.bf16.gmra.mrb[0].mxu0 %v1130
    %v1747 = vpop.f32.mrb[0].mxu0
    %v1748 = vadd.f32 0.0, %v1747
    %v1749 = vpop.f32.mrb[0].mxu0
    %v1750 = vpop.f32.mrb[0].mxu0
    %v1751 = vadd.f32 0.0, %v1750
    %v1752 = vpop.f32.mrb[0].mxu0
    %1753 = vmatprep.mubr.bf16.mxu0 0
    %1754 = vmatmul.mubr.bf16.gmra.mrb[0].mxu0 %v1133
    %v1755 = vpop.f32.mrb[0].mxu0
    %v1756 = vadd.f32 0.0, %v1755
    %v1757 = vpop.f32.mrb[0].mxu0
    %v1758 = vpop.f32.mrb[0].mxu0
    %v1759 = vadd.f32 0.0, %v1758
    %v1760 = vpop.f32.mrb[0].mxu0
    %1761 = vmatprep.mubr.bf16.mxu0 0
    %1762 = vmatmul.mubr.bf16.gmra.mrb[0].mxu0 %v1136
    %v1763 = vpop.f32.mrb[0].mxu0
    %v1764 = vadd.f32 0.0, %v1763
    %v1765 = vpop.f32.mrb[0].mxu0
    %v1766 = vpop.f32.mrb[0].mxu0
    %v1767 = vadd.f32 0.0, %v1766
    %v1768 = vpop.f32.mrb[0].mxu0
    %1769 = vmatprep.mubr.bf16.mxu0 0
    %1770 = vmatmul.mubr.bf16.gmra.mrb[0].mxu0 %v1139
    %v1771 = vpop.f32.mrb[0].mxu0
    %v1772 = vadd.f32 0.0, %v1771
    %v1773 = vpop.f32.mrb[0].mxu0
    %v1774 = vpop.f32.mrb[0].mxu0
    %v1775 = vadd.f32 0.0, %v1774
    %v1776 = vpop.f32.mrb[0].mxu0
    %1777 = vmatprep.mubr.bf16.mxu0 0
    %1778 = vmatmul.mubr.bf16.gmra.mrb[0].mxu0 %v1142
    %v1779 = vpop.f32.mrb[0].mxu0
    %v1780 = vadd.f32 0.0, %v1779
    %v1781 = vpop.f32.mrb[0].mxu0
    %v1782 = vpop.f32.mrb[0].mxu0
    %v1783 = vadd.f32 0.0, %v1782
    %v1784 = vpop.f32.mrb[0].mxu0
    %1785 = vmatprep.mubr.bf16.mxu0 0
    %1786 = vmatmul.mubr.bf16.gmra.mrb[0].mxu0 %v1145
    %v1787 = vpop.f32.mrb[0].mxu0
    %v1788 = vadd.f32 0.0, %v1787
    %v1789 = vpop.f32.mrb[0].mxu0
    %v1790 = vpop.f32.mrb[0].mxu0
    %v1791 = vadd.f32 0.0, %v1790
    %v1792 = vpop.f32.mrb[0].mxu0
    %1793 = vmatprep.mubr.bf16.mxu0 0
    %1794 = vmatmul.mubr.bf16.gmra.mrb[0].mxu0 %v1148
    %v1795 = vpop.f32.mrb[0].mxu0
    %v1796 = vadd.f32 0.0, %v1795
    %v1797 = vpop.f32.mrb[0].mxu0
    %v1798 = vpop.f32.mrb[0].mxu0
    %v1799 = vadd.f32 0.0, %v1798
    %v1800 = vpop.f32.mrb[0].mxu0
    %1801 = vmatprep.mubr.bf16.mxu0 0
    %1802 = vmatmul.mubr.bf16.gmra.mrb[0].mxu0 %v1151
    %v1803 = vpop.f32.mrb[0].mxu0
    %v1804 = vadd.f32 0.0, %v1803
    %v1805 = vpop.f32.mrb[0].mxu0
    %v1806 = vpop.f32.mrb[0].mxu0
    %v1807 = vadd.f32 0.0, %v1806
    %v1808 = vpop.f32.mrb[0].mxu0
    %1809 = vmatprep.mubr.bf16.mxu0 0
    %1810 = vmatmul.mubr.bf16.gmra.mrb[0].mxu0 %v1154
    %v1811 = vpop.f32.mrb[0].mxu0
    %v1812 = vadd.f32 0.0, %v1811
    %v1813 = vpop.f32.mrb[0].mxu0
    %v1814 = vpop.f32.mrb[0].mxu0
    %v1815 = vadd.f32 0.0, %v1814
    %v1816 = vpop.f32.mrb[0].mxu0
    %1817 = vmatprep.mubr.bf16.mxu0 0
    %1818 = vmatmul.mubr.bf16.gmra.mrb[0].mxu0 %v1157
    %v1819 = vpop.f32.mrb[0].mxu0
    %v1820 = vadd.f32 0.0, %v1819
    %v1821 = vpop.f32.mrb[0].mxu0
    %v1822 = vpop.f32.mrb[0].mxu0
    %v1823 = vadd.f32 0.0, %v1822
    %v1824 = vpop.f32.mrb[0].mxu0
    %1825 = vmatprep.mubr.bf16.mxu0 0
    %1826 = vmatmul.mubr.bf16.gmra.mrb[0].mxu0 %v1160
    %v1827 = vpop.f32.mrb[0].mxu0
    %v1828 = vadd.f32 0.0, %v1827
    %v1829 = vpop.f32.mrb[0].mxu0
    %v1830 = vpop.f32.mrb[0].mxu0
    %v1831 = vadd.f32 0.0, %v1830
    %v1832 = vpop.f32.mrb[0].mxu0
    %1833 = vmatprep.mubr.bf16.mxu0 0
    %1834 = vmatmul.mubr.bf16.gmra.mrb[0].mxu0 %v1163
    %v1835 = vpop.f32.mrb[0].mxu0
    %v1836 = vadd.f32 0.0, %v1835
    %v1837 = vpop.f32.mrb[0].mxu0
    %v1838 = vpop.f32.mrb[0].mxu0
    %v1839 = vadd.f32 0.0, %v1838
    %v1840 = vpop.f32.mrb[0].mxu0
    %1841 = vmatprep.mubr.bf16.mxu0 0
    %1842 = vmatmul.mubr.bf16.gmra.mrb[0].mxu0 %v1166
    %v1843 = vpop.f32.mrb[0].mxu0
    %v1844 = vadd.f32 0.0, %v1843
    %v1845 = vpop.f32.mrb[0].mxu0
    %v1846 = vpop.f32.mrb[0].mxu0
    %v1847 = vadd.f32 0.0, %v1846
    %v1848 = vpop.f32.mrb[0].mxu0
    %1849 = vmatprep.mubr.bf16.mxu0 0
    %1850 = vmatmul.mubr.bf16.gmra.mrb[0].mxu0 %v1169
    %v1851 = vpop.f32.mrb[0].mxu0
    %v1852 = vadd.f32 0.0, %v1851
    %v1853 = vpop.f32.mrb[0].mxu0
    %v1854 = vpop.f32.mrb[0].mxu0
    %v1855 = vadd.f32 0.0, %v1854
    %v1856 = vpop.f32.mrb[0].mxu0
    %1857 = vmatprep.mubr.bf16.mxu0 0
    %1858 = vmatmul.mubr.bf16.gmra.mrb[0].mxu0 %v1172
    %v1859 = vpop.f32.mrb[0].mxu0
    %v1860 = vadd.f32 0.0, %v1859
    %v1861 = vpop.f32.mrb[0].mxu0
    %v1862 = vpop.f32.mrb[0].mxu0
    %v1863 = vadd.f32 0.0, %v1862
    %v1864 = vpop.f32.mrb[0].mxu0
    %1865 = vmatprep.mubr.bf16.mxu0 0
    %1866 = vmatmul.mubr.bf16.gmra.mrb[0].mxu0 %v1175
    %v1867 = vpop.f32.mrb[0].mxu0
    %v1868 = vadd.f32 0.0, %v1867
    %v1869 = vpop.f32.mrb[0].mxu0
    %v1870 = vpop.f32.mrb[0].mxu0
    %v1871 = vadd.f32 0.0, %v1870
    %v1872 = vpop.f32.mrb[0].mxu0
    %1873 = vmatprep.mubr.bf16.mxu0 0
    %1874 = vmatmul.mubr.bf16.gmra.mrb[0].mxu0 %v1178
    %v1875 = vpop.f32.mrb[0].mxu0
    %v1876 = vadd.f32 0.0, %v1875
    %v1877 = vpop.f32.mrb[0].mxu0
    %v1878 = vpop.f32.mrb[0].mxu0
    %v1879 = vadd.f32 0.0, %v1878
    %v1880 = vpop.f32.mrb[0].mxu0
    %1881 = vmatprep.mubr.bf16.mxu0 0
    %1882 = vmatmul.mubr.bf16.gmra.mrb[0].mxu0 %v1181
    %v1883 = vpop.f32.mrb[0].mxu0
    %v1884 = vadd.f32 0.0, %v1883
    %v1885 = vpop.f32.mrb[0].mxu0
    %v1886 = vpop.f32.mrb[0].mxu0
    %v1887 = vadd.f32 0.0, %v1886
    %v1888 = vpop.f32.mrb[0].mxu0
    %1889 = vmatprep.mubr.bf16.mxu0 0
    %1890 = vmatmul.mubr.bf16.gmra.mrb[0].mxu0 %v1184
    %v1891 = vpop.f32.mrb[0].mxu0
    %v1892 = vadd.f32 0.0, %v1891
    %v1893 = vpop.f32.mrb[0].mxu0
    %v1894 = vpop.f32.mrb[0].mxu0
    %v1895 = vadd.f32 0.0, %v1894
    %v1896 = vpop.f32.mrb[0].mxu0
    %1897 = vmatprep.mubr.bf16.mxu0 0
    %1898 = vmatmul.mubr.bf16.gmra.mrb[0].mxu0 %v1187
    %v1899 = vpop.f32.mrb[0].mxu0
    %v1900 = vadd.f32 0.0, %v1899
    %v1901 = vpop.f32.mrb[0].mxu0
    %v1902 = vpop.f32.mrb[0].mxu0
    %v1903 = vadd.f32 0.0, %v1902
    %v1904 = vpop.f32.mrb[0].mxu0
    %1905 = vmatprep.mubr.bf16.mxu0 0
    %1906 = vmatmul.mubr.bf16.gmra.mrb[0].mxu0 %v1190
    %v1907 = vpop.f32.mrb[0].mxu0
    %v1908 = vadd.f32 0.0, %v1907
    %v1909 = vpop.f32.mrb[0].mxu0
    %v1910 = vpop.f32.mrb[0].mxu0
    %v1911 = vadd.f32 0.0, %v1910
    %v1912 = vpop.f32.mrb[0].mxu0
    %1913 = vmatprep.mubr.bf16.mxu0 0
    %1914 = vmatmul.mubr.bf16.gmra.mrb[0].mxu0 %v1193
    %v1915 = vpop.f32.mrb[0].mxu0
    %v1916 = vadd.f32 0.0, %v1915
    %v1917 = vpop.f32.mrb[0].mxu0
    %v1918 = vpop.f32.mrb[0].mxu0
    %v1919 = vadd.f32 0.0, %v1918
    %v1920 = vpop.f32.mrb[0].mxu0
    %1921 = vmatprep.mubr.bf16.mxu0 0
    %1922 = vmatmul.mubr.bf16.gmra.mrb[0].mxu0 %v1196
    %v1923 = vpop.f32.mrb[0].mxu0
    %v1924 = vadd.f32 0.0, %v1923
    %v1925 = vpop.f32.mrb[0].mxu0
    %v1926 = vpop.f32.mrb[0].mxu0
    %v1927 = vadd.f32 0.0, %v1926
    %v1928 = vpop.f32.mrb[0].mxu0
    %1929 = vmatprep.mubr.bf16.mxu0 0
    %1930 = vmatmul.mubr.bf16.gmra.mrb[0].mxu0 %v1199
    %v1931 = vpop.f32.mrb[0].mxu0
    %v1932 = vadd.f32 0.0, %v1931
    %v1933 = vpop.f32.mrb[0].mxu0
    %v1934 = vpop.f32.mrb[0].mxu0
    %v1935 = vadd.f32 0.0, %v1934
    %v1936 = vpop.f32.mrb[0].mxu0
    %1937 = vmatprep.mubr.bf16.mxu0 0
    %1938 = vmatmul.mubr.bf16.gmra.mrb[0].mxu0 %v1202
    %v1939 = vpop.f32.mrb[0].mxu0
    %v1940 = vadd.f32 0.0, %v1939
    %v1941 = vpop.f32.mrb[0].mxu0
    %v1942 = vpop.f32.mrb[0].mxu0
    %v1943 = vadd.f32 0.0, %v1942
    %v1944 = vpop.f32.mrb[0].mxu0
    %1945 = vmatprep.mubr.bf16.mxu0 0
    %1946 = vmatmul.mubr.bf16.gmra.mrb[0].mxu0 %v1205
    %v1947 = vpop.f32.mrb[0].mxu0
    %v1948 = vadd.f32 0.0, %v1947
    %v1949 = vpop.f32.mrb[0].mxu0
    %v1950 = vpop.f32.mrb[0].mxu0
    %v1951 = vadd.f32 0.0, %v1950
    %v1952 = vpop.f32.mrb[0].mxu0
    %1953 = vmatprep.mubr.bf16.mxu0 0
    %1954 = vmatmul.mubr.bf16.gmra.mrb[0].mxu0 %v1208
    %v1955 = vpop.f32.mrb[0].mxu0
    %v1956 = vadd.f32 0.0, %v1955
    %v1957 = vpop.f32.mrb[0].mxu0
    %v1958 = vpop.f32.mrb[0].mxu0
    %v1959 = vadd.f32 0.0, %v1958
    %v1960 = vpop.f32.mrb[0].mxu0
    %1961 = vmatprep.mubr.bf16.mxu0 0
    %1962 = vmatmul.mubr.bf16.gmra.mrb[0].mxu0 %v1211
    %v1963 = vpop.f32.mrb[0].mxu0
    %v1964 = vadd.f32 0.0, %v1963
    %v1965 = vpop.f32.mrb[0].mxu0
    %v1966 = vpop.f32.mrb[0].mxu0
    %v1967 = vadd.f32 0.0, %v1966
    %v1968 = vpop.f32.mrb[0].mxu0
    %1969 = vmatprep.mubr.bf16.mxu0 0
    %1970 = vmatmul.mubr.bf16.gmra.mrb[0].mxu0 %v1214
    %v1971 = vpop.f32.mrb[0].mxu0
    %v1972 = vadd.f32 0.0, %v1971
    %v1973 = vpop.f32.mrb[0].mxu0
    %v1974 = vpop.f32.mrb[0].mxu0
    %v1975 = vadd.f32 0.0, %v1974
    %v1976 = vpop.f32.mrb[0].mxu0
    %1977 = vmatprep.mubr.bf16.mxu0 0
    %1978 = vmatmul.mubr.bf16.gmra.mrb[0].mxu0 %v1217
    %v1979 = vpop.f32.mrb[0].mxu0
    %v1980 = vadd.f32 0.0, %v1979
    %v1981 = vpop.f32.mrb[0].mxu0
    %v1982 = vpop.f32.mrb[0].mxu0
    %v1983 = vadd.f32 0.0, %v1982
    %v1984 = vpop.f32.mrb[0].mxu0
    %1985 = vmatprep.mubr.bf16.mxu0 0
    %1986 = vmatmul.mubr.bf16.gmra.mrb[0].mxu0 %v1220
    %v1987 = vpop.f32.mrb[0].mxu0
    %v1988 = vadd.f32 0.0, %v1987
    %v1989 = vpop.f32.mrb[0].mxu0
    %v1990 = vpop.f32.mrb[0].mxu0
    %v1991 = vadd.f32 0.0, %v1990
    %v1992 = vpop.f32.mrb[0].mxu0
    %1993 = vmatprep.mubr.bf16.mxu0 0
    %1994 = vmatmul.mubr.bf16.gmra.mrb[0].mxu0 %v1223
    %v1995 = vpop.f32.mrb[0].mxu0
    %v1996 = vadd.f32 0.0, %v1995
    %v1997 = vpop.f32.mrb[0].mxu0
    %v1998 = vpop.f32.mrb[0].mxu0
    %v1999 = vadd.f32 0.0, %v1998
    %v2000 = vpop.f32.mrb[0].mxu0
    %2001 = vmatprep.mubr.bf16.mxu0 0
    %2002 = vmatmul.mubr.bf16.gmra.mrb[0].mxu0 %v1226
    %v2003 = vpop.f32.mrb[0].mxu0
    %v2004 = vadd.f32 0.0, %v2003
    %v2005 = vpop.f32.mrb[0].mxu0
    %v2006 = vpop.f32.mrb[0].mxu0
    %v2007 = vadd.f32 0.0, %v2006
    %v2008 = vpop.f32.mrb[0].mxu0
    %2009 = vmatprep.mubr.bf16.mxu0 0
    %2010 = vmatmul.mubr.bf16.gmra.mrb[0].mxu0 %v1229
    %v2011 = vpop.f32.mrb[0].mxu0
    %v2012 = vadd.f32 0.0, %v2011
    %v2013 = vpop.f32.mrb[0].mxu0
    %v2014 = vpop.f32.mrb[0].mxu0
    %v2015 = vadd.f32 0.0, %v2014
    %v2016 = vpop.f32.mrb[0].mxu0
    %2017 = vmatprep.mubr.bf16.mxu0 0
    %2018 = vmatmul.mubr.bf16.gmra.mrb[0].mxu0 %v1232
    %v2019 = vpop.f32.mrb[0].mxu0
    %v2020 = vadd.f32 0.0, %v2019
    %v2021 = vpop.f32.mrb[0].mxu0
    %v2022 = vpop.f32.mrb[0].mxu0
    %v2023 = vadd.f32 0.0, %v2022
    %v2024 = vpop.f32.mrb[0].mxu0
    %2025 = vmatprep.mubr.bf16.mxu0 0
    %2026 = vmatmul.mubr.bf16.gmra.mrb[0].mxu0 %v1235
    %v2027 = vpop.f32.mrb[0].mxu0
    %v2028 = vadd.f32 0.0, %v2027
    %v2029 = vpop.f32.mrb[0].mxu0
    %v2030 = vpop.f32.mrb[0].mxu0
    %v2031 = vadd.f32 0.0, %v2030
    %v2032 = vpop.f32.mrb[0].mxu0
    %2033 = vmatprep.mubr.bf16.mxu0 0
    %2034 = vmatmul.mubr.bf16.gmra.mrb[0].mxu0 %v1238
    %v2035 = vpop.f32.mrb[0].mxu0
    %v2036 = vadd.f32 0.0, %v2035
    %v2037 = vpop.f32.mrb[0].mxu0
    %v2038 = vpop.f32.mrb[0].mxu0
    %v2039 = vadd.f32 0.0, %v2038
    %v2040 = vpop.f32.mrb[0].mxu0
    %2041 = vmatprep.mubr.bf16.mxu0 0
    %2042 = vmatmul.mubr.bf16.gmra.mrb[0].mxu0 %v1241
    %v2043 = vpop.f32.mrb[0].mxu0
    %v2044 = vadd.f32 0.0, %v2043
    %v2045 = vpop.f32.mrb[0].mxu0
    %v2046 = vpop.f32.mrb[0].mxu0
    %v2047 = vadd.f32 0.0, %v2046
    %v2048 = vpop.f32.mrb[0].mxu0
    %2049 = vmatprep.mubr.bf16.mxu0 0
    %2050 = vmatmul.mubr.bf16.gmra.mrb[0].mxu0 %v1244
    %v2051 = vpop.f32.mrb[0].mxu0
    %v2052 = vadd.f32 0.0, %v2051
    %v2053 = vpop.f32.mrb[0].mxu0
    %v2054 = vpop.f32.mrb[0].mxu0
    %v2055 = vadd.f32 0.0, %v2054
    %v2056 = vpop.f32.mrb[0].mxu0
    %2057 = vmatprep.mubr.bf16.mxu0 0
    %2058 = vmatmul.mubr.bf16.gmra.mrb[0].mxu0 %v1247
    %v2059 = vpop.f32.mrb[0].mxu0
    %v2060 = vadd.f32 0.0, %v2059
    %v2061 = vpop.f32.mrb[0].mxu0
    %v2062 = vpop.f32.mrb[0].mxu0
    %v2063 = vadd.f32 0.0, %v2062
    %v2064 = vpop.f32.mrb[0].mxu0
    %2065 = vmatprep.mubr.bf16.mxu0 0
    %2066 = vmatmul.mubr.bf16.gmra.mrb[0].mxu0 %v1250
    %v2067 = vpop.f32.mrb[0].mxu0
    %v2068 = vadd.f32 0.0, %v2067
    %v2069 = vpop.f32.mrb[0].mxu0
    %v2070 = vpop.f32.mrb[0].mxu0
    %v2071 = vadd.f32 0.0, %v2070
    %v2072 = vpop.f32.mrb[0].mxu0
    %2073 = vmatprep.mubr.bf16.mxu0 0
    %2074 = vmatmul.mubr.bf16.gmra.mrb[0].mxu0 %v1253
    %v2075 = vpop.f32.mrb[0].mxu0
    %v2076 = vadd.f32 0.0, %v2075
    %v2077 = vpop.f32.mrb[0].mxu0
    %v2078 = vpop.f32.mrb[0].mxu0
    %v2079 = vadd.f32 0.0, %v2078
    %v2080 = vpop.f32.mrb[0].mxu0
    %2081 = vmatprep.mubr.bf16.mxu0 0
    %2082 = vmatmul.mubr.bf16.gmra.mrb[0].mxu0 %v1256
    %v2083 = vpop.f32.mrb[0].mxu0
    %v2084 = vadd.f32 0.0, %v2083
    %v2085 = vpop.f32.mrb[0].mxu0
    %v2086 = vpop.f32.mrb[0].mxu0
    %v2087 = vadd.f32 0.0, %v2086
    %v2088 = vpop.f32.mrb[0].mxu0
    %2089 = vmatprep.mubr.bf16.mxu0 0
    %2090 = vmatmul.mubr.bf16.gmra.mrb[0].mxu0 %v1259
    %v2091 = vpop.f32.mrb[0].mxu0
    %v2092 = vadd.f32 0.0, %v2091
    %v2093 = vpop.f32.mrb[0].mxu0
    %v2094 = vpop.f32.mrb[0].mxu0
    %v2095 = vadd.f32 0.0, %v2094
    %v2096 = vpop.f32.mrb[0].mxu0
    %2097 = vmatprep.mubr.bf16.mxu0 0
    %2098 = vmatmul.mubr.bf16.gmra.mrb[0].mxu0 %v1262
    %v2099 = vpop.f32.mrb[0].mxu0
    %v2100 = vadd.f32 0.0, %v2099
    %v2101 = vpop.f32.mrb[0].mxu0
    %v2102 = vpop.f32.mrb[0].mxu0
    %v2103 = vadd.f32 0.0, %v2102
    %v2104 = vpop.f32.mrb[0].mxu0
    %2105 = vmatprep.mubr.bf16.mxu0 0
    %2106 = vmatmul.mubr.bf16.gmra.mrb[0].mxu0 %v1265
    %v2107 = vpop.f32.mrb[0].mxu0
    %v2108 = vadd.f32 0.0, %v2107
    %v2109 = vpop.f32.mrb[0].mxu0
    %v2110 = vpop.f32.mrb[0].mxu0
    %v2111 = vadd.f32 0.0, %v2110
    %v2112 = vpop.f32.mrb[0].mxu0
    %2113 = vmatprep.mubr.bf16.mxu0 0
    %2114 = vmatmul.mubr.bf16.gmra.mrb[0].mxu0 %v1268
    %v2115 = vpop.f32.mrb[0].mxu0
    %v2116 = vadd.f32 0.0, %v2115
    %v2117 = vpop.f32.mrb[0].mxu0
    %v2118 = vpop.f32.mrb[0].mxu0
    %v2119 = vadd.f32 0.0, %v2118
    %v2120 = vpop.f32.mrb[0].mxu0
    %2121 = vmatprep.mubr.bf16.mxu0 0
    %2122 = vmatmul.mubr.bf16.gmra.mrb[0].mxu0 %v1271
    %v2123 = vpop.f32.mrb[0].mxu0
    %v2124 = vadd.f32 0.0, %v2123
    %v2125 = vpop.f32.mrb[0].mxu0
    %v2126 = vpop.f32.mrb[0].mxu0
    %v2127 = vadd.f32 0.0, %v2126
    %v2128 = vpop.f32.mrb[0].mxu0
    %2129 = vmatprep.mubr.bf16.mxu0 0
    %2130 = vmatmul.mubr.bf16.gmra.mrb[0].mxu0 %v1274
    %v2131 = vpop.f32.mrb[0].mxu0
    %v2132 = vadd.f32 0.0, %v2131
    %v2133 = vpop.f32.mrb[0].mxu0
    %v2134 = vpop.f32.mrb[0].mxu0
    %v2135 = vadd.f32 0.0, %v2134
    %v2136 = vpop.f32.mrb[0].mxu0
    %2137 = vmatprep.mubr.bf16.mxu0 0
    %2138 = vmatmul.mubr.bf16.gmra.mrb[0].mxu0 %v1277
    %v2139 = vpop.f32.mrb[0].mxu0
    %v2140 = vadd.f32 0.0, %v2139
    %v2141 = vpop.f32.mrb[0].mxu0
    %v2142 = vpop.f32.mrb[0].mxu0
    %v2143 = vadd.f32 0.0, %v2142
    %v2144 = vpop.f32.mrb[0].mxu0
    %2145 = vmatprep.mubr.bf16.mxu0 0
    %2146 = vmatmul.mubr.bf16.gmra.mrb[0].mxu0 %v1280
    %v2147 = vpop.f32.mrb[0].mxu0
    %v2148 = vadd.f32 0.0, %v2147
    %v2149 = vpop.f32.mrb[0].mxu0
    %v2150 = vpop.f32.mrb[0].mxu0
    %v2151 = vadd.f32 0.0, %v2150
    %v2152 = vpop.f32.mrb[0].mxu0
    %2153 = vmatprep.mubr.bf16.mxu0 0
    %2154 = vmatmul.mubr.bf16.gmra.mrb[0].mxu0 %v1283
    %v2155 = vpop.f32.mrb[0].mxu0
    %v2156 = vadd.f32 0.0, %v2155
    %v2157 = vpop.f32.mrb[0].mxu0
    %v2158 = vpop.f32.mrb[0].mxu0
    %v2159 = vadd.f32 0.0, %v2158
    %v2160 = vpop.f32.mrb[0].mxu0
    %2161 = vmatprep.mubr.bf16.mxu0 0
    %2162 = vmatmul.mubr.bf16.gmra.mrb[0].mxu0 %v1286
    %v2163 = vpop.f32.mrb[0].mxu0
    %v2164 = vadd.f32 0.0, %v2163
    %v2165 = vpop.f32.mrb[0].mxu0
    %v2166 = vpop.f32.mrb[0].mxu0
    %v2167 = vadd.f32 0.0, %v2166
    %v2168 = vpop.f32.mrb[0].mxu0
    %2169 = vmatprep.mubr.bf16.mxu0 0
    %2170 = vmatmul.mubr.bf16.gmra.mrb[0].mxu0 %v1289
    %v2171 = vpop.f32.mrb[0].mxu0
    %v2172 = vadd.f32 0.0, %v2171
    %v2173 = vpop.f32.mrb[0].mxu0
    %v2174 = vpop.f32.mrb[0].mxu0
    %v2175 = vadd.f32 0.0, %v2174
    %v2176 = vpop.f32.mrb[0].mxu0
    %2177 = vmatprep.mubr.bf16.mxu0 0
    %2178 = vmatmul.mubr.bf16.gmra.mrb[0].mxu0 %v1292
    %v2179 = vpop.f32.mrb[0].mxu0
    %v2180 = vadd.f32 0.0, %v2179
    %v2181 = vpop.f32.mrb[0].mxu0
    %v2182 = vpop.f32.mrb[0].mxu0
    %v2183 = vadd.f32 0.0, %v2182
    %v2184 = vpop.f32.mrb[0].mxu0
    %2185 = vmatprep.mubr.bf16.mxu0 0
    %2186 = vmatmul.mubr.bf16.gmra.mrb[0].mxu0 %v1295
    %v2187 = vpop.f32.mrb[0].mxu0
    %v2188 = vadd.f32 0.0, %v2187
    %v2189 = vpop.f32.mrb[0].mxu0
    %v2190 = vpop.f32.mrb[0].mxu0
    %v2191 = vadd.f32 0.0, %v2190
    %v2192 = vpop.f32.mrb[0].mxu0
    %2193 = vmatprep.mubr.bf16.mxu0 0
    %2194 = vmatmul.mubr.bf16.gmra.mrb[0].mxu0 %v1298
    %v2195 = vpop.f32.mrb[0].mxu0
    %v2196 = vadd.f32 0.0, %v2195
    %v2197 = vpop.f32.mrb[0].mxu0
    %v2198 = vpop.f32.mrb[0].mxu0
    %v2199 = vadd.f32 0.0, %v2198
    %v2200 = vpop.f32.mrb[0].mxu0
    %2201 = vmatprep.mubr.bf16.mxu0 0
    %2202 = vmatmul.mubr.bf16.gmra.mrb[0].mxu0 %v1301
    %v2203 = vpop.f32.mrb[0].mxu0
    %v2204 = vadd.f32 0.0, %v2203
    %v2205 = vpop.f32.mrb[0].mxu0
    %v2206 = vpop.f32.mrb[0].mxu0
    %v2207 = vadd.f32 0.0, %v2206
    %v2208 = vpop.f32.mrb[0].mxu0
    %2209 = vmatprep.mubr.bf16.mxu0 0
    %2210 = vmatmul.mubr.bf16.gmra.mrb[0].mxu0 %v1304
    %v2211 = vpop.f32.mrb[0].mxu0
    %v2212 = vadd.f32 0.0, %v2211
    %v2213 = vpop.f32.mrb[0].mxu0
    %v2214 = vpop.f32.mrb[0].mxu0
    %v2215 = vadd.f32 0.0, %v2214
    %v2216 = vpop.f32.mrb[0].mxu0
    %2217 = vmatprep.mubr.bf16.mxu0 0
    %2218 = vmatmul.mubr.bf16.gmra.mrb[0].mxu0 %v1307
    %v2219 = vpop.f32.mrb[0].mxu0
    %v2220 = vadd.f32 0.0, %v2219
    %v2221 = vpop.f32.mrb[0].mxu0
    %v2222 = vpop.f32.mrb[0].mxu0
    %v2223 = vadd.f32 0.0, %v2222
    %v2224 = vpop.f32.mrb[0].mxu0
    %2225 = vmatprep.mubr.bf16.mxu0 0
    %2226 = vmatmul.mubr.bf16.gmra.mrb[0].mxu0 %v1310
    %v2227 = vpop.f32.mrb[0].mxu0
    %v2228 = vadd.f32 0.0, %v2227
    %v2229 = vpop.f32.mrb[0].mxu0
    %v2230 = vpop.f32.mrb[0].mxu0
    %v2231 = vadd.f32 0.0, %v2230
    %v2232 = vpop.f32.mrb[0].mxu0
    %2233 = vmatprep.mubr.bf16.mxu0 0
    %2234 = vmatmul.mubr.bf16.gmra.mrb[0].mxu0 %v1313
    %v2235 = vpop.f32.mrb[0].mxu0
    %v2236 = vadd.f32 0.0, %v2235
    %v2237 = vpop.f32.mrb[0].mxu0
    %v2238 = vpop.f32.mrb[0].mxu0
    %v2239 = vadd.f32 0.0, %v2238
    %v2240 = vpop.f32.mrb[0].mxu0
    %2241 = vmatprep.mubr.bf16.mxu0 0
    %2242 = vmatmul.mubr.bf16.gmra.mrb[0].mxu0 %v1316
    %v2243 = vpop.f32.mrb[0].mxu0
    %v2244 = vadd.f32 0.0, %v2243
    %v2245 = vpop.f32.mrb[0].mxu0
    %v2246 = vpop.f32.mrb[0].mxu0
    %v2247 = vadd.f32 0.0, %v2246
    %v2248 = vpop.f32.mrb[0].mxu0
    %2249 = vmatprep.mubr.bf16.mxu0 0
    %2250 = vmatmul.mubr.bf16.gmra.mrb[0].mxu0 %v1319
    %v2251 = vpop.f32.mrb[0].mxu0
    %v2252 = vadd.f32 0.0, %v2251
    %v2253 = vpop.f32.mrb[0].mxu0
    %v2254 = vpop.f32.mrb[0].mxu0
    %v2255 = vadd.f32 0.0, %v2254
    %v2256 = vpop.f32.mrb[0].mxu0
    %2257 = vmatprep.mubr.bf16.mxu0 0
    %2258 = vmatmul.mubr.bf16.gmra.mrb[0].mxu0 %v1322
    %v2259 = vpop.f32.mrb[0].mxu0
    %v2260 = vadd.f32 0.0, %v2259
    %v2261 = vpop.f32.mrb[0].mxu0
    %v2262 = vpop.f32.mrb[0].mxu0
    %v2263 = vadd.f32 0.0, %v2262
    %v2264 = vpop.f32.mrb[0].mxu0
    %2265 = vmatprep.mubr.bf16.mxu0 0
    %2266 = vmatmul.mubr.bf16.gmra.mrb[0].mxu0 %v1325
    %v2267 = vpop.f32.mrb[0].mxu0
    %v2268 = vadd.f32 0.0, %v2267
    %v2269 = vpop.f32.mrb[0].mxu0
    %v2270 = vpop.f32.mrb[0].mxu0
    %v2271 = vadd.f32 0.0, %v2270
    %v2272 = vpop.f32.mrb[0].mxu0
    %2273 = vmatprep.mubr.bf16.mxu0 0
    %2274 = vmatmul.mubr.bf16.gmra.mrb[0].mxu0 %v1328
    %v2275 = vpop.f32.mrb[0].mxu0
    %v2276 = vadd.f32 0.0, %v2275
    %v2277 = vpop.f32.mrb[0].mxu0
    %v2278 = vpop.f32.mrb[0].mxu0
    %v2279 = vadd.f32 0.0, %v2278
    %v2280 = vpop.f32.mrb[0].mxu0
    %2281 = vmatprep.mubr.bf16.mxu0 0
    %2282 = vmatmul.mubr.bf16.gmra.mrb[0].mxu0 %v1331
    %v2283 = vpop.f32.mrb[0].mxu0
    %v2284 = vadd.f32 0.0, %v2283
    %v2285 = vpop.f32.mrb[0].mxu0
    %v2286 = vpop.f32.mrb[0].mxu0
    %v2287 = vadd.f32 0.0, %v2286
    %v2288 = vpop.f32.mrb[0].mxu0
    %2289 = vmatprep.mubr.bf16.mxu0 0
    %2290 = vmatmul.mubr.bf16.gmra.mrb[0].mxu0 %v1334
    %v2291 = vpop.f32.mrb[0].mxu0
    %v2292 = vadd.f32 0.0, %v2291
    %v2293 = vpop.f32.mrb[0].mxu0
    %v2294 = vpop.f32.mrb[0].mxu0
    %v2295 = vadd.f32 0.0, %v2294
    %v2296 = vpop.f32.mrb[0].mxu0
    %2297 = vmatprep.mubr.bf16.mxu0 0
    %2298 = vmatmul.mubr.bf16.gmra.mrb[0].mxu0 %v1337
    %v2299 = vpop.f32.mrb[0].mxu0
    %v2300 = vadd.f32 0.0, %v2299
    %v2301 = vpop.f32.mrb[0].mxu0
    %v2302 = vpop.f32.mrb[0].mxu0
    %v2303 = vadd.f32 0.0, %v2302
    %v2304 = vpop.f32.mrb[0].mxu0
    %2305 = vmatprep.mubr.bf16.mxu0 0
    %2306 = vmatmul.mubr.bf16.gmra.mrb[0].mxu0 %v1340
    %v2307 = vpop.f32.mrb[0].mxu0
    %v2308 = vadd.f32 0.0, %v2307
    %v2309 = vpop.f32.mrb[0].mxu0
    %v2310 = vpop.f32.mrb[0].mxu0
    %v2311 = vadd.f32 0.0, %v2310
    %v2312 = vpop.f32.mrb[0].mxu0
    %2313 = vmatprep.mubr.bf16.mxu0 0
    %2314 = vmatmul.mubr.bf16.gmra.mrb[0].mxu0 %v1343
    %v2315 = vpop.f32.mrb[0].mxu0
    %v2316 = vadd.f32 0.0, %v2315
    %v2317 = vpop.f32.mrb[0].mxu0
    %v2318 = vpop.f32.mrb[0].mxu0
    %v2319 = vadd.f32 0.0, %v2318
    %v2320 = vpop.f32.mrb[0].mxu0
    %2321 = vmatprep.mubr.bf16.mxu0 0
    %2322 = vmatmul.mubr.bf16.gmra.mrb[0].mxu0 %v1346
    %v2323 = vpop.f32.mrb[0].mxu0
    %v2324 = vadd.f32 0.0, %v2323
    %v2325 = vpop.f32.mrb[0].mxu0
    %v2326 = vpop.f32.mrb[0].mxu0
    %v2327 = vadd.f32 0.0, %v2326
    %v2328 = vpop.f32.mrb[0].mxu0
    %2329 = vmatprep.mubr.bf16.mxu0 0
    %2330 = vmatmul.mubr.bf16.gmra.mrb[0].mxu0 %v1349
    %v2331 = vpop.f32.mrb[0].mxu0
    %v2332 = vadd.f32 0.0, %v2331
    %v2333 = vpop.f32.mrb[0].mxu0
    %v2334 = vpop.f32.mrb[0].mxu0
    %v2335 = vadd.f32 0.0, %v2334
    %v2336 = vpop.f32.mrb[0].mxu0
    %2337 = vmatprep.mubr.bf16.mxu0 0
    %2338 = vmatmul.mubr.bf16.gmra.mrb[0].mxu0 %v1352
    %v2339 = vpop.f32.mrb[0].mxu0
    %v2340 = vadd.f32 0.0, %v2339
    %v2341 = vpop.f32.mrb[0].mxu0
    %v2342 = vpop.f32.mrb[0].mxu0
    %v2343 = vadd.f32 0.0, %v2342
    %v2344 = vpop.f32.mrb[0].mxu0
    %2345 = vmatprep.mubr.bf16.mxu0 0
    %2346 = vmatmul.mubr.bf16.gmra.mrb[0].mxu0 %v1355
    %v2347 = vpop.f32.mrb[0].mxu0
    %v2348 = vadd.f32 0.0, %v2347
    %v2349 = vpop.f32.mrb[0].mxu0
    %v2350 = vpop.f32.mrb[0].mxu0
    %v2351 = vadd.f32 0.0, %v2350
    %v2352 = vpop.f32.mrb[0].mxu0
    %2353 = vmatprep.mubr.bf16.mxu0 0
    %2354 = vmatmul.mubr.bf16.gmra.mrb[0].mxu0 %v1358
    %v2355 = vpop.f32.mrb[0].mxu0
    %v2356 = vadd.f32 0.0, %v2355
    %v2357 = vpop.f32.mrb[0].mxu0
    %v2358 = vpop.f32.mrb[0].mxu0
    %v2359 = vadd.f32 0.0, %v2358
    %v2360 = vpop.f32.mrb[0].mxu0
    %2361 = vmatprep.mubr.bf16.mxu0 0
    %2362 = vmatmul.mubr.bf16.gmra.mrb[0].mxu0 %v1361
    %v2363 = vpop.f32.mrb[0].mxu0
    %v2364 = vadd.f32 0.0, %v2363
    %v2365 = vpop.f32.mrb[0].mxu0
    %v2366 = vpop.f32.mrb[0].mxu0
    %v2367 = vadd.f32 0.0, %v2366
    %v2368 = vpop.f32.mrb[0].mxu0
    %2369 = vmatprep.mubr.bf16.mxu0 0
    %2370 = vmatmul.mubr.bf16.gmra.mrb[0].mxu0 %v1364
    %v2371 = vpop.f32.mrb[0].mxu0
    %v2372 = vadd.f32 0.0, %v2371
    %v2373 = vpop.f32.mrb[0].mxu0
    %v2374 = vpop.f32.mrb[0].mxu0
    %v2375 = vadd.f32 0.0, %v2374
    %v2376 = vpop.f32.mrb[0].mxu0
    %2377 = vmatprep.mubr.bf16.mxu0 0
    %2378 = vmatmul.mubr.bf16.gmra.mrb[0].mxu0 %v1367
    %v2379 = vpop.f32.mrb[0].mxu0
    %v2380 = vadd.f32 0.0, %v2379
    %v2381 = vpop.f32.mrb[0].mxu0
    %v2382 = vpop.f32.mrb[0].mxu0
    %v2383 = vadd.f32 0.0, %v2382
    %v2384 = vpop.f32.mrb[0].mxu0
    %2385 = vmatprep.mubr.bf16.mxu0 0
    %2386 = vmatmul.mubr.bf16.gmra.mrb[0].mxu0 %v1370
    %v2387 = vpop.f32.mrb[0].mxu0
    %v2388 = vadd.f32 0.0, %v2387
    %v2389 = vpop.f32.mrb[0].mxu0
    %v2390 = vpop.f32.mrb[0].mxu0
    %v2391 = vadd.f32 0.0, %v2390
    %v2392 = vpop.f32.mrb[0].mxu0
    %2393 = vmatprep.mubr.bf16.mxu0 0
    %2394 = vmatmul.mubr.bf16.gmra.mrb[0].mxu0 %v1373
    %v2395 = vpop.f32.mrb[0].mxu0
    %v2396 = vadd.f32 0.0, %v2395
    %v2397 = vpop.f32.mrb[0].mxu0
    %v2398 = vpop.f32.mrb[0].mxu0
    %v2399 = vadd.f32 0.0, %v2398
    %v2400 = vpop.f32.mrb[0].mxu0
    %2401 = vmatprep.mubr.bf16.mxu0 0
    %2402 = vmatmul.mubr.bf16.gmra.mrb[0].mxu0 %v1376
    %v2403 = vpop.f32.mrb[0].mxu0
    %v2404 = vadd.f32 0.0, %v2403
    %v2405 = vpop.f32.mrb[0].mxu0
    %v2406 = vpop.f32.mrb[0].mxu0
    %v2407 = vadd.f32 0.0, %v2406
    %v2408 = vpop.f32.mrb[0].mxu0
    %2409 = vmatprep.mubr.bf16.mxu0 0
    %2410 = vmatmul.mubr.bf16.gmra.mrb[0].mxu0 %v1379
    %v2411 = vpop.f32.mrb[0].mxu0
    %v2412 = vadd.f32 0.0, %v2411
    %v2413 = vpop.f32.mrb[0].mxu0
    %v2414 = vpop.f32.mrb[0].mxu0
    %v2415 = vadd.f32 0.0, %v2414
    %v2416 = vpop.f32.mrb[0].mxu0
    %2417 = vmatprep.mubr.bf16.mxu0 0
    %2418 = vmatmul.mubr.bf16.gmra.mrb[0].mxu0 %v1382
    %v2419 = vpop.f32.mrb[0].mxu0
    %v2420 = vadd.f32 0.0, %v2419
    %v2421 = vpop.f32.mrb[0].mxu0
    %v2422 = vpop.f32.mrb[0].mxu0
    %v2423 = vadd.f32 0.0, %v2422
    %v2424 = vpop.f32.mrb[0].mxu0
    %2425 = vmatprep.mubr.bf16.mxu0 0
    %2426 = vmatmul.mubr.bf16.gmra.mrb[0].mxu0 %v1385
    %v2427 = vpop.f32.mrb[0].mxu0
    %v2428 = vadd.f32 0.0, %v2427
    %v2429 = vpop.f32.mrb[0].mxu0
    %v2430 = vpop.f32.mrb[0].mxu0
    %v2431 = vadd.f32 0.0, %v2430
    %v2432 = vpop.f32.mrb[0].mxu0
    %2433 = vmatprep.mubr.bf16.mxu0 0
    %2434 = vmatmul.mubr.bf16.gmra.mrb[0].mxu0 %v1388
    %v2435 = vpop.f32.mrb[0].mxu0
    %v2436 = vadd.f32 0.0, %v2435
    %v2437 = vpop.f32.mrb[0].mxu0
    %v2438 = vpop.f32.mrb[0].mxu0
    %v2439 = vadd.f32 0.0, %v2438
    %v2440 = vpop.f32.mrb[0].mxu0
    %2441 = vmatprep.mubr.bf16.mxu0 0
    %2442 = vmatmul.mubr.bf16.gmra.mrb[0].mxu0 %v1391
    %v2443 = vpop.f32.mrb[0].mxu0
    %v2444 = vadd.f32 0.0, %v2443
    %v2445 = vpop.f32.mrb[0].mxu0
    %v2446 = vpop.f32.mrb[0].mxu0
    %v2447 = vadd.f32 0.0, %v2446
    %v2448 = vpop.f32.mrb[0].mxu0
    %2449 = vdwg.mxu0
    %v2450 = vld [vmem:[#allocation2] sm:$0xff]
    %v2451 = vld [vmem:[#allocation2 + $0x8] sm:$0xff]
    %v2452 = vadd.f32 %v1428, %v2450
    %v2453 = vadd.f32 %v1431, %v2451
    %v2454 = vadd.f32 %v1436, %v2450
    %v2455 = vadd.f32 %v1439, %v2451
    %v2456 = vadd.f32 %v1444, %v2450
    %v2457 = vadd.f32 %v1447, %v2451
    %v2458 = vadd.f32 %v1452, %v2450
    %v2459 = vadd.f32 %v1455, %v2451
    %v2460 = vadd.f32 %v1460, %v2450
    %v2461 = vadd.f32 %v1463, %v2451
    %v2462 = vadd.f32 %v1468, %v2450
    %v2463 = vadd.f32 %v1471, %v2451
    %v2464 = vadd.f32 %v1476, %v2450
    %v2465 = vadd.f32 %v1479, %v2451
    %v2466 = vadd.f32 %v1484, %v2450
    %v2467 = vadd.f32 %v1487, %v2451
    %v2468 = vadd.f32 %v1492, %v2450
    %v2469 = vadd.f32 %v1495, %v2451
    %v2470 = vadd.f32 %v1500, %v2450
    %v2471 = vadd.f32 %v1503, %v2451
    %v2472 = vadd.f32 %v1508, %v2450
    %v2473 = vadd.f32 %v1511, %v2451
    %v2474 = vadd.f32 %v1516, %v2450
    %v2475 = vadd.f32 %v1519, %v2451
    %v2476 = vadd.f32 %v1524, %v2450
    %v2477 = vadd.f32 %v1527, %v2451
    %v2478 = vadd.f32 %v1532, %v2450
    %v2479 = vadd.f32 %v1535, %v2451
    %v2480 = vadd.f32 %v1540, %v2450
    %v2481 = vadd.f32 %v1543, %v2451
    %v2482 = vadd.f32 %v1548, %v2450
    %v2483 = vadd.f32 %v1551, %v2451
    %v2484 = vadd.f32 %v1556, %v2450
    %v2485 = vadd.f32 %v1559, %v2451
    %v2486 = vadd.f32 %v1564, %v2450
    %v2487 = vadd.f32 %v1567, %v2451
    %v2488 = vadd.f32 %v1572, %v2450
    %v2489 = vadd.f32 %v1575, %v2451
    %v2490 = vadd.f32 %v1580, %v2450
    %v2491 = vadd.f32 %v1583, %v2451
    %v2492 = vadd.f32 %v1588, %v2450
    %v2493 = vadd.f32 %v1591, %v2451
    %v2494 = vadd.f32 %v1596, %v2450
    %v2495 = vadd.f32 %v1599, %v2451
    %v2496 = vadd.f32 %v1604, %v2450
    %v2497 = vadd.f32 %v1607, %v2451
    %v2498 = vadd.f32 %v1612, %v2450
    %v2499 = vadd.f32 %v1615, %v2451
    %v2500 = vadd.f32 %v1620, %v2450
    %v2501 = vadd.f32 %v1623, %v2451
    %v2502 = vadd.f32 %v1628, %v2450
    %v2503 = vadd.f32 %v1631, %v2451
    %v2504 = vadd.f32 %v1636, %v2450
    %v2505 = vadd.f32 %v1639, %v2451
    %v2506 = vadd.f32 %v1644, %v2450
    %v2507 = vadd.f32 %v1647, %v2451
    %v2508 = vadd.f32 %v1652, %v2450
    %v2509 = vadd.f32 %v1655, %v2451
    %v2510 = vadd.f32 %v1660, %v2450
    %v2511 = vadd.f32 %v1663, %v2451
    %v2512 = vadd.f32 %v1668, %v2450
    %v2513 = vadd.f32 %v1671, %v2451
    %v2514 = vadd.f32 %v1676, %v2450
    %v2515 = vadd.f32 %v1679, %v2451
    %v2516 = vadd.f32 %v1684, %v2450
    %v2517 = vadd.f32 %v1687, %v2451
    %v2518 = vadd.f32 %v1692, %v2450
    %v2519 = vadd.f32 %v1695, %v2451
    %v2520 = vadd.f32 %v1700, %v2450
    %v2521 = vadd.f32 %v1703, %v2451
    %v2522 = vadd.f32 %v1708, %v2450
    %v2523 = vadd.f32 %v1711, %v2451
    %v2524 = vadd.f32 %v1716, %v2450
    %v2525 = vadd.f32 %v1719, %v2451
    %v2526 = vadd.f32 %v1724, %v2450
    %v2527 = vadd.f32 %v1727, %v2451
    %v2528 = vadd.f32 %v1732, %v2450
    %v2529 = vadd.f32 %v1735, %v2451
    %v2530 = vadd.f32 %v1740, %v2450
    %v2531 = vadd.f32 %v1743, %v2451
    %v2532 = vadd.f32 %v1748, %v2450
    %v2533 = vadd.f32 %v1751, %v2451
    %v2534 = vadd.f32 %v1756, %v2450
    %v2535 = vadd.f32 %v1759, %v2451
    %v2536 = vadd.f32 %v1764, %v2450
    %v2537 = vadd.f32 %v1767, %v2451
    %v2538 = vadd.f32 %v1772, %v2450
    %v2539 = vadd.f32 %v1775, %v2451
    %v2540 = vadd.f32 %v1780, %v2450
    %v2541 = vadd.f32 %v1783, %v2451
    %v2542 = vadd.f32 %v1788, %v2450
    %v2543 = vadd.f32 %v1791, %v2451
    %v2544 = vadd.f32 %v1796, %v2450
    %v2545 = vadd.f32 %v1799, %v2451
    %v2546 = vadd.f32 %v1804, %v2450
    %v2547 = vadd.f32 %v1807, %v2451
    %v2548 = vadd.f32 %v1812, %v2450
    %v2549 = vadd.f32 %v1815, %v2451
    %v2550 = vadd.f32 %v1820, %v2450
    %v2551 = vadd.f32 %v1823, %v2451
    %v2552 = vadd.f32 %v1828, %v2450
    %v2553 = vadd.f32 %v1831, %v2451
    %v2554 = vadd.f32 %v1836, %v2450
    %v2555 = vadd.f32 %v1839, %v2451
    %v2556 = vadd.f32 %v1844, %v2450
    %v2557 = vadd.f32 %v1847, %v2451
    %v2558 = vadd.f32 %v1852, %v2450
    %v2559 = vadd.f32 %v1855, %v2451
    %v2560 = vadd.f32 %v1860, %v2450
    %v2561 = vadd.f32 %v1863, %v2451
    %v2562 = vadd.f32 %v1868, %v2450
    %v2563 = vadd.f32 %v1871, %v2451
    %v2564 = vadd.f32 %v1876, %v2450
    %v2565 = vadd.f32 %v1879, %v2451
    %v2566 = vadd.f32 %v1884, %v2450
    %v2567 = vadd.f32 %v1887, %v2451
    %v2568 = vadd.f32 %v1892, %v2450
    %v2569 = vadd.f32 %v1895, %v2451
    %v2570 = vadd.f32 %v1900, %v2450
    %v2571 = vadd.f32 %v1903, %v2451
    %v2572 = vadd.f32 %v1908, %v2450
    %v2573 = vadd.f32 %v1911, %v2451
    %v2574 = vadd.f32 %v1916, %v2450
    %v2575 = vadd.f32 %v1919, %v2451
    %v2576 = vadd.f32 %v1924, %v2450
    %v2577 = vadd.f32 %v1927, %v2451
    %v2578 = vadd.f32 %v1932, %v2450
    %v2579 = vadd.f32 %v1935, %v2451
    %v2580 = vadd.f32 %v1940, %v2450
    %v2581 = vadd.f32 %v1943, %v2451
    %v2582 = vadd.f32 %v1948, %v2450
    %v2583 = vadd.f32 %v1951, %v2451
    %v2584 = vadd.f32 %v1956, %v2450
    %v2585 = vadd.f32 %v1959, %v2451
    %v2586 = vadd.f32 %v1964, %v2450
    %v2587 = vadd.f32 %v1967, %v2451
    %v2588 = vadd.f32 %v1972, %v2450
    %v2589 = vadd.f32 %v1975, %v2451
    %v2590 = vadd.f32 %v1980, %v2450
    %v2591 = vadd.f32 %v1983, %v2451
    %v2592 = vadd.f32 %v1988, %v2450
    %v2593 = vadd.f32 %v1991, %v2451
    %v2594 = vadd.f32 %v1996, %v2450
    %v2595 = vadd.f32 %v1999, %v2451
    %v2596 = vadd.f32 %v2004, %v2450
    %v2597 = vadd.f32 %v2007, %v2451
    %v2598 = vadd.f32 %v2012, %v2450
    %v2599 = vadd.f32 %v2015, %v2451
    %v2600 = vadd.f32 %v2020, %v2450
    %v2601 = vadd.f32 %v2023, %v2451
    %v2602 = vadd.f32 %v2028, %v2450
    %v2603 = vadd.f32 %v2031, %v2451
    %v2604 = vadd.f32 %v2036, %v2450
    %v2605 = vadd.f32 %v2039, %v2451
    %v2606 = vadd.f32 %v2044, %v2450
    %v2607 = vadd.f32 %v2047, %v2451
    %v2608 = vadd.f32 %v2052, %v2450
    %v2609 = vadd.f32 %v2055, %v2451
    %v2610 = vadd.f32 %v2060, %v2450
    %v2611 = vadd.f32 %v2063, %v2451
    %v2612 = vadd.f32 %v2068, %v2450
    %v2613 = vadd.f32 %v2071, %v2451
    %v2614 = vadd.f32 %v2076, %v2450
    %v2615 = vadd.f32 %v2079, %v2451
    %v2616 = vadd.f32 %v2084, %v2450
    %v2617 = vadd.f32 %v2087, %v2451
    %v2618 = vadd.f32 %v2092, %v2450
    %v2619 = vadd.f32 %v2095, %v2451
    %v2620 = vadd.f32 %v2100, %v2450
    %v2621 = vadd.f32 %v2103, %v2451
    %v2622 = vadd.f32 %v2108, %v2450
    %v2623 = vadd.f32 %v2111, %v2451
    %v2624 = vadd.f32 %v2116, %v2450
    %v2625 = vadd.f32 %v2119, %v2451
    %v2626 = vadd.f32 %v2124, %v2450
    %v2627 = vadd.f32 %v2127, %v2451
    %v2628 = vadd.f32 %v2132, %v2450
    %v2629 = vadd.f32 %v2135, %v2451
    %v2630 = vadd.f32 %v2140, %v2450
    %v2631 = vadd.f32 %v2143, %v2451
    %v2632 = vadd.f32 %v2148, %v2450
    %v2633 = vadd.f32 %v2151, %v2451
    %v2634 = vadd.f32 %v2156, %v2450
    %v2635 = vadd.f32 %v2159, %v2451
    %v2636 = vadd.f32 %v2164, %v2450
    %v2637 = vadd.f32 %v2167, %v2451
    %v2638 = vadd.f32 %v2172, %v2450
    %v2639 = vadd.f32 %v2175, %v2451
    %v2640 = vadd.f32 %v2180, %v2450
    %v2641 = vadd.f32 %v2183, %v2451
    %v2642 = vadd.f32 %v2188, %v2450
    %v2643 = vadd.f32 %v2191, %v2451
    %v2644 = vadd.f32 %v2196, %v2450
    %v2645 = vadd.f32 %v2199, %v2451
    %v2646 = vadd.f32 %v2204, %v2450
    %v2647 = vadd.f32 %v2207, %v2451
    %v2648 = vadd.f32 %v2212, %v2450
    %v2649 = vadd.f32 %v2215, %v2451
    %v2650 = vadd.f32 %v2220, %v2450
    %v2651 = vadd.f32 %v2223, %v2451
    %v2652 = vadd.f32 %v2228, %v2450
    %v2653 = vadd.f32 %v2231, %v2451
    %v2654 = vadd.f32 %v2236, %v2450
    %v2655 = vadd.f32 %v2239, %v2451
    %v2656 = vadd.f32 %v2244, %v2450
    %v2657 = vadd.f32 %v2247, %v2451
    %v2658 = vadd.f32 %v2252, %v2450
    %v2659 = vadd.f32 %v2255, %v2451
    %v2660 = vadd.f32 %v2260, %v2450
    %v2661 = vadd.f32 %v2263, %v2451
    %v2662 = vadd.f32 %v2268, %v2450
    %v2663 = vadd.f32 %v2271, %v2451
    %v2664 = vadd.f32 %v2276, %v2450
    %v2665 = vadd.f32 %v2279, %v2451
    %v2666 = vadd.f32 %v2284, %v2450
    %v2667 = vadd.f32 %v2287, %v2451
    %v2668 = vadd.f32 %v2292, %v2450
    %v2669 = vadd.f32 %v2295, %v2451
    %v2670 = vadd.f32 %v2300, %v2450
    %v2671 = vadd.f32 %v2303, %v2451
    %v2672 = vadd.f32 %v2308, %v2450
    %v2673 = vadd.f32 %v2311, %v2451
    %v2674 = vadd.f32 %v2316, %v2450
    %v2675 = vadd.f32 %v2319, %v2451
    %v2676 = vadd.f32 %v2324, %v2450
    %v2677 = vadd.f32 %v2327, %v2451
    %v2678 = vadd.f32 %v2332, %v2450
    %v2679 = vadd.f32 %v2335, %v2451
    %v2680 = vadd.f32 %v2340, %v2450
    %v2681 = vadd.f32 %v2343, %v2451
    %v2682 = vadd.f32 %v2348, %v2450
    %v2683 = vadd.f32 %v2351, %v2451
    %v2684 = vadd.f32 %v2356, %v2450
    %v2685 = vadd.f32 %v2359, %v2451
    %v2686 = vadd.f32 %v2364, %v2450
    %v2687 = vadd.f32 %v2367, %v2451
    %v2688 = vadd.f32 %v2372, %v2450
    %v2689 = vadd.f32 %v2375, %v2451
    %v2690 = vadd.f32 %v2380, %v2450
    %v2691 = vadd.f32 %v2383, %v2451
    %v2692 = vadd.f32 %v2388, %v2450
    %v2693 = vadd.f32 %v2391, %v2451
    %v2694 = vadd.f32 %v2396, %v2450
    %v2695 = vadd.f32 %v2399, %v2451
    %v2696 = vadd.f32 %v2404, %v2450
    %v2697 = vadd.f32 %v2407, %v2451
    %v2698 = vadd.f32 %v2412, %v2450
    %v2699 = vadd.f32 %v2415, %v2451
    %v2700 = vadd.f32 %v2420, %v2450
    %v2701 = vadd.f32 %v2423, %v2451
    %v2702 = vadd.f32 %v2428, %v2450
    %v2703 = vadd.f32 %v2431, %v2451
    %v2704 = vadd.f32 %v2436, %v2450
    %v2705 = vadd.f32 %v2439, %v2451
    %v2706 = vadd.f32 %v2444, %v2450
    %v2707 = vadd.f32 %v2447, %v2451
    %v2708 = vtanh.pop %v2452
    %v2709 = vtanh.pop %v2453
    %v2710 = vtanh.pop %v2454
    %v2711 = vtanh.pop %v2455
    %v2712 = vtanh.pop %v2456
    %v2713 = vtanh.pop %v2457
    %v2714 = vtanh.pop %v2458
    %v2715 = vtanh.pop %v2459
    %v2716 = vtanh.pop %v2460
    %v2717 = vtanh.pop %v2461
    %v2718 = vtanh.pop %v2462
    %v2719 = vtanh.pop %v2463
    %v2720 = vtanh.pop %v2464
    %v2721 = vtanh.pop %v2465
    %v2722 = vtanh.pop %v2466
    %v2723 = vtanh.pop %v2467
    %v2724 = vtanh.pop %v2468
    %v2725 = vtanh.pop %v2469
    %v2726 = vtanh.pop %v2470
    %v2727 = vtanh.pop %v2471
    %v2728 = vtanh.pop %v2472
    %v2729 = vtanh.pop %v2473
    %v2730 = vtanh.pop %v2474
    %v2731 = vtanh.pop %v2475
    %v2732 = vtanh.pop %v2476
    %v2733 = vtanh.pop %v2477
    %v2734 = vtanh.pop %v2478
    %v2735 = vtanh.pop %v2479
    %v2736 = vtanh.pop %v2480
    %v2737 = vtanh.pop %v2481
    %v2738 = vtanh.pop %v2482
    %v2739 = vtanh.pop %v2483
    %v2740 = vtanh.pop %v2484
    %v2741 = vtanh.pop %v2485
    %v2742 = vtanh.pop %v2486
    %v2743 = vtanh.pop %v2487
    %v2744 = vtanh.pop %v2488
    %v2745 = vtanh.pop %v2489
    %v2746 = vtanh.pop %v2490
    %v2747 = vtanh.pop %v2491
    %v2748 = vtanh.pop %v2492
    %v2749 = vtanh.pop %v2493
    %v2750 = vtanh.pop %v2494
    %v2751 = vtanh.pop %v2495
    %v2752 = vtanh.pop %v2496
    %v2753 = vtanh.pop %v2497
    %v2754 = vtanh.pop %v2498
    %v2755 = vtanh.pop %v2499
    %v2756 = vtanh.pop %v2500
    %v2757 = vtanh.pop %v2501
    %v2758 = vtanh.pop %v2502
    %v2759 = vtanh.pop %v2503
    %v2760 = vtanh.pop %v2504
    %v2761 = vtanh.pop %v2505
    %v2762 = vtanh.pop %v2506
    %v2763 = vtanh.pop %v2507
    %v2764 = vtanh.pop %v2508
    %v2765 = vtanh.pop %v2509
    %v2766 = vtanh.pop %v2510
    %v2767 = vtanh.pop %v2511
    %v2768 = vtanh.pop %v2512
    %v2769 = vtanh.pop %v2513
    %v2770 = vtanh.pop %v2514
    %v2771 = vtanh.pop %v2515
    %v2772 = vtanh.pop %v2516
    %v2773 = vtanh.pop %v2517
    %v2774 = vtanh.pop %v2518
    %v2775 = vtanh.pop %v2519
    %v2776 = vtanh.pop %v2520
    %v2777 = vtanh.pop %v2521
    %v2778 = vtanh.pop %v2522
    %v2779 = vtanh.pop %v2523
    %v2780 = vtanh.pop %v2524
    %v2781 = vtanh.pop %v2525
    %v2782 = vtanh.pop %v2526
    %v2783 = vtanh.pop %v2527
    %v2784 = vtanh.pop %v2528
    %v2785 = vtanh.pop %v2529
    %v2786 = vtanh.pop %v2530
    %v2787 = vtanh.pop %v2531
    %v2788 = vtanh.pop %v2532
    %v2789 = vtanh.pop %v2533
    %v2790 = vtanh.pop %v2534
    %v2791 = vtanh.pop %v2535
    %v2792 = vtanh.pop %v2536
    %v2793 = vtanh.pop %v2537
    %v2794 = vtanh.pop %v2538
    %v2795 = vtanh.pop %v2539
    %v2796 = vtanh.pop %v2540
    %v2797 = vtanh.pop %v2541
    %v2798 = vtanh.pop %v2542
    %v2799 = vtanh.pop %v2543
    %v2800 = vtanh.pop %v2544
    %v2801 = vtanh.pop %v2545
    %v2802 = vtanh.pop %v2546
    %v2803 = vtanh.pop %v2547
    %v2804 = vtanh.pop %v2548
    %v2805 = vtanh.pop %v2549
    %v2806 = vtanh.pop %v2550
    %v2807 = vtanh.pop %v2551
    %v2808 = vtanh.pop %v2552
    %v2809 = vtanh.pop %v2553
    %v2810 = vtanh.pop %v2554
    %v2811 = vtanh.pop %v2555
    %v2812 = vtanh.pop %v2556
    %v2813 = vtanh.pop %v2557
    %v2814 = vtanh.pop %v2558
    %v2815 = vtanh.pop %v2559
    %v2816 = vtanh.pop %v2560
    %v2817 = vtanh.pop %v2561
    %v2818 = vtanh.pop %v2562
    %v2819 = vtanh.pop %v2563
    %v2820 = vtanh.pop %v2564
    %v2821 = vtanh.pop %v2565
    %v2822 = vtanh.pop %v2566
    %v2823 = vtanh.pop %v2567
    %v2824 = vtanh.pop %v2568
    %v2825 = vtanh.pop %v2569
    %v2826 = vtanh.pop %v2570
    %v2827 = vtanh.pop %v2571
    %v2828 = vtanh.pop %v2572
    %v2829 = vtanh.pop %v2573
    %v2830 = vtanh.pop %v2574
    %v2831 = vtanh.pop %v2575
    %v2832 = vtanh.pop %v2576
    %v2833 = vtanh.pop %v2577
    %v2834 = vtanh.pop %v2578
    %v2835 = vtanh.pop %v2579
    %v2836 = vtanh.pop %v2580
    %v2837 = vtanh.pop %v2581
    %v2838 = vtanh.pop %v2582
    %v2839 = vtanh.pop %v2583
    %v2840 = vtanh.pop %v2584
    %v2841 = vtanh.pop %v2585
    %v2842 = vtanh.pop %v2586
    %v2843 = vtanh.pop %v2587
    %v2844 = vtanh.pop %v2588
    %v2845 = vtanh.pop %v2589
    %v2846 = vtanh.pop %v2590
    %v2847 = vtanh.pop %v2591
    %v2848 = vtanh.pop %v2592
    %v2849 = vtanh.pop %v2593
    %v2850 = vtanh.pop %v2594
    %v2851 = vtanh.pop %v2595
    %v2852 = vtanh.pop %v2596
    %v2853 = vtanh.pop %v2597
    %v2854 = vtanh.pop %v2598
    %v2855 = vtanh.pop %v2599
    %v2856 = vtanh.pop %v2600
    %v2857 = vtanh.pop %v2601
    %v2858 = vtanh.pop %v2602
    %v2859 = vtanh.pop %v2603
    %v2860 = vtanh.pop %v2604
    %v2861 = vtanh.pop %v2605
    %v2862 = vtanh.pop %v2606
    %v2863 = vtanh.pop %v2607
    %v2864 = vtanh.pop %v2608
    %v2865 = vtanh.pop %v2609
    %v2866 = vtanh.pop %v2610
    %v2867 = vtanh.pop %v2611
    %v2868 = vtanh.pop %v2612
    %v2869 = vtanh.pop %v2613
    %v2870 = vtanh.pop %v2614
    %v2871 = vtanh.pop %v2615
    %v2872 = vtanh.pop %v2616
    %v2873 = vtanh.pop %v2617
    %v2874 = vtanh.pop %v2618
    %v2875 = vtanh.pop %v2619
    %v2876 = vtanh.pop %v2620
    %v2877 = vtanh.pop %v2621
    %v2878 = vtanh.pop %v2622
    %v2879 = vtanh.pop %v2623
    %v2880 = vtanh.pop %v2624
    %v2881 = vtanh.pop %v2625
    %v2882 = vtanh.pop %v2626
    %v2883 = vtanh.pop %v2627
    %v2884 = vtanh.pop %v2628
    %v2885 = vtanh.pop %v2629
    %v2886 = vtanh.pop %v2630
    %v2887 = vtanh.pop %v2631
    %v2888 = vtanh.pop %v2632
    %v2889 = vtanh.pop %v2633
    %v2890 = vtanh.pop %v2634
    %v2891 = vtanh.pop %v2635
    %v2892 = vtanh.pop %v2636
    %v2893 = vtanh.pop %v2637
    %v2894 = vtanh.pop %v2638
    %v2895 = vtanh.pop %v2639
    %v2896 = vtanh.pop %v2640
    %v2897 = vtanh.pop %v2641
    %v2898 = vtanh.pop %v2642
    %v2899 = vtanh.pop %v2643
    %v2900 = vtanh.pop %v2644
    %v2901 = vtanh.pop %v2645
    %v2902 = vtanh.pop %v2646
    %v2903 = vtanh.pop %v2647
    %v2904 = vtanh.pop %v2648
    %v2905 = vtanh.pop %v2649
    %v2906 = vtanh.pop %v2650
    %v2907 = vtanh.pop %v2651
    %v2908 = vtanh.pop %v2652
    %v2909 = vtanh.pop %v2653
    %v2910 = vtanh.pop %v2654
    %v2911 = vtanh.pop %v2655
    %v2912 = vtanh.pop %v2656
    %v2913 = vtanh.pop %v2657
    %v2914 = vtanh.pop %v2658
    %v2915 = vtanh.pop %v2659
    %v2916 = vtanh.pop %v2660
    %v2917 = vtanh.pop %v2661
    %v2918 = vtanh.pop %v2662
    %v2919 = vtanh.pop %v2663
    %v2920 = vtanh.pop %v2664
    %v2921 = vtanh.pop %v2665
    %v2922 = vtanh.pop %v2666
    %v2923 = vtanh.pop %v2667
    %v2924 = vtanh.pop %v2668
    %v2925 = vtanh.pop %v2669
    %v2926 = vtanh.pop %v2670
    %v2927 = vtanh.pop %v2671
    %v2928 = vtanh.pop %v2672
    %v2929 = vtanh.pop %v2673
    %v2930 = vtanh.pop %v2674
    %v2931 = vtanh.pop %v2675
    %v2932 = vtanh.pop %v2676
    %v2933 = vtanh.pop %v2677
    %v2934 = vtanh.pop %v2678
    %v2935 = vtanh.pop %v2679
    %v2936 = vtanh.pop %v2680
    %v2937 = vtanh.pop %v2681
    %v2938 = vtanh.pop %v2682
    %v2939 = vtanh.pop %v2683
    %v2940 = vtanh.pop %v2684
    %v2941 = vtanh.pop %v2685
    %v2942 = vtanh.pop %v2686
    %v2943 = vtanh.pop %v2687
    %v2944 = vtanh.pop %v2688
    %v2945 = vtanh.pop %v2689
    %v2946 = vtanh.pop %v2690
    %v2947 = vtanh.pop %v2691
    %v2948 = vtanh.pop %v2692
    %v2949 = vtanh.pop %v2693
    %v2950 = vtanh.pop %v2694
    %v2951 = vtanh.pop %v2695
    %v2952 = vtanh.pop %v2696
    %v2953 = vtanh.pop %v2697
    %v2954 = vtanh.pop %v2698
    %v2955 = vtanh.pop %v2699
    %v2956 = vtanh.pop %v2700
    %v2957 = vtanh.pop %v2701
    %v2958 = vtanh.pop %v2702
    %v2959 = vtanh.pop %v2703
    %v2960 = vtanh.pop %v2704
    %v2961 = vtanh.pop %v2705
    %v2962 = vtanh.pop %v2706
    %v2963 = vtanh.pop %v2707
    %v2964 = vld [vmem:[%s4] sm:$0x1]
    %v2965 = vunpack.c.l.bf16 %v2964
    %v2966 = vlaneseq
    %v2967 = vshrl.u32 %v2966, 7
    %v2968 = vsub.s32 0, %v2967
    %v2969 = vrot.slane %v2965, %v2968
    %v2970 = vmul.f32 %v2708, %v2969
    %v2971 = vmul.f32 %v2709, %v2969
    %v2972 = vmul.f32 %v2710, %v2969
    %v2973 = vmul.f32 %v2711, %v2969
    %v2974 = vmul.f32 %v2712, %v2969
    %v2975 = vmul.f32 %v2713, %v2969
    %v2976 = vmul.f32 %v2714, %v2969
    %v2977 = vmul.f32 %v2715, %v2969
    %v2978 = vmul.f32 %v2716, %v2969
    %v2979 = vmul.f32 %v2717, %v2969
    %v2980 = vmul.f32 %v2718, %v2969
    %v2981 = vmul.f32 %v2719, %v2969
    %v2982 = vmul.f32 %v2720, %v2969
    %v2983 = vmul.f32 %v2721, %v2969
    %v2984 = vmul.f32 %v2722, %v2969
    %v2985 = vmul.f32 %v2723, %v2969
    %v2986 = vmul.f32 %v2724, %v2969
    %v2987 = vmul.f32 %v2725, %v2969
    %v2988 = vmul.f32 %v2726, %v2969
    %v2989 = vmul.f32 %v2727, %v2969
    %v2990 = vmul.f32 %v2728, %v2969
    %v2991 = vmul.f32 %v2729, %v2969
    %v2992 = vmul.f32 %v2730, %v2969
    %v2993 = vmul.f32 %v2731, %v2969
    %v2994 = vmul.f32 %v2732, %v2969
    %v2995 = vmul.f32 %v2733, %v2969
    %v2996 = vmul.f32 %v2734, %v2969
    %v2997 = vmul.f32 %v2735, %v2969
    %v2998 = vmul.f32 %v2736, %v2969
    %v2999 = vmul.f32 %v2737, %v2969
    %v3000 = vmul.f32 %v2738, %v2969
    %v3001 = vmul.f32 %v2739, %v2969
    %v3002 = vmul.f32 %v2740, %v2969
    %v3003 = vmul.f32 %v2741, %v2969
    %v3004 = vmul.f32 %v2742, %v2969
    %v3005 = vmul.f32 %v2743, %v2969
    %v3006 = vmul.f32 %v2744, %v2969
    %v3007 = vmul.f32 %v2745, %v2969
    %v3008 = vmul.f32 %v2746, %v2969
    %v3009 = vmul.f32 %v2747, %v2969
    %v3010 = vmul.f32 %v2748, %v2969
    %v3011 = vmul.f32 %v2749, %v2969
    %v3012 = vmul.f32 %v2750, %v2969
    %v3013 = vmul.f32 %v2751, %v2969
    %v3014 = vmul.f32 %v2752, %v2969
    %v3015 = vmul.f32 %v2753, %v2969
    %v3016 = vmul.f32 %v2754, %v2969
    %v3017 = vmul.f32 %v2755, %v2969
    %v3018 = vmul.f32 %v2756, %v2969
    %v3019 = vmul.f32 %v2757, %v2969
    %v3020 = vmul.f32 %v2758, %v2969
    %v3021 = vmul.f32 %v2759, %v2969
    %v3022 = vmul.f32 %v2760, %v2969
    %v3023 = vmul.f32 %v2761, %v2969
    %v3024 = vmul.f32 %v2762, %v2969
    %v3025 = vmul.f32 %v2763, %v2969
    %v3026 = vmul.f32 %v2764, %v2969
    %v3027 = vmul.f32 %v2765, %v2969
    %v3028 = vmul.f32 %v2766, %v2969
    %v3029 = vmul.f32 %v2767, %v2969
    %v3030 = vmul.f32 %v2768, %v2969
    %v3031 = vmul.f32 %v2769, %v2969
    %v3032 = vmul.f32 %v2770, %v2969
    %v3033 = vmul.f32 %v2771, %v2969
    %v3034 = vmul.f32 %v2772, %v2969
    %v3035 = vmul.f32 %v2773, %v2969
    %v3036 = vmul.f32 %v2774, %v2969
    %v3037 = vmul.f32 %v2775, %v2969
    %v3038 = vmul.f32 %v2776, %v2969
    %v3039 = vmul.f32 %v2777, %v2969
    %v3040 = vmul.f32 %v2778, %v2969
    %v3041 = vmul.f32 %v2779, %v2969
    %v3042 = vmul.f32 %v2780, %v2969
    %v3043 = vmul.f32 %v2781, %v2969
    %v3044 = vmul.f32 %v2782, %v2969
    %v3045 = vmul.f32 %v2783, %v2969
    %v3046 = vmul.f32 %v2784, %v2969
    %v3047 = vmul.f32 %v2785, %v2969
    %v3048 = vmul.f32 %v2786, %v2969
    %v3049 = vmul.f32 %v2787, %v2969
    %v3050 = vmul.f32 %v2788, %v2969
    %v3051 = vmul.f32 %v2789, %v2969
    %v3052 = vmul.f32 %v2790, %v2969
    %v3053 = vmul.f32 %v2791, %v2969
    %v3054 = vmul.f32 %v2792, %v2969
    %v3055 = vmul.f32 %v2793, %v2969
    %v3056 = vmul.f32 %v2794, %v2969
    %v3057 = vmul.f32 %v2795, %v2969
    %v3058 = vmul.f32 %v2796, %v2969
    %v3059 = vmul.f32 %v2797, %v2969
    %v3060 = vmul.f32 %v2798, %v2969
    %v3061 = vmul.f32 %v2799, %v2969
    %v3062 = vmul.f32 %v2800, %v2969
    %v3063 = vmul.f32 %v2801, %v2969
    %v3064 = vmul.f32 %v2802, %v2969
    %v3065 = vmul.f32 %v2803, %v2969
    %v3066 = vmul.f32 %v2804, %v2969
    %v3067 = vmul.f32 %v2805, %v2969
    %v3068 = vmul.f32 %v2806, %v2969
    %v3069 = vmul.f32 %v2807, %v2969
    %v3070 = vmul.f32 %v2808, %v2969
    %v3071 = vmul.f32 %v2809, %v2969
    %v3072 = vmul.f32 %v2810, %v2969
    %v3073 = vmul.f32 %v2811, %v2969
    %v3074 = vmul.f32 %v2812, %v2969
    %v3075 = vmul.f32 %v2813, %v2969
    %v3076 = vmul.f32 %v2814, %v2969
    %v3077 = vmul.f32 %v2815, %v2969
    %v3078 = vmul.f32 %v2816, %v2969
    %v3079 = vmul.f32 %v2817, %v2969
    %v3080 = vmul.f32 %v2818, %v2969
    %v3081 = vmul.f32 %v2819, %v2969
    %v3082 = vmul.f32 %v2820, %v2969
    %v3083 = vmul.f32 %v2821, %v2969
    %v3084 = vmul.f32 %v2822, %v2969
    %v3085 = vmul.f32 %v2823, %v2969
    %v3086 = vmul.f32 %v2824, %v2969
    %v3087 = vmul.f32 %v2825, %v2969
    %v3088 = vmul.f32 %v2826, %v2969
    %v3089 = vmul.f32 %v2827, %v2969
    %v3090 = vmul.f32 %v2828, %v2969
    %v3091 = vmul.f32 %v2829, %v2969
    %v3092 = vmul.f32 %v2830, %v2969
    %v3093 = vmul.f32 %v2831, %v2969
    %v3094 = vmul.f32 %v2832, %v2969
    %v3095 = vmul.f32 %v2833, %v2969
    %v3096 = vmul.f32 %v2834, %v2969
    %v3097 = vmul.f32 %v2835, %v2969
    %v3098 = vmul.f32 %v2836, %v2969
    %v3099 = vmul.f32 %v2837, %v2969
    %v3100 = vmul.f32 %v2838, %v2969
    %v3101 = vmul.f32 %v2839, %v2969
    %v3102 = vmul.f32 %v2840, %v2969
    %v3103 = vmul.f32 %v2841, %v2969
    %v3104 = vmul.f32 %v2842, %v2969
    %v3105 = vmul.f32 %v2843, %v2969
    %v3106 = vmul.f32 %v2844, %v2969
    %v3107 = vmul.f32 %v2845, %v2969
    %v3108 = vmul.f32 %v2846, %v2969
    %v3109 = vmul.f32 %v2847, %v2969
    %v3110 = vmul.f32 %v2848, %v2969
    %v3111 = vmul.f32 %v2849, %v2969
    %v3112 = vmul.f32 %v2850, %v2969
    %v3113 = vmul.f32 %v2851, %v2969
    %v3114 = vmul.f32 %v2852, %v2969
    %v3115 = vmul.f32 %v2853, %v2969
    %v3116 = vmul.f32 %v2854, %v2969
    %v3117 = vmul.f32 %v2855, %v2969
    %v3118 = vmul.f32 %v2856, %v2969
    %v3119 = vmul.f32 %v2857, %v2969
    %v3120 = vmul.f32 %v2858, %v2969
    %v3121 = vmul.f32 %v2859, %v2969
    %v3122 = vmul.f32 %v2860, %v2969
    %v3123 = vmul.f32 %v2861, %v2969
    %v3124 = vmul.f32 %v2862, %v2969
    %v3125 = vmul.f32 %v2863, %v2969
    %v3126 = vmul.f32 %v2864, %v2969
    %v3127 = vmul.f32 %v2865, %v2969
    %v3128 = vmul.f32 %v2866, %v2969
    %v3129 = vmul.f32 %v2867, %v2969
    %v3130 = vmul.f32 %v2868, %v2969
    %v3131 = vmul.f32 %v2869, %v2969
    %v3132 = vmul.f32 %v2870, %v2969
    %v3133 = vmul.f32 %v2871, %v2969
    %v3134 = vmul.f32 %v2872, %v2969
    %v3135 = vmul.f32 %v2873, %v2969
    %v3136 = vmul.f32 %v2874, %v2969
    %v3137 = vmul.f32 %v2875, %v2969
    %v3138 = vmul.f32 %v2876, %v2969
    %v3139 = vmul.f32 %v2877, %v2969
    %v3140 = vmul.f32 %v2878, %v2969
    %v3141 = vmul.f32 %v2879, %v2969
    %v3142 = vmul.f32 %v2880, %v2969
    %v3143 = vmul.f32 %v2881, %v2969
    %v3144 = vmul.f32 %v2882, %v2969
    %v3145 = vmul.f32 %v2883, %v2969
    %v3146 = vmul.f32 %v2884, %v2969
    %v3147 = vmul.f32 %v2885, %v2969
    %v3148 = vmul.f32 %v2886, %v2969
    %v3149 = vmul.f32 %v2887, %v2969
    %v3150 = vmul.f32 %v2888, %v2969
    %v3151 = vmul.f32 %v2889, %v2969
    %v3152 = vmul.f32 %v2890, %v2969
    %v3153 = vmul.f32 %v2891, %v2969
    %v3154 = vmul.f32 %v2892, %v2969
    %v3155 = vmul.f32 %v2893, %v2969
    %v3156 = vmul.f32 %v2894, %v2969
    %v3157 = vmul.f32 %v2895, %v2969
    %v3158 = vmul.f32 %v2896, %v2969
    %v3159 = vmul.f32 %v2897, %v2969
    %v3160 = vmul.f32 %v2898, %v2969
    %v3161 = vmul.f32 %v2899, %v2969
    %v3162 = vmul.f32 %v2900, %v2969
    %v3163 = vmul.f32 %v2901, %v2969
    %v3164 = vmul.f32 %v2902, %v2969
    %v3165 = vmul.f32 %v2903, %v2969
    %v3166 = vmul.f32 %v2904, %v2969
    %v3167 = vmul.f32 %v2905, %v2969
    %v3168 = vmul.f32 %v2906, %v2969
    %v3169 = vmul.f32 %v2907, %v2969
    %v3170 = vmul.f32 %v2908, %v2969
    %v3171 = vmul.f32 %v2909, %v2969
    %v3172 = vmul.f32 %v2910, %v2969
    %v3173 = vmul.f32 %v2911, %v2969
    %v3174 = vmul.f32 %v2912, %v2969
    %v3175 = vmul.f32 %v2913, %v2969
    %v3176 = vmul.f32 %v2914, %v2969
    %v3177 = vmul.f32 %v2915, %v2969
    %v3178 = vmul.f32 %v2916, %v2969
    %v3179 = vmul.f32 %v2917, %v2969
    %v3180 = vmul.f32 %v2918, %v2969
    %v3181 = vmul.f32 %v2919, %v2969
    %v3182 = vmul.f32 %v2920, %v2969
    %v3183 = vmul.f32 %v2921, %v2969
    %v3184 = vmul.f32 %v2922, %v2969
    %v3185 = vmul.f32 %v2923, %v2969
    %v3186 = vmul.f32 %v2924, %v2969
    %v3187 = vmul.f32 %v2925, %v2969
    %v3188 = vmul.f32 %v2926, %v2969
    %v3189 = vmul.f32 %v2927, %v2969
    %v3190 = vmul.f32 %v2928, %v2969
    %v3191 = vmul.f32 %v2929, %v2969
    %v3192 = vmul.f32 %v2930, %v2969
    %v3193 = vmul.f32 %v2931, %v2969
    %v3194 = vmul.f32 %v2932, %v2969
    %v3195 = vmul.f32 %v2933, %v2969
    %v3196 = vmul.f32 %v2934, %v2969
    %v3197 = vmul.f32 %v2935, %v2969
    %v3198 = vmul.f32 %v2936, %v2969
    %v3199 = vmul.f32 %v2937, %v2969
    %v3200 = vmul.f32 %v2938, %v2969
    %v3201 = vmul.f32 %v2939, %v2969
    %v3202 = vmul.f32 %v2940, %v2969
    %v3203 = vmul.f32 %v2941, %v2969
    %v3204 = vmul.f32 %v2942, %v2969
    %v3205 = vmul.f32 %v2943, %v2969
    %v3206 = vmul.f32 %v2944, %v2969
    %v3207 = vmul.f32 %v2945, %v2969
    %v3208 = vmul.f32 %v2946, %v2969
    %v3209 = vmul.f32 %v2947, %v2969
    %v3210 = vmul.f32 %v2948, %v2969
    %v3211 = vmul.f32 %v2949, %v2969
    %v3212 = vmul.f32 %v2950, %v2969
    %v3213 = vmul.f32 %v2951, %v2969
    %v3214 = vmul.f32 %v2952, %v2969
    %v3215 = vmul.f32 %v2953, %v2969
    %v3216 = vmul.f32 %v2954, %v2969
    %v3217 = vmul.f32 %v2955, %v2969
    %v3218 = vmul.f32 %v2956, %v2969
    %v3219 = vmul.f32 %v2957, %v2969
    %v3220 = vmul.f32 %v2958, %v2969
    %v3221 = vmul.f32 %v2959, %v2969
    %v3222 = vmul.f32 %v2960, %v2969
    %v3223 = vmul.f32 %v2961, %v2969
    %v3224 = vmul.f32 %v2962, %v2969
    %v3225 = vmul.f32 %v2963, %v2969
    %v3226 = vsel %vm1008, %v2970, 0.0
    %3227 = vadd.xlane.f32.xlu0 %v3226
    %v3228 = vpop.xlane.xlu0 %3227
    %v3229 = vsel %vm1008, %v2971, 0.0
    %3230 = vadd.xlane.f32.xlu0 %v3229
    %v3231 = vpop.xlane.xlu0 %3230
    %v3232 = vsel %vm1008, %v2972, 0.0
    %3233 = vadd.xlane.f32.xlu0 %v3232
    %v3234 = vpop.xlane.xlu0 %3233
    %v3235 = vsel %vm1008, %v2973, 0.0
    %3236 = vadd.xlane.f32.xlu0 %v3235
    %v3237 = vpop.xlane.xlu0 %3236
    %v3238 = vsel %vm1008, %v2974, 0.0
    %3239 = vadd.xlane.f32.xlu0 %v3238
    %v3240 = vpop.xlane.xlu0 %3239
    %v3241 = vsel %vm1008, %v2975, 0.0
    %3242 = vadd.xlane.f32.xlu0 %v3241
    %v3243 = vpop.xlane.xlu0 %3242
    %v3244 = vsel %vm1008, %v2976, 0.0
    %3245 = vadd.xlane.f32.xlu0 %v3244
    %v3246 = vpop.xlane.xlu0 %3245
    %v3247 = vsel %vm1008, %v2977, 0.0
    %3248 = vadd.xlane.f32.xlu0 %v3247
    %v3249 = vpop.xlane.xlu0 %3248
    %v3250 = vsel %vm1008, %v2978, 0.0
    %3251 = vadd.xlane.f32.xlu0 %v3250
    %v3252 = vpop.xlane.xlu0 %3251
    %v3253 = vsel %vm1008, %v2979, 0.0
    %3254 = vadd.xlane.f32.xlu0 %v3253
    %v3255 = vpop.xlane.xlu0 %3254
    %v3256 = vsel %vm1008, %v2980, 0.0
    %3257 = vadd.xlane.f32.xlu0 %v3256
    %v3258 = vpop.xlane.xlu0 %3257
    %v3259 = vsel %vm1008, %v2981, 0.0
    %3260 = vadd.xlane.f32.xlu0 %v3259
    %v3261 = vpop.xlane.xlu0 %3260
    %v3262 = vsel %vm1008, %v2982, 0.0
    %3263 = vadd.xlane.f32.xlu0 %v3262
    %v3264 = vpop.xlane.xlu0 %3263
    %v3265 = vsel %vm1008, %v2983, 0.0
    %3266 = vadd.xlane.f32.xlu0 %v3265
    %v3267 = vpop.xlane.xlu0 %3266
    %v3268 = vsel %vm1008, %v2984, 0.0
    %3269 = vadd.xlane.f32.xlu0 %v3268
    %v3270 = vpop.xlane.xlu0 %3269
    %v3271 = vsel %vm1008, %v2985, 0.0
    %3272 = vadd.xlane.f32.xlu0 %v3271
    %v3273 = vpop.xlane.xlu0 %3272
    %v3274 = vsel %vm1008, %v2986, 0.0
    %3275 = vadd.xlane.f32.xlu0 %v3274
    %v3276 = vpop.xlane.xlu0 %3275
    %v3277 = vsel %vm1008, %v2987, 0.0
    %3278 = vadd.xlane.f32.xlu0 %v3277
    %v3279 = vpop.xlane.xlu0 %3278
    %v3280 = vsel %vm1008, %v2988, 0.0
    %3281 = vadd.xlane.f32.xlu0 %v3280
    %v3282 = vpop.xlane.xlu0 %3281
    %v3283 = vsel %vm1008, %v2989, 0.0
    %3284 = vadd.xlane.f32.xlu0 %v3283
    %v3285 = vpop.xlane.xlu0 %3284
    %v3286 = vsel %vm1008, %v2990, 0.0
    %3287 = vadd.xlane.f32.xlu0 %v3286
    %v3288 = vpop.xlane.xlu0 %3287
    %v3289 = vsel %vm1008, %v2991, 0.0
    %3290 = vadd.xlane.f32.xlu0 %v3289
    %v3291 = vpop.xlane.xlu0 %3290
    %v3292 = vsel %vm1008, %v2992, 0.0
    %3293 = vadd.xlane.f32.xlu0 %v3292
    %v3294 = vpop.xlane.xlu0 %3293
    %v3295 = vsel %vm1008, %v2993, 0.0
    %3296 = vadd.xlane.f32.xlu0 %v3295
    %v3297 = vpop.xlane.xlu0 %3296
    %v3298 = vsel %vm1008, %v2994, 0.0
    %3299 = vadd.xlane.f32.xlu0 %v3298
    %v3300 = vpop.xlane.xlu0 %3299
    %v3301 = vsel %vm1008, %v2995, 0.0
    %3302 = vadd.xlane.f32.xlu0 %v3301
    %v3303 = vpop.xlane.xlu0 %3302
    %v3304 = vsel %vm1008, %v2996, 0.0
    %3305 = vadd.xlane.f32.xlu0 %v3304
    %v3306 = vpop.xlane.xlu0 %3305
    %v3307 = vsel %vm1008, %v2997, 0.0
    %3308 = vadd.xlane.f32.xlu0 %v3307
    %v3309 = vpop.xlane.xlu0 %3308
    %v3310 = vsel %vm1008, %v2998, 0.0
    %3311 = vadd.xlane.f32.xlu0 %v3310
    %v3312 = vpop.xlane.xlu0 %3311
    %v3313 = vsel %vm1008, %v2999, 0.0
    %3314 = vadd.xlane.f32.xlu0 %v3313
    %v3315 = vpop.xlane.xlu0 %3314
    %v3316 = vsel %vm1008, %v3000, 0.0
    %3317 = vadd.xlane.f32.xlu0 %v3316
    %v3318 = vpop.xlane.xlu0 %3317
    %v3319 = vsel %vm1008, %v3001, 0.0
    %3320 = vadd.xlane.f32.xlu0 %v3319
    %v3321 = vpop.xlane.xlu0 %3320
    %v3322 = vsel %vm1008, %v3002, 0.0
    %3323 = vadd.xlane.f32.xlu0 %v3322
    %v3324 = vpop.xlane.xlu0 %3323
    %v3325 = vsel %vm1008, %v3003, 0.0
    %3326 = vadd.xlane.f32.xlu0 %v3325
    %v3327 = vpop.xlane.xlu0 %3326
    %v3328 = vsel %vm1008, %v3004, 0.0
    %3329 = vadd.xlane.f32.xlu0 %v3328
    %v3330 = vpop.xlane.xlu0 %3329
    %v3331 = vsel %vm1008, %v3005, 0.0
    %3332 = vadd.xlane.f32.xlu0 %v3331
    %v3333 = vpop.xlane.xlu0 %3332
    %v3334 = vsel %vm1008, %v3006, 0.0
    %3335 = vadd.xlane.f32.xlu0 %v3334
    %v3336 = vpop.xlane.xlu0 %3335
    %v3337 = vsel %vm1008, %v3007, 0.0
    %3338 = vadd.xlane.f32.xlu0 %v3337
    %v3339 = vpop.xlane.xlu0 %3338
    %v3340 = vsel %vm1008, %v3008, 0.0
    %3341 = vadd.xlane.f32.xlu0 %v3340
    %v3342 = vpop.xlane.xlu0 %3341
    %v3343 = vsel %vm1008, %v3009, 0.0
    %3344 = vadd.xlane.f32.xlu0 %v3343
    %v3345 = vpop.xlane.xlu0 %3344
    %v3346 = vsel %vm1008, %v3010, 0.0
    %3347 = vadd.xlane.f32.xlu0 %v3346
    %v3348 = vpop.xlane.xlu0 %3347
    %v3349 = vsel %vm1008, %v3011, 0.0
    %3350 = vadd.xlane.f32.xlu0 %v3349
    %v3351 = vpop.xlane.xlu0 %3350
    %v3352 = vsel %vm1008, %v3012, 0.0
    %3353 = vadd.xlane.f32.xlu0 %v3352
    %v3354 = vpop.xlane.xlu0 %3353
    %v3355 = vsel %vm1008, %v3013, 0.0
    %3356 = vadd.xlane.f32.xlu0 %v3355
    %v3357 = vpop.xlane.xlu0 %3356
    %v3358 = vsel %vm1008, %v3014, 0.0
    %3359 = vadd.xlane.f32.xlu0 %v3358
    %v3360 = vpop.xlane.xlu0 %3359
    %v3361 = vsel %vm1008, %v3015, 0.0
    %3362 = vadd.xlane.f32.xlu0 %v3361
    %v3363 = vpop.xlane.xlu0 %3362
    %v3364 = vsel %vm1008, %v3016, 0.0
    %3365 = vadd.xlane.f32.xlu0 %v3364
    %v3366 = vpop.xlane.xlu0 %3365
    %v3367 = vsel %vm1008, %v3017, 0.0
    %3368 = vadd.xlane.f32.xlu0 %v3367
    %v3369 = vpop.xlane.xlu0 %3368
    %v3370 = vsel %vm1008, %v3018, 0.0
    %3371 = vadd.xlane.f32.xlu0 %v3370
    %v3372 = vpop.xlane.xlu0 %3371
    %v3373 = vsel %vm1008, %v3019, 0.0
    %3374 = vadd.xlane.f32.xlu0 %v3373
    %v3375 = vpop.xlane.xlu0 %3374
    %v3376 = vsel %vm1008, %v3020, 0.0
    %3377 = vadd.xlane.f32.xlu0 %v3376
    %v3378 = vpop.xlane.xlu0 %3377
    %v3379 = vsel %vm1008, %v3021, 0.0
    %3380 = vadd.xlane.f32.xlu0 %v3379
    %v3381 = vpop.xlane.xlu0 %3380
    %v3382 = vsel %vm1008, %v3022, 0.0
    %3383 = vadd.xlane.f32.xlu0 %v3382
    %v3384 = vpop.xlane.xlu0 %3383
    %v3385 = vsel %vm1008, %v3023, 0.0
    %3386 = vadd.xlane.f32.xlu0 %v3385
    %v3387 = vpop.xlane.xlu0 %3386
    %v3388 = vsel %vm1008, %v3024, 0.0
    %3389 = vadd.xlane.f32.xlu0 %v3388
    %v3390 = vpop.xlane.xlu0 %3389
    %v3391 = vsel %vm1008, %v3025, 0.0
    %3392 = vadd.xlane.f32.xlu0 %v3391
    %v3393 = vpop.xlane.xlu0 %3392
    %v3394 = vsel %vm1008, %v3026, 0.0
    %3395 = vadd.xlane.f32.xlu0 %v3394
    %v3396 = vpop.xlane.xlu0 %3395
    %v3397 = vsel %vm1008, %v3027, 0.0
    %3398 = vadd.xlane.f32.xlu0 %v3397
    %v3399 = vpop.xlane.xlu0 %3398
    %v3400 = vsel %vm1008, %v3028, 0.0
    %3401 = vadd.xlane.f32.xlu0 %v3400
    %v3402 = vpop.xlane.xlu0 %3401
    %v3403 = vsel %vm1008, %v3029, 0.0
    %3404 = vadd.xlane.f32.xlu0 %v3403
    %v3405 = vpop.xlane.xlu0 %3404
    %v3406 = vsel %vm1008, %v3030, 0.0
    %3407 = vadd.xlane.f32.xlu0 %v3406
    %v3408 = vpop.xlane.xlu0 %3407
    %v3409 = vsel %vm1008, %v3031, 0.0
    %3410 = vadd.xlane.f32.xlu0 %v3409
    %v3411 = vpop.xlane.xlu0 %3410
    %v3412 = vsel %vm1008, %v3032, 0.0
    %3413 = vadd.xlane.f32.xlu0 %v3412
    %v3414 = vpop.xlane.xlu0 %3413
    %v3415 = vsel %vm1008, %v3033, 0.0
    %3416 = vadd.xlane.f32.xlu0 %v3415
    %v3417 = vpop.xlane.xlu0 %3416
    %v3418 = vsel %vm1008, %v3034, 0.0
    %3419 = vadd.xlane.f32.xlu0 %v3418
    %v3420 = vpop.xlane.xlu0 %3419
    %v3421 = vsel %vm1008, %v3035, 0.0
    %3422 = vadd.xlane.f32.xlu0 %v3421
    %v3423 = vpop.xlane.xlu0 %3422
    %v3424 = vsel %vm1008, %v3036, 0.0
    %3425 = vadd.xlane.f32.xlu0 %v3424
    %v3426 = vpop.xlane.xlu0 %3425
    %v3427 = vsel %vm1008, %v3037, 0.0
    %3428 = vadd.xlane.f32.xlu0 %v3427
    %v3429 = vpop.xlane.xlu0 %3428
    %v3430 = vsel %vm1008, %v3038, 0.0
    %3431 = vadd.xlane.f32.xlu0 %v3430
    %v3432 = vpop.xlane.xlu0 %3431
    %v3433 = vsel %vm1008, %v3039, 0.0
    %3434 = vadd.xlane.f32.xlu0 %v3433
    %v3435 = vpop.xlane.xlu0 %3434
    %v3436 = vsel %vm1008, %v3040, 0.0
    %3437 = vadd.xlane.f32.xlu0 %v3436
    %v3438 = vpop.xlane.xlu0 %3437
    %v3439 = vsel %vm1008, %v3041, 0.0
    %3440 = vadd.xlane.f32.xlu0 %v3439
    %v3441 = vpop.xlane.xlu0 %3440
    %v3442 = vsel %vm1008, %v3042, 0.0
    %3443 = vadd.xlane.f32.xlu0 %v3442
    %v3444 = vpop.xlane.xlu0 %3443
    %v3445 = vsel %vm1008, %v3043, 0.0
    %3446 = vadd.xlane.f32.xlu0 %v3445
    %v3447 = vpop.xlane.xlu0 %3446
    %v3448 = vsel %vm1008, %v3044, 0.0
    %3449 = vadd.xlane.f32.xlu0 %v3448
    %v3450 = vpop.xlane.xlu0 %3449
    %v3451 = vsel %vm1008, %v3045, 0.0
    %3452 = vadd.xlane.f32.xlu0 %v3451
    %v3453 = vpop.xlane.xlu0 %3452
    %v3454 = vsel %vm1008, %v3046, 0.0
    %3455 = vadd.xlane.f32.xlu0 %v3454
    %v3456 = vpop.xlane.xlu0 %3455
    %v3457 = vsel %vm1008, %v3047, 0.0
    %3458 = vadd.xlane.f32.xlu0 %v3457
    %v3459 = vpop.xlane.xlu0 %3458
    %v3460 = vsel %vm1008, %v3048, 0.0
    %3461 = vadd.xlane.f32.xlu0 %v3460
    %v3462 = vpop.xlane.xlu0 %3461
    %v3463 = vsel %vm1008, %v3049, 0.0
    %3464 = vadd.xlane.f32.xlu0 %v3463
    %v3465 = vpop.xlane.xlu0 %3464
    %v3466 = vsel %vm1008, %v3050, 0.0
    %3467 = vadd.xlane.f32.xlu0 %v3466
    %v3468 = vpop.xlane.xlu0 %3467
    %v3469 = vsel %vm1008, %v3051, 0.0
    %3470 = vadd.xlane.f32.xlu0 %v3469
    %v3471 = vpop.xlane.xlu0 %3470
    %v3472 = vsel %vm1008, %v3052, 0.0
    %3473 = vadd.xlane.f32.xlu0 %v3472
    %v3474 = vpop.xlane.xlu0 %3473
    %v3475 = vsel %vm1008, %v3053, 0.0
    %3476 = vadd.xlane.f32.xlu0 %v3475
    %v3477 = vpop.xlane.xlu0 %3476
    %v3478 = vsel %vm1008, %v3054, 0.0
    %3479 = vadd.xlane.f32.xlu0 %v3478
    %v3480 = vpop.xlane.xlu0 %3479
    %v3481 = vsel %vm1008, %v3055, 0.0
    %3482 = vadd.xlane.f32.xlu0 %v3481
    %v3483 = vpop.xlane.xlu0 %3482
    %v3484 = vsel %vm1008, %v3056, 0.0
    %3485 = vadd.xlane.f32.xlu0 %v3484
    %v3486 = vpop.xlane.xlu0 %3485
    %v3487 = vsel %vm1008, %v3057, 0.0
    %3488 = vadd.xlane.f32.xlu0 %v3487
    %v3489 = vpop.xlane.xlu0 %3488
    %v3490 = vsel %vm1008, %v3058, 0.0
    %3491 = vadd.xlane.f32.xlu0 %v3490
    %v3492 = vpop.xlane.xlu0 %3491
    %v3493 = vsel %vm1008, %v3059, 0.0
    %3494 = vadd.xlane.f32.xlu0 %v3493
    %v3495 = vpop.xlane.xlu0 %3494
    %v3496 = vsel %vm1008, %v3060, 0.0
    %3497 = vadd.xlane.f32.xlu0 %v3496
    %v3498 = vpop.xlane.xlu0 %3497
    %v3499 = vsel %vm1008, %v3061, 0.0
    %3500 = vadd.xlane.f32.xlu0 %v3499
    %v3501 = vpop.xlane.xlu0 %3500
    %v3502 = vsel %vm1008, %v3062, 0.0
    %3503 = vadd.xlane.f32.xlu0 %v3502
    %v3504 = vpop.xlane.xlu0 %3503
    %v3505 = vsel %vm1008, %v3063, 0.0
    %3506 = vadd.xlane.f32.xlu0 %v3505
    %v3507 = vpop.xlane.xlu0 %3506
    %v3508 = vsel %vm1008, %v3064, 0.0
    %3509 = vadd.xlane.f32.xlu0 %v3508
    %v3510 = vpop.xlane.xlu0 %3509
    %v3511 = vsel %vm1008, %v3065, 0.0
    %3512 = vadd.xlane.f32.xlu0 %v3511
    %v3513 = vpop.xlane.xlu0 %3512
    %v3514 = vsel %vm1008, %v3066, 0.0
    %3515 = vadd.xlane.f32.xlu0 %v3514
    %v3516 = vpop.xlane.xlu0 %3515
    %v3517 = vsel %vm1008, %v3067, 0.0
    %3518 = vadd.xlane.f32.xlu0 %v3517
    %v3519 = vpop.xlane.xlu0 %3518
    %v3520 = vsel %vm1008, %v3068, 0.0
    %3521 = vadd.xlane.f32.xlu0 %v3520
    %v3522 = vpop.xlane.xlu0 %3521
    %v3523 = vsel %vm1008, %v3069, 0.0
    %3524 = vadd.xlane.f32.xlu0 %v3523
    %v3525 = vpop.xlane.xlu0 %3524
    %v3526 = vsel %vm1008, %v3070, 0.0
    %3527 = vadd.xlane.f32.xlu0 %v3526
    %v3528 = vpop.xlane.xlu0 %3527
    %v3529 = vsel %vm1008, %v3071, 0.0
    %3530 = vadd.xlane.f32.xlu0 %v3529
    %v3531 = vpop.xlane.xlu0 %3530
    %v3532 = vsel %vm1008, %v3072, 0.0
    %3533 = vadd.xlane.f32.xlu0 %v3532
    %v3534 = vpop.xlane.xlu0 %3533
    %v3535 = vsel %vm1008, %v3073, 0.0
    %3536 = vadd.xlane.f32.xlu0 %v3535
    %v3537 = vpop.xlane.xlu0 %3536
    %v3538 = vsel %vm1008, %v3074, 0.0
    %3539 = vadd.xlane.f32.xlu0 %v3538
    %v3540 = vpop.xlane.xlu0 %3539
    %v3541 = vsel %vm1008, %v3075, 0.0
    %3542 = vadd.xlane.f32.xlu0 %v3541
    %v3543 = vpop.xlane.xlu0 %3542
    %v3544 = vsel %vm1008, %v3076, 0.0
    %3545 = vadd.xlane.f32.xlu0 %v3544
    %v3546 = vpop.xlane.xlu0 %3545
    %v3547 = vsel %vm1008, %v3077, 0.0
    %3548 = vadd.xlane.f32.xlu0 %v3547
    %v3549 = vpop.xlane.xlu0 %3548
    %v3550 = vsel %vm1008, %v3078, 0.0
    %3551 = vadd.xlane.f32.xlu0 %v3550
    %v3552 = vpop.xlane.xlu0 %3551
    %v3553 = vsel %vm1008, %v3079, 0.0
    %3554 = vadd.xlane.f32.xlu0 %v3553
    %v3555 = vpop.xlane.xlu0 %3554
    %v3556 = vsel %vm1008, %v3080, 0.0
    %3557 = vadd.xlane.f32.xlu0 %v3556
    %v3558 = vpop.xlane.xlu0 %3557
    %v3559 = vsel %vm1008, %v3081, 0.0
    %3560 = vadd.xlane.f32.xlu0 %v3559
    %v3561 = vpop.xlane.xlu0 %3560
    %v3562 = vsel %vm1008, %v3082, 0.0
    %3563 = vadd.xlane.f32.xlu0 %v3562
    %v3564 = vpop.xlane.xlu0 %3563
    %v3565 = vsel %vm1008, %v3083, 0.0
    %3566 = vadd.xlane.f32.xlu0 %v3565
    %v3567 = vpop.xlane.xlu0 %3566
    %v3568 = vsel %vm1008, %v3084, 0.0
    %3569 = vadd.xlane.f32.xlu0 %v3568
    %v3570 = vpop.xlane.xlu0 %3569
    %v3571 = vsel %vm1008, %v3085, 0.0
    %3572 = vadd.xlane.f32.xlu0 %v3571
    %v3573 = vpop.xlane.xlu0 %3572
    %v3574 = vsel %vm1008, %v3086, 0.0
    %3575 = vadd.xlane.f32.xlu0 %v3574
    %v3576 = vpop.xlane.xlu0 %3575
    %v3577 = vsel %vm1008, %v3087, 0.0
    %3578 = vadd.xlane.f32.xlu0 %v3577
    %v3579 = vpop.xlane.xlu0 %3578
    %v3580 = vsel %vm1008, %v3088, 0.0
    %3581 = vadd.xlane.f32.xlu0 %v3580
    %v3582 = vpop.xlane.xlu0 %3581
    %v3583 = vsel %vm1008, %v3089, 0.0
    %3584 = vadd.xlane.f32.xlu0 %v3583
    %v3585 = vpop.xlane.xlu0 %3584
    %v3586 = vsel %vm1008, %v3090, 0.0
    %3587 = vadd.xlane.f32.xlu0 %v3586
    %v3588 = vpop.xlane.xlu0 %3587
    %v3589 = vsel %vm1008, %v3091, 0.0
    %3590 = vadd.xlane.f32.xlu0 %v3589
    %v3591 = vpop.xlane.xlu0 %3590
    %v3592 = vsel %vm1008, %v3092, 0.0
    %3593 = vadd.xlane.f32.xlu0 %v3592
    %v3594 = vpop.xlane.xlu0 %3593
    %v3595 = vsel %vm1008, %v3093, 0.0
    %3596 = vadd.xlane.f32.xlu0 %v3595
    %v3597 = vpop.xlane.xlu0 %3596
    %v3598 = vsel %vm1008, %v3094, 0.0
    %3599 = vadd.xlane.f32.xlu0 %v3598
    %v3600 = vpop.xlane.xlu0 %3599
    %v3601 = vsel %vm1008, %v3095, 0.0
    %3602 = vadd.xlane.f32.xlu0 %v3601
    %v3603 = vpop.xlane.xlu0 %3602
    %v3604 = vsel %vm1008, %v3096, 0.0
    %3605 = vadd.xlane.f32.xlu0 %v3604
    %v3606 = vpop.xlane.xlu0 %3605
    %v3607 = vsel %vm1008, %v3097, 0.0
    %3608 = vadd.xlane.f32.xlu0 %v3607
    %v3609 = vpop.xlane.xlu0 %3608
    %v3610 = vsel %vm1008, %v3098, 0.0
    %3611 = vadd.xlane.f32.xlu0 %v3610
    %v3612 = vpop.xlane.xlu0 %3611
    %v3613 = vsel %vm1008, %v3099, 0.0
    %3614 = vadd.xlane.f32.xlu0 %v3613
    %v3615 = vpop.xlane.xlu0 %3614
    %v3616 = vsel %vm1008, %v3100, 0.0
    %3617 = vadd.xlane.f32.xlu0 %v3616
    %v3618 = vpop.xlane.xlu0 %3617
    %v3619 = vsel %vm1008, %v3101, 0.0
    %3620 = vadd.xlane.f32.xlu0 %v3619
    %v3621 = vpop.xlane.xlu0 %3620
    %v3622 = vsel %vm1008, %v3102, 0.0
    %3623 = vadd.xlane.f32.xlu0 %v3622
    %v3624 = vpop.xlane.xlu0 %3623
    %v3625 = vsel %vm1008, %v3103, 0.0
    %3626 = vadd.xlane.f32.xlu0 %v3625
    %v3627 = vpop.xlane.xlu0 %3626
    %v3628 = vsel %vm1008, %v3104, 0.0
    %3629 = vadd.xlane.f32.xlu0 %v3628
    %v3630 = vpop.xlane.xlu0 %3629
    %v3631 = vsel %vm1008, %v3105, 0.0
    %3632 = vadd.xlane.f32.xlu0 %v3631
    %v3633 = vpop.xlane.xlu0 %3632
    %v3634 = vsel %vm1008, %v3106, 0.0
    %3635 = vadd.xlane.f32.xlu0 %v3634
    %v3636 = vpop.xlane.xlu0 %3635
    %v3637 = vsel %vm1008, %v3107, 0.0
    %3638 = vadd.xlane.f32.xlu0 %v3637
    %v3639 = vpop.xlane.xlu0 %3638
    %v3640 = vsel %vm1008, %v3108, 0.0
    %3641 = vadd.xlane.f32.xlu0 %v3640
    %v3642 = vpop.xlane.xlu0 %3641
    %v3643 = vsel %vm1008, %v3109, 0.0
    %3644 = vadd.xlane.f32.xlu0 %v3643
    %v3645 = vpop.xlane.xlu0 %3644
    %v3646 = vsel %vm1008, %v3110, 0.0
    %3647 = vadd.xlane.f32.xlu0 %v3646
    %v3648 = vpop.xlane.xlu0 %3647
    %v3649 = vsel %vm1008, %v3111, 0.0
    %3650 = vadd.xlane.f32.xlu0 %v3649
    %v3651 = vpop.xlane.xlu0 %3650
    %v3652 = vsel %vm1008, %v3112, 0.0
    %3653 = vadd.xlane.f32.xlu0 %v3652
    %v3654 = vpop.xlane.xlu0 %3653
    %v3655 = vsel %vm1008, %v3113, 0.0
    %3656 = vadd.xlane.f32.xlu0 %v3655
    %v3657 = vpop.xlane.xlu0 %3656
    %v3658 = vsel %vm1008, %v3114, 0.0
    %3659 = vadd.xlane.f32.xlu0 %v3658
    %v3660 = vpop.xlane.xlu0 %3659
    %v3661 = vsel %vm1008, %v3115, 0.0
    %3662 = vadd.xlane.f32.xlu0 %v3661
    %v3663 = vpop.xlane.xlu0 %3662
    %v3664 = vsel %vm1008, %v3116, 0.0
    %3665 = vadd.xlane.f32.xlu0 %v3664
    %v3666 = vpop.xlane.xlu0 %3665
    %v3667 = vsel %vm1008, %v3117, 0.0
    %3668 = vadd.xlane.f32.xlu0 %v3667
    %v3669 = vpop.xlane.xlu0 %3668
    %v3670 = vsel %vm1008, %v3118, 0.0
    %3671 = vadd.xlane.f32.xlu0 %v3670
    %v3672 = vpop.xlane.xlu0 %3671
    %v3673 = vsel %vm1008, %v3119, 0.0
    %3674 = vadd.xlane.f32.xlu0 %v3673
    %v3675 = vpop.xlane.xlu0 %3674
    %v3676 = vsel %vm1008, %v3120, 0.0
    %3677 = vadd.xlane.f32.xlu0 %v3676
    %v3678 = vpop.xlane.xlu0 %3677
    %v3679 = vsel %vm1008, %v3121, 0.0
    %3680 = vadd.xlane.f32.xlu0 %v3679
    %v3681 = vpop.xlane.xlu0 %3680
    %v3682 = vsel %vm1008, %v3122, 0.0
    %3683 = vadd.xlane.f32.xlu0 %v3682
    %v3684 = vpop.xlane.xlu0 %3683
    %v3685 = vsel %vm1008, %v3123, 0.0
    %3686 = vadd.xlane.f32.xlu0 %v3685
    %v3687 = vpop.xlane.xlu0 %3686
    %v3688 = vsel %vm1008, %v3124, 0.0
    %3689 = vadd.xlane.f32.xlu0 %v3688
    %v3690 = vpop.xlane.xlu0 %3689
    %v3691 = vsel %vm1008, %v3125, 0.0
    %3692 = vadd.xlane.f32.xlu0 %v3691
    %v3693 = vpop.xlane.xlu0 %3692
    %v3694 = vsel %vm1008, %v3126, 0.0
    %3695 = vadd.xlane.f32.xlu0 %v3694
    %v3696 = vpop.xlane.xlu0 %3695
    %v3697 = vsel %vm1008, %v3127, 0.0
    %3698 = vadd.xlane.f32.xlu0 %v3697
    %v3699 = vpop.xlane.xlu0 %3698
    %v3700 = vsel %vm1008, %v3128, 0.0
    %3701 = vadd.xlane.f32.xlu0 %v3700
    %v3702 = vpop.xlane.xlu0 %3701
    %v3703 = vsel %vm1008, %v3129, 0.0
    %3704 = vadd.xlane.f32.xlu0 %v3703
    %v3705 = vpop.xlane.xlu0 %3704
    %v3706 = vsel %vm1008, %v3130, 0.0
    %3707 = vadd.xlane.f32.xlu0 %v3706
    %v3708 = vpop.xlane.xlu0 %3707
    %v3709 = vsel %vm1008, %v3131, 0.0
    %3710 = vadd.xlane.f32.xlu0 %v3709
    %v3711 = vpop.xlane.xlu0 %3710
    %v3712 = vsel %vm1008, %v3132, 0.0
    %3713 = vadd.xlane.f32.xlu0 %v3712
    %v3714 = vpop.xlane.xlu0 %3713
    %v3715 = vsel %vm1008, %v3133, 0.0
    %3716 = vadd.xlane.f32.xlu0 %v3715
    %v3717 = vpop.xlane.xlu0 %3716
    %v3718 = vsel %vm1008, %v3134, 0.0
    %3719 = vadd.xlane.f32.xlu0 %v3718
    %v3720 = vpop.xlane.xlu0 %3719
    %v3721 = vsel %vm1008, %v3135, 0.0
    %3722 = vadd.xlane.f32.xlu0 %v3721
    %v3723 = vpop.xlane.xlu0 %3722
    %v3724 = vsel %vm1008, %v3136, 0.0
    %3725 = vadd.xlane.f32.xlu0 %v3724
    %v3726 = vpop.xlane.xlu0 %3725
    %v3727 = vsel %vm1008, %v3137, 0.0
    %3728 = vadd.xlane.f32.xlu0 %v3727
    %v3729 = vpop.xlane.xlu0 %3728
    %v3730 = vsel %vm1008, %v3138, 0.0
    %3731 = vadd.xlane.f32.xlu0 %v3730
    %v3732 = vpop.xlane.xlu0 %3731
    %v3733 = vsel %vm1008, %v3139, 0.0
    %3734 = vadd.xlane.f32.xlu0 %v3733
    %v3735 = vpop.xlane.xlu0 %3734
    %v3736 = vsel %vm1008, %v3140, 0.0
    %3737 = vadd.xlane.f32.xlu0 %v3736
    %v3738 = vpop.xlane.xlu0 %3737
    %v3739 = vsel %vm1008, %v3141, 0.0
    %3740 = vadd.xlane.f32.xlu0 %v3739
    %v3741 = vpop.xlane.xlu0 %3740
    %v3742 = vsel %vm1008, %v3142, 0.0
    %3743 = vadd.xlane.f32.xlu0 %v3742
    %v3744 = vpop.xlane.xlu0 %3743
    %v3745 = vsel %vm1008, %v3143, 0.0
    %3746 = vadd.xlane.f32.xlu0 %v3745
    %v3747 = vpop.xlane.xlu0 %3746
    %v3748 = vsel %vm1008, %v3144, 0.0
    %3749 = vadd.xlane.f32.xlu0 %v3748
    %v3750 = vpop.xlane.xlu0 %3749
    %v3751 = vsel %vm1008, %v3145, 0.0
    %3752 = vadd.xlane.f32.xlu0 %v3751
    %v3753 = vpop.xlane.xlu0 %3752
    %v3754 = vsel %vm1008, %v3146, 0.0
    %3755 = vadd.xlane.f32.xlu0 %v3754
    %v3756 = vpop.xlane.xlu0 %3755
    %v3757 = vsel %vm1008, %v3147, 0.0
    %3758 = vadd.xlane.f32.xlu0 %v3757
    %v3759 = vpop.xlane.xlu0 %3758
    %v3760 = vsel %vm1008, %v3148, 0.0
    %3761 = vadd.xlane.f32.xlu0 %v3760
    %v3762 = vpop.xlane.xlu0 %3761
    %v3763 = vsel %vm1008, %v3149, 0.0
    %3764 = vadd.xlane.f32.xlu0 %v3763
    %v3765 = vpop.xlane.xlu0 %3764
    %v3766 = vsel %vm1008, %v3150, 0.0
    %3767 = vadd.xlane.f32.xlu0 %v3766
    %v3768 = vpop.xlane.xlu0 %3767
    %v3769 = vsel %vm1008, %v3151, 0.0
    %3770 = vadd.xlane.f32.xlu0 %v3769
    %v3771 = vpop.xlane.xlu0 %3770
    %v3772 = vsel %vm1008, %v3152, 0.0
    %3773 = vadd.xlane.f32.xlu0 %v3772
    %v3774 = vpop.xlane.xlu0 %3773
    %v3775 = vsel %vm1008, %v3153, 0.0
    %3776 = vadd.xlane.f32.xlu0 %v3775
    %v3777 = vpop.xlane.xlu0 %3776
    %v3778 = vsel %vm1008, %v3154, 0.0
    %3779 = vadd.xlane.f32.xlu0 %v3778
    %v3780 = vpop.xlane.xlu0 %3779
    %v3781 = vsel %vm1008, %v3155, 0.0
    %3782 = vadd.xlane.f32.xlu0 %v3781
    %v3783 = vpop.xlane.xlu0 %3782
    %v3784 = vsel %vm1008, %v3156, 0.0
    %3785 = vadd.xlane.f32.xlu0 %v3784
    %v3786 = vpop.xlane.xlu0 %3785
    %v3787 = vsel %vm1008, %v3157, 0.0
    %3788 = vadd.xlane.f32.xlu0 %v3787
    %v3789 = vpop.xlane.xlu0 %3788
    %v3790 = vsel %vm1008, %v3158, 0.0
    %3791 = vadd.xlane.f32.xlu0 %v3790
    %v3792 = vpop.xlane.xlu0 %3791
    %v3793 = vsel %vm1008, %v3159, 0.0
    %3794 = vadd.xlane.f32.xlu0 %v3793
    %v3795 = vpop.xlane.xlu0 %3794
    %v3796 = vsel %vm1008, %v3160, 0.0
    %3797 = vadd.xlane.f32.xlu0 %v3796
    %v3798 = vpop.xlane.xlu0 %3797
    %v3799 = vsel %vm1008, %v3161, 0.0
    %3800 = vadd.xlane.f32.xlu0 %v3799
    %v3801 = vpop.xlane.xlu0 %3800
    %v3802 = vsel %vm1008, %v3162, 0.0
    %3803 = vadd.xlane.f32.xlu0 %v3802
    %v3804 = vpop.xlane.xlu0 %3803
    %v3805 = vsel %vm1008, %v3163, 0.0
    %3806 = vadd.xlane.f32.xlu0 %v3805
    %v3807 = vpop.xlane.xlu0 %3806
    %v3808 = vsel %vm1008, %v3164, 0.0
    %3809 = vadd.xlane.f32.xlu0 %v3808
    %v3810 = vpop.xlane.xlu0 %3809
    %v3811 = vsel %vm1008, %v3165, 0.0
    %3812 = vadd.xlane.f32.xlu0 %v3811
    %v3813 = vpop.xlane.xlu0 %3812
    %v3814 = vsel %vm1008, %v3166, 0.0
    %3815 = vadd.xlane.f32.xlu0 %v3814
    %v3816 = vpop.xlane.xlu0 %3815
    %v3817 = vsel %vm1008, %v3167, 0.0
    %3818 = vadd.xlane.f32.xlu0 %v3817
    %v3819 = vpop.xlane.xlu0 %3818
    %v3820 = vsel %vm1008, %v3168, 0.0
    %3821 = vadd.xlane.f32.xlu0 %v3820
    %v3822 = vpop.xlane.xlu0 %3821
    %v3823 = vsel %vm1008, %v3169, 0.0
    %3824 = vadd.xlane.f32.xlu0 %v3823
    %v3825 = vpop.xlane.xlu0 %3824
    %v3826 = vsel %vm1008, %v3170, 0.0
    %3827 = vadd.xlane.f32.xlu0 %v3826
    %v3828 = vpop.xlane.xlu0 %3827
    %v3829 = vsel %vm1008, %v3171, 0.0
    %3830 = vadd.xlane.f32.xlu0 %v3829
    %v3831 = vpop.xlane.xlu0 %3830
    %v3832 = vsel %vm1008, %v3172, 0.0
    %3833 = vadd.xlane.f32.xlu0 %v3832
    %v3834 = vpop.xlane.xlu0 %3833
    %v3835 = vsel %vm1008, %v3173, 0.0
    %3836 = vadd.xlane.f32.xlu0 %v3835
    %v3837 = vpop.xlane.xlu0 %3836
    %v3838 = vsel %vm1008, %v3174, 0.0
    %3839 = vadd.xlane.f32.xlu0 %v3838
    %v3840 = vpop.xlane.xlu0 %3839
    %v3841 = vsel %vm1008, %v3175, 0.0
    %3842 = vadd.xlane.f32.xlu0 %v3841
    %v3843 = vpop.xlane.xlu0 %3842
    %v3844 = vsel %vm1008, %v3176, 0.0
    %3845 = vadd.xlane.f32.xlu0 %v3844
    %v3846 = vpop.xlane.xlu0 %3845
    %v3847 = vsel %vm1008, %v3177, 0.0
    %3848 = vadd.xlane.f32.xlu0 %v3847
    %v3849 = vpop.xlane.xlu0 %3848
    %v3850 = vsel %vm1008, %v3178, 0.0
    %3851 = vadd.xlane.f32.xlu0 %v3850
    %v3852 = vpop.xlane.xlu0 %3851
    %v3853 = vsel %vm1008, %v3179, 0.0
    %3854 = vadd.xlane.f32.xlu0 %v3853
    %v3855 = vpop.xlane.xlu0 %3854
    %v3856 = vsel %vm1008, %v3180, 0.0
    %3857 = vadd.xlane.f32.xlu0 %v3856
    %v3858 = vpop.xlane.xlu0 %3857
    %v3859 = vsel %vm1008, %v3181, 0.0
    %3860 = vadd.xlane.f32.xlu0 %v3859
    %v3861 = vpop.xlane.xlu0 %3860
    %v3862 = vsel %vm1008, %v3182, 0.0
    %3863 = vadd.xlane.f32.xlu0 %v3862
    %v3864 = vpop.xlane.xlu0 %3863
    %v3865 = vsel %vm1008, %v3183, 0.0
    %3866 = vadd.xlane.f32.xlu0 %v3865
    %v3867 = vpop.xlane.xlu0 %3866
    %v3868 = vsel %vm1008, %v3184, 0.0
    %3869 = vadd.xlane.f32.xlu0 %v3868
    %v3870 = vpop.xlane.xlu0 %3869
    %v3871 = vsel %vm1008, %v3185, 0.0
    %3872 = vadd.xlane.f32.xlu0 %v3871
    %v3873 = vpop.xlane.xlu0 %3872
    %v3874 = vsel %vm1008, %v3186, 0.0
    %3875 = vadd.xlane.f32.xlu0 %v3874
    %v3876 = vpop.xlane.xlu0 %3875
    %v3877 = vsel %vm1008, %v3187, 0.0
    %3878 = vadd.xlane.f32.xlu0 %v3877
    %v3879 = vpop.xlane.xlu0 %3878
    %v3880 = vsel %vm1008, %v3188, 0.0
    %3881 = vadd.xlane.f32.xlu0 %v3880
    %v3882 = vpop.xlane.xlu0 %3881
    %v3883 = vsel %vm1008, %v3189, 0.0
    %3884 = vadd.xlane.f32.xlu0 %v3883
    %v3885 = vpop.xlane.xlu0 %3884
    %v3886 = vsel %vm1008, %v3190, 0.0
    %3887 = vadd.xlane.f32.xlu0 %v3886
    %v3888 = vpop.xlane.xlu0 %3887
    %v3889 = vsel %vm1008, %v3191, 0.0
    %3890 = vadd.xlane.f32.xlu0 %v3889
    %v3891 = vpop.xlane.xlu0 %3890
    %v3892 = vsel %vm1008, %v3192, 0.0
    %3893 = vadd.xlane.f32.xlu0 %v3892
    %v3894 = vpop.xlane.xlu0 %3893
    %v3895 = vsel %vm1008, %v3193, 0.0
    %3896 = vadd.xlane.f32.xlu0 %v3895
    %v3897 = vpop.xlane.xlu0 %3896
    %v3898 = vsel %vm1008, %v3194, 0.0
    %3899 = vadd.xlane.f32.xlu0 %v3898
    %v3900 = vpop.xlane.xlu0 %3899
    %v3901 = vsel %vm1008, %v3195, 0.0
    %3902 = vadd.xlane.f32.xlu0 %v3901
    %v3903 = vpop.xlane.xlu0 %3902
    %v3904 = vsel %vm1008, %v3196, 0.0
    %3905 = vadd.xlane.f32.xlu0 %v3904
    %v3906 = vpop.xlane.xlu0 %3905
    %v3907 = vsel %vm1008, %v3197, 0.0
    %3908 = vadd.xlane.f32.xlu0 %v3907
    %v3909 = vpop.xlane.xlu0 %3908
    %v3910 = vsel %vm1008, %v3198, 0.0
    %3911 = vadd.xlane.f32.xlu0 %v3910
    %v3912 = vpop.xlane.xlu0 %3911
    %v3913 = vsel %vm1008, %v3199, 0.0
    %3914 = vadd.xlane.f32.xlu0 %v3913
    %v3915 = vpop.xlane.xlu0 %3914
    %v3916 = vsel %vm1008, %v3200, 0.0
    %3917 = vadd.xlane.f32.xlu0 %v3916
    %v3918 = vpop.xlane.xlu0 %3917
    %v3919 = vsel %vm1008, %v3201, 0.0
    %3920 = vadd.xlane.f32.xlu0 %v3919
    %v3921 = vpop.xlane.xlu0 %3920
    %v3922 = vsel %vm1008, %v3202, 0.0
    %3923 = vadd.xlane.f32.xlu0 %v3922
    %v3924 = vpop.xlane.xlu0 %3923
    %v3925 = vsel %vm1008, %v3203, 0.0
    %3926 = vadd.xlane.f32.xlu0 %v3925
    %v3927 = vpop.xlane.xlu0 %3926
    %v3928 = vsel %vm1008, %v3204, 0.0
    %3929 = vadd.xlane.f32.xlu0 %v3928
    %v3930 = vpop.xlane.xlu0 %3929
    %v3931 = vsel %vm1008, %v3205, 0.0
    %3932 = vadd.xlane.f32.xlu0 %v3931
    %v3933 = vpop.xlane.xlu0 %3932
    %v3934 = vsel %vm1008, %v3206, 0.0
    %3935 = vadd.xlane.f32.xlu0 %v3934
    %v3936 = vpop.xlane.xlu0 %3935
    %v3937 = vsel %vm1008, %v3207, 0.0
    %3938 = vadd.xlane.f32.xlu0 %v3937
    %v3939 = vpop.xlane.xlu0 %3938
    %v3940 = vsel %vm1008, %v3208, 0.0
    %3941 = vadd.xlane.f32.xlu0 %v3940
    %v3942 = vpop.xlane.xlu0 %3941
    %v3943 = vsel %vm1008, %v3209, 0.0
    %3944 = vadd.xlane.f32.xlu0 %v3943
    %v3945 = vpop.xlane.xlu0 %3944
    %v3946 = vsel %vm1008, %v3210, 0.0
    %3947 = vadd.xlane.f32.xlu0 %v3946
    %v3948 = vpop.xlane.xlu0 %3947
    %v3949 = vsel %vm1008, %v3211, 0.0
    %3950 = vadd.xlane.f32.xlu0 %v3949
    %v3951 = vpop.xlane.xlu0 %3950
    %v3952 = vsel %vm1008, %v3212, 0.0
    %3953 = vadd.xlane.f32.xlu0 %v3952
    %v3954 = vpop.xlane.xlu0 %3953
    %v3955 = vsel %vm1008, %v3213, 0.0
    %3956 = vadd.xlane.f32.xlu0 %v3955
    %v3957 = vpop.xlane.xlu0 %3956
    %v3958 = vsel %vm1008, %v3214, 0.0
    %3959 = vadd.xlane.f32.xlu0 %v3958
    %v3960 = vpop.xlane.xlu0 %3959
    %v3961 = vsel %vm1008, %v3215, 0.0
    %3962 = vadd.xlane.f32.xlu0 %v3961
    %v3963 = vpop.xlane.xlu0 %3962
    %v3964 = vsel %vm1008, %v3216, 0.0
    %3965 = vadd.xlane.f32.xlu0 %v3964
    %v3966 = vpop.xlane.xlu0 %3965
    %v3967 = vsel %vm1008, %v3217, 0.0
    %3968 = vadd.xlane.f32.xlu0 %v3967
    %v3969 = vpop.xlane.xlu0 %3968
    %v3970 = vsel %vm1008, %v3218, 0.0
    %3971 = vadd.xlane.f32.xlu0 %v3970
    %v3972 = vpop.xlane.xlu0 %3971
    %v3973 = vsel %vm1008, %v3219, 0.0
    %3974 = vadd.xlane.f32.xlu0 %v3973
    %v3975 = vpop.xlane.xlu0 %3974
    %v3976 = vsel %vm1008, %v3220, 0.0
    %3977 = vadd.xlane.f32.xlu0 %v3976
    %v3978 = vpop.xlane.xlu0 %3977
    %v3979 = vsel %vm1008, %v3221, 0.0
    %3980 = vadd.xlane.f32.xlu0 %v3979
    %v3981 = vpop.xlane.xlu0 %3980
    %v3982 = vsel %vm1008, %v3222, 0.0
    %3983 = vadd.xlane.f32.xlu0 %v3982
    %v3984 = vpop.xlane.xlu0 %3983
    %v3985 = vsel %vm1008, %v3223, 0.0
    %3986 = vadd.xlane.f32.xlu0 %v3985
    %v3987 = vpop.xlane.xlu0 %3986
    %v3988 = vsel %vm1008, %v3224, 0.0
    %3989 = vadd.xlane.f32.xlu0 %v3988
    %v3990 = vpop.xlane.xlu0 %3989
    %v3991 = vsel %vm1008, %v3225, 0.0
    %3992 = vadd.xlane.f32.xlu0 %v3991
    %v3993 = vpop.xlane.xlu0 %3992
    %s3994 = smul.u32 0, 128
    %v4251 = vlaneseq
    %v4252 = vand.u32 %v4251, 127
    %v4253 = vlaneseq
    %v4254 = vshrl.u32 %v4253, 7
    %v4255 = vsub.s32 %v4252, %v4254
    %v4256 = vrot.slane %v3228, %v4255
    %v4257 = vadd.s32 %v4252, 4294967288
    %v4258 = vlaneseq
    %v4259 = vshrl.u32 %v4258, 7
    %v4260 = vsub.s32 %v4257, %v4259
    %v4261 = vrot.slane %v3231, %v4260
    %vm4262 = vcmask 130112
    %v4263 = vsel %vm4262, %v4261, %v4256
    %v4264 = vlaneseq
    %v4265 = vshrl.u32 %v4264, 7
    %v4266 = vsub.s32 %v4252, %v4265
    %v4267 = vrot.slane %v3234, %v4266
    %v4268 = vlaneseq
    %v4269 = vshrl.u32 %v4268, 7
    %v4270 = vsub.s32 %v4257, %v4269
    %v4271 = vrot.slane %v3237, %v4270
    %v4272 = vsel %vm4262, %v4271, %v4267
    %v4273 = vlaneseq
    %v4274 = vshrl.u32 %v4273, 7
    %v4275 = vsub.s32 %v4252, %v4274
    %v4276 = vrot.slane %v3240, %v4275
    %v4277 = vlaneseq
    %v4278 = vshrl.u32 %v4277, 7
    %v4279 = vsub.s32 %v4257, %v4278
    %v4280 = vrot.slane %v3243, %v4279
    %v4281 = vsel %vm4262, %v4280, %v4276
    %v4282 = vlaneseq
    %v4283 = vshrl.u32 %v4282, 7
    %v4284 = vsub.s32 %v4252, %v4283
    %v4285 = vrot.slane %v3246, %v4284
    %v4286 = vlaneseq
    %v4287 = vshrl.u32 %v4286, 7
    %v4288 = vsub.s32 %v4257, %v4287
    %v4289 = vrot.slane %v3249, %v4288
    %v4290 = vsel %vm4262, %v4289, %v4285
    %v4291 = vlaneseq
    %v4292 = vshrl.u32 %v4291, 7
    %v4293 = vsub.s32 %v4252, %v4292
    %v4294 = vrot.slane %v3252, %v4293
    %v4295 = vlaneseq
    %v4296 = vshrl.u32 %v4295, 7
    %v4297 = vsub.s32 %v4257, %v4296
    %v4298 = vrot.slane %v3255, %v4297
    %v4299 = vsel %vm4262, %v4298, %v4294
    %v4300 = vlaneseq
    %v4301 = vshrl.u32 %v4300, 7
    %v4302 = vsub.s32 %v4252, %v4301
    %v4303 = vrot.slane %v3258, %v4302
    %v4304 = vlaneseq
    %v4305 = vshrl.u32 %v4304, 7
    %v4306 = vsub.s32 %v4257, %v4305
    %v4307 = vrot.slane %v3261, %v4306
    %v4308 = vsel %vm4262, %v4307, %v4303
    %v4309 = vlaneseq
    %v4310 = vshrl.u32 %v4309, 7
    %v4311 = vsub.s32 %v4252, %v4310
    %v4312 = vrot.slane %v3264, %v4311
    %v4313 = vlaneseq
    %v4314 = vshrl.u32 %v4313, 7
    %v4315 = vsub.s32 %v4257, %v4314
    %v4316 = vrot.slane %v3267, %v4315
    %v4317 = vsel %vm4262, %v4316, %v4312
    %v4318 = vlaneseq
    %v4319 = vshrl.u32 %v4318, 7
    %v4320 = vsub.s32 %v4252, %v4319
    %v4321 = vrot.slane %v3270, %v4320
    %v4322 = vlaneseq
    %v4323 = vshrl.u32 %v4322, 7
    %v4324 = vsub.s32 %v4257, %v4323
    %v4325 = vrot.slane %v3273, %v4324
    %v4326 = vsel %vm4262, %v4325, %v4321
    %v4327 = vlaneseq
    %v4328 = vshrl.u32 %v4327, 7
    %v4329 = vsub.s32 %v4252, %v4328
    %v4330 = vrot.slane %v3276, %v4329
    %v4331 = vlaneseq
    %v4332 = vshrl.u32 %v4331, 7
    %v4333 = vsub.s32 %v4257, %v4332
    %v4334 = vrot.slane %v3279, %v4333
    %v4335 = vsel %vm4262, %v4334, %v4330
    %v4336 = vlaneseq
    %v4337 = vshrl.u32 %v4336, 7
    %v4338 = vsub.s32 %v4252, %v4337
    %v4339 = vrot.slane %v3282, %v4338
    %v4340 = vlaneseq
    %v4341 = vshrl.u32 %v4340, 7
    %v4342 = vsub.s32 %v4257, %v4341
    %v4343 = vrot.slane %v3285, %v4342
    %v4344 = vsel %vm4262, %v4343, %v4339
    %v4345 = vlaneseq
    %v4346 = vshrl.u32 %v4345, 7
    %v4347 = vsub.s32 %v4252, %v4346
    %v4348 = vrot.slane %v3288, %v4347
    %v4349 = vlaneseq
    %v4350 = vshrl.u32 %v4349, 7
    %v4351 = vsub.s32 %v4257, %v4350
    %v4352 = vrot.slane %v3291, %v4351
    %v4353 = vsel %vm4262, %v4352, %v4348
    %v4354 = vlaneseq
    %v4355 = vshrl.u32 %v4354, 7
    %v4356 = vsub.s32 %v4252, %v4355
    %v4357 = vrot.slane %v3294, %v4356
    %v4358 = vlaneseq
    %v4359 = vshrl.u32 %v4358, 7
    %v4360 = vsub.s32 %v4257, %v4359
    %v4361 = vrot.slane %v3297, %v4360
    %v4362 = vsel %vm4262, %v4361, %v4357
    %v4363 = vlaneseq
    %v4364 = vshrl.u32 %v4363, 7
    %v4365 = vsub.s32 %v4252, %v4364
    %v4366 = vrot.slane %v3300, %v4365
    %v4367 = vlaneseq
    %v4368 = vshrl.u32 %v4367, 7
    %v4369 = vsub.s32 %v4257, %v4368
    %v4370 = vrot.slane %v3303, %v4369
    %v4371 = vsel %vm4262, %v4370, %v4366
    %v4372 = vlaneseq
    %v4373 = vshrl.u32 %v4372, 7
    %v4374 = vsub.s32 %v4252, %v4373
    %v4375 = vrot.slane %v3306, %v4374
    %v4376 = vlaneseq
    %v4377 = vshrl.u32 %v4376, 7
    %v4378 = vsub.s32 %v4257, %v4377
    %v4379 = vrot.slane %v3309, %v4378
    %v4380 = vsel %vm4262, %v4379, %v4375
    %v4381 = vlaneseq
    %v4382 = vshrl.u32 %v4381, 7
    %v4383 = vsub.s32 %v4252, %v4382
    %v4384 = vrot.slane %v3312, %v4383
    %v4385 = vlaneseq
    %v4386 = vshrl.u32 %v4385, 7
    %v4387 = vsub.s32 %v4257, %v4386
    %v4388 = vrot.slane %v3315, %v4387
    %v4389 = vsel %vm4262, %v4388, %v4384
    %v4390 = vlaneseq
    %v4391 = vshrl.u32 %v4390, 7
    %v4392 = vsub.s32 %v4252, %v4391
    %v4393 = vrot.slane %v3318, %v4392
    %v4394 = vlaneseq
    %v4395 = vshrl.u32 %v4394, 7
    %v4396 = vsub.s32 %v4257, %v4395
    %v4397 = vrot.slane %v3321, %v4396
    %v4398 = vsel %vm4262, %v4397, %v4393
    %v4399 = vlaneseq
    %v4400 = vshrl.u32 %v4399, 7
    %v4401 = vsub.s32 %v4252, %v4400
    %v4402 = vrot.slane %v3324, %v4401
    %v4403 = vlaneseq
    %v4404 = vshrl.u32 %v4403, 7
    %v4405 = vsub.s32 %v4257, %v4404
    %v4406 = vrot.slane %v3327, %v4405
    %v4407 = vsel %vm4262, %v4406, %v4402
    %v4408 = vlaneseq
    %v4409 = vshrl.u32 %v4408, 7
    %v4410 = vsub.s32 %v4252, %v4409
    %v4411 = vrot.slane %v3330, %v4410
    %v4412 = vlaneseq
    %v4413 = vshrl.u32 %v4412, 7
    %v4414 = vsub.s32 %v4257, %v4413
    %v4415 = vrot.slane %v3333, %v4414
    %v4416 = vsel %vm4262, %v4415, %v4411
    %v4417 = vlaneseq
    %v4418 = vshrl.u32 %v4417, 7
    %v4419 = vsub.s32 %v4252, %v4418
    %v4420 = vrot.slane %v3336, %v4419
    %v4421 = vlaneseq
    %v4422 = vshrl.u32 %v4421, 7
    %v4423 = vsub.s32 %v4257, %v4422
    %v4424 = vrot.slane %v3339, %v4423
    %v4425 = vsel %vm4262, %v4424, %v4420
    %v4426 = vlaneseq
    %v4427 = vshrl.u32 %v4426, 7
    %v4428 = vsub.s32 %v4252, %v4427
    %v4429 = vrot.slane %v3342, %v4428
    %v4430 = vlaneseq
    %v4431 = vshrl.u32 %v4430, 7
    %v4432 = vsub.s32 %v4257, %v4431
    %v4433 = vrot.slane %v3345, %v4432
    %v4434 = vsel %vm4262, %v4433, %v4429
    %v4435 = vlaneseq
    %v4436 = vshrl.u32 %v4435, 7
    %v4437 = vsub.s32 %v4252, %v4436
    %v4438 = vrot.slane %v3348, %v4437
    %v4439 = vlaneseq
    %v4440 = vshrl.u32 %v4439, 7
    %v4441 = vsub.s32 %v4257, %v4440
    %v4442 = vrot.slane %v3351, %v4441
    %v4443 = vsel %vm4262, %v4442, %v4438
    %v4444 = vlaneseq
    %v4445 = vshrl.u32 %v4444, 7
    %v4446 = vsub.s32 %v4252, %v4445
    %v4447 = vrot.slane %v3354, %v4446
    %v4448 = vlaneseq
    %v4449 = vshrl.u32 %v4448, 7
    %v4450 = vsub.s32 %v4257, %v4449
    %v4451 = vrot.slane %v3357, %v4450
    %v4452 = vsel %vm4262, %v4451, %v4447
    %v4453 = vlaneseq
    %v4454 = vshrl.u32 %v4453, 7
    %v4455 = vsub.s32 %v4252, %v4454
    %v4456 = vrot.slane %v3360, %v4455
    %v4457 = vlaneseq
    %v4458 = vshrl.u32 %v4457, 7
    %v4459 = vsub.s32 %v4257, %v4458
    %v4460 = vrot.slane %v3363, %v4459
    %v4461 = vsel %vm4262, %v4460, %v4456
    %v4462 = vlaneseq
    %v4463 = vshrl.u32 %v4462, 7
    %v4464 = vsub.s32 %v4252, %v4463
    %v4465 = vrot.slane %v3366, %v4464
    %v4466 = vlaneseq
    %v4467 = vshrl.u32 %v4466, 7
    %v4468 = vsub.s32 %v4257, %v4467
    %v4469 = vrot.slane %v3369, %v4468
    %v4470 = vsel %vm4262, %v4469, %v4465
    %v4471 = vlaneseq
    %v4472 = vshrl.u32 %v4471, 7
    %v4473 = vsub.s32 %v4252, %v4472
    %v4474 = vrot.slane %v3372, %v4473
    %v4475 = vlaneseq
    %v4476 = vshrl.u32 %v4475, 7
    %v4477 = vsub.s32 %v4257, %v4476
    %v4478 = vrot.slane %v3375, %v4477
    %v4479 = vsel %vm4262, %v4478, %v4474
    %v4480 = vlaneseq
    %v4481 = vshrl.u32 %v4480, 7
    %v4482 = vsub.s32 %v4252, %v4481
    %v4483 = vrot.slane %v3378, %v4482
    %v4484 = vlaneseq
    %v4485 = vshrl.u32 %v4484, 7
    %v4486 = vsub.s32 %v4257, %v4485
    %v4487 = vrot.slane %v3381, %v4486
    %v4488 = vsel %vm4262, %v4487, %v4483
    %v4489 = vlaneseq
    %v4490 = vshrl.u32 %v4489, 7
    %v4491 = vsub.s32 %v4252, %v4490
    %v4492 = vrot.slane %v3384, %v4491
    %v4493 = vlaneseq
    %v4494 = vshrl.u32 %v4493, 7
    %v4495 = vsub.s32 %v4257, %v4494
    %v4496 = vrot.slane %v3387, %v4495
    %v4497 = vsel %vm4262, %v4496, %v4492
    %v4498 = vlaneseq
    %v4499 = vshrl.u32 %v4498, 7
    %v4500 = vsub.s32 %v4252, %v4499
    %v4501 = vrot.slane %v3390, %v4500
    %v4502 = vlaneseq
    %v4503 = vshrl.u32 %v4502, 7
    %v4504 = vsub.s32 %v4257, %v4503
    %v4505 = vrot.slane %v3393, %v4504
    %v4506 = vsel %vm4262, %v4505, %v4501
    %v4507 = vlaneseq
    %v4508 = vshrl.u32 %v4507, 7
    %v4509 = vsub.s32 %v4252, %v4508
    %v4510 = vrot.slane %v3396, %v4509
    %v4511 = vlaneseq
    %v4512 = vshrl.u32 %v4511, 7
    %v4513 = vsub.s32 %v4257, %v4512
    %v4514 = vrot.slane %v3399, %v4513
    %v4515 = vsel %vm4262, %v4514, %v4510
    %v4516 = vlaneseq
    %v4517 = vshrl.u32 %v4516, 7
    %v4518 = vsub.s32 %v4252, %v4517
    %v4519 = vrot.slane %v3402, %v4518
    %v4520 = vlaneseq
    %v4521 = vshrl.u32 %v4520, 7
    %v4522 = vsub.s32 %v4257, %v4521
    %v4523 = vrot.slane %v3405, %v4522
    %v4524 = vsel %vm4262, %v4523, %v4519
    %v4525 = vlaneseq
    %v4526 = vshrl.u32 %v4525, 7
    %v4527 = vsub.s32 %v4252, %v4526
    %v4528 = vrot.slane %v3408, %v4527
    %v4529 = vlaneseq
    %v4530 = vshrl.u32 %v4529, 7
    %v4531 = vsub.s32 %v4257, %v4530
    %v4532 = vrot.slane %v3411, %v4531
    %v4533 = vsel %vm4262, %v4532, %v4528
    %v4534 = vlaneseq
    %v4535 = vshrl.u32 %v4534, 7
    %v4536 = vsub.s32 %v4252, %v4535
    %v4537 = vrot.slane %v3414, %v4536
    %v4538 = vlaneseq
    %v4539 = vshrl.u32 %v4538, 7
    %v4540 = vsub.s32 %v4257, %v4539
    %v4541 = vrot.slane %v3417, %v4540
    %v4542 = vsel %vm4262, %v4541, %v4537
    %v4543 = vlaneseq
    %v4544 = vshrl.u32 %v4543, 7
    %v4545 = vsub.s32 %v4252, %v4544
    %v4546 = vrot.slane %v3420, %v4545
    %v4547 = vlaneseq
    %v4548 = vshrl.u32 %v4547, 7
    %v4549 = vsub.s32 %v4257, %v4548
    %v4550 = vrot.slane %v3423, %v4549
    %v4551 = vsel %vm4262, %v4550, %v4546
    %v4552 = vlaneseq
    %v4553 = vshrl.u32 %v4552, 7
    %v4554 = vsub.s32 %v4252, %v4553
    %v4555 = vrot.slane %v3426, %v4554
    %v4556 = vlaneseq
    %v4557 = vshrl.u32 %v4556, 7
    %v4558 = vsub.s32 %v4257, %v4557
    %v4559 = vrot.slane %v3429, %v4558
    %v4560 = vsel %vm4262, %v4559, %v4555
    %v4561 = vlaneseq
    %v4562 = vshrl.u32 %v4561, 7
    %v4563 = vsub.s32 %v4252, %v4562
    %v4564 = vrot.slane %v3432, %v4563
    %v4565 = vlaneseq
    %v4566 = vshrl.u32 %v4565, 7
    %v4567 = vsub.s32 %v4257, %v4566
    %v4568 = vrot.slane %v3435, %v4567
    %v4569 = vsel %vm4262, %v4568, %v4564
    %v4570 = vlaneseq
    %v4571 = vshrl.u32 %v4570, 7
    %v4572 = vsub.s32 %v4252, %v4571
    %v4573 = vrot.slane %v3438, %v4572
    %v4574 = vlaneseq
    %v4575 = vshrl.u32 %v4574, 7
    %v4576 = vsub.s32 %v4257, %v4575
    %v4577 = vrot.slane %v3441, %v4576
    %v4578 = vsel %vm4262, %v4577, %v4573
    %v4579 = vlaneseq
    %v4580 = vshrl.u32 %v4579, 7
    %v4581 = vsub.s32 %v4252, %v4580
    %v4582 = vrot.slane %v3444, %v4581
    %v4583 = vlaneseq
    %v4584 = vshrl.u32 %v4583, 7
    %v4585 = vsub.s32 %v4257, %v4584
    %v4586 = vrot.slane %v3447, %v4585
    %v4587 = vsel %vm4262, %v4586, %v4582
    %v4588 = vlaneseq
    %v4589 = vshrl.u32 %v4588, 7
    %v4590 = vsub.s32 %v4252, %v4589
    %v4591 = vrot.slane %v3450, %v4590
    %v4592 = vlaneseq
    %v4593 = vshrl.u32 %v4592, 7
    %v4594 = vsub.s32 %v4257, %v4593
    %v4595 = vrot.slane %v3453, %v4594
    %v4596 = vsel %vm4262, %v4595, %v4591
    %v4597 = vlaneseq
    %v4598 = vshrl.u32 %v4597, 7
    %v4599 = vsub.s32 %v4252, %v4598
    %v4600 = vrot.slane %v3456, %v4599
    %v4601 = vlaneseq
    %v4602 = vshrl.u32 %v4601, 7
    %v4603 = vsub.s32 %v4257, %v4602
    %v4604 = vrot.slane %v3459, %v4603
    %v4605 = vsel %vm4262, %v4604, %v4600
    %v4606 = vlaneseq
    %v4607 = vshrl.u32 %v4606, 7
    %v4608 = vsub.s32 %v4252, %v4607
    %v4609 = vrot.slane %v3462, %v4608
    %v4610 = vlaneseq
    %v4611 = vshrl.u32 %v4610, 7
    %v4612 = vsub.s32 %v4257, %v4611
    %v4613 = vrot.slane %v3465, %v4612
    %v4614 = vsel %vm4262, %v4613, %v4609
    %v4615 = vlaneseq
    %v4616 = vshrl.u32 %v4615, 7
    %v4617 = vsub.s32 %v4252, %v4616
    %v4618 = vrot.slane %v3468, %v4617
    %v4619 = vlaneseq
    %v4620 = vshrl.u32 %v4619, 7
    %v4621 = vsub.s32 %v4257, %v4620
    %v4622 = vrot.slane %v3471, %v4621
    %v4623 = vsel %vm4262, %v4622, %v4618
    %v4624 = vlaneseq
    %v4625 = vshrl.u32 %v4624, 7
    %v4626 = vsub.s32 %v4252, %v4625
    %v4627 = vrot.slane %v3474, %v4626
    %v4628 = vlaneseq
    %v4629 = vshrl.u32 %v4628, 7
    %v4630 = vsub.s32 %v4257, %v4629
    %v4631 = vrot.slane %v3477, %v4630
    %v4632 = vsel %vm4262, %v4631, %v4627
    %v4633 = vlaneseq
    %v4634 = vshrl.u32 %v4633, 7
    %v4635 = vsub.s32 %v4252, %v4634
    %v4636 = vrot.slane %v3480, %v4635
    %v4637 = vlaneseq
    %v4638 = vshrl.u32 %v4637, 7
    %v4639 = vsub.s32 %v4257, %v4638
    %v4640 = vrot.slane %v3483, %v4639
    %v4641 = vsel %vm4262, %v4640, %v4636
    %v4642 = vlaneseq
    %v4643 = vshrl.u32 %v4642, 7
    %v4644 = vsub.s32 %v4252, %v4643
    %v4645 = vrot.slane %v3486, %v4644
    %v4646 = vlaneseq
    %v4647 = vshrl.u32 %v4646, 7
    %v4648 = vsub.s32 %v4257, %v4647
    %v4649 = vrot.slane %v3489, %v4648
    %v4650 = vsel %vm4262, %v4649, %v4645
    %v4651 = vlaneseq
    %v4652 = vshrl.u32 %v4651, 7
    %v4653 = vsub.s32 %v4252, %v4652
    %v4654 = vrot.slane %v3492, %v4653
    %v4655 = vlaneseq
    %v4656 = vshrl.u32 %v4655, 7
    %v4657 = vsub.s32 %v4257, %v4656
    %v4658 = vrot.slane %v3495, %v4657
    %v4659 = vsel %vm4262, %v4658, %v4654
    %v4660 = vlaneseq
    %v4661 = vshrl.u32 %v4660, 7
    %v4662 = vsub.s32 %v4252, %v4661
    %v4663 = vrot.slane %v3498, %v4662
    %v4664 = vlaneseq
    %v4665 = vshrl.u32 %v4664, 7
    %v4666 = vsub.s32 %v4257, %v4665
    %v4667 = vrot.slane %v3501, %v4666
    %v4668 = vsel %vm4262, %v4667, %v4663
    %v4669 = vlaneseq
    %v4670 = vshrl.u32 %v4669, 7
    %v4671 = vsub.s32 %v4252, %v4670
    %v4672 = vrot.slane %v3504, %v4671
    %v4673 = vlaneseq
    %v4674 = vshrl.u32 %v4673, 7
    %v4675 = vsub.s32 %v4257, %v4674
    %v4676 = vrot.slane %v3507, %v4675
    %v4677 = vsel %vm4262, %v4676, %v4672
    %v4678 = vlaneseq
    %v4679 = vshrl.u32 %v4678, 7
    %v4680 = vsub.s32 %v4252, %v4679
    %v4681 = vrot.slane %v3510, %v4680
    %v4682 = vlaneseq
    %v4683 = vshrl.u32 %v4682, 7
    %v4684 = vsub.s32 %v4257, %v4683
    %v4685 = vrot.slane %v3513, %v4684
    %v4686 = vsel %vm4262, %v4685, %v4681
    %v4687 = vlaneseq
    %v4688 = vshrl.u32 %v4687, 7
    %v4689 = vsub.s32 %v4252, %v4688
    %v4690 = vrot.slane %v3516, %v4689
    %v4691 = vlaneseq
    %v4692 = vshrl.u32 %v4691, 7
    %v4693 = vsub.s32 %v4257, %v4692
    %v4694 = vrot.slane %v3519, %v4693
    %v4695 = vsel %vm4262, %v4694, %v4690
    %v4696 = vlaneseq
    %v4697 = vshrl.u32 %v4696, 7
    %v4698 = vsub.s32 %v4252, %v4697
    %v4699 = vrot.slane %v3522, %v4698
    %v4700 = vlaneseq
    %v4701 = vshrl.u32 %v4700, 7
    %v4702 = vsub.s32 %v4257, %v4701
    %v4703 = vrot.slane %v3525, %v4702
    %v4704 = vsel %vm4262, %v4703, %v4699
    %v4705 = vlaneseq
    %v4706 = vshrl.u32 %v4705, 7
    %v4707 = vsub.s32 %v4252, %v4706
    %v4708 = vrot.slane %v3528, %v4707
    %v4709 = vlaneseq
    %v4710 = vshrl.u32 %v4709, 7
    %v4711 = vsub.s32 %v4257, %v4710
    %v4712 = vrot.slane %v3531, %v4711
    %v4713 = vsel %vm4262, %v4712, %v4708
    %v4714 = vlaneseq
    %v4715 = vshrl.u32 %v4714, 7
    %v4716 = vsub.s32 %v4252, %v4715
    %v4717 = vrot.slane %v3534, %v4716
    %v4718 = vlaneseq
    %v4719 = vshrl.u32 %v4718, 7
    %v4720 = vsub.s32 %v4257, %v4719
    %v4721 = vrot.slane %v3537, %v4720
    %v4722 = vsel %vm4262, %v4721, %v4717
    %v4723 = vlaneseq
    %v4724 = vshrl.u32 %v4723, 7
    %v4725 = vsub.s32 %v4252, %v4724
    %v4726 = vrot.slane %v3540, %v4725
    %v4727 = vlaneseq
    %v4728 = vshrl.u32 %v4727, 7
    %v4729 = vsub.s32 %v4257, %v4728
    %v4730 = vrot.slane %v3543, %v4729
    %v4731 = vsel %vm4262, %v4730, %v4726
    %v4732 = vlaneseq
    %v4733 = vshrl.u32 %v4732, 7
    %v4734 = vsub.s32 %v4252, %v4733
    %v4735 = vrot.slane %v3546, %v4734
    %v4736 = vlaneseq
    %v4737 = vshrl.u32 %v4736, 7
    %v4738 = vsub.s32 %v4257, %v4737
    %v4739 = vrot.slane %v3549, %v4738
    %v4740 = vsel %vm4262, %v4739, %v4735
    %v4741 = vlaneseq
    %v4742 = vshrl.u32 %v4741, 7
    %v4743 = vsub.s32 %v4252, %v4742
    %v4744 = vrot.slane %v3552, %v4743
    %v4745 = vlaneseq
    %v4746 = vshrl.u32 %v4745, 7
    %v4747 = vsub.s32 %v4257, %v4746
    %v4748 = vrot.slane %v3555, %v4747
    %v4749 = vsel %vm4262, %v4748, %v4744
    %v4750 = vlaneseq
    %v4751 = vshrl.u32 %v4750, 7
    %v4752 = vsub.s32 %v4252, %v4751
    %v4753 = vrot.slane %v3558, %v4752
    %v4754 = vlaneseq
    %v4755 = vshrl.u32 %v4754, 7
    %v4756 = vsub.s32 %v4257, %v4755
    %v4757 = vrot.slane %v3561, %v4756
    %v4758 = vsel %vm4262, %v4757, %v4753
    %v4759 = vlaneseq
    %v4760 = vshrl.u32 %v4759, 7
    %v4761 = vsub.s32 %v4252, %v4760
    %v4762 = vrot.slane %v3564, %v4761
    %v4763 = vlaneseq
    %v4764 = vshrl.u32 %v4763, 7
    %v4765 = vsub.s32 %v4257, %v4764
    %v4766 = vrot.slane %v3567, %v4765
    %v4767 = vsel %vm4262, %v4766, %v4762
    %v4768 = vlaneseq
    %v4769 = vshrl.u32 %v4768, 7
    %v4770 = vsub.s32 %v4252, %v4769
    %v4771 = vrot.slane %v3570, %v4770
    %v4772 = vlaneseq
    %v4773 = vshrl.u32 %v4772, 7
    %v4774 = vsub.s32 %v4257, %v4773
    %v4775 = vrot.slane %v3573, %v4774
    %v4776 = vsel %vm4262, %v4775, %v4771
    %v4777 = vlaneseq
    %v4778 = vshrl.u32 %v4777, 7
    %v4779 = vsub.s32 %v4252, %v4778
    %v4780 = vrot.slane %v3576, %v4779
    %v4781 = vlaneseq
    %v4782 = vshrl.u32 %v4781, 7
    %v4783 = vsub.s32 %v4257, %v4782
    %v4784 = vrot.slane %v3579, %v4783
    %v4785 = vsel %vm4262, %v4784, %v4780
    %v4786 = vlaneseq
    %v4787 = vshrl.u32 %v4786, 7
    %v4788 = vsub.s32 %v4252, %v4787
    %v4789 = vrot.slane %v3582, %v4788
    %v4790 = vlaneseq
    %v4791 = vshrl.u32 %v4790, 7
    %v4792 = vsub.s32 %v4257, %v4791
    %v4793 = vrot.slane %v3585, %v4792
    %v4794 = vsel %vm4262, %v4793, %v4789
    %v4795 = vlaneseq
    %v4796 = vshrl.u32 %v4795, 7
    %v4797 = vsub.s32 %v4252, %v4796
    %v4798 = vrot.slane %v3588, %v4797
    %v4799 = vlaneseq
    %v4800 = vshrl.u32 %v4799, 7
    %v4801 = vsub.s32 %v4257, %v4800
    %v4802 = vrot.slane %v3591, %v4801
    %v4803 = vsel %vm4262, %v4802, %v4798
    %v4804 = vlaneseq
    %v4805 = vshrl.u32 %v4804, 7
    %v4806 = vsub.s32 %v4252, %v4805
    %v4807 = vrot.slane %v3594, %v4806
    %v4808 = vlaneseq
    %v4809 = vshrl.u32 %v4808, 7
    %v4810 = vsub.s32 %v4257, %v4809
    %v4811 = vrot.slane %v3597, %v4810
    %v4812 = vsel %vm4262, %v4811, %v4807
    %v4813 = vlaneseq
    %v4814 = vshrl.u32 %v4813, 7
    %v4815 = vsub.s32 %v4252, %v4814
    %v4816 = vrot.slane %v3600, %v4815
    %v4817 = vlaneseq
    %v4818 = vshrl.u32 %v4817, 7
    %v4819 = vsub.s32 %v4257, %v4818
    %v4820 = vrot.slane %v3603, %v4819
    %v4821 = vsel %vm4262, %v4820, %v4816
    %v4822 = vlaneseq
    %v4823 = vshrl.u32 %v4822, 7
    %v4824 = vsub.s32 %v4252, %v4823
    %v4825 = vrot.slane %v3606, %v4824
    %v4826 = vlaneseq
    %v4827 = vshrl.u32 %v4826, 7
    %v4828 = vsub.s32 %v4257, %v4827
    %v4829 = vrot.slane %v3609, %v4828
    %v4830 = vsel %vm4262, %v4829, %v4825
    %v4831 = vlaneseq
    %v4832 = vshrl.u32 %v4831, 7
    %v4833 = vsub.s32 %v4252, %v4832
    %v4834 = vrot.slane %v3612, %v4833
    %v4835 = vlaneseq
    %v4836 = vshrl.u32 %v4835, 7
    %v4837 = vsub.s32 %v4257, %v4836
    %v4838 = vrot.slane %v3615, %v4837
    %v4839 = vsel %vm4262, %v4838, %v4834
    %v4840 = vlaneseq
    %v4841 = vshrl.u32 %v4840, 7
    %v4842 = vsub.s32 %v4252, %v4841
    %v4843 = vrot.slane %v3618, %v4842
    %v4844 = vlaneseq
    %v4845 = vshrl.u32 %v4844, 7
    %v4846 = vsub.s32 %v4257, %v4845
    %v4847 = vrot.slane %v3621, %v4846
    %v4848 = vsel %vm4262, %v4847, %v4843
    %v4849 = vlaneseq
    %v4850 = vshrl.u32 %v4849, 7
    %v4851 = vsub.s32 %v4252, %v4850
    %v4852 = vrot.slane %v3624, %v4851
    %v4853 = vlaneseq
    %v4854 = vshrl.u32 %v4853, 7
    %v4855 = vsub.s32 %v4257, %v4854
    %v4856 = vrot.slane %v3627, %v4855
    %v4857 = vsel %vm4262, %v4856, %v4852
    %v4858 = vlaneseq
    %v4859 = vshrl.u32 %v4858, 7
    %v4860 = vsub.s32 %v4252, %v4859
    %v4861 = vrot.slane %v3630, %v4860
    %v4862 = vlaneseq
    %v4863 = vshrl.u32 %v4862, 7
    %v4864 = vsub.s32 %v4257, %v4863
    %v4865 = vrot.slane %v3633, %v4864
    %v4866 = vsel %vm4262, %v4865, %v4861
    %v4867 = vlaneseq
    %v4868 = vshrl.u32 %v4867, 7
    %v4869 = vsub.s32 %v4252, %v4868
    %v4870 = vrot.slane %v3636, %v4869
    %v4871 = vlaneseq
    %v4872 = vshrl.u32 %v4871, 7
    %v4873 = vsub.s32 %v4257, %v4872
    %v4874 = vrot.slane %v3639, %v4873
    %v4875 = vsel %vm4262, %v4874, %v4870
    %v4876 = vlaneseq
    %v4877 = vshrl.u32 %v4876, 7
    %v4878 = vsub.s32 %v4252, %v4877
    %v4879 = vrot.slane %v3642, %v4878
    %v4880 = vlaneseq
    %v4881 = vshrl.u32 %v4880, 7
    %v4882 = vsub.s32 %v4257, %v4881
    %v4883 = vrot.slane %v3645, %v4882
    %v4884 = vsel %vm4262, %v4883, %v4879
    %v4885 = vlaneseq
    %v4886 = vshrl.u32 %v4885, 7
    %v4887 = vsub.s32 %v4252, %v4886
    %v4888 = vrot.slane %v3648, %v4887
    %v4889 = vlaneseq
    %v4890 = vshrl.u32 %v4889, 7
    %v4891 = vsub.s32 %v4257, %v4890
    %v4892 = vrot.slane %v3651, %v4891
    %v4893 = vsel %vm4262, %v4892, %v4888
    %v4894 = vlaneseq
    %v4895 = vshrl.u32 %v4894, 7
    %v4896 = vsub.s32 %v4252, %v4895
    %v4897 = vrot.slane %v3654, %v4896
    %v4898 = vlaneseq
    %v4899 = vshrl.u32 %v4898, 7
    %v4900 = vsub.s32 %v4257, %v4899
    %v4901 = vrot.slane %v3657, %v4900
    %v4902 = vsel %vm4262, %v4901, %v4897
    %v4903 = vlaneseq
    %v4904 = vshrl.u32 %v4903, 7
    %v4905 = vsub.s32 %v4252, %v4904
    %v4906 = vrot.slane %v3660, %v4905
    %v4907 = vlaneseq
    %v4908 = vshrl.u32 %v4907, 7
    %v4909 = vsub.s32 %v4257, %v4908
    %v4910 = vrot.slane %v3663, %v4909
    %v4911 = vsel %vm4262, %v4910, %v4906
    %v4912 = vlaneseq
    %v4913 = vshrl.u32 %v4912, 7
    %v4914 = vsub.s32 %v4252, %v4913
    %v4915 = vrot.slane %v3666, %v4914
    %v4916 = vlaneseq
    %v4917 = vshrl.u32 %v4916, 7
    %v4918 = vsub.s32 %v4257, %v4917
    %v4919 = vrot.slane %v3669, %v4918
    %v4920 = vsel %vm4262, %v4919, %v4915
    %v4921 = vlaneseq
    %v4922 = vshrl.u32 %v4921, 7
    %v4923 = vsub.s32 %v4252, %v4922
    %v4924 = vrot.slane %v3672, %v4923
    %v4925 = vlaneseq
    %v4926 = vshrl.u32 %v4925, 7
    %v4927 = vsub.s32 %v4257, %v4926
    %v4928 = vrot.slane %v3675, %v4927
    %v4929 = vsel %vm4262, %v4928, %v4924
    %v4930 = vlaneseq
    %v4931 = vshrl.u32 %v4930, 7
    %v4932 = vsub.s32 %v4252, %v4931
    %v4933 = vrot.slane %v3678, %v4932
    %v4934 = vlaneseq
    %v4935 = vshrl.u32 %v4934, 7
    %v4936 = vsub.s32 %v4257, %v4935
    %v4937 = vrot.slane %v3681, %v4936
    %v4938 = vsel %vm4262, %v4937, %v4933
    %v4939 = vlaneseq
    %v4940 = vshrl.u32 %v4939, 7
    %v4941 = vsub.s32 %v4252, %v4940
    %v4942 = vrot.slane %v3684, %v4941
    %v4943 = vlaneseq
    %v4944 = vshrl.u32 %v4943, 7
    %v4945 = vsub.s32 %v4257, %v4944
    %v4946 = vrot.slane %v3687, %v4945
    %v4947 = vsel %vm4262, %v4946, %v4942
    %v4948 = vlaneseq
    %v4949 = vshrl.u32 %v4948, 7
    %v4950 = vsub.s32 %v4252, %v4949
    %v4951 = vrot.slane %v3690, %v4950
    %v4952 = vlaneseq
    %v4953 = vshrl.u32 %v4952, 7
    %v4954 = vsub.s32 %v4257, %v4953
    %v4955 = vrot.slane %v3693, %v4954
    %v4956 = vsel %vm4262, %v4955, %v4951
    %v4957 = vlaneseq
    %v4958 = vshrl.u32 %v4957, 7
    %v4959 = vsub.s32 %v4252, %v4958
    %v4960 = vrot.slane %v3696, %v4959
    %v4961 = vlaneseq
    %v4962 = vshrl.u32 %v4961, 7
    %v4963 = vsub.s32 %v4257, %v4962
    %v4964 = vrot.slane %v3699, %v4963
    %v4965 = vsel %vm4262, %v4964, %v4960
    %v4966 = vlaneseq
    %v4967 = vshrl.u32 %v4966, 7
    %v4968 = vsub.s32 %v4252, %v4967
    %v4969 = vrot.slane %v3702, %v4968
    %v4970 = vlaneseq
    %v4971 = vshrl.u32 %v4970, 7
    %v4972 = vsub.s32 %v4257, %v4971
    %v4973 = vrot.slane %v3705, %v4972
    %v4974 = vsel %vm4262, %v4973, %v4969
    %v4975 = vlaneseq
    %v4976 = vshrl.u32 %v4975, 7
    %v4977 = vsub.s32 %v4252, %v4976
    %v4978 = vrot.slane %v3708, %v4977
    %v4979 = vlaneseq
    %v4980 = vshrl.u32 %v4979, 7
    %v4981 = vsub.s32 %v4257, %v4980
    %v4982 = vrot.slane %v3711, %v4981
    %v4983 = vsel %vm4262, %v4982, %v4978
    %v4984 = vlaneseq
    %v4985 = vshrl.u32 %v4984, 7
    %v4986 = vsub.s32 %v4252, %v4985
    %v4987 = vrot.slane %v3714, %v4986
    %v4988 = vlaneseq
    %v4989 = vshrl.u32 %v4988, 7
    %v4990 = vsub.s32 %v4257, %v4989
    %v4991 = vrot.slane %v3717, %v4990
    %v4992 = vsel %vm4262, %v4991, %v4987
    %v4993 = vlaneseq
    %v4994 = vshrl.u32 %v4993, 7
    %v4995 = vsub.s32 %v4252, %v4994
    %v4996 = vrot.slane %v3720, %v4995
    %v4997 = vlaneseq
    %v4998 = vshrl.u32 %v4997, 7
    %v4999 = vsub.s32 %v4257, %v4998
    %v5000 = vrot.slane %v3723, %v4999
    %v5001 = vsel %vm4262, %v5000, %v4996
    %v5002 = vlaneseq
    %v5003 = vshrl.u32 %v5002, 7
    %v5004 = vsub.s32 %v4252, %v5003
    %v5005 = vrot.slane %v3726, %v5004
    %v5006 = vlaneseq
    %v5007 = vshrl.u32 %v5006, 7
    %v5008 = vsub.s32 %v4257, %v5007
    %v5009 = vrot.slane %v3729, %v5008
    %v5010 = vsel %vm4262, %v5009, %v5005
    %v5011 = vlaneseq
    %v5012 = vshrl.u32 %v5011, 7
    %v5013 = vsub.s32 %v4252, %v5012
    %v5014 = vrot.slane %v3732, %v5013
    %v5015 = vlaneseq
    %v5016 = vshrl.u32 %v5015, 7
    %v5017 = vsub.s32 %v4257, %v5016
    %v5018 = vrot.slane %v3735, %v5017
    %v5019 = vsel %vm4262, %v5018, %v5014
    %v5020 = vlaneseq
    %v5021 = vshrl.u32 %v5020, 7
    %v5022 = vsub.s32 %v4252, %v5021
    %v5023 = vrot.slane %v3738, %v5022
    %v5024 = vlaneseq
    %v5025 = vshrl.u32 %v5024, 7
    %v5026 = vsub.s32 %v4257, %v5025
    %v5027 = vrot.slane %v3741, %v5026
    %v5028 = vsel %vm4262, %v5027, %v5023
    %v5029 = vlaneseq
    %v5030 = vshrl.u32 %v5029, 7
    %v5031 = vsub.s32 %v4252, %v5030
    %v5032 = vrot.slane %v3744, %v5031
    %v5033 = vlaneseq
    %v5034 = vshrl.u32 %v5033, 7
    %v5035 = vsub.s32 %v4257, %v5034
    %v5036 = vrot.slane %v3747, %v5035
    %v5037 = vsel %vm4262, %v5036, %v5032
    %v5038 = vlaneseq
    %v5039 = vshrl.u32 %v5038, 7
    %v5040 = vsub.s32 %v4252, %v5039
    %v5041 = vrot.slane %v3750, %v5040
    %v5042 = vlaneseq
    %v5043 = vshrl.u32 %v5042, 7
    %v5044 = vsub.s32 %v4257, %v5043
    %v5045 = vrot.slane %v3753, %v5044
    %v5046 = vsel %vm4262, %v5045, %v5041
    %v5047 = vlaneseq
    %v5048 = vshrl.u32 %v5047, 7
    %v5049 = vsub.s32 %v4252, %v5048
    %v5050 = vrot.slane %v3756, %v5049
    %v5051 = vlaneseq
    %v5052 = vshrl.u32 %v5051, 7
    %v5053 = vsub.s32 %v4257, %v5052
    %v5054 = vrot.slane %v3759, %v5053
    %v5055 = vsel %vm4262, %v5054, %v5050
    %v5056 = vlaneseq
    %v5057 = vshrl.u32 %v5056, 7
    %v5058 = vsub.s32 %v4252, %v5057
    %v5059 = vrot.slane %v3762, %v5058
    %v5060 = vlaneseq
    %v5061 = vshrl.u32 %v5060, 7
    %v5062 = vsub.s32 %v4257, %v5061
    %v5063 = vrot.slane %v3765, %v5062
    %v5064 = vsel %vm4262, %v5063, %v5059
    %v5065 = vlaneseq
    %v5066 = vshrl.u32 %v5065, 7
    %v5067 = vsub.s32 %v4252, %v5066
    %v5068 = vrot.slane %v3768, %v5067
    %v5069 = vlaneseq
    %v5070 = vshrl.u32 %v5069, 7
    %v5071 = vsub.s32 %v4257, %v5070
    %v5072 = vrot.slane %v3771, %v5071
    %v5073 = vsel %vm4262, %v5072, %v5068
    %v5074 = vlaneseq
    %v5075 = vshrl.u32 %v5074, 7
    %v5076 = vsub.s32 %v4252, %v5075
    %v5077 = vrot.slane %v3774, %v5076
    %v5078 = vlaneseq
    %v5079 = vshrl.u32 %v5078, 7
    %v5080 = vsub.s32 %v4257, %v5079
    %v5081 = vrot.slane %v3777, %v5080
    %v5082 = vsel %vm4262, %v5081, %v5077
    %v5083 = vlaneseq
    %v5084 = vshrl.u32 %v5083, 7
    %v5085 = vsub.s32 %v4252, %v5084
    %v5086 = vrot.slane %v3780, %v5085
    %v5087 = vlaneseq
    %v5088 = vshrl.u32 %v5087, 7
    %v5089 = vsub.s32 %v4257, %v5088
    %v5090 = vrot.slane %v3783, %v5089
    %v5091 = vsel %vm4262, %v5090, %v5086
    %v5092 = vlaneseq
    %v5093 = vshrl.u32 %v5092, 7
    %v5094 = vsub.s32 %v4252, %v5093
    %v5095 = vrot.slane %v3786, %v5094
    %v5096 = vlaneseq
    %v5097 = vshrl.u32 %v5096, 7
    %v5098 = vsub.s32 %v4257, %v5097
    %v5099 = vrot.slane %v3789, %v5098
    %v5100 = vsel %vm4262, %v5099, %v5095
    %v5101 = vlaneseq
    %v5102 = vshrl.u32 %v5101, 7
    %v5103 = vsub.s32 %v4252, %v5102
    %v5104 = vrot.slane %v3792, %v5103
    %v5105 = vlaneseq
    %v5106 = vshrl.u32 %v5105, 7
    %v5107 = vsub.s32 %v4257, %v5106
    %v5108 = vrot.slane %v3795, %v5107
    %v5109 = vsel %vm4262, %v5108, %v5104
    %v5110 = vlaneseq
    %v5111 = vshrl.u32 %v5110, 7
    %v5112 = vsub.s32 %v4252, %v5111
    %v5113 = vrot.slane %v3798, %v5112
    %v5114 = vlaneseq
    %v5115 = vshrl.u32 %v5114, 7
    %v5116 = vsub.s32 %v4257, %v5115
    %v5117 = vrot.slane %v3801, %v5116
    %v5118 = vsel %vm4262, %v5117, %v5113
    %v5119 = vlaneseq
    %v5120 = vshrl.u32 %v5119, 7
    %v5121 = vsub.s32 %v4252, %v5120
    %v5122 = vrot.slane %v3804, %v5121
    %v5123 = vlaneseq
    %v5124 = vshrl.u32 %v5123, 7
    %v5125 = vsub.s32 %v4257, %v5124
    %v5126 = vrot.slane %v3807, %v5125
    %v5127 = vsel %vm4262, %v5126, %v5122
    %v5128 = vlaneseq
    %v5129 = vshrl.u32 %v5128, 7
    %v5130 = vsub.s32 %v4252, %v5129
    %v5131 = vrot.slane %v3810, %v5130
    %v5132 = vlaneseq
    %v5133 = vshrl.u32 %v5132, 7
    %v5134 = vsub.s32 %v4257, %v5133
    %v5135 = vrot.slane %v3813, %v5134
    %v5136 = vsel %vm4262, %v5135, %v5131
    %v5137 = vlaneseq
    %v5138 = vshrl.u32 %v5137, 7
    %v5139 = vsub.s32 %v4252, %v5138
    %v5140 = vrot.slane %v3816, %v5139
    %v5141 = vlaneseq
    %v5142 = vshrl.u32 %v5141, 7
    %v5143 = vsub.s32 %v4257, %v5142
    %v5144 = vrot.slane %v3819, %v5143
    %v5145 = vsel %vm4262, %v5144, %v5140
    %v5146 = vlaneseq
    %v5147 = vshrl.u32 %v5146, 7
    %v5148 = vsub.s32 %v4252, %v5147
    %v5149 = vrot.slane %v3822, %v5148
    %v5150 = vlaneseq
    %v5151 = vshrl.u32 %v5150, 7
    %v5152 = vsub.s32 %v4257, %v5151
    %v5153 = vrot.slane %v3825, %v5152
    %v5154 = vsel %vm4262, %v5153, %v5149
    %v5155 = vlaneseq
    %v5156 = vshrl.u32 %v5155, 7
    %v5157 = vsub.s32 %v4252, %v5156
    %v5158 = vrot.slane %v3828, %v5157
    %v5159 = vlaneseq
    %v5160 = vshrl.u32 %v5159, 7
    %v5161 = vsub.s32 %v4257, %v5160
    %v5162 = vrot.slane %v3831, %v5161
    %v5163 = vsel %vm4262, %v5162, %v5158
    %v5164 = vlaneseq
    %v5165 = vshrl.u32 %v5164, 7
    %v5166 = vsub.s32 %v4252, %v5165
    %v5167 = vrot.slane %v3834, %v5166
    %v5168 = vlaneseq
    %v5169 = vshrl.u32 %v5168, 7
    %v5170 = vsub.s32 %v4257, %v5169
    %v5171 = vrot.slane %v3837, %v5170
    %v5172 = vsel %vm4262, %v5171, %v5167
    %v5173 = vlaneseq
    %v5174 = vshrl.u32 %v5173, 7
    %v5175 = vsub.s32 %v4252, %v5174
    %v5176 = vrot.slane %v3840, %v5175
    %v5177 = vlaneseq
    %v5178 = vshrl.u32 %v5177, 7
    %v5179 = vsub.s32 %v4257, %v5178
    %v5180 = vrot.slane %v3843, %v5179
    %v5181 = vsel %vm4262, %v5180, %v5176
    %v5182 = vlaneseq
    %v5183 = vshrl.u32 %v5182, 7
    %v5184 = vsub.s32 %v4252, %v5183
    %v5185 = vrot.slane %v3846, %v5184
    %v5186 = vlaneseq
    %v5187 = vshrl.u32 %v5186, 7
    %v5188 = vsub.s32 %v4257, %v5187
    %v5189 = vrot.slane %v3849, %v5188
    %v5190 = vsel %vm4262, %v5189, %v5185
    %v5191 = vlaneseq
    %v5192 = vshrl.u32 %v5191, 7
    %v5193 = vsub.s32 %v4252, %v5192
    %v5194 = vrot.slane %v3852, %v5193
    %v5195 = vlaneseq
    %v5196 = vshrl.u32 %v5195, 7
    %v5197 = vsub.s32 %v4257, %v5196
    %v5198 = vrot.slane %v3855, %v5197
    %v5199 = vsel %vm4262, %v5198, %v5194
    %v5200 = vlaneseq
    %v5201 = vshrl.u32 %v5200, 7
    %v5202 = vsub.s32 %v4252, %v5201
    %v5203 = vrot.slane %v3858, %v5202
    %v5204 = vlaneseq
    %v5205 = vshrl.u32 %v5204, 7
    %v5206 = vsub.s32 %v4257, %v5205
    %v5207 = vrot.slane %v3861, %v5206
    %v5208 = vsel %vm4262, %v5207, %v5203
    %v5209 = vlaneseq
    %v5210 = vshrl.u32 %v5209, 7
    %v5211 = vsub.s32 %v4252, %v5210
    %v5212 = vrot.slane %v3864, %v5211
    %v5213 = vlaneseq
    %v5214 = vshrl.u32 %v5213, 7
    %v5215 = vsub.s32 %v4257, %v5214
    %v5216 = vrot.slane %v3867, %v5215
    %v5217 = vsel %vm4262, %v5216, %v5212
    %v5218 = vlaneseq
    %v5219 = vshrl.u32 %v5218, 7
    %v5220 = vsub.s32 %v4252, %v5219
    %v5221 = vrot.slane %v3870, %v5220
    %v5222 = vlaneseq
    %v5223 = vshrl.u32 %v5222, 7
    %v5224 = vsub.s32 %v4257, %v5223
    %v5225 = vrot.slane %v3873, %v5224
    %v5226 = vsel %vm4262, %v5225, %v5221
    %v5227 = vlaneseq
    %v5228 = vshrl.u32 %v5227, 7
    %v5229 = vsub.s32 %v4252, %v5228
    %v5230 = vrot.slane %v3876, %v5229
    %v5231 = vlaneseq
    %v5232 = vshrl.u32 %v5231, 7
    %v5233 = vsub.s32 %v4257, %v5232
    %v5234 = vrot.slane %v3879, %v5233
    %v5235 = vsel %vm4262, %v5234, %v5230
    %v5236 = vlaneseq
    %v5237 = vshrl.u32 %v5236, 7
    %v5238 = vsub.s32 %v4252, %v5237
    %v5239 = vrot.slane %v3882, %v5238
    %v5240 = vlaneseq
    %v5241 = vshrl.u32 %v5240, 7
    %v5242 = vsub.s32 %v4257, %v5241
    %v5243 = vrot.slane %v3885, %v5242
    %v5244 = vsel %vm4262, %v5243, %v5239
    %v5245 = vlaneseq
    %v5246 = vshrl.u32 %v5245, 7
    %v5247 = vsub.s32 %v4252, %v5246
    %v5248 = vrot.slane %v3888, %v5247
    %v5249 = vlaneseq
    %v5250 = vshrl.u32 %v5249, 7
    %v5251 = vsub.s32 %v4257, %v5250
    %v5252 = vrot.slane %v3891, %v5251
    %v5253 = vsel %vm4262, %v5252, %v5248
    %v5254 = vlaneseq
    %v5255 = vshrl.u32 %v5254, 7
    %v5256 = vsub.s32 %v4252, %v5255
    %v5257 = vrot.slane %v3894, %v5256
    %v5258 = vlaneseq
    %v5259 = vshrl.u32 %v5258, 7
    %v5260 = vsub.s32 %v4257, %v5259
    %v5261 = vrot.slane %v3897, %v5260
    %v5262 = vsel %vm4262, %v5261, %v5257
    %v5263 = vlaneseq
    %v5264 = vshrl.u32 %v5263, 7
    %v5265 = vsub.s32 %v4252, %v5264
    %v5266 = vrot.slane %v3900, %v5265
    %v5267 = vlaneseq
    %v5268 = vshrl.u32 %v5267, 7
    %v5269 = vsub.s32 %v4257, %v5268
    %v5270 = vrot.slane %v3903, %v5269
    %v5271 = vsel %vm4262, %v5270, %v5266
    %v5272 = vlaneseq
    %v5273 = vshrl.u32 %v5272, 7
    %v5274 = vsub.s32 %v4252, %v5273
    %v5275 = vrot.slane %v3906, %v5274
    %v5276 = vlaneseq
    %v5277 = vshrl.u32 %v5276, 7
    %v5278 = vsub.s32 %v4257, %v5277
    %v5279 = vrot.slane %v3909, %v5278
    %v5280 = vsel %vm4262, %v5279, %v5275
    %v5281 = vlaneseq
    %v5282 = vshrl.u32 %v5281, 7
    %v5283 = vsub.s32 %v4252, %v5282
    %v5284 = vrot.slane %v3912, %v5283
    %v5285 = vlaneseq
    %v5286 = vshrl.u32 %v5285, 7
    %v5287 = vsub.s32 %v4257, %v5286
    %v5288 = vrot.slane %v3915, %v5287
    %v5289 = vsel %vm4262, %v5288, %v5284
    %v5290 = vlaneseq
    %v5291 = vshrl.u32 %v5290, 7
    %v5292 = vsub.s32 %v4252, %v5291
    %v5293 = vrot.slane %v3918, %v5292
    %v5294 = vlaneseq
    %v5295 = vshrl.u32 %v5294, 7
    %v5296 = vsub.s32 %v4257, %v5295
    %v5297 = vrot.slane %v3921, %v5296
    %v5298 = vsel %vm4262, %v5297, %v5293
    %v5299 = vlaneseq
    %v5300 = vshrl.u32 %v5299, 7
    %v5301 = vsub.s32 %v4252, %v5300
    %v5302 = vrot.slane %v3924, %v5301
    %v5303 = vlaneseq
    %v5304 = vshrl.u32 %v5303, 7
    %v5305 = vsub.s32 %v4257, %v5304
    %v5306 = vrot.slane %v3927, %v5305
    %v5307 = vsel %vm4262, %v5306, %v5302
    %v5308 = vlaneseq
    %v5309 = vshrl.u32 %v5308, 7
    %v5310 = vsub.s32 %v4252, %v5309
    %v5311 = vrot.slane %v3930, %v5310
    %v5312 = vlaneseq
    %v5313 = vshrl.u32 %v5312, 7
    %v5314 = vsub.s32 %v4257, %v5313
    %v5315 = vrot.slane %v3933, %v5314
    %v5316 = vsel %vm4262, %v5315, %v5311
    %v5317 = vlaneseq
    %v5318 = vshrl.u32 %v5317, 7
    %v5319 = vsub.s32 %v4252, %v5318
    %v5320 = vrot.slane %v3936, %v5319
    %v5321 = vlaneseq
    %v5322 = vshrl.u32 %v5321, 7
    %v5323 = vsub.s32 %v4257, %v5322
    %v5324 = vrot.slane %v3939, %v5323
    %v5325 = vsel %vm4262, %v5324, %v5320
    %v5326 = vlaneseq
    %v5327 = vshrl.u32 %v5326, 7
    %v5328 = vsub.s32 %v4252, %v5327
    %v5329 = vrot.slane %v3942, %v5328
    %v5330 = vlaneseq
    %v5331 = vshrl.u32 %v5330, 7
    %v5332 = vsub.s32 %v4257, %v5331
    %v5333 = vrot.slane %v3945, %v5332
    %v5334 = vsel %vm4262, %v5333, %v5329
    %v5335 = vlaneseq
    %v5336 = vshrl.u32 %v5335, 7
    %v5337 = vsub.s32 %v4252, %v5336
    %v5338 = vrot.slane %v3948, %v5337
    %v5339 = vlaneseq
    %v5340 = vshrl.u32 %v5339, 7
    %v5341 = vsub.s32 %v4257, %v5340
    %v5342 = vrot.slane %v3951, %v5341
    %v5343 = vsel %vm4262, %v5342, %v5338
    %v5344 = vlaneseq
    %v5345 = vshrl.u32 %v5344, 7
    %v5346 = vsub.s32 %v4252, %v5345
    %v5347 = vrot.slane %v3954, %v5346
    %v5348 = vlaneseq
    %v5349 = vshrl.u32 %v5348, 7
    %v5350 = vsub.s32 %v4257, %v5349
    %v5351 = vrot.slane %v3957, %v5350
    %v5352 = vsel %vm4262, %v5351, %v5347
    %v5353 = vlaneseq
    %v5354 = vshrl.u32 %v5353, 7
    %v5355 = vsub.s32 %v4252, %v5354
    %v5356 = vrot.slane %v3960, %v5355
    %v5357 = vlaneseq
    %v5358 = vshrl.u32 %v5357, 7
    %v5359 = vsub.s32 %v4257, %v5358
    %v5360 = vrot.slane %v3963, %v5359
    %v5361 = vsel %vm4262, %v5360, %v5356
    %v5362 = vlaneseq
    %v5363 = vshrl.u32 %v5362, 7
    %v5364 = vsub.s32 %v4252, %v5363
    %v5365 = vrot.slane %v3966, %v5364
    %v5366 = vlaneseq
    %v5367 = vshrl.u32 %v5366, 7
    %v5368 = vsub.s32 %v4257, %v5367
    %v5369 = vrot.slane %v3969, %v5368
    %v5370 = vsel %vm4262, %v5369, %v5365
    %v5371 = vlaneseq
    %v5372 = vshrl.u32 %v5371, 7
    %v5373 = vsub.s32 %v4252, %v5372
    %v5374 = vrot.slane %v3972, %v5373
    %v5375 = vlaneseq
    %v5376 = vshrl.u32 %v5375, 7
    %v5377 = vsub.s32 %v4257, %v5376
    %v5378 = vrot.slane %v3975, %v5377
    %v5379 = vsel %vm4262, %v5378, %v5374
    %v5380 = vlaneseq
    %v5381 = vshrl.u32 %v5380, 7
    %v5382 = vsub.s32 %v4252, %v5381
    %v5383 = vrot.slane %v3978, %v5382
    %v5384 = vlaneseq
    %v5385 = vshrl.u32 %v5384, 7
    %v5386 = vsub.s32 %v4257, %v5385
    %v5387 = vrot.slane %v3981, %v5386
    %v5388 = vsel %vm4262, %v5387, %v5383
    %v5389 = vlaneseq
    %v5390 = vshrl.u32 %v5389, 7
    %v5391 = vsub.s32 %v4252, %v5390
    %v5392 = vrot.slane %v3984, %v5391
    %v5393 = vlaneseq
    %v5394 = vshrl.u32 %v5393, 7
    %v5395 = vsub.s32 %v4257, %v5394
    %v5396 = vrot.slane %v3987, %v5395
    %v5397 = vsel %vm4262, %v5396, %v5392
    %v5398 = vlaneseq
    %v5399 = vshrl.u32 %v5398, 7
    %v5400 = vsub.s32 %v4252, %v5399
    %v5401 = vrot.slane %v3990, %v5400
    %v5402 = vlaneseq
    %v5403 = vshrl.u32 %v5402, 7
    %v5404 = vsub.s32 %v4257, %v5403
    %v5405 = vrot.slane %v3993, %v5404
    %v5406 = vsel %vm4262, %v5405, %v5401
    %vm5407 = vcmask 1041409
    %v5408 = vsel %vm5407, %v4272, %v4263
    %vm5409 = vcmask 1042434
    %v5410 = vsel %vm5409, %v4281, %v5408
    %vm5411 = vcmask 1043459
    %v5412 = vsel %vm5411, %v4290, %v5410
    %vm5413 = vcmask 1044484
    %v5414 = vsel %vm5413, %v4299, %v5412
    %vm5415 = vcmask 1045509
    %v5416 = vsel %vm5415, %v4308, %v5414
    %vm5417 = vcmask 1046534
    %v5418 = vsel %vm5417, %v4317, %v5416
    %vm5419 = vcmask 1047559
    %v5420 = vsel %vm5419, %v4326, %v5418
    %v5421 = vsel %vm5407, %v4344, %v4335
    %v5422 = vsel %vm5409, %v4353, %v5421
    %v5423 = vsel %vm5411, %v4362, %v5422
    %v5424 = vsel %vm5413, %v4371, %v5423
    %v5425 = vsel %vm5415, %v4380, %v5424
    %v5426 = vsel %vm5417, %v4389, %v5425
    %v5427 = vsel %vm5419, %v4398, %v5426
    %v5428 = vsel %vm5407, %v4416, %v4407
    %v5429 = vsel %vm5409, %v4425, %v5428
    %v5430 = vsel %vm5411, %v4434, %v5429
    %v5431 = vsel %vm5413, %v4443, %v5430
    %v5432 = vsel %vm5415, %v4452, %v5431
    %v5433 = vsel %vm5417, %v4461, %v5432
    %v5434 = vsel %vm5419, %v4470, %v5433
    %v5435 = vsel %vm5407, %v4488, %v4479
    %v5436 = vsel %vm5409, %v4497, %v5435
    %v5437 = vsel %vm5411, %v4506, %v5436
    %v5438 = vsel %vm5413, %v4515, %v5437
    %v5439 = vsel %vm5415, %v4524, %v5438
    %v5440 = vsel %vm5417, %v4533, %v5439
    %v5441 = vsel %vm5419, %v4542, %v5440
    %v5442 = vsel %vm5407, %v4560, %v4551
    %v5443 = vsel %vm5409, %v4569, %v5442
    %v5444 = vsel %vm5411, %v4578, %v5443
    %v5445 = vsel %vm5413, %v4587, %v5444
    %v5446 = vsel %vm5415, %v4596, %v5445
    %v5447 = vsel %vm5417, %v4605, %v5446
    %v5448 = vsel %vm5419, %v4614, %v5447
    %v5449 = vsel %vm5407, %v4632, %v4623
    %v5450 = vsel %vm5409, %v4641, %v5449
    %v5451 = vsel %vm5411, %v4650, %v5450
    %v5452 = vsel %vm5413, %v4659, %v5451
    %v5453 = vsel %vm5415, %v4668, %v5452
    %v5454 = vsel %vm5417, %v4677, %v5453
    %v5455 = vsel %vm5419, %v4686, %v5454
    %v5456 = vsel %vm5407, %v4704, %v4695
    %v5457 = vsel %vm5409, %v4713, %v5456
    %v5458 = vsel %vm5411, %v4722, %v5457
    %v5459 = vsel %vm5413, %v4731, %v5458
    %v5460 = vsel %vm5415, %v4740, %v5459
    %v5461 = vsel %vm5417, %v4749, %v5460
    %v5462 = vsel %vm5419, %v4758, %v5461
    %v5463 = vsel %vm5407, %v4776, %v4767
    %v5464 = vsel %vm5409, %v4785, %v5463
    %v5465 = vsel %vm5411, %v4794, %v5464
    %v5466 = vsel %vm5413, %v4803, %v5465
    %v5467 = vsel %vm5415, %v4812, %v5466
    %v5468 = vsel %vm5417, %v4821, %v5467
    %v5469 = vsel %vm5419, %v4830, %v5468
    %v5470 = vsel %vm5407, %v4848, %v4839
    %v5471 = vsel %vm5409, %v4857, %v5470
    %v5472 = vsel %vm5411, %v4866, %v5471
    %v5473 = vsel %vm5413, %v4875, %v5472
    %v5474 = vsel %vm5415, %v4884, %v5473
    %v5475 = vsel %vm5417, %v4893, %v5474
    %v5476 = vsel %vm5419, %v4902, %v5475
    %v5477 = vsel %vm5407, %v4920, %v4911
    %v5478 = vsel %vm5409, %v4929, %v5477
    %v5479 = vsel %vm5411, %v4938, %v5478
    %v5480 = vsel %vm5413, %v4947, %v5479
    %v5481 = vsel %vm5415, %v4956, %v5480
    %v5482 = vsel %vm5417, %v4965, %v5481
    %v5483 = vsel %vm5419, %v4974, %v5482
    %v5484 = vsel %vm5407, %v4992, %v4983
    %v5485 = vsel %vm5409, %v5001, %v5484
    %v5486 = vsel %vm5411, %v5010, %v5485
    %v5487 = vsel %vm5413, %v5019, %v5486
    %v5488 = vsel %vm5415, %v5028, %v5487
    %v5489 = vsel %vm5417, %v5037, %v5488
    %v5490 = vsel %vm5419, %v5046, %v5489
    %v5491 = vsel %vm5407, %v5064, %v5055
    %v5492 = vsel %vm5409, %v5073, %v5491
    %v5493 = vsel %vm5411, %v5082, %v5492
    %v5494 = vsel %vm5413, %v5091, %v5493
    %v5495 = vsel %vm5415, %v5100, %v5494
    %v5496 = vsel %vm5417, %v5109, %v5495
    %v5497 = vsel %vm5419, %v5118, %v5496
    %v5498 = vsel %vm5407, %v5136, %v5127
    %v5499 = vsel %vm5409, %v5145, %v5498
    %v5500 = vsel %vm5411, %v5154, %v5499
    %v5501 = vsel %vm5413, %v5163, %v5500
    %v5502 = vsel %vm5415, %v5172, %v5501
    %v5503 = vsel %vm5417, %v5181, %v5502
    %v5504 = vsel %vm5419, %v5190, %v5503
    %v5505 = vsel %vm5407, %v5208, %v5199
    %v5506 = vsel %vm5409, %v5217, %v5505
    %v5507 = vsel %vm5411, %v5226, %v5506
    %v5508 = vsel %vm5413, %v5235, %v5507
    %v5509 = vsel %vm5415, %v5244, %v5508
    %v5510 = vsel %vm5417, %v5253, %v5509
    %v5511 = vsel %vm5419, %v5262, %v5510
    %v5512 = vsel %vm5407, %v5280, %v5271
    %v5513 = vsel %vm5409, %v5289, %v5512
    %v5514 = vsel %vm5411, %v5298, %v5513
    %v5515 = vsel %vm5413, %v5307, %v5514
    %v5516 = vsel %vm5415, %v5316, %v5515
    %v5517 = vsel %vm5417, %v5325, %v5516
    %v5518 = vsel %vm5419, %v5334, %v5517
    %v5519 = vsel %vm5407, %v5352, %v5343
    %v5520 = vsel %vm5409, %v5361, %v5519
    %v5521 = vsel %vm5411, %v5370, %v5520
    %v5522 = vsel %vm5413, %v5379, %v5521
    %v5523 = vsel %vm5415, %v5388, %v5522
    %v5524 = vsel %vm5417, %v5397, %v5523
    %v5525 = vsel %vm5419, %v5406, %v5524
    %s5542 = scalar_lea.vmem [#allocation3], %s3994
    %vm5543 = vcmask 130048
    %5544 = vst.msk [vmem:[%s5542] sm:$0xff] %vm5543, %v5420
    %5545 = vst.msk [vmem:[%s5542 + $0x8] sm:$0xff] %vm5543, %v5427
    %5546 = vst.msk [vmem:[%s5542 + $0x10] sm:$0xff] %vm5543, %v5434
    %5547 = vst.msk [vmem:[%s5542 + $0x18] sm:$0xff] %vm5543, %v5441
    %5548 = vst.msk [vmem:[%s5542 + $0x20] sm:$0xff] %vm5543, %v5448
    %5549 = vst.msk [vmem:[%s5542 + $0x28] sm:$0xff] %vm5543, %v5455
    %5550 = vst.msk [vmem:[%s5542 + $0x30] sm:$0xff] %vm5543, %v5462
    %5551 = vst.msk [vmem:[%s5542 + $0x38] sm:$0xff] %vm5543, %v5469
    %5552 = vst.msk [vmem:[%s5542 + $0x40] sm:$0xff] %vm5543, %v5476
    %5553 = vst.msk [vmem:[%s5542 + $0x48] sm:$0xff] %vm5543, %v5483
    %5554 = vst.msk [vmem:[%s5542 + $0x50] sm:$0xff] %vm5543, %v5490
    %5555 = vst.msk [vmem:[%s5542 + $0x58] sm:$0xff] %vm5543, %v5497
    %5556 = vst.msk [vmem:[%s5542 + $0x60] sm:$0xff] %vm5543, %v5504
    %5557 = vst.msk [vmem:[%s5542 + $0x68] sm:$0xff] %vm5543, %v5511
    %5558 = vst.msk [vmem:[%s5542 + $0x70] sm:$0xff] %vm5543, %v5518
    %5559 = vst.msk [vmem:[%s5542 + $0x78] sm:$0xff] %vm5543, %v5525
    // Predicated region
    $region26: #{tpu_custom_call.1} parent=1 // pred_check
      %p5560 = pneg %p22
    $region27: #{tpu_custom_call.1} parent=1 // pred_check_branch
      %5562 = sbr.rel (%p5560) target = $region29
    $region28: #{tpu_custom_call.1} parent=1 // pred_region
      %v5563 = vld [vmem:[#allocation3] sm:$0xff]
      %v5564 = vld [vmem:[#allocation3 + $0x8] sm:$0xff]
      %v5565 = vld [vmem:[#allocation3 + $0x10] sm:$0xff]
      %v5566 = vld [vmem:[#allocation3 + $0x18] sm:$0xff]
      %v5567 = vld [vmem:[#allocation3 + $0x20] sm:$0xff]
      %v5568 = vld [vmem:[#allocation3 + $0x28] sm:$0xff]
      %v5569 = vld [vmem:[#allocation3 + $0x30] sm:$0xff]
      %v5570 = vld [vmem:[#allocation3 + $0x38] sm:$0xff]
      %v5571 = vld [vmem:[#allocation3 + $0x40] sm:$0xff]
      %v5572 = vld [vmem:[#allocation3 + $0x48] sm:$0xff]
      %v5573 = vld [vmem:[#allocation3 + $0x50] sm:$0xff]
      %v5574 = vld [vmem:[#allocation3 + $0x58] sm:$0xff]
      %v5575 = vld [vmem:[#allocation3 + $0x60] sm:$0xff]
      %v5576 = vld [vmem:[#allocation3 + $0x68] sm:$0xff]
      %v5577 = vld [vmem:[#allocation3 + $0x70] sm:$0xff]
      %v5578 = vld [vmem:[#allocation3 + $0x78] sm:$0xff]
      %5579 = vxpose.xlu0.b32.start [1/16] %v5563, 128
      %5580 = vxpose.xlu0.b32.cont [2/16] %v5564, 128
      %5581 = vxpose.xlu0.b32.cont [3/16] %v5565, 128
      %5582 = vxpose.xlu0.b32.cont [4/16] %v5566, 128
      %5583 = vxpose.xlu0.b32.cont [5/16] %v5567, 128
      %5584 = vxpose.xlu0.b32.cont [6/16] %v5568, 128
      %5585 = vxpose.xlu0.b32.cont [7/16] %v5569, 128
      %5586 = vxpose.xlu0.b32.cont [8/16] %v5570, 128
      %5587 = vxpose.xlu0.b32.cont [9/16] %v5571, 128
      %5588 = vxpose.xlu0.b32.cont [10/16] %v5572, 128
      %5589 = vxpose.xlu0.b32.cont [11/16] %v5573, 128
      %5590 = vxpose.xlu0.b32.cont [12/16] %v5574, 128
      %5591 = vxpose.xlu0.b32.cont [13/16] %v5575, 128
      %5592 = vxpose.xlu0.b32.cont [14/16] %v5576, 128
      %5593 = vxpose.xlu0.b32.cont [15/16] %v5577, 128
      %5594 = vxpose.xlu0.b32.end [16/16] %v5578, 128
      %v5595 = vpop.trf.xlu0
      %v5596 = vpop.trf.xlu0
      %v5597 = vpop.trf.xlu0
      %v5598 = vpop.trf.xlu0
      %v5599 = vpop.trf.xlu0
      %v5600 = vpop.trf.xlu0
      %v5601 = vpop.trf.xlu0
      %v5602 = vpop.trf.xlu0
      %v5603 = vpop.trf.xlu0
      %v5604 = vpop.trf.xlu0
      %v5605 = vpop.trf.xlu0
      %v5606 = vpop.trf.xlu0
      %v5607 = vpop.trf.xlu0
      %v5608 = vpop.trf.xlu0
      %v5609 = vpop.trf.xlu0
      %v5610 = vpop.trf.xlu0
      %vm5611 = vcmp.lt.s32.totalorder %v4252, 8
      %v5612 = vsel %vm5611, %v5595, -1e+30
      %v5613 = vsel %vm5611, %v5596, -1e+30
      %5614 = vmax.xlane.f32.xlu0 %v5612
      %v5615 = vpop.xlane.xlu0 %5614
      %5616 = vmax.xlane.f32.xlu0 %v5613
      %v5617 = vpop.xlane.xlu0 %5616
      %v5618 = vsub.f32 %v5612, %v5615
      %v5619 = vsub.f32 %v5613, %v5617
      %v5620 = vmul.f32 %v5618, 1.442695
      %v5621 = vpow.pop %v5620
      %v5622 = vmul.f32 %v5619, 1.442695
      %v5623 = vpow.pop %v5622
      %5624 = vadd.xlane.f32.xlu0 %v5621
      %v5625 = vpop.xlane.xlu0 %5624
      %5626 = vadd.xlane.f32.xlu0 %v5623
      %v5627 = vpop.xlane.xlu0 %5626
      %v5628 = vrcp.pop %v5625
      %v5629 = vmul.f32 %v5621, %v5628
      %v5630 = vrcp.pop %v5627
      %v5631 = vmul.f32 %v5623, %v5630
      %5632 = vst [vmem:[#allocation4] sm:$0xff] %v5629
      %5633 = vst [vmem:[#allocation4 + $0x8] sm:$0xff] %v5631
    $region29: #{tpu_custom_call.1} parent=1 // pred_fallthru
      _
    // Predicated region
    $region30: #{tpu_custom_call.1} parent=1 // pred_check
      _
    $region31: #{tpu_custom_call.1} parent=1 // pred_check_branch
      %5635 = sbr.rel (0) target = $region33
    $region32: #{tpu_custom_call.1} parent=1 // pred_region
      %s5637 = ssub.s32 256, 256
      %5638 = vsyncadd [#allocation5], %s5637
      %s5639 = sshll.u32 [#allocation4], 4
      %s5640 = int_to_ptr.vmem [resolvable:$true] %s5639
      %5645 = dma.vmem_to_hbm [thread:$0]  %s5640, 256, %s5, [#allocation5], 128, 128, 8
    $region33: #{tpu_custom_call.1} parent=1 // pred_fallthru
      _
    // Predicated region
    $region34: #{tpu_custom_call.1} parent=1 // pred_check
      _
    $region35: #{tpu_custom_call.1} parent=1 // pred_check_branch
      %5647 = sbr.rel (0) target = $region37
    $region36: #{tpu_custom_call.1} parent=1 // pred_region
      %5648 = dma.done [#allocation5], 256
    $region37: #{tpu_custom_call.1} parent=1 // pred_fallthru
      _
    %5649 = vsyncpa [#allocation5], 1

// kernel: tpu_custom_call.1
$region0: #{tpu_custom_call.1}
  #allocation0 [shape = 'u32[]', space=smem, size = 0x4, offset = 0x4, fixed_abs, tag = 'smem constant byte address 0x4 - core index']
  #allocation1 [shape = 'u32[144,128]{1,0:T(1,128)}', space=vmem, size = 0x12000, scoped, tag = 'internal scratch']
  #allocation2 [shape = 'f32[16,32]{1,0:T(8,128)}', space=vmem, size = 0x2000, scoped, tag = 'scratch operand']
  #allocation3 [shape = 'f32[128,16]{1,0:T(8,128)}', space=vmem, size = 0x10000, scoped, tag = 'scratch operand']
  %s0 = inlined_call_operand.vmem [shape: bf16[16,32], index: 0, kind: input, shape index: {}]
  %s1 = inlined_call_operand.vmem [shape: bf16[128,16,32], index: 1, kind: input, shape index: {}]
  %s2 = inlined_call_operand.vmem [shape: bf16[32,32], index: 2, kind: input, shape index: {}]
  %s3 = inlined_call_operand.vmem [shape: bf16[32,32], index: 3, kind: input, shape index: {}]
  %s4 = inlined_call_operand.vmem [shape: bf16[1,32], index: 4, kind: input, shape index: {}]
  %s5 = inlined_call_operand.hbm [shape: f32[16,128], index: 5, kind: output, shape index: {}]
  %s6 = sld [smem:[#allocation0]]
  $region38: #{tpu_custom_call.1} parent=0
    _
  %s8 = ssub.s32 1, %s6
  %s9 = scalar_select 0, %s8, %s6
  $region1: #{tpu_custom_call.1} parent=0
    #allocation4 [shape = 'u8[8192]{0}', space=vmem, size = 0x2000, scoped, tag = 'output window, operand 0, single buffered']
    #allocation5 [shape = 's32[1]{0}', space=sflag, size = 0x4, scoped, tag = 'scoped memory for tpu_custom_call.1']
    %10 = vsyncpa [#allocation5], 0
    // Predicated region
    $region2: #{tpu_custom_call.1} parent=1 // pred_check
      _
    $region3: #{tpu_custom_call.1} parent=1 // pred_check_branch
      %12 = sbr.rel (0) target = $region5
    $region4: #{tpu_custom_call.1} parent=1 // pred_region
      _
    $region5: #{tpu_custom_call.1} parent=1 // pred_fallthru
      _
    // Predicated region
    $region6: #{tpu_custom_call.1} parent=1 // pred_check
      _
    $region7: #{tpu_custom_call.1} parent=1 // pred_check_branch
      %14 = sbr.rel (0) target = $region9
    $region8: #{tpu_custom_call.1} parent=1 // pred_region
      _
    $region9: #{tpu_custom_call.1} parent=1 // pred_fallthru
      _
    // Predicated region
    $region10: #{tpu_custom_call.1} parent=1 // pred_check
      _
    $region11: #{tpu_custom_call.1} parent=1 // pred_check_branch
      %16 = sbr.rel (0) target = $region13
    $region12: #{tpu_custom_call.1} parent=1 // pred_region
      _
    $region13: #{tpu_custom_call.1} parent=1 // pred_fallthru
      _
    // Predicated region
    $region14: #{tpu_custom_call.1} parent=1 // pred_check
      _
    $region15: #{tpu_custom_call.1} parent=1 // pred_check_branch
      %18 = sbr.rel (0) target = $region17
    $region16: #{tpu_custom_call.1} parent=1 // pred_region
      _
    $region17: #{tpu_custom_call.1} parent=1 // pred_fallthru
      _
    // Predicated region
    $region18: #{tpu_custom_call.1} parent=1 // pred_check
      _
    $region19: #{tpu_custom_call.1} parent=1 // pred_check_branch
      %20 = sbr.rel (0) target = $region21
    $region20: #{tpu_custom_call.1} parent=1 // pred_region
      _
    $region21: #{tpu_custom_call.1} parent=1 // pred_fallthru
      _
    %p22 = scmp.eq.s32.totalorder 0, 0
    // Predicated region
    $region22: #{tpu_custom_call.1} parent=1 // pred_check
      %p23 = pneg %p22
    $region23: #{tpu_custom_call.1} parent=1 // pred_check_branch
      %25 = sbr.rel (%p23) target = $region25
    $region24: #{tpu_custom_call.1} parent=1 // pred_region
      %v26 = vld [vmem:[%s0] sm:$0xf]
      %v27 = vld [vmem:[%s0 + $0x4] sm:$0xf]
      %v28 = vld [vmem:[%s2] sm:$0xf]
      %v29 = vld [vmem:[%s2 + $0x4] sm:$0xf]
      %v30 = vld [vmem:[%s2 + $0x8] sm:$0xf]
      %v31 = vld [vmem:[%s2 + $0xc] sm:$0xf]
      %v34 = vunpack.c.l.b16 %v26
      %v35 = vunpack.c.l.b16 %v27
      %v36 = vpack.c.b16 %v35, %v34
      %v41 = vunpack.c.l.b16 %v28
      %v42 = vunpack.c.l.b16 %v29
      %v43 = vunpack.c.l.b16 %v30
      %v44 = vunpack.c.l.b16 %v31
      %v45 = vpack.c.b16 %v42, %v41
      %v46 = vpack.c.b16 %v44, %v43
      %vm49 = vcmask 261120
      %v51 = vsel %vm49, %v36, 0
      %53 = vmatprep.subr.bf16.mxu0 0
      %54 = vmatpush1.bf16.msra.mxu0 %v45
      %55 = vmatprep.subr.bf16.mxu0 0
      %56 = vmatpush1.bf16.msra.mxu0 %v46
      %57 = vmatprep.subr.bf16.mxu0 0
      %58 = vmatpush1.bf16.msra.mxu0 0
      %59 = vmatprep.subr.bf16.mxu0 0
      %60 = vmatpush1.bf16.msra.mxu0 0
      %61 = vmatprep.subr.bf16.mxu0 0
      %62 = vmatpush1.bf16.msra.mxu0 0
      %63 = vmatprep.subr.bf16.mxu0 0
      %64 = vmatpush1.bf16.msra.mxu0 0
      %65 = vmatprep.subr.bf16.mxu0 0
      %66 = vmatpush1.bf16.msra.mxu0 0
      %67 = vmatprep.subr.bf16.mxu0 0
      %68 = vmatpush1.bf16.msra.mxu0 0
      %69 = vmatprep.subr.bf16.mxu0 0
      %70 = vmatpush1.bf16.msra.mxu0 0
      %71 = vmatprep.subr.bf16.mxu0 0
      %72 = vmatpush1.bf16.msra.mxu0 0
      %73 = vmatprep.subr.bf16.mxu0 0
      %74 = vmatpush1.bf16.msra.mxu0 0
      %75 = vmatprep.subr.bf16.mxu0 0
      %76 = vmatpush1.bf16.msra.mxu0 0
      %77 = vmatprep.subr.bf16.mxu0 0
      %78 = vmatpush1.bf16.msra.mxu0 0
      %79 = vmatprep.subr.bf16.mxu0 0
      %80 = vmatpush1.bf16.msra.mxu0 0
      %81 = vmatprep.subr.bf16.mxu0 0
      %82 = vmatpush1.bf16.msra.mxu0 0
      %83 = vmatprep.subr.bf16.mxu0 0
      %84 = vmatpush1.bf16.msra.mxu0 0
      %85 = vmatprep.mubr.bf16.mxu0 0
      %86 = vmatmul.mubr.bf16.gmra.mrb[0].mxu0 %v51
      %v87 = vpop.f32.mrb[0].mxu0
      %v88 = vadd.f32 0.0, %v87
      %v89 = vpop.f32.mrb[0].mxu0
      %v90 = vpop.f32.mrb[0].mxu0
      %v91 = vadd.f32 0.0, %v90
      %v92 = vpop.f32.mrb[0].mxu0
      %93 = vdwg.mxu0
      %94 = vst.msk [vmem:[#allocation2] sm:$0xff] %vm49, %v88
      %95 = vst.msk [vmem:[#allocation2 + $0x8] sm:$0xff] %vm49, %v91
    $region25: #{tpu_custom_call.1} parent=1 // pred_fallthru
      _
    %v96 = vld [vmem:[%s1] sm:$0xf]
    %v97 = vld [vmem:[%s1 + $0x4] sm:$0xf]
    %v98 = vld [vmem:[%s1 + $0x8] sm:$0xf]
    %v99 = vld [vmem:[%s1 + $0xc] sm:$0xf]
    %v100 = vld [vmem:[%s1 + $0x10] sm:$0xf]
    %v101 = vld [vmem:[%s1 + $0x14] sm:$0xf]
    %v102 = vld [vmem:[%s1 + $0x18] sm:$0xf]
    %v103 = vld [vmem:[%s1 + $0x1c] sm:$0xf]
    %v104 = vld [vmem:[%s1 + $0x20] sm:$0xf]
    %v105 = vld [vmem:[%s1 + $0x24] sm:$0xf]
    %v106 = vld [vmem:[%s1 + $0x28] sm:$0xf]
    %v107 = vld [vmem:[%s1 + $0x2c] sm:$0xf]
    %v108 = vld [vmem:[%s1 + $0x30] sm:$0xf]
    %v109 = vld [vmem:[%s1 + $0x34] sm:$0xf]
    %v110 = vld [vmem:[%s1 + $0x38] sm:$0xf]
    %v111 = vld [vmem:[%s1 + $0x3c] sm:$0xf]
    %v112 = vld [vmem:[%s1 + $0x40] sm:$0xf]
    %v113 = vld [vmem:[%s1 + $0x44] sm:$0xf]
    %v114 = vld [vmem:[%s1 + $0x48] sm:$0xf]
    %v115 = vld [vmem:[%s1 + $0x4c] sm:$0xf]
    %v116 = vld [vmem:[%s1 + $0x50] sm:$0xf]
    %v117 = vld [vmem:[%s1 + $0x54] sm:$0xf]
    %v118 = vld [vmem:[%s1 + $0x58] sm:$0xf]
    %v119 = vld [vmem:[%s1 + $0x5c] sm:$0xf]
    %v120 = vld [vmem:[%s1 + $0x60] sm:$0xf]
    %v121 = vld [vmem:[%s1 + $0x64] sm:$0xf]
    %v122 = vld [vmem:[%s1 + $0x68] sm:$0xf]
    %v123 = vld [vmem:[%s1 + $0x6c] sm:$0xf]
    %v124 = vld [vmem:[%s1 + $0x70] sm:$0xf]
    %v125 = vld [vmem:[%s1 + $0x74] sm:$0xf]
    %v126 = vld [vmem:[%s1 + $0x78] sm:$0xf]
    %v127 = vld [vmem:[%s1 + $0x7c] sm:$0xf]
    %v128 = vld [vmem:[%s1 + $0x80] sm:$0xf]
    %v129 = vld [vmem:[%s1 + $0x84] sm:$0xf]
    %v130 = vld [vmem:[%s1 + $0x88] sm:$0xf]
    %v131 = vld [vmem:[%s1 + $0x8c] sm:$0xf]
    %v132 = vld [vmem:[%s1 + $0x90] sm:$0xf]
    %v133 = vld [vmem:[%s1 + $0x94] sm:$0xf]
    %v134 = vld [vmem:[%s1 + $0x98] sm:$0xf]
    %v135 = vld [vmem:[%s1 + $0x9c] sm:$0xf]
    %v136 = vld [vmem:[%s1 + $0xa0] sm:$0xf]
    %v137 = vld [vmem:[%s1 + $0xa4] sm:$0xf]
    %v138 = vld [vmem:[%s1 + $0xa8] sm:$0xf]
    %v139 = vld [vmem:[%s1 + $0xac] sm:$0xf]
    %v140 = vld [vmem:[%s1 + $0xb0] sm:$0xf]
    %v141 = vld [vmem:[%s1 + $0xb4] sm:$0xf]
    %v142 = vld [vmem:[%s1 + $0xb8] sm:$0xf]
    %v143 = vld [vmem:[%s1 + $0xbc] sm:$0xf]
    %v144 = vld [vmem:[%s1 + $0xc0] sm:$0xf]
    %v145 = vld [vmem:[%s1 + $0xc4] sm:$0xf]
    %v146 = vld [vmem:[%s1 + $0xc8] sm:$0xf]
    %v147 = vld [vmem:[%s1 + $0xcc] sm:$0xf]
    %v148 = vld [vmem:[%s1 + $0xd0] sm:$0xf]
    %v149 = vld [vmem:[%s1 + $0xd4] sm:$0xf]
    %v150 = vld [vmem:[%s1 + $0xd8] sm:$0xf]
    %v151 = vld [vmem:[%s1 + $0xdc] sm:$0xf]
    %v152 = vld [vmem:[%s1 + $0xe0] sm:$0xf]
    %v153 = vld [vmem:[%s1 + $0xe4] sm:$0xf]
    %v154 = vld [vmem:[%s1 + $0xe8] sm:$0xf]
    %v155 = vld [vmem:[%s1 + $0xec] sm:$0xf]
    %v156 = vld [vmem:[%s1 + $0xf0] sm:$0xf]
    %v157 = vld [vmem:[%s1 + $0xf4] sm:$0xf]
    %v158 = vld [vmem:[%s1 + $0xf8] sm:$0xf]
    %v159 = vld [vmem:[%s1 + $0xfc] sm:$0xf]
    %v160 = vld [vmem:[%s1 + $0x100] sm:$0xf]
    %v161 = vld [vmem:[%s1 + $0x104] sm:$0xf]
    %v162 = vld [vmem:[%s1 + $0x108] sm:$0xf]
    %v163 = vld [vmem:[%s1 + $0x10c] sm:$0xf]
    %v164 = vld [vmem:[%s1 + $0x110] sm:$0xf]
    %v165 = vld [vmem:[%s1 + $0x114] sm:$0xf]
    %v166 = vld [vmem:[%s1 + $0x118] sm:$0xf]
    %v167 = vld [vmem:[%s1 + $0x11c] sm:$0xf]
    %v168 = vld [vmem:[%s1 + $0x120] sm:$0xf]
    %v169 = vld [vmem:[%s1 + $0x124] sm:$0xf]
    %v170 = vld [vmem:[%s1 + $0x128] sm:$0xf]
    %v171 = vld [vmem:[%s1 + $0x12c] sm:$0xf]
    %v172 = vld [vmem:[%s1 + $0x130] sm:$0xf]
    %v173 = vld [vmem:[%s1 + $0x134] sm:$0xf]
    %v174 = vld [vmem:[%s1 + $0x138] sm:$0xf]
    %v175 = vld [vmem:[%s1 + $0x13c] sm:$0xf]
    %v176 = vld [vmem:[%s1 + $0x140] sm:$0xf]
    %v177 = vld [vmem:[%s1 + $0x144] sm:$0xf]
    %v178 = vld [vmem:[%s1 + $0x148] sm:$0xf]
    %v179 = vld [vmem:[%s1 + $0x14c] sm:$0xf]
    %v180 = vld [vmem:[%s1 + $0x150] sm:$0xf]
    %v181 = vld [vmem:[%s1 + $0x154] sm:$0xf]
    %v182 = vld [vmem:[%s1 + $0x158] sm:$0xf]
    %v183 = vld [vmem:[%s1 + $0x15c] sm:$0xf]
    %v184 = vld [vmem:[%s1 + $0x160] sm:$0xf]
    %v185 = vld [vmem:[%s1 + $0x164] sm:$0xf]
    %v186 = vld [vmem:[%s1 + $0x168] sm:$0xf]
    %v187 = vld [vmem:[%s1 + $0x16c] sm:$0xf]
    %v188 = vld [vmem:[%s1 + $0x170] sm:$0xf]
    %v189 = vld [vmem:[%s1 + $0x174] sm:$0xf]
    %v190 = vld [vmem:[%s1 + $0x178] sm:$0xf]
    %v191 = vld [vmem:[%s1 + $0x17c] sm:$0xf]
    %v192 = vld [vmem:[%s1 + $0x180] sm:$0xf]
    %v193 = vld [vmem:[%s1 + $0x184] sm:$0xf]
    %v194 = vld [vmem:[%s1 + $0x188] sm:$0xf]
    %v195 = vld [vmem:[%s1 + $0x18c] sm:$0xf]
    %v196 = vld [vmem:[%s1 + $0x190] sm:$0xf]
    %v197 = vld [vmem:[%s1 + $0x194] sm:$0xf]
    %v198 = vld [vmem:[%s1 + $0x198] sm:$0xf]
    %v199 = vld [vmem:[%s1 + $0x19c] sm:$0xf]
    %v200 = vld [vmem:[%s1 + $0x1a0] sm:$0xf]
    %v201 = vld [vmem:[%s1 + $0x1a4] sm:$0xf]
    %v202 = vld [vmem:[%s1 + $0x1a8] sm:$0xf]
    %v203 = vld [vmem:[%s1 + $0x1ac] sm:$0xf]
    %v204 = vld [vmem:[%s1 + $0x1b0] sm:$0xf]
    %v205 = vld [vmem:[%s1 + $0x1b4] sm:$0xf]
    %v206 = vld [vmem:[%s1 + $0x1b8] sm:$0xf]
    %v207 = vld [vmem:[%s1 + $0x1bc] sm:$0xf]
    %v208 = vld [vmem:[%s1 + $0x1c0] sm:$0xf]
    %v209 = vld [vmem:[%s1 + $0x1c4] sm:$0xf]
    %v210 = vld [vmem:[%s1 + $0x1c8] sm:$0xf]
    %v211 = vld [vmem:[%s1 + $0x1cc] sm:$0xf]
    %v212 = vld [vmem:[%s1 + $0x1d0] sm:$0xf]
    %v213 = vld [vmem:[%s1 + $0x1d4] sm:$0xf]
    %v214 = vld [vmem:[%s1 + $0x1d8] sm:$0xf]
    %v215 = vld [vmem:[%s1 + $0x1dc] sm:$0xf]
    %v216 = vld [vmem:[%s1 + $0x1e0] sm:$0xf]
    %v217 = vld [vmem:[%s1 + $0x1e4] sm:$0xf]
    %v218 = vld [vmem:[%s1 + $0x1e8] sm:$0xf]
    %v219 = vld [vmem:[%s1 + $0x1ec] sm:$0xf]
    %v220 = vld [vmem:[%s1 + $0x1f0] sm:$0xf]
    %v221 = vld [vmem:[%s1 + $0x1f4] sm:$0xf]
    %v222 = vld [vmem:[%s1 + $0x1f8] sm:$0xf]
    %v223 = vld [vmem:[%s1 + $0x1fc] sm:$0xf]
    %v224 = vld [vmem:[%s1 + $0x200] sm:$0xf]
    %v225 = vld [vmem:[%s1 + $0x204] sm:$0xf]
    %v226 = vld [vmem:[%s1 + $0x208] sm:$0xf]
    %v227 = vld [vmem:[%s1 + $0x20c] sm:$0xf]
    %v228 = vld [vmem:[%s1 + $0x210] sm:$0xf]
    %v229 = vld [vmem:[%s1 + $0x214] sm:$0xf]
    %v230 = vld [vmem:[%s1 + $0x218] sm:$0xf]
    %v231 = vld [vmem:[%s1 + $0x21c] sm:$0xf]
    %v232 = vld [vmem:[%s1 + $0x220] sm:$0xf]
    %v233 = vld [vmem:[%s1 + $0x224] sm:$0xf]
    %v234 = vld [vmem:[%s1 + $0x228] sm:$0xf]
    %v235 = vld [vmem:[%s1 + $0x22c] sm:$0xf]
    %v236 = vld [vmem:[%s1 + $0x230] sm:$0xf]
    %v237 = vld [vmem:[%s1 + $0x234] sm:$0xf]
    %v238 = vld [vmem:[%s1 + $0x238] sm:$0xf]
    %v239 = vld [vmem:[%s1 + $0x23c] sm:$0xf]
    %v240 = vld [vmem:[%s1 + $0x240] sm:$0xf]
    %v241 = vld [vmem:[%s1 + $0x244] sm:$0xf]
    %v242 = vld [vmem:[%s1 + $0x248] sm:$0xf]
    %v243 = vld [vmem:[%s1 + $0x24c] sm:$0xf]
    %v244 = vld [vmem:[%s1 + $0x250] sm:$0xf]
    %v245 = vld [vmem:[%s1 + $0x254] sm:$0xf]
    %v246 = vld [vmem:[%s1 + $0x258] sm:$0xf]
    %v247 = vld [vmem:[%s1 + $0x25c] sm:$0xf]
    %v248 = vld [vmem:[%s1 + $0x260] sm:$0xf]
    %v249 = vld [vmem:[%s1 + $0x264] sm:$0xf]
    %v250 = vld [vmem:[%s1 + $0x268] sm:$0xf]
    %v251 = vld [vmem:[%s1 + $0x26c] sm:$0xf]
    %v252 = vld [vmem:[%s1 + $0x270] sm:$0xf]
    %v253 = vld [vmem:[%s1 + $0x274] sm:$0xf]
    %v254 = vld [vmem:[%s1 + $0x278] sm:$0xf]
    %v255 = vld [vmem:[%s1 + $0x27c] sm:$0xf]
    %v256 = vld [vmem:[%s1 + $0x280] sm:$0xf]
    %v257 = vld [vmem:[%s1 + $0x284] sm:$0xf]
    %v258 = vld [vmem:[%s1 + $0x288] sm:$0xf]
    %v259 = vld [vmem:[%s1 + $0x28c] sm:$0xf]
    %v260 = vld [vmem:[%s1 + $0x290] sm:$0xf]
    %v261 = vld [vmem:[%s1 + $0x294] sm:$0xf]
    %v262 = vld [vmem:[%s1 + $0x298] sm:$0xf]
    %v263 = vld [vmem:[%s1 + $0x29c] sm:$0xf]
    %v264 = vld [vmem:[%s1 + $0x2a0] sm:$0xf]
    %v265 = vld [vmem:[%s1 + $0x2a4] sm:$0xf]
    %v266 = vld [vmem:[%s1 + $0x2a8] sm:$0xf]
    %v267 = vld [vmem:[%s1 + $0x2ac] sm:$0xf]
    %v268 = vld [vmem:[%s1 + $0x2b0] sm:$0xf]
    %v269 = vld [vmem:[%s1 + $0x2b4] sm:$0xf]
    %v270 = vld [vmem:[%s1 + $0x2b8] sm:$0xf]
    %v271 = vld [vmem:[%s1 + $0x2bc] sm:$0xf]
    %v272 = vld [vmem:[%s1 + $0x2c0] sm:$0xf]
    %v273 = vld [vmem:[%s1 + $0x2c4] sm:$0xf]
    %v274 = vld [vmem:[%s1 + $0x2c8] sm:$0xf]
    %v275 = vld [vmem:[%s1 + $0x2cc] sm:$0xf]
    %v276 = vld [vmem:[%s1 + $0x2d0] sm:$0xf]
    %v277 = vld [vmem:[%s1 + $0x2d4] sm:$0xf]
    %v278 = vld [vmem:[%s1 + $0x2d8] sm:$0xf]
    %v279 = vld [vmem:[%s1 + $0x2dc] sm:$0xf]
    %v280 = vld [vmem:[%s1 + $0x2e0] sm:$0xf]
    %v281 = vld [vmem:[%s1 + $0x2e4] sm:$0xf]
    %v282 = vld [vmem:[%s1 + $0x2e8] sm:$0xf]
    %v283 = vld [vmem:[%s1 + $0x2ec] sm:$0xf]
    %v284 = vld [vmem:[%s1 + $0x2f0] sm:$0xf]
    %v285 = vld [vmem:[%s1 + $0x2f4] sm:$0xf]
    %v286 = vld [vmem:[%s1 + $0x2f8] sm:$0xf]
    %v287 = vld [vmem:[%s1 + $0x2fc] sm:$0xf]
    %v288 = vld [vmem:[%s1 + $0x300] sm:$0xf]
    %v289 = vld [vmem:[%s1 + $0x304] sm:$0xf]
    %v290 = vld [vmem:[%s1 + $0x308] sm:$0xf]
    %v291 = vld [vmem:[%s1 + $0x30c] sm:$0xf]
    %v292 = vld [vmem:[%s1 + $0x310] sm:$0xf]
    %v293 = vld [vmem:[%s1 + $0x314] sm:$0xf]
    %v294 = vld [vmem:[%s1 + $0x318] sm:$0xf]
    %v295 = vld [vmem:[%s1 + $0x31c] sm:$0xf]
    %v296 = vld [vmem:[%s1 + $0x320] sm:$0xf]
    %v297 = vld [vmem:[%s1 + $0x324] sm:$0xf]
    %v298 = vld [vmem:[%s1 + $0x328] sm:$0xf]
    %v299 = vld [vmem:[%s1 + $0x32c] sm:$0xf]
    %v300 = vld [vmem:[%s1 + $0x330] sm:$0xf]
    %v301 = vld [vmem:[%s1 + $0x334] sm:$0xf]
    %v302 = vld [vmem:[%s1 + $0x338] sm:$0xf]
    %v303 = vld [vmem:[%s1 + $0x33c] sm:$0xf]
    %v304 = vld [vmem:[%s1 + $0x340] sm:$0xf]
    %v305 = vld [vmem:[%s1 + $0x344] sm:$0xf]
    %v306 = vld [vmem:[%s1 + $0x348] sm:$0xf]
    %v307 = vld [vmem:[%s1 + $0x34c] sm:$0xf]
    %v308 = vld [vmem:[%s1 + $0x350] sm:$0xf]
    %v309 = vld [vmem:[%s1 + $0x354] sm:$0xf]
    %v310 = vld [vmem:[%s1 + $0x358] sm:$0xf]
    %v311 = vld [vmem:[%s1 + $0x35c] sm:$0xf]
    %v312 = vld [vmem:[%s1 + $0x360] sm:$0xf]
    %v313 = vld [vmem:[%s1 + $0x364] sm:$0xf]
    %v314 = vld [vmem:[%s1 + $0x368] sm:$0xf]
    %v315 = vld [vmem:[%s1 + $0x36c] sm:$0xf]
    %v316 = vld [vmem:[%s1 + $0x370] sm:$0xf]
    %v317 = vld [vmem:[%s1 + $0x374] sm:$0xf]
    %v318 = vld [vmem:[%s1 + $0x378] sm:$0xf]
    %v319 = vld [vmem:[%s1 + $0x37c] sm:$0xf]
    %v320 = vld [vmem:[%s1 + $0x380] sm:$0xf]
    %v321 = vld [vmem:[%s1 + $0x384] sm:$0xf]
    %v322 = vld [vmem:[%s1 + $0x388] sm:$0xf]
    %v323 = vld [vmem:[%s1 + $0x38c] sm:$0xf]
    %v324 = vld [vmem:[%s1 + $0x390] sm:$0xf]
    %v325 = vld [vmem:[%s1 + $0x394] sm:$0xf]
    %v326 = vld [vmem:[%s1 + $0x398] sm:$0xf]
    %v327 = vld [vmem:[%s1 + $0x39c] sm:$0xf]
    %v328 = vld [vmem:[%s1 + $0x3a0] sm:$0xf]
    %v329 = vld [vmem:[%s1 + $0x3a4] sm:$0xf]
    %v330 = vld [vmem:[%s1 + $0x3a8] sm:$0xf]
    %v331 = vld [vmem:[%s1 + $0x3ac] sm:$0xf]
    %v332 = vld [vmem:[%s1 + $0x3b0] sm:$0xf]
    %v333 = vld [vmem:[%s1 + $0x3b4] sm:$0xf]
    %v334 = vld [vmem:[%s1 + $0x3b8] sm:$0xf]
    %v335 = vld [vmem:[%s1 + $0x3bc] sm:$0xf]
    %v336 = vld [vmem:[%s1 + $0x3c0] sm:$0xf]
    %v337 = vld [vmem:[%s1 + $0x3c4] sm:$0xf]
    %v338 = vld [vmem:[%s1 + $0x3c8] sm:$0xf]
    %v339 = vld [vmem:[%s1 + $0x3cc] sm:$0xf]
    %v340 = vld [vmem:[%s1 + $0x3d0] sm:$0xf]
    %v341 = vld [vmem:[%s1 + $0x3d4] sm:$0xf]
    %v342 = vld [vmem:[%s1 + $0x3d8] sm:$0xf]
    %v343 = vld [vmem:[%s1 + $0x3dc] sm:$0xf]
    %v344 = vld [vmem:[%s1 + $0x3e0] sm:$0xf]
    %v345 = vld [vmem:[%s1 + $0x3e4] sm:$0xf]
    %v346 = vld [vmem:[%s1 + $0x3e8] sm:$0xf]
    %v347 = vld [vmem:[%s1 + $0x3ec] sm:$0xf]
    %v348 = vld [vmem:[%s1 + $0x3f0] sm:$0xf]
    %v349 = vld [vmem:[%s1 + $0x3f4] sm:$0xf]
    %v350 = vld [vmem:[%s1 + $0x3f8] sm:$0xf]
    %v351 = vld [vmem:[%s1 + $0x3fc] sm:$0xf]
    %v352 = vld [vmem:[%s3] sm:$0xf]
    %v353 = vld [vmem:[%s3 + $0x4] sm:$0xf]
    %v354 = vld [vmem:[%s3 + $0x8] sm:$0xf]
    %v355 = vld [vmem:[%s3 + $0xc] sm:$0xf]
    %v612 = vunpack.c.l.b16 %v96
    %v613 = vunpack.c.l.b16 %v97
    %v614 = vunpack.c.l.b16 %v98
    %v615 = vunpack.c.l.b16 %v99
    %v616 = vunpack.c.l.b16 %v100
    %v617 = vunpack.c.l.b16 %v101
    %v618 = vunpack.c.l.b16 %v102
    %v619 = vunpack.c.l.b16 %v103
    %v620 = vunpack.c.l.b16 %v104
    %v621 = vunpack.c.l.b16 %v105
    %v622 = vunpack.c.l.b16 %v106
    %v623 = vunpack.c.l.b16 %v107
    %v624 = vunpack.c.l.b16 %v108
    %v625 = vunpack.c.l.b16 %v109
    %v626 = vunpack.c.l.b16 %v110
    %v627 = vunpack.c.l.b16 %v111
    %v628 = vunpack.c.l.b16 %v112
    %v629 = vunpack.c.l.b16 %v113
    %v630 = vunpack.c.l.b16 %v114
    %v631 = vunpack.c.l.b16 %v115
    %v632 = vunpack.c.l.b16 %v116
    %v633 = vunpack.c.l.b16 %v117
    %v634 = vunpack.c.l.b16 %v118
    %v635 = vunpack.c.l.b16 %v119
    %v636 = vunpack.c.l.b16 %v120
    %v637 = vunpack.c.l.b16 %v121
    %v638 = vunpack.c.l.b16 %v122
    %v639 = vunpack.c.l.b16 %v123
    %v640 = vunpack.c.l.b16 %v124
    %v641 = vunpack.c.l.b16 %v125
    %v642 = vunpack.c.l.b16 %v126
    %v643 = vunpack.c.l.b16 %v127
    %v644 = vunpack.c.l.b16 %v128
    %v645 = vunpack.c.l.b16 %v129
    %v646 = vunpack.c.l.b16 %v130
    %v647 = vunpack.c.l.b16 %v131
    %v648 = vunpack.c.l.b16 %v132
    %v649 = vunpack.c.l.b16 %v133
    %v650 = vunpack.c.l.b16 %v134
    %v651 = vunpack.c.l.b16 %v135
    %v652 = vunpack.c.l.b16 %v136
    %v653 = vunpack.c.l.b16 %v137
    %v654 = vunpack.c.l.b16 %v138
    %v655 = vunpack.c.l.b16 %v139
    %v656 = vunpack.c.l.b16 %v140
    %v657 = vunpack.c.l.b16 %v141
    %v658 = vunpack.c.l.b16 %v142
    %v659 = vunpack.c.l.b16 %v143
    %v660 = vunpack.c.l.b16 %v144
    %v661 = vunpack.c.l.b16 %v145
    %v662 = vunpack.c.l.b16 %v146
    %v663 = vunpack.c.l.b16 %v147
    %v664 = vunpack.c.l.b16 %v148
    %v665 = vunpack.c.l.b16 %v149
    %v666 = vunpack.c.l.b16 %v150
    %v667 = vunpack.c.l.b16 %v151
    %v668 = vunpack.c.l.b16 %v152
    %v669 = vunpack.c.l.b16 %v153
    %v670 = vunpack.c.l.b16 %v154
    %v671 = vunpack.c.l.b16 %v155
    %v672 = vunpack.c.l.b16 %v156
    %v673 = vunpack.c.l.b16 %v157
    %v674 = vunpack.c.l.b16 %v158
    %v675 = vunpack.c.l.b16 %v159
    %v676 = vunpack.c.l.b16 %v160
    %v677 = vunpack.c.l.b16 %v161
    %v678 = vunpack.c.l.b16 %v162
    %v679 = vunpack.c.l.b16 %v163
    %v680 = vunpack.c.l.b16 %v164
    %v681 = vunpack.c.l.b16 %v165
    %v682 = vunpack.c.l.b16 %v166
    %v683 = vunpack.c.l.b16 %v167
    %v684 = vunpack.c.l.b16 %v168
    %v685 = vunpack.c.l.b16 %v169
    %v686 = vunpack.c.l.b16 %v170
    %v687 = vunpack.c.l.b16 %v171
    %v688 = vunpack.c.l.b16 %v172
    %v689 = vunpack.c.l.b16 %v173
    %v690 = vunpack.c.l.b16 %v174
    %v691 = vunpack.c.l.b16 %v175
    %v692 = vunpack.c.l.b16 %v176
    %v693 = vunpack.c.l.b16 %v177
    %v694 = vunpack.c.l.b16 %v178
    %v695 = vunpack.c.l.b16 %v179
    %v696 = vunpack.c.l.b16 %v180
    %v697 = vunpack.c.l.b16 %v181
    %v698 = vunpack.c.l.b16 %v182
    %v699 = vunpack.c.l.b16 %v183
    %v700 = vunpack.c.l.b16 %v184
    %v701 = vunpack.c.l.b16 %v185
    %v702 = vunpack.c.l.b16 %v186
    %v703 = vunpack.c.l.b16 %v187
    %v704 = vunpack.c.l.b16 %v188
    %v705 = vunpack.c.l.b16 %v189
    %v706 = vunpack.c.l.b16 %v190
    %v707 = vunpack.c.l.b16 %v191
    %v708 = vunpack.c.l.b16 %v192
    %v709 = vunpack.c.l.b16 %v193
    %v710 = vunpack.c.l.b16 %v194
    %v711 = vunpack.c.l.b16 %v195
    %v712 = vunpack.c.l.b16 %v196
    %v713 = vunpack.c.l.b16 %v197
    %v714 = vunpack.c.l.b16 %v198
    %v715 = vunpack.c.l.b16 %v199
    %v716 = vunpack.c.l.b16 %v200
    %v717 = vunpack.c.l.b16 %v201
    %v718 = vunpack.c.l.b16 %v202
    %v719 = vunpack.c.l.b16 %v203
    %v720 = vunpack.c.l.b16 %v204
    %v721 = vunpack.c.l.b16 %v205
    %v722 = vunpack.c.l.b16 %v206
    %v723 = vunpack.c.l.b16 %v207
    %v724 = vunpack.c.l.b16 %v208
    %v725 = vunpack.c.l.b16 %v209
    %v726 = vunpack.c.l.b16 %v210
    %v727 = vunpack.c.l.b16 %v211
    %v728 = vunpack.c.l.b16 %v212
    %v729 = vunpack.c.l.b16 %v213
    %v730 = vunpack.c.l.b16 %v214
    %v731 = vunpack.c.l.b16 %v215
    %v732 = vunpack.c.l.b16 %v216
    %v733 = vunpack.c.l.b16 %v217
    %v734 = vunpack.c.l.b16 %v218
    %v735 = vunpack.c.l.b16 %v219
    %v736 = vunpack.c.l.b16 %v220
    %v737 = vunpack.c.l.b16 %v221
    %v738 = vunpack.c.l.b16 %v222
    %v739 = vunpack.c.l.b16 %v223
    %v740 = vunpack.c.l.b16 %v224
    %v741 = vunpack.c.l.b16 %v225
    %v742 = vunpack.c.l.b16 %v226
    %v743 = vunpack.c.l.b16 %v227
    %v744 = vunpack.c.l.b16 %v228
    %v745 = vunpack.c.l.b16 %v229
    %v746 = vunpack.c.l.b16 %v230
    %v747 = vunpack.c.l.b16 %v231
    %v748 = vunpack.c.l.b16 %v232
    %v749 = vunpack.c.l.b16 %v233
    %v750 = vunpack.c.l.b16 %v234
    %v751 = vunpack.c.l.b16 %v235
    %v752 = vunpack.c.l.b16 %v236
    %v753 = vunpack.c.l.b16 %v237
    %v754 = vunpack.c.l.b16 %v238
    %v755 = vunpack.c.l.b16 %v239
    %v756 = vunpack.c.l.b16 %v240
    %v757 = vunpack.c.l.b16 %v241
    %v758 = vunpack.c.l.b16 %v242
    %v759 = vunpack.c.l.b16 %v243
    %v760 = vunpack.c.l.b16 %v244
    %v761 = vunpack.c.l.b16 %v245
    %v762 = vunpack.c.l.b16 %v246
    %v763 = vunpack.c.l.b16 %v247
    %v764 = vunpack.c.l.b16 %v248
    %v765 = vunpack.c.l.b16 %v249
    %v766 = vunpack.c.l.b16 %v250
    %v767 = vunpack.c.l.b16 %v251
    %v768 = vunpack.c.l.b16 %v252
    %v769 = vunpack.c.l.b16 %v253
    %v770 = vunpack.c.l.b16 %v254
    %v771 = vunpack.c.l.b16 %v255
    %v772 = vunpack.c.l.b16 %v256
    %v773 = vunpack.c.l.b16 %v257
    %v774 = vunpack.c.l.b16 %v258
    %v775 = vunpack.c.l.b16 %v259
    %v776 = vunpack.c.l.b16 %v260
    %v777 = vunpack.c.l.b16 %v261
    %v778 = vunpack.c.l.b16 %v262
    %v779 = vunpack.c.l.b16 %v263
    %v780 = vunpack.c.l.b16 %v264
    %v781 = vunpack.c.l.b16 %v265
    %v782 = vunpack.c.l.b16 %v266
    %v783 = vunpack.c.l.b16 %v267
    %v784 = vunpack.c.l.b16 %v268
    %v785 = vunpack.c.l.b16 %v269
    %v786 = vunpack.c.l.b16 %v270
    %v787 = vunpack.c.l.b16 %v271
    %v788 = vunpack.c.l.b16 %v272
    %v789 = vunpack.c.l.b16 %v273
    %v790 = vunpack.c.l.b16 %v274
    %v791 = vunpack.c.l.b16 %v275
    %v792 = vunpack.c.l.b16 %v276
    %v793 = vunpack.c.l.b16 %v277
    %v794 = vunpack.c.l.b16 %v278
    %v795 = vunpack.c.l.b16 %v279
    %v796 = vunpack.c.l.b16 %v280
    %v797 = vunpack.c.l.b16 %v281
    %v798 = vunpack.c.l.b16 %v282
    %v799 = vunpack.c.l.b16 %v283
    %v800 = vunpack.c.l.b16 %v284
    %v801 = vunpack.c.l.b16 %v285
    %v802 = vunpack.c.l.b16 %v286
    %v803 = vunpack.c.l.b16 %v287
    %v804 = vunpack.c.l.b16 %v288
    %v805 = vunpack.c.l.b16 %v289
    %v806 = vunpack.c.l.b16 %v290
    %v807 = vunpack.c.l.b16 %v291
    %v808 = vunpack.c.l.b16 %v292
    %v809 = vunpack.c.l.b16 %v293
    %v810 = vunpack.c.l.b16 %v294
    %v811 = vunpack.c.l.b16 %v295
    %v812 = vunpack.c.l.b16 %v296
    %v813 = vunpack.c.l.b16 %v297
    %v814 = vunpack.c.l.b16 %v298
    %v815 = vunpack.c.l.b16 %v299
    %v816 = vunpack.c.l.b16 %v300
    %v817 = vunpack.c.l.b16 %v301
    %v818 = vunpack.c.l.b16 %v302
    %v819 = vunpack.c.l.b16 %v303
    %v820 = vunpack.c.l.b16 %v304
    %v821 = vunpack.c.l.b16 %v305
    %v822 = vunpack.c.l.b16 %v306
    %v823 = vunpack.c.l.b16 %v307
    %v824 = vunpack.c.l.b16 %v308
    %v825 = vunpack.c.l.b16 %v309
    %v826 = vunpack.c.l.b16 %v310
    %v827 = vunpack.c.l.b16 %v311
    %v828 = vunpack.c.l.b16 %v312
    %v829 = vunpack.c.l.b16 %v313
    %v830 = vunpack.c.l.b16 %v314
    %v831 = vunpack.c.l.b16 %v315
    %v832 = vunpack.c.l.b16 %v316
    %v833 = vunpack.c.l.b16 %v317
    %v834 = vunpack.c.l.b16 %v318
    %v835 = vunpack.c.l.b16 %v319
    %v836 = vunpack.c.l.b16 %v320
    %v837 = vunpack.c.l.b16 %v321
    %v838 = vunpack.c.l.b16 %v322
    %v839 = vunpack.c.l.b16 %v323
    %v840 = vunpack.c.l.b16 %v324
    %v841 = vunpack.c.l.b16 %v325
    %v842 = vunpack.c.l.b16 %v326
    %v843 = vunpack.c.l.b16 %v327
    %v844 = vunpack.c.l.b16 %v328
    %v845 = vunpack.c.l.b16 %v329
    %v846 = vunpack.c.l.b16 %v330
    %v847 = vunpack.c.l.b16 %v331
    %v848 = vunpack.c.l.b16 %v332
    %v849 = vunpack.c.l.b16 %v333
    %v850 = vunpack.c.l.b16 %v334
    %v851 = vunpack.c.l.b16 %v335
    %v852 = vunpack.c.l.b16 %v336
    %v853 = vunpack.c.l.b16 %v337
    %v854 = vunpack.c.l.b16 %v338
    %v855 = vunpack.c.l.b16 %v339
    %v856 = vunpack.c.l.b16 %v340
    %v857 = vunpack.c.l.b16 %v341
    %v858 = vunpack.c.l.b16 %v342
    %v859 = vunpack.c.l.b16 %v343
    %v860 = vunpack.c.l.b16 %v344
    %v861 = vunpack.c.l.b16 %v345
    %v862 = vunpack.c.l.b16 %v346
    %v863 = vunpack.c.l.b16 %v347
    %v864 = vunpack.c.l.b16 %v348
    %v865 = vunpack.c.l.b16 %v349
    %v866 = vunpack.c.l.b16 %v350
    %v867 = vunpack.c.l.b16 %v351
    %v868 = vpack.c.b16 %v613, %v612
    %v869 = vpack.c.b16 %v615, %v614
    %v870 = vpack.c.b16 %v617, %v616
    %v871 = vpack.c.b16 %v619, %v618
    %v872 = vpack.c.b16 %v621, %v620
    %v873 = vpack.c.b16 %v623, %v622
    %v874 = vpack.c.b16 %v625, %v624
    %v875 = vpack.c.b16 %v627, %v626
    %v876 = vpack.c.b16 %v629, %v628
    %v877 = vpack.c.b16 %v631, %v630
    %v878 = vpack.c.b16 %v633, %v632
    %v879 = vpack.c.b16 %v635, %v634
    %v880 = vpack.c.b16 %v637, %v636
    %v881 = vpack.c.b16 %v639, %v638
    %v882 = vpack.c.b16 %v641, %v640
    %v883 = vpack.c.b16 %v643, %v642
    %v884 = vpack.c.b16 %v645, %v644
    %v885 = vpack.c.b16 %v647, %v646
    %v886 = vpack.c.b16 %v649, %v648
    %v887 = vpack.c.b16 %v651, %v650
    %v888 = vpack.c.b16 %v653, %v652
    %v889 = vpack.c.b16 %v655, %v654
    %v890 = vpack.c.b16 %v657, %v656
    %v891 = vpack.c.b16 %v659, %v658
    %v892 = vpack.c.b16 %v661, %v660
    %v893 = vpack.c.b16 %v663, %v662
    %v894 = vpack.c.b16 %v665, %v664
    %v895 = vpack.c.b16 %v667, %v666
    %v896 = vpack.c.b16 %v669, %v668
    %v897 = vpack.c.b16 %v671, %v670
    %v898 = vpack.c.b16 %v673, %v672
    %v899 = vpack.c.b16 %v675, %v674
    %v900 = vpack.c.b16 %v677, %v676
    %v901 = vpack.c.b16 %v679, %v678
    %v902 = vpack.c.b16 %v681, %v680
    %v903 = vpack.c.b16 %v683, %v682
    %v904 = vpack.c.b16 %v685, %v684
    %v905 = vpack.c.b16 %v687, %v686
    %v906 = vpack.c.b16 %v689, %v688
    %v907 = vpack.c.b16 %v691, %v690
    %v908 = vpack.c.b16 %v693, %v692
    %v909 = vpack.c.b16 %v695, %v694
    %v910 = vpack.c.b16 %v697, %v696
    %v911 = vpack.c.b16 %v699, %v698
    %v912 = vpack.c.b16 %v701, %v700
    %v913 = vpack.c.b16 %v703, %v702
    %v914 = vpack.c.b16 %v705, %v704
    %v915 = vpack.c.b16 %v707, %v706
    %v916 = vpack.c.b16 %v709, %v708
    %v917 = vpack.c.b16 %v711, %v710
    %v918 = vpack.c.b16 %v713, %v712
    %v919 = vpack.c.b16 %v715, %v714
    %v920 = vpack.c.b16 %v717, %v716
    %v921 = vpack.c.b16 %v719, %v718
    %v922 = vpack.c.b16 %v721, %v720
    %v923 = vpack.c.b16 %v723, %v722
    %v924 = vpack.c.b16 %v725, %v724
    %v925 = vpack.c.b16 %v727, %v726
    %v926 = vpack.c.b16 %v729, %v728
    %v927 = vpack.c.b16 %v731, %v730
    %v928 = vpack.c.b16 %v733, %v732
    %v929 = vpack.c.b16 %v735, %v734
    %v930 = vpack.c.b16 %v737, %v736
    %v931 = vpack.c.b16 %v739, %v738
    %v932 = vpack.c.b16 %v741, %v740
    %v933 = vpack.c.b16 %v743, %v742
    %v934 = vpack.c.b16 %v745, %v744
    %v935 = vpack.c.b16 %v747, %v746
    %v936 = vpack.c.b16 %v749, %v748
    %v937 = vpack.c.b16 %v751, %v750
    %v938 = vpack.c.b16 %v753, %v752
    %v939 = vpack.c.b16 %v755, %v754
    %v940 = vpack.c.b16 %v757, %v756
    %v941 = vpack.c.b16 %v759, %v758
    %v942 = vpack.c.b16 %v761, %v760
    %v943 = vpack.c.b16 %v763, %v762
    %v944 = vpack.c.b16 %v765, %v764
    %v945 = vpack.c.b16 %v767, %v766
    %v946 = vpack.c.b16 %v769, %v768
    %v947 = vpack.c.b16 %v771, %v770
    %v948 = vpack.c.b16 %v773, %v772
    %v949 = vpack.c.b16 %v775, %v774
    %v950 = vpack.c.b16 %v777, %v776
    %v951 = vpack.c.b16 %v779, %v778
    %v952 = vpack.c.b16 %v781, %v780
    %v953 = vpack.c.b16 %v783, %v782
    %v954 = vpack.c.b16 %v785, %v784
    %v955 = vpack.c.b16 %v787, %v786
    %v956 = vpack.c.b16 %v789, %v788
    %v957 = vpack.c.b16 %v791, %v790
    %v958 = vpack.c.b16 %v793, %v792
    %v959 = vpack.c.b16 %v795, %v794
    %v960 = vpack.c.b16 %v797, %v796
    %v961 = vpack.c.b16 %v799, %v798
    %v962 = vpack.c.b16 %v801, %v800
    %v963 = vpack.c.b16 %v803, %v802
    %v964 = vpack.c.b16 %v805, %v804
    %v965 = vpack.c.b16 %v807, %v806
    %v966 = vpack.c.b16 %v809, %v808
    %v967 = vpack.c.b16 %v811, %v810
    %v968 = vpack.c.b16 %v813, %v812
    %v969 = vpack.c.b16 %v815, %v814
    %v970 = vpack.c.b16 %v817, %v816
    %v971 = vpack.c.b16 %v819, %v818
    %v972 = vpack.c.b16 %v821, %v820
    %v973 = vpack.c.b16 %v823, %v822
    %v974 = vpack.c.b16 %v825, %v824
    %v975 = vpack.c.b16 %v827, %v826
    %v976 = vpack.c.b16 %v829, %v828
    %v977 = vpack.c.b16 %v831, %v830
    %v978 = vpack.c.b16 %v833, %v832
    %v979 = vpack.c.b16 %v835, %v834
    %v980 = vpack.c.b16 %v837, %v836
    %v981 = vpack.c.b16 %v839, %v838
    %v982 = vpack.c.b16 %v841, %v840
    %v983 = vpack.c.b16 %v843, %v842
    %v984 = vpack.c.b16 %v845, %v844
    %v985 = vpack.c.b16 %v847, %v846
    %v986 = vpack.c.b16 %v849, %v848
    %v987 = vpack.c.b16 %v851, %v850
    %v988 = vpack.c.b16 %v853, %v852
    %v989 = vpack.c.b16 %v855, %v854
    %v990 = vpack.c.b16 %v857, %v856
    %v991 = vpack.c.b16 %v859, %v858
    %v992 = vpack.c.b16 %v861, %v860
    %v993 = vpack.c.b16 %v863, %v862
    %v994 = vpack.c.b16 %v865, %v864
    %v995 = vpack.c.b16 %v867, %v866
    %v1000 = vunpack.c.l.b16 %v352
    %v1001 = vunpack.c.l.b16 %v353
    %v1002 = vunpack.c.l.b16 %v354
    %v1003 = vunpack.c.l.b16 %v355
    %v1004 = vpack.c.b16 %v1001, %v1000
    %v1005 = vpack.c.b16 %v1003, %v1002
    %vm1008 = vcmask 261120
    %v1010 = vsel %vm1008, %v868, 0
    %v1013 = vsel %vm1008, %v869, 0
    %v1016 = vsel %vm1008, %v870, 0
    %v1019 = vsel %vm1008, %v871, 0
    %v1022 = vsel %vm1008, %v872, 0
    %v1025 = vsel %vm1008, %v873, 0
    %v1028 = vsel %vm1008, %v874, 0
    %v1031 = vsel %vm1008, %v875, 0
    %v1034 = vsel %vm1008, %v876, 0
    %v1037 = vsel %vm1008, %v877, 0
    %v1040 = vsel %vm1008, %v878, 0
    %v1043 = vsel %vm1008, %v879, 0
    %v1046 = vsel %vm1008, %v880, 0
    %v1049 = vsel %vm1008, %v881, 0
    %v1052 = vsel %vm1008, %v882, 0
    %v1055 = vsel %vm1008, %v883, 0
    %v1058 = vsel %vm1008, %v884, 0
    %v1061 = vsel %vm1008, %v885, 0
    %v1064 = vsel %vm1008, %v886, 0
    %v1067 = vsel %vm1008, %v887, 0
    %v1070 = vsel %vm1008, %v888, 0
    %v1073 = vsel %vm1008, %v889, 0
    %v1076 = vsel %vm1008, %v890, 0
    %v1079 = vsel %vm1008, %v891, 0
    %v1082 = vsel %vm1008, %v892, 0
    %v1085 = vsel %vm1008, %v893, 0
    %v1088 = vsel %vm1008, %v894, 0
    %v1091 = vsel %vm1008, %v895, 0
    %v1094 = vsel %vm1008, %v896, 0
    %v1097 = vsel %vm1008, %v897, 0
    %v1100 = vsel %vm1008, %v898, 0
    %v1103 = vsel %vm1008, %v899, 0
    %v1106 = vsel %vm1008, %v900, 0
    %v1109 = vsel %vm1008, %v901, 0
    %v1112 = vsel %vm1008, %v902, 0
    %v1115 = vsel %vm1008, %v903, 0
    %v1118 = vsel %vm1008, %v904, 0
    %v1121 = vsel %vm1008, %v905, 0
    %v1124 = vsel %vm1008, %v906, 0
    %v1127 = vsel %vm1008, %v907, 0
    %v1130 = vsel %vm1008, %v908, 0
    %v1133 = vsel %vm1008, %v909, 0
    %v1136 = vsel %vm1008, %v910, 0
    %v1139 = vsel %vm1008, %v911, 0
    %v1142 = vsel %vm1008, %v912, 0
    %v1145 = vsel %vm1008, %v913, 0
    %v1148 = vsel %vm1008, %v914, 0
    %v1151 = vsel %vm1008, %v915, 0
    %v1154 = vsel %vm1008, %v916, 0
    %v1157 = vsel %vm1008, %v917, 0
    %v1160 = vsel %vm1008, %v918, 0
    %v1163 = vsel %vm1008, %v919, 0
    %v1166 = vsel %vm1008, %v920, 0
    %v1169 = vsel %vm1008, %v921, 0
    %v1172 = vsel %vm1008, %v922, 0
    %v1175 = vsel %vm1008, %v923, 0
    %v1178 = vsel %vm1008, %v924, 0
    %v1181 = vsel %vm1008, %v925, 0
    %v1184 = vsel %vm1008, %v926, 0
    %v1187 = vsel %vm1008, %v927, 0
    %v1190 = vsel %vm1008, %v928, 0
    %v1193 = vsel %vm1008, %v929, 0
    %v1196 = vsel %vm1008, %v930, 0
    %v1199 = vsel %vm1008, %v931, 0
    %v1202 = vsel %vm1008, %v932, 0
    %v1205 = vsel %vm1008, %v933, 0
    %v1208 = vsel %vm1008, %v934, 0
    %v1211 = vsel %vm1008, %v935, 0
    %v1214 = vsel %vm1008, %v936, 0
    %v1217 = vsel %vm1008, %v937, 0
    %v1220 = vsel %vm1008, %v938, 0
    %v1223 = vsel %vm1008, %v939, 0
    %v1226 = vsel %vm1008, %v940, 0
    %v1229 = vsel %vm1008, %v941, 0
    %v1232 = vsel %vm1008, %v942, 0
    %v1235 = vsel %vm1008, %v943, 0
    %v1238 = vsel %vm1008, %v944, 0
    %v1241 = vsel %vm1008, %v945, 0
    %v1244 = vsel %vm1008, %v946, 0
    %v1247 = vsel %vm1008, %v947, 0
    %v1250 = vsel %vm1008, %v948, 0
    %v1253 = vsel %vm1008, %v949, 0
    %v1256 = vsel %vm1008, %v950, 0
    %v1259 = vsel %vm1008, %v951, 0
    %v1262 = vsel %vm1008, %v952, 0
    %v1265 = vsel %vm1008, %v953, 0
    %v1268 = vsel %vm1008, %v954, 0
    %v1271 = vsel %vm1008, %v955, 0
    %v1274 = vsel %vm1008, %v956, 0
    %v1277 = vsel %vm1008, %v957, 0
    %v1280 = vsel %vm1008, %v958, 0
    %v1283 = vsel %vm1008, %v959, 0
    %v1286 = vsel %vm1008, %v960, 0
    %v1289 = vsel %vm1008, %v961, 0
    %v1292 = vsel %vm1008, %v962, 0
    %v1295 = vsel %vm1008, %v963, 0
    %v1298 = vsel %vm1008, %v964, 0
    %v1301 = vsel %vm1008, %v965, 0
    %v1304 = vsel %vm1008, %v966, 0
    %v1307 = vsel %vm1008, %v967, 0
    %v1310 = vsel %vm1008, %v968, 0
    %v1313 = vsel %vm1008, %v969, 0
    %v1316 = vsel %vm1008, %v970, 0
    %v1319 = vsel %vm1008, %v971, 0
    %v1322 = vsel %vm1008, %v972, 0
    %v1325 = vsel %vm1008, %v973, 0
    %v1328 = vsel %vm1008, %v974, 0
    %v1331 = vsel %vm1008, %v975, 0
    %v1334 = vsel %vm1008, %v976, 0
    %v1337 = vsel %vm1008, %v977, 0
    %v1340 = vsel %vm1008, %v978, 0
    %v1343 = vsel %vm1008, %v979, 0
    %v1346 = vsel %vm1008, %v980, 0
    %v1349 = vsel %vm1008, %v981, 0
    %v1352 = vsel %vm1008, %v982, 0
    %v1355 = vsel %vm1008, %v983, 0
    %v1358 = vsel %vm1008, %v984, 0
    %v1361 = vsel %vm1008, %v985, 0
    %v1364 = vsel %vm1008, %v986, 0
    %v1367 = vsel %vm1008, %v987, 0
    %v1370 = vsel %vm1008, %v988, 0
    %v1373 = vsel %vm1008, %v989, 0
    %v1376 = vsel %vm1008, %v990, 0
    %v1379 = vsel %vm1008, %v991, 0
    %v1382 = vsel %vm1008, %v992, 0
    %v1385 = vsel %vm1008, %v993, 0
    %v1388 = vsel %vm1008, %v994, 0
    %v1391 = vsel %vm1008, %v995, 0
    %1393 = vmatprep.subr.bf16.mxu0 0
    %1394 = vmatpush1.bf16.msra.mxu0 %v1004
    %1395 = vmatprep.subr.bf16.mxu0 0
    %1396 = vmatpush1.bf16.msra.mxu0 %v1005
    %1397 = vmatprep.subr.bf16.mxu0 0
    %1398 = vmatpush1.bf16.msra.mxu0 0
    %1399 = vmatprep.subr.bf16.mxu0 0
    %1400 = vmatpush1.bf16.msra.mxu0 0
    %1401 = vmatprep.subr.bf16.mxu0 0
    %1402 = vmatpush1.bf16.msra.mxu0 0
    %1403 = vmatprep.subr.bf16.mxu0 0
    %1404 = vmatpush1.bf16.msra.mxu0 0
    %1405 = vmatprep.subr.bf16.mxu0 0
    %1406 = vmatpush1.bf16.msra.mxu0 0
    %1407 = vmatprep.subr.bf16.mxu0 0
    %1408 = vmatpush1.bf16.msra.mxu0 0
    %1409 = vmatprep.subr.bf16.mxu0 0
    %1410 = vmatpush1.bf16.msra.mxu0 0
    %1411 = vmatprep.subr.bf16.mxu0 0
    %1412 = vmatpush1.bf16.msra.mxu0 0
    %1413 = vmatprep.subr.bf16.mxu0 0
    %1414 = vmatpush1.bf16.msra.mxu0 0
    %1415 = vmatprep.subr.bf16.mxu0 0
    %1416 = vmatpush1.bf16.msra.mxu0 0
    %1417 = vmatprep.subr.bf16.mxu0 0
    %1418 = vmatpush1.bf16.msra.mxu0 0
    %1419 = vmatprep.subr.bf16.mxu0 0
    %1420 = vmatpush1.bf16.msra.mxu0 0
    %1421 = vmatprep.subr.bf16.mxu0 0
    %1422 = vmatpush1.bf16.msra.mxu0 0
    %1423 = vmatprep.subr.bf16.mxu0 0
    %1424 = vmatpush1.bf16.msra.mxu0 0
    %1425 = vmatprep.mubr.bf16.mxu0 0
    %1426 = vmatmul.mubr.bf16.gmra.mrb[0].mxu0 %v1010
    %v1427 = vpop.f32.mrb[0].mxu0
    %v1428 = vadd.f32 0.0, %v1427
    %v1429 = vpop.f32.mrb[0].mxu0
    %v1430 = vpop.f32.mrb[0].mxu0
    %v1431 = vadd.f32 0.0, %v1430
    %v1432 = vpop.f32.mrb[0].mxu0
    %1433 = vmatprep.mubr.bf16.mxu0 0
    %1434 = vmatmul.mubr.bf16.gmra.mrb[0].mxu0 %v1013
    %v1435 = vpop.f32.mrb[0].mxu0
    %v1436 = vadd.f32 0.0, %v1435
    %v1437 = vpop.f32.mrb[0].mxu0
    %v1438 = vpop.f32.mrb[0].mxu0
    %v1439 = vadd.f32 0.0, %v1438
    %v1440 = vpop.f32.mrb[0].mxu0
    %1441 = vmatprep.mubr.bf16.mxu0 0
    %1442 = vmatmul.mubr.bf16.gmra.mrb[0].mxu0 %v1016
    %v1443 = vpop.f32.mrb[0].mxu0
    %v1444 = vadd.f32 0.0, %v1443
    %v1445 = vpop.f32.mrb[0].mxu0
    %v1446 = vpop.f32.mrb[0].mxu0
    %v1447 = vadd.f32 0.0, %v1446
    %v1448 = vpop.f32.mrb[0].mxu0
    %1449 = vmatprep.mubr.bf16.mxu0 0
    %1450 = vmatmul.mubr.bf16.gmra.mrb[0].mxu0 %v1019
    %v1451 = vpop.f32.mrb[0].mxu0
    %v1452 = vadd.f32 0.0, %v1451
    %v1453 = vpop.f32.mrb[0].mxu0
    %v1454 = vpop.f32.mrb[0].mxu0
    %v1455 = vadd.f32 0.0, %v1454
    %v1456 = vpop.f32.mrb[0].mxu0
    %1457 = vmatprep.mubr.bf16.mxu0 0
    %1458 = vmatmul.mubr.bf16.gmra.mrb[0].mxu0 %v1022
    %v1459 = vpop.f32.mrb[0].mxu0
    %v1460 = vadd.f32 0.0, %v1459
    %v1461 = vpop.f32.mrb[0].mxu0
    %v1462 = vpop.f32.mrb[0].mxu0
    %v1463 = vadd.f32 0.0, %v1462
    %v1464 = vpop.f32.mrb[0].mxu0
    %1465 = vmatprep.mubr.bf16.mxu0 0
    %1466 = vmatmul.mubr.bf16.gmra.mrb[0].mxu0 %v1025
    %v1467 = vpop.f32.mrb[0].mxu0
    %v1468 = vadd.f32 0.0, %v1467
    %v1469 = vpop.f32.mrb[0].mxu0
    %v1470 = vpop.f32.mrb[0].mxu0
    %v1471 = vadd.f32 0.0, %v1470
    %v1472 = vpop.f32.mrb[0].mxu0
    %1473 = vmatprep.mubr.bf16.mxu0 0
    %1474 = vmatmul.mubr.bf16.gmra.mrb[0].mxu0 %v1028
    %v1475 = vpop.f32.mrb[0].mxu0
    %v1476 = vadd.f32 0.0, %v1475
    %v1477 = vpop.f32.mrb[0].mxu0
    %v1478 = vpop.f32.mrb[0].mxu0
    %v1479 = vadd.f32 0.0, %v1478
    %v1480 = vpop.f32.mrb[0].mxu0
    %1481 = vmatprep.mubr.bf16.mxu0 0
    %1482 = vmatmul.mubr.bf16.gmra.mrb[0].mxu0 %v1031
    %v1483 = vpop.f32.mrb[0].mxu0
    %v1484 = vadd.f32 0.0, %v1483
    %v1485 = vpop.f32.mrb[0].mxu0
    %v1486 = vpop.f32.mrb[0].mxu0
    %v1487 = vadd.f32 0.0, %v1486
    %v1488 = vpop.f32.mrb[0].mxu0
    %1489 = vmatprep.mubr.bf16.mxu0 0
    %1490 = vmatmul.mubr.bf16.gmra.mrb[0].mxu0 %v1034
    %v1491 = vpop.f32.mrb[0].mxu0
    %v1492 = vadd.f32 0.0, %v1491
    %v1493 = vpop.f32.mrb[0].mxu0
    %v1494 = vpop.f32.mrb[0].mxu0
    %v1495 = vadd.f32 0.0, %v1494
    %v1496 = vpop.f32.mrb[0].mxu0
    %1497 = vmatprep.mubr.bf16.mxu0 0
    %1498 = vmatmul.mubr.bf16.gmra.mrb[0].mxu0 %v1037
    %v1499 = vpop.f32.mrb[0].mxu0
    %v1500 = vadd.f32 0.0, %v1499
    %v1501 = vpop.f32.mrb[0].mxu0
    %v1502 = vpop.f32.mrb[0].mxu0
    %v1503 = vadd.f32 0.0, %v1502
    %v1504 = vpop.f32.mrb[0].mxu0
    %1505 = vmatprep.mubr.bf16.mxu0 0
    %1506 = vmatmul.mubr.bf16.gmra.mrb[0].mxu0 %v1040
    %v1507 = vpop.f32.mrb[0].mxu0
    %v1508 = vadd.f32 0.0, %v1507
    %v1509 = vpop.f32.mrb[0].mxu0
    %v1510 = vpop.f32.mrb[0].mxu0
    %v1511 = vadd.f32 0.0, %v1510
    %v1512 = vpop.f32.mrb[0].mxu0
    %1513 = vmatprep.mubr.bf16.mxu0 0
    %1514 = vmatmul.mubr.bf16.gmra.mrb[0].mxu0 %v1043
    %v1515 = vpop.f32.mrb[0].mxu0
    %v1516 = vadd.f32 0.0, %v1515
    %v1517 = vpop.f32.mrb[0].mxu0
    %v1518 = vpop.f32.mrb[0].mxu0
    %v1519 = vadd.f32 0.0, %v1518
    %v1520 = vpop.f32.mrb[0].mxu0
    %1521 = vmatprep.mubr.bf16.mxu0 0
    %1522 = vmatmul.mubr.bf16.gmra.mrb[0].mxu0 %v1046
    %v1523 = vpop.f32.mrb[0].mxu0
    %v1524 = vadd.f32 0.0, %v1523
    %v1525 = vpop.f32.mrb[0].mxu0
    %v1526 = vpop.f32.mrb[0].mxu0
    %v1527 = vadd.f32 0.0, %v1526
    %v1528 = vpop.f32.mrb[0].mxu0
    %1529 = vmatprep.mubr.bf16.mxu0 0
    %1530 = vmatmul.mubr.bf16.gmra.mrb[0].mxu0 %v1049
    %v1531 = vpop.f32.mrb[0].mxu0
    %v1532 = vadd.f32 0.0, %v1531
    %v1533 = vpop.f32.mrb[0].mxu0
    %v1534 = vpop.f32.mrb[0].mxu0
    %v1535 = vadd.f32 0.0, %v1534
    %v1536 = vpop.f32.mrb[0].mxu0
    %1537 = vmatprep.mubr.bf16.mxu0 0
    %1538 = vmatmul.mubr.bf16.gmra.mrb[0].mxu0 %v1052
    %v1539 = vpop.f32.mrb[0].mxu0
    %v1540 = vadd.f32 0.0, %v1539
    %v1541 = vpop.f32.mrb[0].mxu0
    %v1542 = vpop.f32.mrb[0].mxu0
    %v1543 = vadd.f32 0.0, %v1542
    %v1544 = vpop.f32.mrb[0].mxu0
    %1545 = vmatprep.mubr.bf16.mxu0 0
    %1546 = vmatmul.mubr.bf16.gmra.mrb[0].mxu0 %v1055
    %v1547 = vpop.f32.mrb[0].mxu0
    %v1548 = vadd.f32 0.0, %v1547
    %v1549 = vpop.f32.mrb[0].mxu0
    %v1550 = vpop.f32.mrb[0].mxu0
    %v1551 = vadd.f32 0.0, %v1550
    %v1552 = vpop.f32.mrb[0].mxu0
    %1553 = vmatprep.mubr.bf16.mxu0 0
    %1554 = vmatmul.mubr.bf16.gmra.mrb[0].mxu0 %v1058
    %v1555 = vpop.f32.mrb[0].mxu0
    %v1556 = vadd.f32 0.0, %v1555
    %v1557 = vpop.f32.mrb[0].mxu0
    %v1558 = vpop.f32.mrb[0].mxu0
    %v1559 = vadd.f32 0.0, %v1558
    %v1560 = vpop.f32.mrb[0].mxu0
    %1561 = vmatprep.mubr.bf16.mxu0 0
    %1562 = vmatmul.mubr.bf16.gmra.mrb[0].mxu0 %v1061
    %v1563 = vpop.f32.mrb[0].mxu0
    %v1564 = vadd.f32 0.0, %v1563
    %v1565 = vpop.f32.mrb[0].mxu0
    %v1566 = vpop.f32.mrb[0].mxu0
    %v1567 = vadd.f32 0.0, %v1566
    %v1568 = vpop.f32.mrb[0].mxu0
    %1569 = vmatprep.mubr.bf16.mxu0 0
    %1570 = vmatmul.mubr.bf16.gmra.mrb[0].mxu0 %v1064
    %v1571 = vpop.f32.mrb[0].mxu0
    %v1572 = vadd.f32 0.0, %v1571
    %v1573 = vpop.f32.mrb[0].mxu0
    %v1574 = vpop.f32.mrb[0].mxu0
    %v1575 = vadd.f32 0.0, %v1574
    %v1576 = vpop.f32.mrb[0].mxu0
    %1577 = vmatprep.mubr.bf16.mxu0 0
    %1578 = vmatmul.mubr.bf16.gmra.mrb[0].mxu0 %v1067
    %v1579 = vpop.f32.mrb[0].mxu0
    %v1580 = vadd.f32 0.0, %v1579
    %v1581 = vpop.f32.mrb[0].mxu0
    %v1582 = vpop.f32.mrb[0].mxu0
    %v1583 = vadd.f32 0.0, %v1582
    %v1584 = vpop.f32.mrb[0].mxu0
    %1585 = vmatprep.mubr.bf16.mxu0 0
    %1586 = vmatmul.mubr.bf16.gmra.mrb[0].mxu0 %v1070
    %v1587 = vpop.f32.mrb[0].mxu0
    %v1588 = vadd.f32 0.0, %v1587
    %v1589 = vpop.f32.mrb[0].mxu0
    %v1590 = vpop.f32.mrb[0].mxu0
    %v1591 = vadd.f32 0.0, %v1590
    %v1592 = vpop.f32.mrb[0].mxu0
    %1593 = vmatprep.mubr.bf16.mxu0 0
    %1594 = vmatmul.mubr.bf16.gmra.mrb[0].mxu0 %v1073
    %v1595 = vpop.f32.mrb[0].mxu0
    %v1596 = vadd.f32 0.0, %v1595
    %v1597 = vpop.f32.mrb[0].mxu0
    %v1598 = vpop.f32.mrb[0].mxu0
    %v1599 = vadd.f32 0.0, %v1598
    %v1600 = vpop.f32.mrb[0].mxu0
    %1601 = vmatprep.mubr.bf16.mxu0 0
    %1602 = vmatmul.mubr.bf16.gmra.mrb[0].mxu0 %v1076
    %v1603 = vpop.f32.mrb[0].mxu0
    %v1604 = vadd.f32 0.0, %v1603
    %v1605 = vpop.f32.mrb[0].mxu0
    %v1606 = vpop.f32.mrb[0].mxu0
    %v1607 = vadd.f32 0.0, %v1606
    %v1608 = vpop.f32.mrb[0].mxu0
    %1609 = vmatprep.mubr.bf16.mxu0 0
    %1610 = vmatmul.mubr.bf16.gmra.mrb[0].mxu0 %v1079
    %v1611 = vpop.f32.mrb[0].mxu0
    %v1612 = vadd.f32 0.0, %v1611
    %v1613 = vpop.f32.mrb[0].mxu0
    %v1614 = vpop.f32.mrb[0].mxu0
    %v1615 = vadd.f32 0.0, %v1614
    %v1616 = vpop.f32.mrb[0].mxu0
    %1617 = vmatprep.mubr.bf16.mxu0 0
    %1618 = vmatmul.mubr.bf16.gmra.mrb[0].mxu0 %v1082
    %v1619 = vpop.f32.mrb[0].mxu0
    %v1620 = vadd.f32 0.0, %v1619
    %v1621 = vpop.f32.mrb[0].mxu0
    %v1622 = vpop.f32.mrb[0].mxu0
    %v1623 = vadd.f32 0.0, %v1622
    %v1624 = vpop.f32.mrb[0].mxu0
    %1625 = vmatprep.mubr.bf16.mxu0 0
    %1626 = vmatmul.mubr.bf16.gmra.mrb[0].mxu0 %v1085
    %v1627 = vpop.f32.mrb[0].mxu0
    %v1628 = vadd.f32 0.0, %v1627
    %v1629 = vpop.f32.mrb[0].mxu0
    %v1630 = vpop.f32.mrb[0].mxu0
    %v1631 = vadd.f32 0.0, %v1630
    %v1632 = vpop.f32.mrb[0].mxu0
    %1633 = vmatprep.mubr.bf16.mxu0 0
    %1634 = vmatmul.mubr.bf16.gmra.mrb[0].mxu0 %v1088
    %v1635 = vpop.f32.mrb[0].mxu0
    %v1636 = vadd.f32 0.0, %v1635
    %v1637 = vpop.f32.mrb[0].mxu0
    %v1638 = vpop.f32.mrb[0].mxu0
    %v1639 = vadd.f32 0.0, %v1638
    %v1640 = vpop.f32.mrb[0].mxu0
    %1641 = vmatprep.mubr.bf16.mxu0 0
    %1642 = vmatmul.mubr.bf16.gmra.mrb[0].mxu0 %v1091
    %v1643 = vpop.f32.mrb[0].mxu0
    %v1644 = vadd.f32 0.0, %v1643
    %v1645 = vpop.f32.mrb[0].mxu0
    %v1646 = vpop.f32.mrb[0].mxu0
    %v1647 = vadd.f32 0.0, %v1646
    %v1648 = vpop.f32.mrb[0].mxu0
    %1649 = vmatprep.mubr.bf16.mxu0 0
    %1650 = vmatmul.mubr.bf16.gmra.mrb[0].mxu0 %v1094
    %v1651 = vpop.f32.mrb[0].mxu0
    %v1652 = vadd.f32 0.0, %v1651
    %v1653 = vpop.f32.mrb[0].mxu0
    %v1654 = vpop.f32.mrb[0].mxu0
    %v1655 = vadd.f32 0.0, %v1654
    %v1656 = vpop.f32.mrb[0].mxu0
    %1657 = vmatprep.mubr.bf16.mxu0 0
    %1658 = vmatmul.mubr.bf16.gmra.mrb[0].mxu0 %v1097
    %v1659 = vpop.f32.mrb[0].mxu0
    %v1660 = vadd.f32 0.0, %v1659
    %v1661 = vpop.f32.mrb[0].mxu0
    %v1662 = vpop.f32.mrb[0].mxu0
    %v1663 = vadd.f32 0.0, %v1662
    %v1664 = vpop.f32.mrb[0].mxu0
    %1665 = vmatprep.mubr.bf16.mxu0 0
    %1666 = vmatmul.mubr.bf16.gmra.mrb[0].mxu0 %v1100
    %v1667 = vpop.f32.mrb[0].mxu0
    %v1668 = vadd.f32 0.0, %v1667
    %v1669 = vpop.f32.mrb[0].mxu0
    %v1670 = vpop.f32.mrb[0].mxu0
    %v1671 = vadd.f32 0.0, %v1670
    %v1672 = vpop.f32.mrb[0].mxu0
    %1673 = vmatprep.mubr.bf16.mxu0 0
    %1674 = vmatmul.mubr.bf16.gmra.mrb[0].mxu0 %v1103
    %v1675 = vpop.f32.mrb[0].mxu0
    %v1676 = vadd.f32 0.0, %v1675
    %v1677 = vpop.f32.mrb[0].mxu0
    %v1678 = vpop.f32.mrb[0].mxu0
    %v1679 = vadd.f32 0.0, %v1678
    %v1680 = vpop.f32.mrb[0].mxu0
    %1681 = vmatprep.mubr.bf16.mxu0 0
    %1682 = vmatmul.mubr.bf16.gmra.mrb[0].mxu0 %v1106
    %v1683 = vpop.f32.mrb[0].mxu0
    %v1684 = vadd.f32 0.0, %v1683
    %v1685 = vpop.f32.mrb[0].mxu0
    %v1686 = vpop.f32.mrb[0].mxu0
    %v1687 = vadd.f32 0.0, %v1686
    %v1688 = vpop.f32.mrb[0].mxu0
    %1689 = vmatprep.mubr.bf16.mxu0 0
    %1690 = vmatmul.mubr.bf16.gmra.mrb[0].mxu0 %v1109
    %v1691 = vpop.f32.mrb[0].mxu0
    %v1692 = vadd.f32 0.0, %v1691
    %v1693 = vpop.f32.mrb[0].mxu0
    %v1694 = vpop.f32.mrb[0].mxu0
    %v1695 = vadd.f32 0.0, %v1694
    %v1696 = vpop.f32.mrb[0].mxu0
    %1697 = vmatprep.mubr.bf16.mxu0 0
    %1698 = vmatmul.mubr.bf16.gmra.mrb[0].mxu0 %v1112
    %v1699 = vpop.f32.mrb[0].mxu0
    %v1700 = vadd.f32 0.0, %v1699
    %v1701 = vpop.f32.mrb[0].mxu0
    %v1702 = vpop.f32.mrb[0].mxu0
    %v1703 = vadd.f32 0.0, %v1702
    %v1704 = vpop.f32.mrb[0].mxu0
    %1705 = vmatprep.mubr.bf16.mxu0 0
    %1706 = vmatmul.mubr.bf16.gmra.mrb[0].mxu0 %v1115
    %v1707 = vpop.f32.mrb[0].mxu0
    %v1708 = vadd.f32 0.0, %v1707
    %v1709 = vpop.f32.mrb[0].mxu0
    %v1710 = vpop.f32.mrb[0].mxu0
    %v1711 = vadd.f32 0.0, %v1710
    %v1712 = vpop.f32.mrb[0].mxu0
    %1713 = vmatprep.mubr.bf16.mxu0 0
    %1714 = vmatmul.mubr.bf16.gmra.mrb[0].mxu0 %v1118
    %v1715 = vpop.f32.mrb[0].mxu0
    %v1716 = vadd.f32 0.0, %v1715
    %v1717 = vpop.f32.mrb[0].mxu0
    %v1718 = vpop.f32.mrb[0].mxu0
    %v1719 = vadd.f32 0.0, %v1718
    %v1720 = vpop.f32.mrb[0].mxu0
    %1721 = vmatprep.mubr.bf16.mxu0 0
    %1722 = vmatmul.mubr.bf16.gmra.mrb[0].mxu0 %v1121
    %v1723 = vpop.f32.mrb[0].mxu0
    %v1724 = vadd.f32 0.0, %v1723
    %v1725 = vpop.f32.mrb[0].mxu0
    %v1726 = vpop.f32.mrb[0].mxu0
    %v1727 = vadd.f32 0.0, %v1726
    %v1728 = vpop.f32.mrb[0].mxu0
    %1729 = vmatprep.mubr.bf16.mxu0 0
    %1730 = vmatmul.mubr.bf16.gmra.mrb[0].mxu0 %v1124
    %v1731 = vpop.f32.mrb[0].mxu0
    %v1732 = vadd.f32 0.0, %v1731
    %v1733 = vpop.f32.mrb[0].mxu0
    %v1734 = vpop.f32.mrb[0].mxu0
    %v1735 = vadd.f32 0.0, %v1734
    %v1736 = vpop.f32.mrb[0].mxu0
    %1737 = vmatprep.mubr.bf16.mxu0 0
    %1738 = vmatmul.mubr.bf16.gmra.mrb[0].mxu0 %v1127
    %v1739 = vpop.f32.mrb[0].mxu0
    %v1740 = vadd.f32 0.0, %v1739
    %v1741 = vpop.f32.mrb[0].mxu0
    %v1742 = vpop.f32.mrb[0].mxu0
    %v1743 = vadd.f32 0.0, %v1742
    %v1744 = vpop.f32.mrb[0].mxu0
    %1745 = vmatprep.mubr.bf16.mxu0 0
    %1746 = vmatmul.mubr.bf16.gmra.mrb[0].mxu0 %v1130
    %v1747 = vpop.f32.mrb[0].mxu0
    %v1748 = vadd.f32 0.0, %v1747
    %v1749 = vpop.f32.mrb[0].mxu0
    %v1750 = vpop.f32.mrb[0].mxu0
    %v1751 = vadd.f32 0.0, %v1750
    %v1752 = vpop.f32.mrb[0].mxu0
    %1753 = vmatprep.mubr.bf16.mxu0 0
    %1754 = vmatmul.mubr.bf16.gmra.mrb[0].mxu0 %v1133
    %v1755 = vpop.f32.mrb[0].mxu0
    %v1756 = vadd.f32 0.0, %v1755
    %v1757 = vpop.f32.mrb[0].mxu0
    %v1758 = vpop.f32.mrb[0].mxu0
    %v1759 = vadd.f32 0.0, %v1758
    %v1760 = vpop.f32.mrb[0].mxu0
    %1761 = vmatprep.mubr.bf16.mxu0 0
    %1762 = vmatmul.mubr.bf16.gmra.mrb[0].mxu0 %v1136
    %v1763 = vpop.f32.mrb[0].mxu0
    %v1764 = vadd.f32 0.0, %v1763
    %v1765 = vpop.f32.mrb[0].mxu0
    %v1766 = vpop.f32.mrb[0].mxu0
    %v1767 = vadd.f32 0.0, %v1766
    %v1768 = vpop.f32.mrb[0].mxu0
    %1769 = vmatprep.mubr.bf16.mxu0 0
    %1770 = vmatmul.mubr.bf16.gmra.mrb[0].mxu0 %v1139
    %v1771 = vpop.f32.mrb[0].mxu0
    %v1772 = vadd.f32 0.0, %v1771
    %v1773 = vpop.f32.mrb[0].mxu0
    %v1774 = vpop.f32.mrb[0].mxu0
    %v1775 = vadd.f32 0.0, %v1774
    %v1776 = vpop.f32.mrb[0].mxu0
    %1777 = vmatprep.mubr.bf16.mxu0 0
    %1778 = vmatmul.mubr.bf16.gmra.mrb[0].mxu0 %v1142
    %v1779 = vpop.f32.mrb[0].mxu0
    %v1780 = vadd.f32 0.0, %v1779
    %v1781 = vpop.f32.mrb[0].mxu0
    %v1782 = vpop.f32.mrb[0].mxu0
    %v1783 = vadd.f32 0.0, %v1782
    %v1784 = vpop.f32.mrb[0].mxu0
    %1785 = vmatprep.mubr.bf16.mxu0 0
    %1786 = vmatmul.mubr.bf16.gmra.mrb[0].mxu0 %v1145
    %v1787 = vpop.f32.mrb[0].mxu0
    %v1788 = vadd.f32 0.0, %v1787
    %v1789 = vpop.f32.mrb[0].mxu0
    %v1790 = vpop.f32.mrb[0].mxu0
    %v1791 = vadd.f32 0.0, %v1790
    %v1792 = vpop.f32.mrb[0].mxu0
    %1793 = vmatprep.mubr.bf16.mxu0 0
    %1794 = vmatmul.mubr.bf16.gmra.mrb[0].mxu0 %v1148
    %v1795 = vpop.f32.mrb[0].mxu0
    %v1796 = vadd.f32 0.0, %v1795
    %v1797 = vpop.f32.mrb[0].mxu0
    %v1798 = vpop.f32.mrb[0].mxu0
    %v1799 = vadd.f32 0.0, %v1798
    %v1800 = vpop.f32.mrb[0].mxu0
    %1801 = vmatprep.mubr.bf16.mxu0 0
    %1802 = vmatmul.mubr.bf16.gmra.mrb[0].mxu0 %v1151
    %v1803 = vpop.f32.mrb[0].mxu0
    %v1804 = vadd.f32 0.0, %v1803
    %v1805 = vpop.f32.mrb[0].mxu0
    %v1806 = vpop.f32.mrb[0].mxu0
    %v1807 = vadd.f32 0.0, %v1806
    %v1808 = vpop.f32.mrb[0].mxu0
    %1809 = vmatprep.mubr.bf16.mxu0 0
    %1810 = vmatmul.mubr.bf16.gmra.mrb[0].mxu0 %v1154
    %v1811 = vpop.f32.mrb[0].mxu0
    %v1812 = vadd.f32 0.0, %v1811
    %v1813 = vpop.f32.mrb[0].mxu0
    %v1814 = vpop.f32.mrb[0].mxu0
    %v1815 = vadd.f32 0.0, %v1814
    %v1816 = vpop.f32.mrb[0].mxu0
    %1817 = vmatprep.mubr.bf16.mxu0 0
    %1818 = vmatmul.mubr.bf16.gmra.mrb[0].mxu0 %v1157
    %v1819 = vpop.f32.mrb[0].mxu0
    %v1820 = vadd.f32 0.0, %v1819
    %v1821 = vpop.f32.mrb[0].mxu0
    %v1822 = vpop.f32.mrb[0].mxu0
    %v1823 = vadd.f32 0.0, %v1822
    %v1824 = vpop.f32.mrb[0].mxu0
    %1825 = vmatprep.mubr.bf16.mxu0 0
    %1826 = vmatmul.mubr.bf16.gmra.mrb[0].mxu0 %v1160
    %v1827 = vpop.f32.mrb[0].mxu0
    %v1828 = vadd.f32 0.0, %v1827
    %v1829 = vpop.f32.mrb[0].mxu0
    %v1830 = vpop.f32.mrb[0].mxu0
    %v1831 = vadd.f32 0.0, %v1830
    %v1832 = vpop.f32.mrb[0].mxu0
    %1833 = vmatprep.mubr.bf16.mxu0 0
    %1834 = vmatmul.mubr.bf16.gmra.mrb[0].mxu0 %v1163
    %v1835 = vpop.f32.mrb[0].mxu0
    %v1836 = vadd.f32 0.0, %v1835
    %v1837 = vpop.f32.mrb[0].mxu0
    %v1838 = vpop.f32.mrb[0].mxu0
    %v1839 = vadd.f32 0.0, %v1838
    %v1840 = vpop.f32.mrb[0].mxu0
    %1841 = vmatprep.mubr.bf16.mxu0 0
    %1842 = vmatmul.mubr.bf16.gmra.mrb[0].mxu0 %v1166
    %v1843 = vpop.f32.mrb[0].mxu0
    %v1844 = vadd.f32 0.0, %v1843
    %v1845 = vpop.f32.mrb[0].mxu0
    %v1846 = vpop.f32.mrb[0].mxu0
    %v1847 = vadd.f32 0.0, %v1846
    %v1848 = vpop.f32.mrb[0].mxu0
    %1849 = vmatprep.mubr.bf16.mxu0 0
    %1850 = vmatmul.mubr.bf16.gmra.mrb[0].mxu0 %v1169
    %v1851 = vpop.f32.mrb[0].mxu0
    %v1852 = vadd.f32 0.0, %v1851
    %v1853 = vpop.f32.mrb[0].mxu0
    %v1854 = vpop.f32.mrb[0].mxu0
    %v1855 = vadd.f32 0.0, %v1854
    %v1856 = vpop.f32.mrb[0].mxu0
    %1857 = vmatprep.mubr.bf16.mxu0 0
    %1858 = vmatmul.mubr.bf16.gmra.mrb[0].mxu0 %v1172
    %v1859 = vpop.f32.mrb[0].mxu0
    %v1860 = vadd.f32 0.0, %v1859
    %v1861 = vpop.f32.mrb[0].mxu0
    %v1862 = vpop.f32.mrb[0].mxu0
    %v1863 = vadd.f32 0.0, %v1862
    %v1864 = vpop.f32.mrb[0].mxu0
    %1865 = vmatprep.mubr.bf16.mxu0 0
    %1866 = vmatmul.mubr.bf16.gmra.mrb[0].mxu0 %v1175
    %v1867 = vpop.f32.mrb[0].mxu0
    %v1868 = vadd.f32 0.0, %v1867
    %v1869 = vpop.f32.mrb[0].mxu0
    %v1870 = vpop.f32.mrb[0].mxu0
    %v1871 = vadd.f32 0.0, %v1870
    %v1872 = vpop.f32.mrb[0].mxu0
    %1873 = vmatprep.mubr.bf16.mxu0 0
    %1874 = vmatmul.mubr.bf16.gmra.mrb[0].mxu0 %v1178
    %v1875 = vpop.f32.mrb[0].mxu0
    %v1876 = vadd.f32 0.0, %v1875
    %v1877 = vpop.f32.mrb[0].mxu0
    %v1878 = vpop.f32.mrb[0].mxu0
    %v1879 = vadd.f32 0.0, %v1878
    %v1880 = vpop.f32.mrb[0].mxu0
    %1881 = vmatprep.mubr.bf16.mxu0 0
    %1882 = vmatmul.mubr.bf16.gmra.mrb[0].mxu0 %v1181
    %v1883 = vpop.f32.mrb[0].mxu0
    %v1884 = vadd.f32 0.0, %v1883
    %v1885 = vpop.f32.mrb[0].mxu0
    %v1886 = vpop.f32.mrb[0].mxu0
    %v1887 = vadd.f32 0.0, %v1886
    %v1888 = vpop.f32.mrb[0].mxu0
    %1889 = vmatprep.mubr.bf16.mxu0 0
    %1890 = vmatmul.mubr.bf16.gmra.mrb[0].mxu0 %v1184
    %v1891 = vpop.f32.mrb[0].mxu0
    %v1892 = vadd.f32 0.0, %v1891
    %v1893 = vpop.f32.mrb[0].mxu0
    %v1894 = vpop.f32.mrb[0].mxu0
    %v1895 = vadd.f32 0.0, %v1894
    %v1896 = vpop.f32.mrb[0].mxu0
    %1897 = vmatprep.mubr.bf16.mxu0 0
    %1898 = vmatmul.mubr.bf16.gmra.mrb[0].mxu0 %v1187
    %v1899 = vpop.f32.mrb[0].mxu0
    %v1900 = vadd.f32 0.0, %v1899
    %v1901 = vpop.f32.mrb[0].mxu0
    %v1902 = vpop.f32.mrb[0].mxu0
    %v1903 = vadd.f32 0.0, %v1902
    %v1904 = vpop.f32.mrb[0].mxu0
    %1905 = vmatprep.mubr.bf16.mxu0 0
    %1906 = vmatmul.mubr.bf16.gmra.mrb[0].mxu0 %v1190
    %v1907 = vpop.f32.mrb[0].mxu0
    %v1908 = vadd.f32 0.0, %v1907
    %v1909 = vpop.f32.mrb[0].mxu0
    %v1910 = vpop.f32.mrb[0].mxu0
    %v1911 = vadd.f32 0.0, %v1910
    %v1912 = vpop.f32.mrb[0].mxu0
    %1913 = vmatprep.mubr.bf16.mxu0 0
    %1914 = vmatmul.mubr.bf16.gmra.mrb[0].mxu0 %v1193
    %v1915 = vpop.f32.mrb[0].mxu0
    %v1916 = vadd.f32 0.0, %v1915
    %v1917 = vpop.f32.mrb[0].mxu0
    %v1918 = vpop.f32.mrb[0].mxu0
    %v1919 = vadd.f32 0.0, %v1918
    %v1920 = vpop.f32.mrb[0].mxu0
    %1921 = vmatprep.mubr.bf16.mxu0 0
    %1922 = vmatmul.mubr.bf16.gmra.mrb[0].mxu0 %v1196
    %v1923 = vpop.f32.mrb[0].mxu0
    %v1924 = vadd.f32 0.0, %v1923
    %v1925 = vpop.f32.mrb[0].mxu0
    %v1926 = vpop.f32.mrb[0].mxu0
    %v1927 = vadd.f32 0.0, %v1926
    %v1928 = vpop.f32.mrb[0].mxu0
    %1929 = vmatprep.mubr.bf16.mxu0 0
    %1930 = vmatmul.mubr.bf16.gmra.mrb[0].mxu0 %v1199
    %v1931 = vpop.f32.mrb[0].mxu0
    %v1932 = vadd.f32 0.0, %v1931
    %v1933 = vpop.f32.mrb[0].mxu0
    %v1934 = vpop.f32.mrb[0].mxu0
    %v1935 = vadd.f32 0.0, %v1934
    %v1936 = vpop.f32.mrb[0].mxu0
    %1937 = vmatprep.mubr.bf16.mxu0 0
    %1938 = vmatmul.mubr.bf16.gmra.mrb[0].mxu0 %v1202
    %v1939 = vpop.f32.mrb[0].mxu0
    %v1940 = vadd.f32 0.0, %v1939
    %v1941 = vpop.f32.mrb[0].mxu0
    %v1942 = vpop.f32.mrb[0].mxu0
    %v1943 = vadd.f32 0.0, %v1942
    %v1944 = vpop.f32.mrb[0].mxu0
    %1945 = vmatprep.mubr.bf16.mxu0 0
    %1946 = vmatmul.mubr.bf16.gmra.mrb[0].mxu0 %v1205
    %v1947 = vpop.f32.mrb[0].mxu0
    %v1948 = vadd.f32 0.0, %v1947
    %v1949 = vpop.f32.mrb[0].mxu0
    %v1950 = vpop.f32.mrb[0].mxu0
    %v1951 = vadd.f32 0.0, %v1950
    %v1952 = vpop.f32.mrb[0].mxu0
    %1953 = vmatprep.mubr.bf16.mxu0 0
    %1954 = vmatmul.mubr.bf16.gmra.mrb[0].mxu0 %v1208
    %v1955 = vpop.f32.mrb[0].mxu0
    %v1956 = vadd.f32 0.0, %v1955
    %v1957 = vpop.f32.mrb[0].mxu0
    %v1958 = vpop.f32.mrb[0].mxu0
    %v1959 = vadd.f32 0.0, %v1958
    %v1960 = vpop.f32.mrb[0].mxu0
    %1961 = vmatprep.mubr.bf16.mxu0 0
    %1962 = vmatmul.mubr.bf16.gmra.mrb[0].mxu0 %v1211
    %v1963 = vpop.f32.mrb[0].mxu0
    %v1964 = vadd.f32 0.0, %v1963
    %v1965 = vpop.f32.mrb[0].mxu0
    %v1966 = vpop.f32.mrb[0].mxu0
    %v1967 = vadd.f32 0.0, %v1966
    %v1968 = vpop.f32.mrb[0].mxu0
    %1969 = vmatprep.mubr.bf16.mxu0 0
    %1970 = vmatmul.mubr.bf16.gmra.mrb[0].mxu0 %v1214
    %v1971 = vpop.f32.mrb[0].mxu0
    %v1972 = vadd.f32 0.0, %v1971
    %v1973 = vpop.f32.mrb[0].mxu0
    %v1974 = vpop.f32.mrb[0].mxu0
    %v1975 = vadd.f32 0.0, %v1974
    %v1976 = vpop.f32.mrb[0].mxu0
    %1977 = vmatprep.mubr.bf16.mxu0 0
    %1978 = vmatmul.mubr.bf16.gmra.mrb[0].mxu0 %v1217
    %v1979 = vpop.f32.mrb[0].mxu0
    %v1980 = vadd.f32 0.0, %v1979
    %v1981 = vpop.f32.mrb[0].mxu0
    %v1982 = vpop.f32.mrb[0].mxu0
    %v1983 = vadd.f32 0.0, %v1982
    %v1984 = vpop.f32.mrb[0].mxu0
    %1985 = vmatprep.mubr.bf16.mxu0 0
    %1986 = vmatmul.mubr.bf16.gmra.mrb[0].mxu0 %v1220
    %v1987 = vpop.f32.mrb[0].mxu0
    %v1988 = vadd.f32 0.0, %v1987
    %v1989 = vpop.f32.mrb[0].mxu0
    %v1990 = vpop.f32.mrb[0].mxu0
    %v1991 = vadd.f32 0.0, %v1990
    %v1992 = vpop.f32.mrb[0].mxu0
    %1993 = vmatprep.mubr.bf16.mxu0 0
    %1994 = vmatmul.mubr.bf16.gmra.mrb[0].mxu0 %v1223
    %v1995 = vpop.f32.mrb[0].mxu0
    %v1996 = vadd.f32 0.0, %v1995
    %v1997 = vpop.f32.mrb[0].mxu0
    %v1998 = vpop.f32.mrb[0].mxu0
    %v1999 = vadd.f32 0.0, %v1998
    %v2000 = vpop.f32.mrb[0].mxu0
    %2001 = vmatprep.mubr.bf16.mxu0 0
    %2002 = vmatmul.mubr.bf16.gmra.mrb[0].mxu0 %v1226
    %v2003 = vpop.f32.mrb[0].mxu0
    %v2004 = vadd.f32 0.0, %v2003
    %v2005 = vpop.f32.mrb[0].mxu0
    %v2006 = vpop.f32.mrb[0].mxu0
    %v2007 = vadd.f32 0.0, %v2006
    %v2008 = vpop.f32.mrb[0].mxu0
    %2009 = vmatprep.mubr.bf16.mxu0 0
    %2010 = vmatmul.mubr.bf16.gmra.mrb[0].mxu0 %v1229
    %v2011 = vpop.f32.mrb[0].mxu0
    %v2012 = vadd.f32 0.0, %v2011
    %v2013 = vpop.f32.mrb[0].mxu0
    %v2014 = vpop.f32.mrb[0].mxu0
    %v2015 = vadd.f32 0.0, %v2014
    %v2016 = vpop.f32.mrb[0].mxu0
    %2017 = vmatprep.mubr.bf16.mxu0 0
    %2018 = vmatmul.mubr.bf16.gmra.mrb[0].mxu0 %v1232
    %v2019 = vpop.f32.mrb[0].mxu0
    %v2020 = vadd.f32 0.0, %v2019
    %v2021 = vpop.f32.mrb[0].mxu0
    %v2022 = vpop.f32.mrb[0].mxu0
    %v2023 = vadd.f32 0.0, %v2022
    %v2024 = vpop.f32.mrb[0].mxu0
    %2025 = vmatprep.mubr.bf16.mxu0 0
    %2026 = vmatmul.mubr.bf16.gmra.mrb[0].mxu0 %v1235
    %v2027 = vpop.f32.mrb[0].mxu0
    %v2028 = vadd.f32 0.0, %v2027
    %v2029 = vpop.f32.mrb[0].mxu0
    %v2030 = vpop.f32.mrb[0].mxu0
    %v2031 = vadd.f32 0.0, %v2030
    %v2032 = vpop.f32.mrb[0].mxu0
    %2033 = vmatprep.mubr.bf16.mxu0 0
    %2034 = vmatmul.mubr.bf16.gmra.mrb[0].mxu0 %v1238
    %v2035 = vpop.f32.mrb[0].mxu0
    %v2036 = vadd.f32 0.0, %v2035
    %v2037 = vpop.f32.mrb[0].mxu0
    %v2038 = vpop.f32.mrb[0].mxu0
    %v2039 = vadd.f32 0.0, %v2038
    %v2040 = vpop.f32.mrb[0].mxu0
    %2041 = vmatprep.mubr.bf16.mxu0 0
    %2042 = vmatmul.mubr.bf16.gmra.mrb[0].mxu0 %v1241
    %v2043 = vpop.f32.mrb[0].mxu0
    %v2044 = vadd.f32 0.0, %v2043
    %v2045 = vpop.f32.mrb[0].mxu0
    %v2046 = vpop.f32.mrb[0].mxu0
    %v2047 = vadd.f32 0.0, %v2046
    %v2048 = vpop.f32.mrb[0].mxu0
    %2049 = vmatprep.mubr.bf16.mxu0 0
    %2050 = vmatmul.mubr.bf16.gmra.mrb[0].mxu0 %v1244
    %v2051 = vpop.f32.mrb[0].mxu0
    %v2052 = vadd.f32 0.0, %v2051
    %v2053 = vpop.f32.mrb[0].mxu0
    %v2054 = vpop.f32.mrb[0].mxu0
    %v2055 = vadd.f32 0.0, %v2054
    %v2056 = vpop.f32.mrb[0].mxu0
    %2057 = vmatprep.mubr.bf16.mxu0 0
    %2058 = vmatmul.mubr.bf16.gmra.mrb[0].mxu0 %v1247
    %v2059 = vpop.f32.mrb[0].mxu0
    %v2060 = vadd.f32 0.0, %v2059
    %v2061 = vpop.f32.mrb[0].mxu0
    %v2062 = vpop.f32.mrb[0].mxu0
    %v2063 = vadd.f32 0.0, %v2062
    %v2064 = vpop.f32.mrb[0].mxu0
    %2065 = vmatprep.mubr.bf16.mxu0 0
    %2066 = vmatmul.mubr.bf16.gmra.mrb[0].mxu0 %v1250
    %v2067 = vpop.f32.mrb[0].mxu0
    %v2068 = vadd.f32 0.0, %v2067
    %v2069 = vpop.f32.mrb[0].mxu0
    %v2070 = vpop.f32.mrb[0].mxu0
    %v2071 = vadd.f32 0.0, %v2070
    %v2072 = vpop.f32.mrb[0].mxu0
    %2073 = vmatprep.mubr.bf16.mxu0 0
    %2074 = vmatmul.mubr.bf16.gmra.mrb[0].mxu0 %v1253
    %v2075 = vpop.f32.mrb[0].mxu0
    %v2076 = vadd.f32 0.0, %v2075
    %v2077 = vpop.f32.mrb[0].mxu0
    %v2078 = vpop.f32.mrb[0].mxu0
    %v2079 = vadd.f32 0.0, %v2078
    %v2080 = vpop.f32.mrb[0].mxu0
    %2081 = vmatprep.mubr.bf16.mxu0 0
    %2082 = vmatmul.mubr.bf16.gmra.mrb[0].mxu0 %v1256
    %v2083 = vpop.f32.mrb[0].mxu0
    %v2084 = vadd.f32 0.0, %v2083
    %v2085 = vpop.f32.mrb[0].mxu0
    %v2086 = vpop.f32.mrb[0].mxu0
    %v2087 = vadd.f32 0.0, %v2086
    %v2088 = vpop.f32.mrb[0].mxu0
    %2089 = vmatprep.mubr.bf16.mxu0 0
    %2090 = vmatmul.mubr.bf16.gmra.mrb[0].mxu0 %v1259
    %v2091 = vpop.f32.mrb[0].mxu0
    %v2092 = vadd.f32 0.0, %v2091
    %v2093 = vpop.f32.mrb[0].mxu0
    %v2094 = vpop.f32.mrb[0].mxu0
    %v2095 = vadd.f32 0.0, %v2094
    %v2096 = vpop.f32.mrb[0].mxu0
    %2097 = vmatprep.mubr.bf16.mxu0 0
    %2098 = vmatmul.mubr.bf16.gmra.mrb[0].mxu0 %v1262
    %v2099 = vpop.f32.mrb[0].mxu0
    %v2100 = vadd.f32 0.0, %v2099
    %v2101 = vpop.f32.mrb[0].mxu0
    %v2102 = vpop.f32.mrb[0].mxu0
    %v2103 = vadd.f32 0.0, %v2102
    %v2104 = vpop.f32.mrb[0].mxu0
    %2105 = vmatprep.mubr.bf16.mxu0 0
    %2106 = vmatmul.mubr.bf16.gmra.mrb[0].mxu0 %v1265
    %v2107 = vpop.f32.mrb[0].mxu0
    %v2108 = vadd.f32 0.0, %v2107
    %v2109 = vpop.f32.mrb[0].mxu0
    %v2110 = vpop.f32.mrb[0].mxu0
    %v2111 = vadd.f32 0.0, %v2110
    %v2112 = vpop.f32.mrb[0].mxu0
    %2113 = vmatprep.mubr.bf16.mxu0 0
    %2114 = vmatmul.mubr.bf16.gmra.mrb[0].mxu0 %v1268
    %v2115 = vpop.f32.mrb[0].mxu0
    %v2116 = vadd.f32 0.0, %v2115
    %v2117 = vpop.f32.mrb[0].mxu0
    %v2118 = vpop.f32.mrb[0].mxu0
    %v2119 = vadd.f32 0.0, %v2118
    %v2120 = vpop.f32.mrb[0].mxu0
    %2121 = vmatprep.mubr.bf16.mxu0 0
    %2122 = vmatmul.mubr.bf16.gmra.mrb[0].mxu0 %v1271
    %v2123 = vpop.f32.mrb[0].mxu0
    %v2124 = vadd.f32 0.0, %v2123
    %v2125 = vpop.f32.mrb[0].mxu0
    %v2126 = vpop.f32.mrb[0].mxu0
    %v2127 = vadd.f32 0.0, %v2126
    %v2128 = vpop.f32.mrb[0].mxu0
    %2129 = vmatprep.mubr.bf16.mxu0 0
    %2130 = vmatmul.mubr.bf16.gmra.mrb[0].mxu0 %v1274
    %v2131 = vpop.f32.mrb[0].mxu0
    %v2132 = vadd.f32 0.0, %v2131
    %v2133 = vpop.f32.mrb[0].mxu0
    %v2134 = vpop.f32.mrb[0].mxu0
    %v2135 = vadd.f32 0.0, %v2134
    %v2136 = vpop.f32.mrb[0].mxu0
    %2137 = vmatprep.mubr.bf16.mxu0 0
    %2138 = vmatmul.mubr.bf16.gmra.mrb[0].mxu0 %v1277
    %v2139 = vpop.f32.mrb[0].mxu0
    %v2140 = vadd.f32 0.0, %v2139
    %v2141 = vpop.f32.mrb[0].mxu0
    %v2142 = vpop.f32.mrb[0].mxu0
    %v2143 = vadd.f32 0.0, %v2142
    %v2144 = vpop.f32.mrb[0].mxu0
    %2145 = vmatprep.mubr.bf16.mxu0 0
    %2146 = vmatmul.mubr.bf16.gmra.mrb[0].mxu0 %v1280
    %v2147 = vpop.f32.mrb[0].mxu0
    %v2148 = vadd.f32 0.0, %v2147
    %v2149 = vpop.f32.mrb[0].mxu0
    %v2150 = vpop.f32.mrb[0].mxu0
    %v2151 = vadd.f32 0.0, %v2150
    %v2152 = vpop.f32.mrb[0].mxu0
    %2153 = vmatprep.mubr.bf16.mxu0 0
    %2154 = vmatmul.mubr.bf16.gmra.mrb[0].mxu0 %v1283
    %v2155 = vpop.f32.mrb[0].mxu0
    %v2156 = vadd.f32 0.0, %v2155
    %v2157 = vpop.f32.mrb[0].mxu0
    %v2158 = vpop.f32.mrb[0].mxu0
    %v2159 = vadd.f32 0.0, %v2158
    %v2160 = vpop.f32.mrb[0].mxu0
    %2161 = vmatprep.mubr.bf16.mxu0 0
    %2162 = vmatmul.mubr.bf16.gmra.mrb[0].mxu0 %v1286
    %v2163 = vpop.f32.mrb[0].mxu0
    %v2164 = vadd.f32 0.0, %v2163
    %v2165 = vpop.f32.mrb[0].mxu0
    %v2166 = vpop.f32.mrb[0].mxu0
    %v2167 = vadd.f32 0.0, %v2166
    %v2168 = vpop.f32.mrb[0].mxu0
    %2169 = vmatprep.mubr.bf16.mxu0 0
    %2170 = vmatmul.mubr.bf16.gmra.mrb[0].mxu0 %v1289
    %v2171 = vpop.f32.mrb[0].mxu0
    %v2172 = vadd.f32 0.0, %v2171
    %v2173 = vpop.f32.mrb[0].mxu0
    %v2174 = vpop.f32.mrb[0].mxu0
    %v2175 = vadd.f32 0.0, %v2174
    %v2176 = vpop.f32.mrb[0].mxu0
    %2177 = vmatprep.mubr.bf16.mxu0 0
    %2178 = vmatmul.mubr.bf16.gmra.mrb[0].mxu0 %v1292
    %v2179 = vpop.f32.mrb[0].mxu0
    %v2180 = vadd.f32 0.0, %v2179
    %v2181 = vpop.f32.mrb[0].mxu0
    %v2182 = vpop.f32.mrb[0].mxu0
    %v2183 = vadd.f32 0.0, %v2182
    %v2184 = vpop.f32.mrb[0].mxu0
    %2185 = vmatprep.mubr.bf16.mxu0 0
    %2186 = vmatmul.mubr.bf16.gmra.mrb[0].mxu0 %v1295
    %v2187 = vpop.f32.mrb[0].mxu0
    %v2188 = vadd.f32 0.0, %v2187
    %v2189 = vpop.f32.mrb[0].mxu0
    %v2190 = vpop.f32.mrb[0].mxu0
    %v2191 = vadd.f32 0.0, %v2190
    %v2192 = vpop.f32.mrb[0].mxu0
    %2193 = vmatprep.mubr.bf16.mxu0 0
    %2194 = vmatmul.mubr.bf16.gmra.mrb[0].mxu0 %v1298
    %v2195 = vpop.f32.mrb[0].mxu0
    %v2196 = vadd.f32 0.0, %v2195
    %v2197 = vpop.f32.mrb[0].mxu0
    %v2198 = vpop.f32.mrb[0].mxu0
    %v2199 = vadd.f32 0.0, %v2198
    %v2200 = vpop.f32.mrb[0].mxu0
    %2201 = vmatprep.mubr.bf16.mxu0 0
    %2202 = vmatmul.mubr.bf16.gmra.mrb[0].mxu0 %v1301
    %v2203 = vpop.f32.mrb[0].mxu0
    %v2204 = vadd.f32 0.0, %v2203
    %v2205 = vpop.f32.mrb[0].mxu0
    %v2206 = vpop.f32.mrb[0].mxu0
    %v2207 = vadd.f32 0.0, %v2206
    %v2208 = vpop.f32.mrb[0].mxu0
    %2209 = vmatprep.mubr.bf16.mxu0 0
    %2210 = vmatmul.mubr.bf16.gmra.mrb[0].mxu0 %v1304
    %v2211 = vpop.f32.mrb[0].mxu0
    %v2212 = vadd.f32 0.0, %v2211
    %v2213 = vpop.f32.mrb[0].mxu0
    %v2214 = vpop.f32.mrb[0].mxu0
    %v2215 = vadd.f32 0.0, %v2214
    %v2216 = vpop.f32.mrb[0].mxu0
    %2217 = vmatprep.mubr.bf16.mxu0 0
    %2218 = vmatmul.mubr.bf16.gmra.mrb[0].mxu0 %v1307
    %v2219 = vpop.f32.mrb[0].mxu0
    %v2220 = vadd.f32 0.0, %v2219
    %v2221 = vpop.f32.mrb[0].mxu0
    %v2222 = vpop.f32.mrb[0].mxu0
    %v2223 = vadd.f32 0.0, %v2222
    %v2224 = vpop.f32.mrb[0].mxu0
    %2225 = vmatprep.mubr.bf16.mxu0 0
    %2226 = vmatmul.mubr.bf16.gmra.mrb[0].mxu0 %v1310
    %v2227 = vpop.f32.mrb[0].mxu0
    %v2228 = vadd.f32 0.0, %v2227
    %v2229 = vpop.f32.mrb[0].mxu0
    %v2230 = vpop.f32.mrb[0].mxu0
    %v2231 = vadd.f32 0.0, %v2230
    %v2232 = vpop.f32.mrb[0].mxu0
    %2233 = vmatprep.mubr.bf16.mxu0 0
    %2234 = vmatmul.mubr.bf16.gmra.mrb[0].mxu0 %v1313
    %v2235 = vpop.f32.mrb[0].mxu0
    %v2236 = vadd.f32 0.0, %v2235
    %v2237 = vpop.f32.mrb[0].mxu0
    %v2238 = vpop.f32.mrb[0].mxu0
    %v2239 = vadd.f32 0.0, %v2238
    %v2240 = vpop.f32.mrb[0].mxu0
    %2241 = vmatprep.mubr.bf16.mxu0 0
    %2242 = vmatmul.mubr.bf16.gmra.mrb[0].mxu0 %v1316
    %v2243 = vpop.f32.mrb[0].mxu0
    %v2244 = vadd.f32 0.0, %v2243
    %v2245 = vpop.f32.mrb[0].mxu0
    %v2246 = vpop.f32.mrb[0].mxu0
    %v2247 = vadd.f32 0.0, %v2246
    %v2248 = vpop.f32.mrb[0].mxu0
    %2249 = vmatprep.mubr.bf16.mxu0 0
    %2250 = vmatmul.mubr.bf16.gmra.mrb[0].mxu0 %v1319
    %v2251 = vpop.f32.mrb[0].mxu0
    %v2252 = vadd.f32 0.0, %v2251
    %v2253 = vpop.f32.mrb[0].mxu0
    %v2254 = vpop.f32.mrb[0].mxu0
    %v2255 = vadd.f32 0.0, %v2254
    %v2256 = vpop.f32.mrb[0].mxu0
    %2257 = vmatprep.mubr.bf16.mxu0 0
    %2258 = vmatmul.mubr.bf16.gmra.mrb[0].mxu0 %v1322
    %v2259 = vpop.f32.mrb[0].mxu0
    %v2260 = vadd.f32 0.0, %v2259
    %v2261 = vpop.f32.mrb[0].mxu0
    %v2262 = vpop.f32.mrb[0].mxu0
    %v2263 = vadd.f32 0.0, %v2262
    %v2264 = vpop.f32.mrb[0].mxu0
    %2265 = vmatprep.mubr.bf16.mxu0 0
    %2266 = vmatmul.mubr.bf16.gmra.mrb[0].mxu0 %v1325
    %v2267 = vpop.f32.mrb[0].mxu0
    %v2268 = vadd.f32 0.0, %v2267
    %v2269 = vpop.f32.mrb[0].mxu0
    %v2270 = vpop.f32.mrb[0].mxu0
    %v2271 = vadd.f32 0.0, %v2270
    %v2272 = vpop.f32.mrb[0].mxu0
    %2273 = vmatprep.mubr.bf16.mxu0 0
    %2274 = vmatmul.mubr.bf16.gmra.mrb[0].mxu0 %v1328
    %v2275 = vpop.f32.mrb[0].mxu0
    %v2276 = vadd.f32 0.0, %v2275
    %v2277 = vpop.f32.mrb[0].mxu0
    %v2278 = vpop.f32.mrb[0].mxu0
    %v2279 = vadd.f32 0.0, %v2278
    %v2280 = vpop.f32.mrb[0].mxu0
    %2281 = vmatprep.mubr.bf16.mxu0 0
    %2282 = vmatmul.mubr.bf16.gmra.mrb[0].mxu0 %v1331
    %v2283 = vpop.f32.mrb[0].mxu0
    %v2284 = vadd.f32 0.0, %v2283
    %v2285 = vpop.f32.mrb[0].mxu0
    %v2286 = vpop.f32.mrb[0].mxu0
    %v2287 = vadd.f32 0.0, %v2286
    %v2288 = vpop.f32.mrb[0].mxu0
    %2289 = vmatprep.mubr.bf16.mxu0 0
    %2290 = vmatmul.mubr.bf16.gmra.mrb[0].mxu0 %v1334
    %v2291 = vpop.f32.mrb[0].mxu0
    %v2292 = vadd.f32 0.0, %v2291
    %v2293 = vpop.f32.mrb[0].mxu0
    %v2294 = vpop.f32.mrb[0].mxu0
    %v2295 = vadd.f32 0.0, %v2294
    %v2296 = vpop.f32.mrb[0].mxu0
    %2297 = vmatprep.mubr.bf16.mxu0 0
    %2298 = vmatmul.mubr.bf16.gmra.mrb[0].mxu0 %v1337
    %v2299 = vpop.f32.mrb[0].mxu0
    %v2300 = vadd.f32 0.0, %v2299
    %v2301 = vpop.f32.mrb[0].mxu0
    %v2302 = vpop.f32.mrb[0].mxu0
    %v2303 = vadd.f32 0.0, %v2302
    %v2304 = vpop.f32.mrb[0].mxu0
    %2305 = vmatprep.mubr.bf16.mxu0 0
    %2306 = vmatmul.mubr.bf16.gmra.mrb[0].mxu0 %v1340
    %v2307 = vpop.f32.mrb[0].mxu0
    %v2308 = vadd.f32 0.0, %v2307
    %v2309 = vpop.f32.mrb[0].mxu0
    %v2310 = vpop.f32.mrb[0].mxu0
    %v2311 = vadd.f32 0.0, %v2310
    %v2312 = vpop.f32.mrb[0].mxu0
    %2313 = vmatprep.mubr.bf16.mxu0 0
    %2314 = vmatmul.mubr.bf16.gmra.mrb[0].mxu0 %v1343
    %v2315 = vpop.f32.mrb[0].mxu0
    %v2316 = vadd.f32 0.0, %v2315
    %v2317 = vpop.f32.mrb[0].mxu0
    %v2318 = vpop.f32.mrb[0].mxu0
    %v2319 = vadd.f32 0.0, %v2318
    %v2320 = vpop.f32.mrb[0].mxu0
    %2321 = vmatprep.mubr.bf16.mxu0 0
    %2322 = vmatmul.mubr.bf16.gmra.mrb[0].mxu0 %v1346
    %v2323 = vpop.f32.mrb[0].mxu0
    %v2324 = vadd.f32 0.0, %v2323
    %v2325 = vpop.f32.mrb[0].mxu0
    %v2326 = vpop.f32.mrb[0].mxu0
    %v2327 = vadd.f32 0.0, %v2326
    %v2328 = vpop.f32.mrb[0].mxu0
    %2329 = vmatprep.mubr.bf16.mxu0 0
    %2330 = vmatmul.mubr.bf16.gmra.mrb[0].mxu0 %v1349
    %v2331 = vpop.f32.mrb[0].mxu0
    %v2332 = vadd.f32 0.0, %v2331
    %v2333 = vpop.f32.mrb[0].mxu0
    %v2334 = vpop.f32.mrb[0].mxu0
    %v2335 = vadd.f32 0.0, %v2334
    %v2336 = vpop.f32.mrb[0].mxu0
    %2337 = vmatprep.mubr.bf16.mxu0 0
    %2338 = vmatmul.mubr.bf16.gmra.mrb[0].mxu0 %v1352
    %v2339 = vpop.f32.mrb[0].mxu0
    %v2340 = vadd.f32 0.0, %v2339
    %v2341 = vpop.f32.mrb[0].mxu0
    %v2342 = vpop.f32.mrb[0].mxu0
    %v2343 = vadd.f32 0.0, %v2342
    %v2344 = vpop.f32.mrb[0].mxu0
    %2345 = vmatprep.mubr.bf16.mxu0 0
    %2346 = vmatmul.mubr.bf16.gmra.mrb[0].mxu0 %v1355
    %v2347 = vpop.f32.mrb[0].mxu0
    %v2348 = vadd.f32 0.0, %v2347
    %v2349 = vpop.f32.mrb[0].mxu0
    %v2350 = vpop.f32.mrb[0].mxu0
    %v2351 = vadd.f32 0.0, %v2350
    %v2352 = vpop.f32.mrb[0].mxu0
    %2353 = vmatprep.mubr.bf16.mxu0 0
    %2354 = vmatmul.mubr.bf16.gmra.mrb[0].mxu0 %v1358
    %v2355 = vpop.f32.mrb[0].mxu0
    %v2356 = vadd.f32 0.0, %v2355
    %v2357 = vpop.f32.mrb[0].mxu0
    %v2358 = vpop.f32.mrb[0].mxu0
    %v2359 = vadd.f32 0.0, %v2358
    %v2360 = vpop.f32.mrb[0].mxu0
    %2361 = vmatprep.mubr.bf16.mxu0 0
    %2362 = vmatmul.mubr.bf16.gmra.mrb[0].mxu0 %v1361
    %v2363 = vpop.f32.mrb[0].mxu0
    %v2364 = vadd.f32 0.0, %v2363
    %v2365 = vpop.f32.mrb[0].mxu0
    %v2366 = vpop.f32.mrb[0].mxu0
    %v2367 = vadd.f32 0.0, %v2366
    %v2368 = vpop.f32.mrb[0].mxu0
    %2369 = vmatprep.mubr.bf16.mxu0 0
    %2370 = vmatmul.mubr.bf16.gmra.mrb[0].mxu0 %v1364
    %v2371 = vpop.f32.mrb[0].mxu0
    %v2372 = vadd.f32 0.0, %v2371
    %v2373 = vpop.f32.mrb[0].mxu0
    %v2374 = vpop.f32.mrb[0].mxu0
    %v2375 = vadd.f32 0.0, %v2374
    %v2376 = vpop.f32.mrb[0].mxu0
    %2377 = vmatprep.mubr.bf16.mxu0 0
    %2378 = vmatmul.mubr.bf16.gmra.mrb[0].mxu0 %v1367
    %v2379 = vpop.f32.mrb[0].mxu0
    %v2380 = vadd.f32 0.0, %v2379
    %v2381 = vpop.f32.mrb[0].mxu0
    %v2382 = vpop.f32.mrb[0].mxu0
    %v2383 = vadd.f32 0.0, %v2382
    %v2384 = vpop.f32.mrb[0].mxu0
    %2385 = vmatprep.mubr.bf16.mxu0 0
    %2386 = vmatmul.mubr.bf16.gmra.mrb[0].mxu0 %v1370
    %v2387 = vpop.f32.mrb[0].mxu0
    %v2388 = vadd.f32 0.0, %v2387
    %v2389 = vpop.f32.mrb[0].mxu0
    %v2390 = vpop.f32.mrb[0].mxu0
    %v2391 = vadd.f32 0.0, %v2390
    %v2392 = vpop.f32.mrb[0].mxu0
    %2393 = vmatprep.mubr.bf16.mxu0 0
    %2394 = vmatmul.mubr.bf16.gmra.mrb[0].mxu0 %v1373
    %v2395 = vpop.f32.mrb[0].mxu0
    %v2396 = vadd.f32 0.0, %v2395
    %v2397 = vpop.f32.mrb[0].mxu0
    %v2398 = vpop.f32.mrb[0].mxu0
    %v2399 = vadd.f32 0.0, %v2398
    %v2400 = vpop.f32.mrb[0].mxu0
    %2401 = vmatprep.mubr.bf16.mxu0 0
    %2402 = vmatmul.mubr.bf16.gmra.mrb[0].mxu0 %v1376
    %v2403 = vpop.f32.mrb[0].mxu0
    %v2404 = vadd.f32 0.0, %v2403
    %v2405 = vpop.f32.mrb[0].mxu0
    %v2406 = vpop.f32.mrb[0].mxu0
    %v2407 = vadd.f32 0.0, %v2406
    %v2408 = vpop.f32.mrb[0].mxu0
    %2409 = vmatprep.mubr.bf16.mxu0 0
    %2410 = vmatmul.mubr.bf16.gmra.mrb[0].mxu0 %v1379
    %v2411 = vpop.f32.mrb[0].mxu0
    %v2412 = vadd.f32 0.0, %v2411
    %v2413 = vpop.f32.mrb[0].mxu0
    %v2414 = vpop.f32.mrb[0].mxu0
    %v2415 = vadd.f32 0.0, %v2414
    %v2416 = vpop.f32.mrb[0].mxu0
    %2417 = vmatprep.mubr.bf16.mxu0 0
    %2418 = vmatmul.mubr.bf16.gmra.mrb[0].mxu0 %v1382
    %v2419 = vpop.f32.mrb[0].mxu0
    %v2420 = vadd.f32 0.0, %v2419
    %v2421 = vpop.f32.mrb[0].mxu0
    %v2422 = vpop.f32.mrb[0].mxu0
    %v2423 = vadd.f32 0.0, %v2422
    %v2424 = vpop.f32.mrb[0].mxu0
    %2425 = vmatprep.mubr.bf16.mxu0 0
    %2426 = vmatmul.mubr.bf16.gmra.mrb[0].mxu0 %v1385
    %v2427 = vpop.f32.mrb[0].mxu0
    %v2428 = vadd.f32 0.0, %v2427
    %v2429 = vpop.f32.mrb[0].mxu0
    %v2430 = vpop.f32.mrb[0].mxu0
    %v2431 = vadd.f32 0.0, %v2430
    %v2432 = vpop.f32.mrb[0].mxu0
    %2433 = vmatprep.mubr.bf16.mxu0 0
    %2434 = vmatmul.mubr.bf16.gmra.mrb[0].mxu0 %v1388
    %v2435 = vpop.f32.mrb[0].mxu0
    %v2436 = vadd.f32 0.0, %v2435
    %v2437 = vpop.f32.mrb[0].mxu0
    %v2438 = vpop.f32.mrb[0].mxu0
    %v2439 = vadd.f32 0.0, %v2438
    %v2440 = vpop.f32.mrb[0].mxu0
    %2441 = vmatprep.mubr.bf16.mxu0 0
    %2442 = vmatmul.mubr.bf16.gmra.mrb[0].mxu0 %v1391
    %v2443 = vpop.f32.mrb[0].mxu0
    %v2444 = vadd.f32 0.0, %v2443
    %v2445 = vpop.f32.mrb[0].mxu0
    %v2446 = vpop.f32.mrb[0].mxu0
    %v2447 = vadd.f32 0.0, %v2446
    %v2448 = vpop.f32.mrb[0].mxu0
    %2449 = vdwg.mxu0
    %v2450 = vld [vmem:[#allocation2] sm:$0xff]
    %v2451 = vld [vmem:[#allocation2 + $0x8] sm:$0xff]
    %v2452 = vadd.f32 %v1428, %v2450
    %v2453 = vadd.f32 %v1431, %v2451
    %v2454 = vadd.f32 %v1436, %v2450
    %v2455 = vadd.f32 %v1439, %v2451
    %v2456 = vadd.f32 %v1444, %v2450
    %v2457 = vadd.f32 %v1447, %v2451
    %v2458 = vadd.f32 %v1452, %v2450
    %v2459 = vadd.f32 %v1455, %v2451
    %v2460 = vadd.f32 %v1460, %v2450
    %v2461 = vadd.f32 %v1463, %v2451
    %v2462 = vadd.f32 %v1468, %v2450
    %v2463 = vadd.f32 %v1471, %v2451
    %v2464 = vadd.f32 %v1476, %v2450
    %v2465 = vadd.f32 %v1479, %v2451
    %v2466 = vadd.f32 %v1484, %v2450
    %v2467 = vadd.f32 %v1487, %v2451
    %v2468 = vadd.f32 %v1492, %v2450
    %v2469 = vadd.f32 %v1495, %v2451
    %v2470 = vadd.f32 %v1500, %v2450
    %v2471 = vadd.f32 %v1503, %v2451
    %v2472 = vadd.f32 %v1508, %v2450
    %v2473 = vadd.f32 %v1511, %v2451
    %v2474 = vadd.f32 %v1516, %v2450
    %v2475 = vadd.f32 %v1519, %v2451
    %v2476 = vadd.f32 %v1524, %v2450
    %v2477 = vadd.f32 %v1527, %v2451
    %v2478 = vadd.f32 %v1532, %v2450
    %v2479 = vadd.f32 %v1535, %v2451
    %v2480 = vadd.f32 %v1540, %v2450
    %v2481 = vadd.f32 %v1543, %v2451
    %v2482 = vadd.f32 %v1548, %v2450
    %v2483 = vadd.f32 %v1551, %v2451
    %v2484 = vadd.f32 %v1556, %v2450
    %v2485 = vadd.f32 %v1559, %v2451
    %v2486 = vadd.f32 %v1564, %v2450
    %v2487 = vadd.f32 %v1567, %v2451
    %v2488 = vadd.f32 %v1572, %v2450
    %v2489 = vadd.f32 %v1575, %v2451
    %v2490 = vadd.f32 %v1580, %v2450
    %v2491 = vadd.f32 %v1583, %v2451
    %v2492 = vadd.f32 %v1588, %v2450
    %v2493 = vadd.f32 %v1591, %v2451
    %v2494 = vadd.f32 %v1596, %v2450
    %v2495 = vadd.f32 %v1599, %v2451
    %v2496 = vadd.f32 %v1604, %v2450
    %v2497 = vadd.f32 %v1607, %v2451
    %v2498 = vadd.f32 %v1612, %v2450
    %v2499 = vadd.f32 %v1615, %v2451
    %v2500 = vadd.f32 %v1620, %v2450
    %v2501 = vadd.f32 %v1623, %v2451
    %v2502 = vadd.f32 %v1628, %v2450
    %v2503 = vadd.f32 %v1631, %v2451
    %v2504 = vadd.f32 %v1636, %v2450
    %v2505 = vadd.f32 %v1639, %v2451
    %v2506 = vadd.f32 %v1644, %v2450
    %v2507 = vadd.f32 %v1647, %v2451
    %v2508 = vadd.f32 %v1652, %v2450
    %v2509 = vadd.f32 %v1655, %v2451
    %v2510 = vadd.f32 %v1660, %v2450
    %v2511 = vadd.f32 %v1663, %v2451
    %v2512 = vadd.f32 %v1668, %v2450
    %v2513 = vadd.f32 %v1671, %v2451
    %v2514 = vadd.f32 %v1676, %v2450
    %v2515 = vadd.f32 %v1679, %v2451
    %v2516 = vadd.f32 %v1684, %v2450
    %v2517 = vadd.f32 %v1687, %v2451
    %v2518 = vadd.f32 %v1692, %v2450
    %v2519 = vadd.f32 %v1695, %v2451
    %v2520 = vadd.f32 %v1700, %v2450
    %v2521 = vadd.f32 %v1703, %v2451
    %v2522 = vadd.f32 %v1708, %v2450
    %v2523 = vadd.f32 %v1711, %v2451
    %v2524 = vadd.f32 %v1716, %v2450
    %v2525 = vadd.f32 %v1719, %v2451
    %v2526 = vadd.f32 %v1724, %v2450
    %v2527 = vadd.f32 %v1727, %v2451
    %v2528 = vadd.f32 %v1732, %v2450
    %v2529 = vadd.f32 %v1735, %v2451
    %v2530 = vadd.f32 %v1740, %v2450
    %v2531 = vadd.f32 %v1743, %v2451
    %v2532 = vadd.f32 %v1748, %v2450
    %v2533 = vadd.f32 %v1751, %v2451
    %v2534 = vadd.f32 %v1756, %v2450
    %v2535 = vadd.f32 %v1759, %v2451
    %v2536 = vadd.f32 %v1764, %v2450
    %v2537 = vadd.f32 %v1767, %v2451
    %v2538 = vadd.f32 %v1772, %v2450
    %v2539 = vadd.f32 %v1775, %v2451
    %v2540 = vadd.f32 %v1780, %v2450
    %v2541 = vadd.f32 %v1783, %v2451
    %v2542 = vadd.f32 %v1788, %v2450
    %v2543 = vadd.f32 %v1791, %v2451
    %v2544 = vadd.f32 %v1796, %v2450
    %v2545 = vadd.f32 %v1799, %v2451
    %v2546 = vadd.f32 %v1804, %v2450
    %v2547 = vadd.f32 %v1807, %v2451
    %v2548 = vadd.f32 %v1812, %v2450
    %v2549 = vadd.f32 %v1815, %v2451
    %v2550 = vadd.f32 %v1820, %v2450
    %v2551 = vadd.f32 %v1823, %v2451
    %v2552 = vadd.f32 %v1828, %v2450
    %v2553 = vadd.f32 %v1831, %v2451
    %v2554 = vadd.f32 %v1836, %v2450
    %v2555 = vadd.f32 %v1839, %v2451
    %v2556 = vadd.f32 %v1844, %v2450
    %v2557 = vadd.f32 %v1847, %v2451
    %v2558 = vadd.f32 %v1852, %v2450
    %v2559 = vadd.f32 %v1855, %v2451
    %v2560 = vadd.f32 %v1860, %v2450
    %v2561 = vadd.f32 %v1863, %v2451
    %v2562 = vadd.f32 %v1868, %v2450
    %v2563 = vadd.f32 %v1871, %v2451
    %v2564 = vadd.f32 %v1876, %v2450
    %v2565 = vadd.f32 %v1879, %v2451
    %v2566 = vadd.f32 %v1884, %v2450
    %v2567 = vadd.f32 %v1887, %v2451
    %v2568 = vadd.f32 %v1892, %v2450
    %v2569 = vadd.f32 %v1895, %v2451
    %v2570 = vadd.f32 %v1900, %v2450
    %v2571 = vadd.f32 %v1903, %v2451
    %v2572 = vadd.f32 %v1908, %v2450
    %v2573 = vadd.f32 %v1911, %v2451
    %v2574 = vadd.f32 %v1916, %v2450
    %v2575 = vadd.f32 %v1919, %v2451
    %v2576 = vadd.f32 %v1924, %v2450
    %v2577 = vadd.f32 %v1927, %v2451
    %v2578 = vadd.f32 %v1932, %v2450
    %v2579 = vadd.f32 %v1935, %v2451
    %v2580 = vadd.f32 %v1940, %v2450
    %v2581 = vadd.f32 %v1943, %v2451
    %v2582 = vadd.f32 %v1948, %v2450
    %v2583 = vadd.f32 %v1951, %v2451
    %v2584 = vadd.f32 %v1956, %v2450
    %v2585 = vadd.f32 %v1959, %v2451
    %v2586 = vadd.f32 %v1964, %v2450
    %v2587 = vadd.f32 %v1967, %v2451
    %v2588 = vadd.f32 %v1972, %v2450
    %v2589 = vadd.f32 %v1975, %v2451
    %v2590 = vadd.f32 %v1980, %v2450
    %v2591 = vadd.f32 %v1983, %v2451
    %v2592 = vadd.f32 %v1988, %v2450
    %v2593 = vadd.f32 %v1991, %v2451
    %v2594 = vadd.f32 %v1996, %v2450
    %v2595 = vadd.f32 %v1999, %v2451
    %v2596 = vadd.f32 %v2004, %v2450
    %v2597 = vadd.f32 %v2007, %v2451
    %v2598 = vadd.f32 %v2012, %v2450
    %v2599 = vadd.f32 %v2015, %v2451
    %v2600 = vadd.f32 %v2020, %v2450
    %v2601 = vadd.f32 %v2023, %v2451
    %v2602 = vadd.f32 %v2028, %v2450
    %v2603 = vadd.f32 %v2031, %v2451
    %v2604 = vadd.f32 %v2036, %v2450
    %v2605 = vadd.f32 %v2039, %v2451
    %v2606 = vadd.f32 %v2044, %v2450
    %v2607 = vadd.f32 %v2047, %v2451
    %v2608 = vadd.f32 %v2052, %v2450
    %v2609 = vadd.f32 %v2055, %v2451
    %v2610 = vadd.f32 %v2060, %v2450
    %v2611 = vadd.f32 %v2063, %v2451
    %v2612 = vadd.f32 %v2068, %v2450
    %v2613 = vadd.f32 %v2071, %v2451
    %v2614 = vadd.f32 %v2076, %v2450
    %v2615 = vadd.f32 %v2079, %v2451
    %v2616 = vadd.f32 %v2084, %v2450
    %v2617 = vadd.f32 %v2087, %v2451
    %v2618 = vadd.f32 %v2092, %v2450
    %v2619 = vadd.f32 %v2095, %v2451
    %v2620 = vadd.f32 %v2100, %v2450
    %v2621 = vadd.f32 %v2103, %v2451
    %v2622 = vadd.f32 %v2108, %v2450
    %v2623 = vadd.f32 %v2111, %v2451
    %v2624 = vadd.f32 %v2116, %v2450
    %v2625 = vadd.f32 %v2119, %v2451
    %v2626 = vadd.f32 %v2124, %v2450
    %v2627 = vadd.f32 %v2127, %v2451
    %v2628 = vadd.f32 %v2132, %v2450
    %v2629 = vadd.f32 %v2135, %v2451
    %v2630 = vadd.f32 %v2140, %v2450
    %v2631 = vadd.f32 %v2143, %v2451
    %v2632 = vadd.f32 %v2148, %v2450
    %v2633 = vadd.f32 %v2151, %v2451
    %v2634 = vadd.f32 %v2156, %v2450
    %v2635 = vadd.f32 %v2159, %v2451
    %v2636 = vadd.f32 %v2164, %v2450
    %v2637 = vadd.f32 %v2167, %v2451
    %v2638 = vadd.f32 %v2172, %v2450
    %v2639 = vadd.f32 %v2175, %v2451
    %v2640 = vadd.f32 %v2180, %v2450
    %v2641 = vadd.f32 %v2183, %v2451
    %v2642 = vadd.f32 %v2188, %v2450
    %v2643 = vadd.f32 %v2191, %v2451
    %v2644 = vadd.f32 %v2196, %v2450
    %v2645 = vadd.f32 %v2199, %v2451
    %v2646 = vadd.f32 %v2204, %v2450
    %v2647 = vadd.f32 %v2207, %v2451
    %v2648 = vadd.f32 %v2212, %v2450
    %v2649 = vadd.f32 %v2215, %v2451
    %v2650 = vadd.f32 %v2220, %v2450
    %v2651 = vadd.f32 %v2223, %v2451
    %v2652 = vadd.f32 %v2228, %v2450
    %v2653 = vadd.f32 %v2231, %v2451
    %v2654 = vadd.f32 %v2236, %v2450
    %v2655 = vadd.f32 %v2239, %v2451
    %v2656 = vadd.f32 %v2244, %v2450
    %v2657 = vadd.f32 %v2247, %v2451
    %v2658 = vadd.f32 %v2252, %v2450
    %v2659 = vadd.f32 %v2255, %v2451
    %v2660 = vadd.f32 %v2260, %v2450
    %v2661 = vadd.f32 %v2263, %v2451
    %v2662 = vadd.f32 %v2268, %v2450
    %v2663 = vadd.f32 %v2271, %v2451
    %v2664 = vadd.f32 %v2276, %v2450
    %v2665 = vadd.f32 %v2279, %v2451
    %v2666 = vadd.f32 %v2284, %v2450
    %v2667 = vadd.f32 %v2287, %v2451
    %v2668 = vadd.f32 %v2292, %v2450
    %v2669 = vadd.f32 %v2295, %v2451
    %v2670 = vadd.f32 %v2300, %v2450
    %v2671 = vadd.f32 %v2303, %v2451
    %v2672 = vadd.f32 %v2308, %v2450
    %v2673 = vadd.f32 %v2311, %v2451
    %v2674 = vadd.f32 %v2316, %v2450
    %v2675 = vadd.f32 %v2319, %v2451
    %v2676 = vadd.f32 %v2324, %v2450
    %v2677 = vadd.f32 %v2327, %v2451
    %v2678 = vadd.f32 %v2332, %v2450
    %v2679 = vadd.f32 %v2335, %v2451
    %v2680 = vadd.f32 %v2340, %v2450
    %v2681 = vadd.f32 %v2343, %v2451
    %v2682 = vadd.f32 %v2348, %v2450
    %v2683 = vadd.f32 %v2351, %v2451
    %v2684 = vadd.f32 %v2356, %v2450
    %v2685 = vadd.f32 %v2359, %v2451
    %v2686 = vadd.f32 %v2364, %v2450
    %v2687 = vadd.f32 %v2367, %v2451
    %v2688 = vadd.f32 %v2372, %v2450
    %v2689 = vadd.f32 %v2375, %v2451
    %v2690 = vadd.f32 %v2380, %v2450
    %v2691 = vadd.f32 %v2383, %v2451
    %v2692 = vadd.f32 %v2388, %v2450
    %v2693 = vadd.f32 %v2391, %v2451
    %v2694 = vadd.f32 %v2396, %v2450
    %v2695 = vadd.f32 %v2399, %v2451
    %v2696 = vadd.f32 %v2404, %v2450
    %v2697 = vadd.f32 %v2407, %v2451
    %v2698 = vadd.f32 %v2412, %v2450
    %v2699 = vadd.f32 %v2415, %v2451
    %v2700 = vadd.f32 %v2420, %v2450
    %v2701 = vadd.f32 %v2423, %v2451
    %v2702 = vadd.f32 %v2428, %v2450
    %v2703 = vadd.f32 %v2431, %v2451
    %v2704 = vadd.f32 %v2436, %v2450
    %v2705 = vadd.f32 %v2439, %v2451
    %v2706 = vadd.f32 %v2444, %v2450
    %v2707 = vadd.f32 %v2447, %v2451
    %v2708 = vtanh.pop %v2452
    %v2709 = vtanh.pop %v2453
    %v2710 = vtanh.pop %v2454
    %v2711 = vtanh.pop %v2455
    %v2712 = vtanh.pop %v2456
    %v2713 = vtanh.pop %v2457
    %v2714 = vtanh.pop %v2458
    %v2715 = vtanh.pop %v2459
    %v2716 = vtanh.pop %v2460
    %v2717 = vtanh.pop %v2461
    %v2718 = vtanh.pop %v2462
    %v2719 = vtanh.pop %v2463
    %v2720 = vtanh.pop %v2464
    %v2721 = vtanh.pop %v2465
    %v2722 = vtanh.pop %v2466
    %v2723 = vtanh.pop %v2467
    %v2724 = vtanh.pop %v2468
    %v2725 = vtanh.pop %v2469
    %v2726 = vtanh.pop %v2470
    %v2727 = vtanh.pop %v2471
    %v2728 = vtanh.pop %v2472
    %v2729 = vtanh.pop %v2473
    %v2730 = vtanh.pop %v2474
    %v2731 = vtanh.pop %v2475
    %v2732 = vtanh.pop %v2476
    %v2733 = vtanh.pop %v2477
    %v2734 = vtanh.pop %v2478
    %v2735 = vtanh.pop %v2479
    %v2736 = vtanh.pop %v2480
    %v2737 = vtanh.pop %v2481
    %v2738 = vtanh.pop %v2482
    %v2739 = vtanh.pop %v2483
    %v2740 = vtanh.pop %v2484
    %v2741 = vtanh.pop %v2485
    %v2742 = vtanh.pop %v2486
    %v2743 = vtanh.pop %v2487
    %v2744 = vtanh.pop %v2488
    %v2745 = vtanh.pop %v2489
    %v2746 = vtanh.pop %v2490
    %v2747 = vtanh.pop %v2491
    %v2748 = vtanh.pop %v2492
    %v2749 = vtanh.pop %v2493
    %v2750 = vtanh.pop %v2494
    %v2751 = vtanh.pop %v2495
    %v2752 = vtanh.pop %v2496
    %v2753 = vtanh.pop %v2497
    %v2754 = vtanh.pop %v2498
    %v2755 = vtanh.pop %v2499
    %v2756 = vtanh.pop %v2500
    %v2757 = vtanh.pop %v2501
    %v2758 = vtanh.pop %v2502
    %v2759 = vtanh.pop %v2503
    %v2760 = vtanh.pop %v2504
    %v2761 = vtanh.pop %v2505
    %v2762 = vtanh.pop %v2506
    %v2763 = vtanh.pop %v2507
    %v2764 = vtanh.pop %v2508
    %v2765 = vtanh.pop %v2509
    %v2766 = vtanh.pop %v2510
    %v2767 = vtanh.pop %v2511
    %v2768 = vtanh.pop %v2512
    %v2769 = vtanh.pop %v2513
    %v2770 = vtanh.pop %v2514
    %v2771 = vtanh.pop %v2515
    %v2772 = vtanh.pop %v2516
    %v2773 = vtanh.pop %v2517
    %v2774 = vtanh.pop %v2518
    %v2775 = vtanh.pop %v2519
    %v2776 = vtanh.pop %v2520
    %v2777 = vtanh.pop %v2521
    %v2778 = vtanh.pop %v2522
    %v2779 = vtanh.pop %v2523
    %v2780 = vtanh.pop %v2524
    %v2781 = vtanh.pop %v2525
    %v2782 = vtanh.pop %v2526
    %v2783 = vtanh.pop %v2527
    %v2784 = vtanh.pop %v2528
    %v2785 = vtanh.pop %v2529
    %v2786 = vtanh.pop %v2530
    %v2787 = vtanh.pop %v2531
    %v2788 = vtanh.pop %v2532
    %v2789 = vtanh.pop %v2533
    %v2790 = vtanh.pop %v2534
    %v2791 = vtanh.pop %v2535
    %v2792 = vtanh.pop %v2536
    %v2793 = vtanh.pop %v2537
    %v2794 = vtanh.pop %v2538
    %v2795 = vtanh.pop %v2539
    %v2796 = vtanh.pop %v2540
    %v2797 = vtanh.pop %v2541
    %v2798 = vtanh.pop %v2542
    %v2799 = vtanh.pop %v2543
    %v2800 = vtanh.pop %v2544
    %v2801 = vtanh.pop %v2545
    %v2802 = vtanh.pop %v2546
    %v2803 = vtanh.pop %v2547
    %v2804 = vtanh.pop %v2548
    %v2805 = vtanh.pop %v2549
    %v2806 = vtanh.pop %v2550
    %v2807 = vtanh.pop %v2551
    %v2808 = vtanh.pop %v2552
    %v2809 = vtanh.pop %v2553
    %v2810 = vtanh.pop %v2554
    %v2811 = vtanh.pop %v2555
    %v2812 = vtanh.pop %v2556
    %v2813 = vtanh.pop %v2557
    %v2814 = vtanh.pop %v2558
    %v2815 = vtanh.pop %v2559
    %v2816 = vtanh.pop %v2560
    %v2817 = vtanh.pop %v2561
    %v2818 = vtanh.pop %v2562
    %v2819 = vtanh.pop %v2563
    %v2820 = vtanh.pop %v2564
    %v2821 = vtanh.pop %v2565
    %v2822 = vtanh.pop %v2566
    %v2823 = vtanh.pop %v2567
    %v2824 = vtanh.pop %v2568
    %v2825 = vtanh.pop %v2569
    %v2826 = vtanh.pop %v2570
    %v2827 = vtanh.pop %v2571
    %v2828 = vtanh.pop %v2572
    %v2829 = vtanh.pop %v2573
    %v2830 = vtanh.pop %v2574
    %v2831 = vtanh.pop %v2575
    %v2832 = vtanh.pop %v2576
    %v2833 = vtanh.pop %v2577
    %v2834 = vtanh.pop %v2578
    %v2835 = vtanh.pop %v2579
    %v2836 = vtanh.pop %v2580
    %v2837 = vtanh.pop %v2581
    %v2838 = vtanh.pop %v2582
    %v2839 = vtanh.pop %v2583
    %v2840 = vtanh.pop %v2584
    %v2841 = vtanh.pop %v2585
    %v2842 = vtanh.pop %v2586
    %v2843 = vtanh.pop %v2587
    %v2844 = vtanh.pop %v2588
    %v2845 = vtanh.pop %v2589
    %v2846 = vtanh.pop %v2590
    %v2847 = vtanh.pop %v2591
    %v2848 = vtanh.pop %v2592
    %v2849 = vtanh.pop %v2593
    %v2850 = vtanh.pop %v2594
    %v2851 = vtanh.pop %v2595
    %v2852 = vtanh.pop %v2596
    %v2853 = vtanh.pop %v2597
    %v2854 = vtanh.pop %v2598
    %v2855 = vtanh.pop %v2599
    %v2856 = vtanh.pop %v2600
    %v2857 = vtanh.pop %v2601
    %v2858 = vtanh.pop %v2602
    %v2859 = vtanh.pop %v2603
    %v2860 = vtanh.pop %v2604
    %v2861 = vtanh.pop %v2605
    %v2862 = vtanh.pop %v2606
    %v2863 = vtanh.pop %v2607
    %v2864 = vtanh.pop %v2608
    %v2865 = vtanh.pop %v2609
    %v2866 = vtanh.pop %v2610
    %v2867 = vtanh.pop %v2611
    %v2868 = vtanh.pop %v2612
    %v2869 = vtanh.pop %v2613
    %v2870 = vtanh.pop %v2614
    %v2871 = vtanh.pop %v2615
    %v2872 = vtanh.pop %v2616
    %v2873 = vtanh.pop %v2617
    %v2874 = vtanh.pop %v2618
    %v2875 = vtanh.pop %v2619
    %v2876 = vtanh.pop %v2620
    %v2877 = vtanh.pop %v2621
    %v2878 = vtanh.pop %v2622
    %v2879 = vtanh.pop %v2623
    %v2880 = vtanh.pop %v2624
    %v2881 = vtanh.pop %v2625
    %v2882 = vtanh.pop %v2626
    %v2883 = vtanh.pop %v2627
    %v2884 = vtanh.pop %v2628
    %v2885 = vtanh.pop %v2629
    %v2886 = vtanh.pop %v2630
    %v2887 = vtanh.pop %v2631
    %v2888 = vtanh.pop %v2632
    %v2889 = vtanh.pop %v2633
    %v2890 = vtanh.pop %v2634
    %v2891 = vtanh.pop %v2635
    %v2892 = vtanh.pop %v2636
    %v2893 = vtanh.pop %v2637
    %v2894 = vtanh.pop %v2638
    %v2895 = vtanh.pop %v2639
    %v2896 = vtanh.pop %v2640
    %v2897 = vtanh.pop %v2641
    %v2898 = vtanh.pop %v2642
    %v2899 = vtanh.pop %v2643
    %v2900 = vtanh.pop %v2644
    %v2901 = vtanh.pop %v2645
    %v2902 = vtanh.pop %v2646
    %v2903 = vtanh.pop %v2647
    %v2904 = vtanh.pop %v2648
    %v2905 = vtanh.pop %v2649
    %v2906 = vtanh.pop %v2650
    %v2907 = vtanh.pop %v2651
    %v2908 = vtanh.pop %v2652
    %v2909 = vtanh.pop %v2653
    %v2910 = vtanh.pop %v2654
    %v2911 = vtanh.pop %v2655
    %v2912 = vtanh.pop %v2656
    %v2913 = vtanh.pop %v2657
    %v2914 = vtanh.pop %v2658
    %v2915 = vtanh.pop %v2659
    %v2916 = vtanh.pop %v2660
    %v2917 = vtanh.pop %v2661
    %v2918 = vtanh.pop %v2662
    %v2919 = vtanh.pop %v2663
    %v2920 = vtanh.pop %v2664
    %v2921 = vtanh.pop %v2665
    %v2922 = vtanh.pop %v2666
    %v2923 = vtanh.pop %v2667
    %v2924 = vtanh.pop %v2668
    %v2925 = vtanh.pop %v2669
    %v2926 = vtanh.pop %v2670
    %v2927 = vtanh.pop %v2671
    %v2928 = vtanh.pop %v2672
    %v2929 = vtanh.pop %v2673
    %v2930 = vtanh.pop %v2674
    %v2931 = vtanh.pop %v2675
    %v2932 = vtanh.pop %v2676
    %v2933 = vtanh.pop %v2677
    %v2934 = vtanh.pop %v2678
    %v2935 = vtanh.pop %v2679
    %v2936 = vtanh.pop %v2680
    %v2937 = vtanh.pop %v2681
    %v2938 = vtanh.pop %v2682
    %v2939 = vtanh.pop %v2683
    %v2940 = vtanh.pop %v2684
    %v2941 = vtanh.pop %v2685
    %v2942 = vtanh.pop %v2686
    %v2943 = vtanh.pop %v2687
    %v2944 = vtanh.pop %v2688
    %v2945 = vtanh.pop %v2689
    %v2946 = vtanh.pop %v2690
    %v2947 = vtanh.pop %v2691
    %v2948 = vtanh.pop %v2692
    %v2949 = vtanh.pop %v2693
    %v2950 = vtanh.pop %v2694
    %v2951 = vtanh.pop %v2695
    %v2952 = vtanh.pop %v2696
    %v2953 = vtanh.pop %v2697
    %v2954 = vtanh.pop %v2698
    %v2955 = vtanh.pop %v2699
    %v2956 = vtanh.pop %v2700
    %v2957 = vtanh.pop %v2701
    %v2958 = vtanh.pop %v2702
    %v2959 = vtanh.pop %v2703
    %v2960 = vtanh.pop %v2704
    %v2961 = vtanh.pop %v2705
    %v2962 = vtanh.pop %v2706
    %v2963 = vtanh.pop %v2707
    %v2964 = vld [vmem:[%s4] sm:$0x1]
    %v2965 = vunpack.c.l.bf16 %v2964
    %v2966 = vlaneseq
    %v2967 = vshrl.u32 %v2966, 7
    %v2968 = vsub.s32 0, %v2967
    %v2969 = vrot.slane %v2965, %v2968
    %v2970 = vmul.f32 %v2708, %v2969
    %v2971 = vmul.f32 %v2709, %v2969
    %v2972 = vmul.f32 %v2710, %v2969
    %v2973 = vmul.f32 %v2711, %v2969
    %v2974 = vmul.f32 %v2712, %v2969
    %v2975 = vmul.f32 %v2713, %v2969
    %v2976 = vmul.f32 %v2714, %v2969
    %v2977 = vmul.f32 %v2715, %v2969
    %v2978 = vmul.f32 %v2716, %v2969
    %v2979 = vmul.f32 %v2717, %v2969
    %v2980 = vmul.f32 %v2718, %v2969
    %v2981 = vmul.f32 %v2719, %v2969
    %v2982 = vmul.f32 %v2720, %v2969
    %v2983 = vmul.f32 %v2721, %v2969
    %v2984 = vmul.f32 %v2722, %v2969
    %v2985 = vmul.f32 %v2723, %v2969
    %v2986 = vmul.f32 %v2724, %v2969
    %v2987 = vmul.f32 %v2725, %v2969
    %v2988 = vmul.f32 %v2726, %v2969
    %v2989 = vmul.f32 %v2727, %v2969
    %v2990 = vmul.f32 %v2728, %v2969
    %v2991 = vmul.f32 %v2729, %v2969
    %v2992 = vmul.f32 %v2730, %v2969
    %v2993 = vmul.f32 %v2731, %v2969
    %v2994 = vmul.f32 %v2732, %v2969
    %v2995 = vmul.f32 %v2733, %v2969
    %v2996 = vmul.f32 %v2734, %v2969
    %v2997 = vmul.f32 %v2735, %v2969
    %v2998 = vmul.f32 %v2736, %v2969
    %v2999 = vmul.f32 %v2737, %v2969
    %v3000 = vmul.f32 %v2738, %v2969
    %v3001 = vmul.f32 %v2739, %v2969
    %v3002 = vmul.f32 %v2740, %v2969
    %v3003 = vmul.f32 %v2741, %v2969
    %v3004 = vmul.f32 %v2742, %v2969
    %v3005 = vmul.f32 %v2743, %v2969
    %v3006 = vmul.f32 %v2744, %v2969
    %v3007 = vmul.f32 %v2745, %v2969
    %v3008 = vmul.f32 %v2746, %v2969
    %v3009 = vmul.f32 %v2747, %v2969
    %v3010 = vmul.f32 %v2748, %v2969
    %v3011 = vmul.f32 %v2749, %v2969
    %v3012 = vmul.f32 %v2750, %v2969
    %v3013 = vmul.f32 %v2751, %v2969
    %v3014 = vmul.f32 %v2752, %v2969
    %v3015 = vmul.f32 %v2753, %v2969
    %v3016 = vmul.f32 %v2754, %v2969
    %v3017 = vmul.f32 %v2755, %v2969
    %v3018 = vmul.f32 %v2756, %v2969
    %v3019 = vmul.f32 %v2757, %v2969
    %v3020 = vmul.f32 %v2758, %v2969
    %v3021 = vmul.f32 %v2759, %v2969
    %v3022 = vmul.f32 %v2760, %v2969
    %v3023 = vmul.f32 %v2761, %v2969
    %v3024 = vmul.f32 %v2762, %v2969
    %v3025 = vmul.f32 %v2763, %v2969
    %v3026 = vmul.f32 %v2764, %v2969
    %v3027 = vmul.f32 %v2765, %v2969
    %v3028 = vmul.f32 %v2766, %v2969
    %v3029 = vmul.f32 %v2767, %v2969
    %v3030 = vmul.f32 %v2768, %v2969
    %v3031 = vmul.f32 %v2769, %v2969
    %v3032 = vmul.f32 %v2770, %v2969
    %v3033 = vmul.f32 %v2771, %v2969
    %v3034 = vmul.f32 %v2772, %v2969
    %v3035 = vmul.f32 %v2773, %v2969
    %v3036 = vmul.f32 %v2774, %v2969
    %v3037 = vmul.f32 %v2775, %v2969
    %v3038 = vmul.f32 %v2776, %v2969
    %v3039 = vmul.f32 %v2777, %v2969
    %v3040 = vmul.f32 %v2778, %v2969
    %v3041 = vmul.f32 %v2779, %v2969
    %v3042 = vmul.f32 %v2780, %v2969
    %v3043 = vmul.f32 %v2781, %v2969
    %v3044 = vmul.f32 %v2782, %v2969
    %v3045 = vmul.f32 %v2783, %v2969
    %v3046 = vmul.f32 %v2784, %v2969
    %v3047 = vmul.f32 %v2785, %v2969
    %v3048 = vmul.f32 %v2786, %v2969
    %v3049 = vmul.f32 %v2787, %v2969
    %v3050 = vmul.f32 %v2788, %v2969
    %v3051 = vmul.f32 %v2789, %v2969
    %v3052 = vmul.f32 %v2790, %v2969
    %v3053 = vmul.f32 %v2791, %v2969
    %v3054 = vmul.f32 %v2792, %v2969
    %v3055 = vmul.f32 %v2793, %v2969
    %v3056 = vmul.f32 %v2794, %v2969
    %v3057 = vmul.f32 %v2795, %v2969
    %v3058 = vmul.f32 %v2796, %v2969
    %v3059 = vmul.f32 %v2797, %v2969
    %v3060 = vmul.f32 %v2798, %v2969
    %v3061 = vmul.f32 %v2799, %v2969
    %v3062 = vmul.f32 %v2800, %v2969
    %v3063 = vmul.f32 %v2801, %v2969
    %v3064 = vmul.f32 %v2802, %v2969
    %v3065 = vmul.f32 %v2803, %v2969
    %v3066 = vmul.f32 %v2804, %v2969
    %v3067 = vmul.f32 %v2805, %v2969
    %v3068 = vmul.f32 %v2806, %v2969
    %v3069 = vmul.f32 %v2807, %v2969
    %v3070 = vmul.f32 %v2808, %v2969
    %v3071 = vmul.f32 %v2809, %v2969
    %v3072 = vmul.f32 %v2810, %v2969
    %v3073 = vmul.f32 %v2811, %v2969
    %v3074 = vmul.f32 %v2812, %v2969
    %v3075 = vmul.f32 %v2813, %v2969
    %v3076 = vmul.f32 %v2814, %v2969
    %v3077 = vmul.f32 %v2815, %v2969
    %v3078 = vmul.f32 %v2816, %v2969
    %v3079 = vmul.f32 %v2817, %v2969
    %v3080 = vmul.f32 %v2818, %v2969
    %v3081 = vmul.f32 %v2819, %v2969
    %v3082 = vmul.f32 %v2820, %v2969
    %v3083 = vmul.f32 %v2821, %v2969
    %v3084 = vmul.f32 %v2822, %v2969
    %v3085 = vmul.f32 %v2823, %v2969
    %v3086 = vmul.f32 %v2824, %v2969
    %v3087 = vmul.f32 %v2825, %v2969
    %v3088 = vmul.f32 %v2826, %v2969
    %v3089 = vmul.f32 %v2827, %v2969
    %v3090 = vmul.f32 %v2828, %v2969
    %v3091 = vmul.f32 %v2829, %v2969
    %v3092 = vmul.f32 %v2830, %v2969
    %v3093 = vmul.f32 %v2831, %v2969
    %v3094 = vmul.f32 %v2832, %v2969
    %v3095 = vmul.f32 %v2833, %v2969
    %v3096 = vmul.f32 %v2834, %v2969
    %v3097 = vmul.f32 %v2835, %v2969
    %v3098 = vmul.f32 %v2836, %v2969
    %v3099 = vmul.f32 %v2837, %v2969
    %v3100 = vmul.f32 %v2838, %v2969
    %v3101 = vmul.f32 %v2839, %v2969
    %v3102 = vmul.f32 %v2840, %v2969
    %v3103 = vmul.f32 %v2841, %v2969
    %v3104 = vmul.f32 %v2842, %v2969
    %v3105 = vmul.f32 %v2843, %v2969
    %v3106 = vmul.f32 %v2844, %v2969
    %v3107 = vmul.f32 %v2845, %v2969
    %v3108 = vmul.f32 %v2846, %v2969
    %v3109 = vmul.f32 %v2847, %v2969
    %v3110 = vmul.f32 %v2848, %v2969
    %v3111 = vmul.f32 %v2849, %v2969
    %v3112 = vmul.f32 %v2850, %v2969
    %v3113 = vmul.f32 %v2851, %v2969
    %v3114 = vmul.f32 %v2852, %v2969
    %v3115 = vmul.f32 %v2853, %v2969
    %v3116 = vmul.f32 %v2854, %v2969
    %v3117 = vmul.f32 %v2855, %v2969
    %v3118 = vmul.f32 %v2856, %v2969
    %v3119 = vmul.f32 %v2857, %v2969
    %v3120 = vmul.f32 %v2858, %v2969
    %v3121 = vmul.f32 %v2859, %v2969
    %v3122 = vmul.f32 %v2860, %v2969
    %v3123 = vmul.f32 %v2861, %v2969
    %v3124 = vmul.f32 %v2862, %v2969
    %v3125 = vmul.f32 %v2863, %v2969
    %v3126 = vmul.f32 %v2864, %v2969
    %v3127 = vmul.f32 %v2865, %v2969
    %v3128 = vmul.f32 %v2866, %v2969
    %v3129 = vmul.f32 %v2867, %v2969
    %v3130 = vmul.f32 %v2868, %v2969
    %v3131 = vmul.f32 %v2869, %v2969
    %v3132 = vmul.f32 %v2870, %v2969
    %v3133 = vmul.f32 %v2871, %v2969
    %v3134 = vmul.f32 %v2872, %v2969
    %v3135 = vmul.f32 %v2873, %v2969
    %v3136 = vmul.f32 %v2874, %v2969
    %v3137 = vmul.f32 %v2875, %v2969
    %v3138 = vmul.f32 %v2876, %v2969
    %v3139 = vmul.f32 %v2877, %v2969
    %v3140 = vmul.f32 %v2878, %v2969
    %v3141 = vmul.f32 %v2879, %v2969
    %v3142 = vmul.f32 %v2880, %v2969
    %v3143 = vmul.f32 %v2881, %v2969
    %v3144 = vmul.f32 %v2882, %v2969
    %v3145 = vmul.f32 %v2883, %v2969
    %v3146 = vmul.f32 %v2884, %v2969
    %v3147 = vmul.f32 %v2885, %v2969
    %v3148 = vmul.f32 %v2886, %v2969
    %v3149 = vmul.f32 %v2887, %v2969
    %v3150 = vmul.f32 %v2888, %v2969
    %v3151 = vmul.f32 %v2889, %v2969
    %v3152 = vmul.f32 %v2890, %v2969
    %v3153 = vmul.f32 %v2891, %v2969
    %v3154 = vmul.f32 %v2892, %v2969
    %v3155 = vmul.f32 %v2893, %v2969
    %v3156 = vmul.f32 %v2894, %v2969
    %v3157 = vmul.f32 %v2895, %v2969
    %v3158 = vmul.f32 %v2896, %v2969
    %v3159 = vmul.f32 %v2897, %v2969
    %v3160 = vmul.f32 %v2898, %v2969
    %v3161 = vmul.f32 %v2899, %v2969
    %v3162 = vmul.f32 %v2900, %v2969
    %v3163 = vmul.f32 %v2901, %v2969
    %v3164 = vmul.f32 %v2902, %v2969
    %v3165 = vmul.f32 %v2903, %v2969
    %v3166 = vmul.f32 %v2904, %v2969
    %v3167 = vmul.f32 %v2905, %v2969
    %v3168 = vmul.f32 %v2906, %v2969
    %v3169 = vmul.f32 %v2907, %v2969
    %v3170 = vmul.f32 %v2908, %v2969
    %v3171 = vmul.f32 %v2909, %v2969
    %v3172 = vmul.f32 %v2910, %v2969
    %v3173 = vmul.f32 %v2911, %v2969
    %v3174 = vmul.f32 %v2912, %v2969
    %v3175 = vmul.f32 %v2913, %v2969
    %v3176 = vmul.f32 %v2914, %v2969
    %v3177 = vmul.f32 %v2915, %v2969
    %v3178 = vmul.f32 %v2916, %v2969
    %v3179 = vmul.f32 %v2917, %v2969
    %v3180 = vmul.f32 %v2918, %v2969
    %v3181 = vmul.f32 %v2919, %v2969
    %v3182 = vmul.f32 %v2920, %v2969
    %v3183 = vmul.f32 %v2921, %v2969
    %v3184 = vmul.f32 %v2922, %v2969
    %v3185 = vmul.f32 %v2923, %v2969
    %v3186 = vmul.f32 %v2924, %v2969
    %v3187 = vmul.f32 %v2925, %v2969
    %v3188 = vmul.f32 %v2926, %v2969
    %v3189 = vmul.f32 %v2927, %v2969
    %v3190 = vmul.f32 %v2928, %v2969
    %v3191 = vmul.f32 %v2929, %v2969
    %v3192 = vmul.f32 %v2930, %v2969
    %v3193 = vmul.f32 %v2931, %v2969
    %v3194 = vmul.f32 %v2932, %v2969
    %v3195 = vmul.f32 %v2933, %v2969
    %v3196 = vmul.f32 %v2934, %v2969
    %v3197 = vmul.f32 %v2935, %v2969
    %v3198 = vmul.f32 %v2936, %v2969
    %v3199 = vmul.f32 %v2937, %v2969
    %v3200 = vmul.f32 %v2938, %v2969
    %v3201 = vmul.f32 %v2939, %v2969
    %v3202 = vmul.f32 %v2940, %v2969
    %v3203 = vmul.f32 %v2941, %v2969
    %v3204 = vmul.f32 %v2942, %v2969
    %v3205 = vmul.f32 %v2943, %v2969
    %v3206 = vmul.f32 %v2944, %v2969
    %v3207 = vmul.f32 %v2945, %v2969
    %v3208 = vmul.f32 %v2946, %v2969
    %v3209 = vmul.f32 %v2947, %v2969
    %v3210 = vmul.f32 %v2948, %v2969
    %v3211 = vmul.f32 %v2949, %v2969
    %v3212 = vmul.f32 %v2950, %v2969
    %v3213 = vmul.f32 %v2951, %v2969
    %v3214 = vmul.f32 %v2952, %v2969
    %v3215 = vmul.f32 %v2953, %v2969
    %v3216 = vmul.f32 %v2954, %v2969
    %v3217 = vmul.f32 %v2955, %v2969
    %v3218 = vmul.f32 %v2956, %v2969
    %v3219 = vmul.f32 %v2957, %v2969
    %v3220 = vmul.f32 %v2958, %v2969
    %v3221 = vmul.f32 %v2959, %v2969
    %v3222 = vmul.f32 %v2960, %v2969
    %v3223 = vmul.f32 %v2961, %v2969
    %v3224 = vmul.f32 %v2962, %v2969
    %v3225 = vmul.f32 %v2963, %v2969
    %v3226 = vsel %vm1008, %v2970, 0.0
    %3227 = vadd.xlane.f32.xlu0 %v3226
    %v3228 = vpop.xlane.xlu0 %3227
    %v3229 = vsel %vm1008, %v2971, 0.0
    %3230 = vadd.xlane.f32.xlu0 %v3229
    %v3231 = vpop.xlane.xlu0 %3230
    %v3232 = vsel %vm1008, %v2972, 0.0
    %3233 = vadd.xlane.f32.xlu0 %v3232
    %v3234 = vpop.xlane.xlu0 %3233
    %v3235 = vsel %vm1008, %v2973, 0.0
    %3236 = vadd.xlane.f32.xlu0 %v3235
    %v3237 = vpop.xlane.xlu0 %3236
    %v3238 = vsel %vm1008, %v2974, 0.0
    %3239 = vadd.xlane.f32.xlu0 %v3238
    %v3240 = vpop.xlane.xlu0 %3239
    %v3241 = vsel %vm1008, %v2975, 0.0
    %3242 = vadd.xlane.f32.xlu0 %v3241
    %v3243 = vpop.xlane.xlu0 %3242
    %v3244 = vsel %vm1008, %v2976, 0.0
    %3245 = vadd.xlane.f32.xlu0 %v3244
    %v3246 = vpop.xlane.xlu0 %3245
    %v3247 = vsel %vm1008, %v2977, 0.0
    %3248 = vadd.xlane.f32.xlu0 %v3247
    %v3249 = vpop.xlane.xlu0 %3248
    %v3250 = vsel %vm1008, %v2978, 0.0
    %3251 = vadd.xlane.f32.xlu0 %v3250
    %v3252 = vpop.xlane.xlu0 %3251
    %v3253 = vsel %vm1008, %v2979, 0.0
    %3254 = vadd.xlane.f32.xlu0 %v3253
    %v3255 = vpop.xlane.xlu0 %3254
    %v3256 = vsel %vm1008, %v2980, 0.0
    %3257 = vadd.xlane.f32.xlu0 %v3256
    %v3258 = vpop.xlane.xlu0 %3257
    %v3259 = vsel %vm1008, %v2981, 0.0
    %3260 = vadd.xlane.f32.xlu0 %v3259
    %v3261 = vpop.xlane.xlu0 %3260
    %v3262 = vsel %vm1008, %v2982, 0.0
    %3263 = vadd.xlane.f32.xlu0 %v3262
    %v3264 = vpop.xlane.xlu0 %3263
    %v3265 = vsel %vm1008, %v2983, 0.0
    %3266 = vadd.xlane.f32.xlu0 %v3265
    %v3267 = vpop.xlane.xlu0 %3266
    %v3268 = vsel %vm1008, %v2984, 0.0
    %3269 = vadd.xlane.f32.xlu0 %v3268
    %v3270 = vpop.xlane.xlu0 %3269
    %v3271 = vsel %vm1008, %v2985, 0.0
    %3272 = vadd.xlane.f32.xlu0 %v3271
    %v3273 = vpop.xlane.xlu0 %3272
    %v3274 = vsel %vm1008, %v2986, 0.0
    %3275 = vadd.xlane.f32.xlu0 %v3274
    %v3276 = vpop.xlane.xlu0 %3275
    %v3277 = vsel %vm1008, %v2987, 0.0
    %3278 = vadd.xlane.f32.xlu0 %v3277
    %v3279 = vpop.xlane.xlu0 %3278
    %v3280 = vsel %vm1008, %v2988, 0.0
    %3281 = vadd.xlane.f32.xlu0 %v3280
    %v3282 = vpop.xlane.xlu0 %3281
    %v3283 = vsel %vm1008, %v2989, 0.0
    %3284 = vadd.xlane.f32.xlu0 %v3283
    %v3285 = vpop.xlane.xlu0 %3284
    %v3286 = vsel %vm1008, %v2990, 0.0
    %3287 = vadd.xlane.f32.xlu0 %v3286
    %v3288 = vpop.xlane.xlu0 %3287
    %v3289 = vsel %vm1008, %v2991, 0.0
    %3290 = vadd.xlane.f32.xlu0 %v3289
    %v3291 = vpop.xlane.xlu0 %3290
    %v3292 = vsel %vm1008, %v2992, 0.0
    %3293 = vadd.xlane.f32.xlu0 %v3292
    %v3294 = vpop.xlane.xlu0 %3293
    %v3295 = vsel %vm1008, %v2993, 0.0
    %3296 = vadd.xlane.f32.xlu0 %v3295
    %v3297 = vpop.xlane.xlu0 %3296
    %v3298 = vsel %vm1008, %v2994, 0.0
    %3299 = vadd.xlane.f32.xlu0 %v3298
    %v3300 = vpop.xlane.xlu0 %3299
    %v3301 = vsel %vm1008, %v2995, 0.0
    %3302 = vadd.xlane.f32.xlu0 %v3301
    %v3303 = vpop.xlane.xlu0 %3302
    %v3304 = vsel %vm1008, %v2996, 0.0
    %3305 = vadd.xlane.f32.xlu0 %v3304
    %v3306 = vpop.xlane.xlu0 %3305
    %v3307 = vsel %vm1008, %v2997, 0.0
    %3308 = vadd.xlane.f32.xlu0 %v3307
    %v3309 = vpop.xlane.xlu0 %3308
    %v3310 = vsel %vm1008, %v2998, 0.0
    %3311 = vadd.xlane.f32.xlu0 %v3310
    %v3312 = vpop.xlane.xlu0 %3311
    %v3313 = vsel %vm1008, %v2999, 0.0
    %3314 = vadd.xlane.f32.xlu0 %v3313
    %v3315 = vpop.xlane.xlu0 %3314
    %v3316 = vsel %vm1008, %v3000, 0.0
    %3317 = vadd.xlane.f32.xlu0 %v3316
    %v3318 = vpop.xlane.xlu0 %3317
    %v3319 = vsel %vm1008, %v3001, 0.0
    %3320 = vadd.xlane.f32.xlu0 %v3319
    %v3321 = vpop.xlane.xlu0 %3320
    %v3322 = vsel %vm1008, %v3002, 0.0
    %3323 = vadd.xlane.f32.xlu0 %v3322
    %v3324 = vpop.xlane.xlu0 %3323
    %v3325 = vsel %vm1008, %v3003, 0.0
    %3326 = vadd.xlane.f32.xlu0 %v3325
    %v3327 = vpop.xlane.xlu0 %3326
    %v3328 = vsel %vm1008, %v3004, 0.0
    %3329 = vadd.xlane.f32.xlu0 %v3328
    %v3330 = vpop.xlane.xlu0 %3329
    %v3331 = vsel %vm1008, %v3005, 0.0
    %3332 = vadd.xlane.f32.xlu0 %v3331
    %v3333 = vpop.xlane.xlu0 %3332
    %v3334 = vsel %vm1008, %v3006, 0.0
    %3335 = vadd.xlane.f32.xlu0 %v3334
    %v3336 = vpop.xlane.xlu0 %3335
    %v3337 = vsel %vm1008, %v3007, 0.0
    %3338 = vadd.xlane.f32.xlu0 %v3337
    %v3339 = vpop.xlane.xlu0 %3338
    %v3340 = vsel %vm1008, %v3008, 0.0
    %3341 = vadd.xlane.f32.xlu0 %v3340
    %v3342 = vpop.xlane.xlu0 %3341
    %v3343 = vsel %vm1008, %v3009, 0.0
    %3344 = vadd.xlane.f32.xlu0 %v3343
    %v3345 = vpop.xlane.xlu0 %3344
    %v3346 = vsel %vm1008, %v3010, 0.0
    %3347 = vadd.xlane.f32.xlu0 %v3346
    %v3348 = vpop.xlane.xlu0 %3347
    %v3349 = vsel %vm1008, %v3011, 0.0
    %3350 = vadd.xlane.f32.xlu0 %v3349
    %v3351 = vpop.xlane.xlu0 %3350
    %v3352 = vsel %vm1008, %v3012, 0.0
    %3353 = vadd.xlane.f32.xlu0 %v3352
    %v3354 = vpop.xlane.xlu0 %3353
    %v3355 = vsel %vm1008, %v3013, 0.0
    %3356 = vadd.xlane.f32.xlu0 %v3355
    %v3357 = vpop.xlane.xlu0 %3356
    %v3358 = vsel %vm1008, %v3014, 0.0
    %3359 = vadd.xlane.f32.xlu0 %v3358
    %v3360 = vpop.xlane.xlu0 %3359
    %v3361 = vsel %vm1008, %v3015, 0.0
    %3362 = vadd.xlane.f32.xlu0 %v3361
    %v3363 = vpop.xlane.xlu0 %3362
    %v3364 = vsel %vm1008, %v3016, 0.0
    %3365 = vadd.xlane.f32.xlu0 %v3364
    %v3366 = vpop.xlane.xlu0 %3365
    %v3367 = vsel %vm1008, %v3017, 0.0
    %3368 = vadd.xlane.f32.xlu0 %v3367
    %v3369 = vpop.xlane.xlu0 %3368
    %v3370 = vsel %vm1008, %v3018, 0.0
    %3371 = vadd.xlane.f32.xlu0 %v3370
    %v3372 = vpop.xlane.xlu0 %3371
    %v3373 = vsel %vm1008, %v3019, 0.0
    %3374 = vadd.xlane.f32.xlu0 %v3373
    %v3375 = vpop.xlane.xlu0 %3374
    %v3376 = vsel %vm1008, %v3020, 0.0
    %3377 = vadd.xlane.f32.xlu0 %v3376
    %v3378 = vpop.xlane.xlu0 %3377
    %v3379 = vsel %vm1008, %v3021, 0.0
    %3380 = vadd.xlane.f32.xlu0 %v3379
    %v3381 = vpop.xlane.xlu0 %3380
    %v3382 = vsel %vm1008, %v3022, 0.0
    %3383 = vadd.xlane.f32.xlu0 %v3382
    %v3384 = vpop.xlane.xlu0 %3383
    %v3385 = vsel %vm1008, %v3023, 0.0
    %3386 = vadd.xlane.f32.xlu0 %v3385
    %v3387 = vpop.xlane.xlu0 %3386
    %v3388 = vsel %vm1008, %v3024, 0.0
    %3389 = vadd.xlane.f32.xlu0 %v3388
    %v3390 = vpop.xlane.xlu0 %3389
    %v3391 = vsel %vm1008, %v3025, 0.0
    %3392 = vadd.xlane.f32.xlu0 %v3391
    %v3393 = vpop.xlane.xlu0 %3392
    %v3394 = vsel %vm1008, %v3026, 0.0
    %3395 = vadd.xlane.f32.xlu0 %v3394
    %v3396 = vpop.xlane.xlu0 %3395
    %v3397 = vsel %vm1008, %v3027, 0.0
    %3398 = vadd.xlane.f32.xlu0 %v3397
    %v3399 = vpop.xlane.xlu0 %3398
    %v3400 = vsel %vm1008, %v3028, 0.0
    %3401 = vadd.xlane.f32.xlu0 %v3400
    %v3402 = vpop.xlane.xlu0 %3401
    %v3403 = vsel %vm1008, %v3029, 0.0
    %3404 = vadd.xlane.f32.xlu0 %v3403
    %v3405 = vpop.xlane.xlu0 %3404
    %v3406 = vsel %vm1008, %v3030, 0.0
    %3407 = vadd.xlane.f32.xlu0 %v3406
    %v3408 = vpop.xlane.xlu0 %3407
    %v3409 = vsel %vm1008, %v3031, 0.0
    %3410 = vadd.xlane.f32.xlu0 %v3409
    %v3411 = vpop.xlane.xlu0 %3410
    %v3412 = vsel %vm1008, %v3032, 0.0
    %3413 = vadd.xlane.f32.xlu0 %v3412
    %v3414 = vpop.xlane.xlu0 %3413
    %v3415 = vsel %vm1008, %v3033, 0.0
    %3416 = vadd.xlane.f32.xlu0 %v3415
    %v3417 = vpop.xlane.xlu0 %3416
    %v3418 = vsel %vm1008, %v3034, 0.0
    %3419 = vadd.xlane.f32.xlu0 %v3418
    %v3420 = vpop.xlane.xlu0 %3419
    %v3421 = vsel %vm1008, %v3035, 0.0
    %3422 = vadd.xlane.f32.xlu0 %v3421
    %v3423 = vpop.xlane.xlu0 %3422
    %v3424 = vsel %vm1008, %v3036, 0.0
    %3425 = vadd.xlane.f32.xlu0 %v3424
    %v3426 = vpop.xlane.xlu0 %3425
    %v3427 = vsel %vm1008, %v3037, 0.0
    %3428 = vadd.xlane.f32.xlu0 %v3427
    %v3429 = vpop.xlane.xlu0 %3428
    %v3430 = vsel %vm1008, %v3038, 0.0
    %3431 = vadd.xlane.f32.xlu0 %v3430
    %v3432 = vpop.xlane.xlu0 %3431
    %v3433 = vsel %vm1008, %v3039, 0.0
    %3434 = vadd.xlane.f32.xlu0 %v3433
    %v3435 = vpop.xlane.xlu0 %3434
    %v3436 = vsel %vm1008, %v3040, 0.0
    %3437 = vadd.xlane.f32.xlu0 %v3436
    %v3438 = vpop.xlane.xlu0 %3437
    %v3439 = vsel %vm1008, %v3041, 0.0
    %3440 = vadd.xlane.f32.xlu0 %v3439
    %v3441 = vpop.xlane.xlu0 %3440
    %v3442 = vsel %vm1008, %v3042, 0.0
    %3443 = vadd.xlane.f32.xlu0 %v3442
    %v3444 = vpop.xlane.xlu0 %3443
    %v3445 = vsel %vm1008, %v3043, 0.0
    %3446 = vadd.xlane.f32.xlu0 %v3445
    %v3447 = vpop.xlane.xlu0 %3446
    %v3448 = vsel %vm1008, %v3044, 0.0
    %3449 = vadd.xlane.f32.xlu0 %v3448
    %v3450 = vpop.xlane.xlu0 %3449
    %v3451 = vsel %vm1008, %v3045, 0.0
    %3452 = vadd.xlane.f32.xlu0 %v3451
    %v3453 = vpop.xlane.xlu0 %3452
    %v3454 = vsel %vm1008, %v3046, 0.0
    %3455 = vadd.xlane.f32.xlu0 %v3454
    %v3456 = vpop.xlane.xlu0 %3455
    %v3457 = vsel %vm1008, %v3047, 0.0
    %3458 = vadd.xlane.f32.xlu0 %v3457
    %v3459 = vpop.xlane.xlu0 %3458
    %v3460 = vsel %vm1008, %v3048, 0.0
    %3461 = vadd.xlane.f32.xlu0 %v3460
    %v3462 = vpop.xlane.xlu0 %3461
    %v3463 = vsel %vm1008, %v3049, 0.0
    %3464 = vadd.xlane.f32.xlu0 %v3463
    %v3465 = vpop.xlane.xlu0 %3464
    %v3466 = vsel %vm1008, %v3050, 0.0
    %3467 = vadd.xlane.f32.xlu0 %v3466
    %v3468 = vpop.xlane.xlu0 %3467
    %v3469 = vsel %vm1008, %v3051, 0.0
    %3470 = vadd.xlane.f32.xlu0 %v3469
    %v3471 = vpop.xlane.xlu0 %3470
    %v3472 = vsel %vm1008, %v3052, 0.0
    %3473 = vadd.xlane.f32.xlu0 %v3472
    %v3474 = vpop.xlane.xlu0 %3473
    %v3475 = vsel %vm1008, %v3053, 0.0
    %3476 = vadd.xlane.f32.xlu0 %v3475
    %v3477 = vpop.xlane.xlu0 %3476
    %v3478 = vsel %vm1008, %v3054, 0.0
    %3479 = vadd.xlane.f32.xlu0 %v3478
    %v3480 = vpop.xlane.xlu0 %3479
    %v3481 = vsel %vm1008, %v3055, 0.0
    %3482 = vadd.xlane.f32.xlu0 %v3481
    %v3483 = vpop.xlane.xlu0 %3482
    %v3484 = vsel %vm1008, %v3056, 0.0
    %3485 = vadd.xlane.f32.xlu0 %v3484
    %v3486 = vpop.xlane.xlu0 %3485
    %v3487 = vsel %vm1008, %v3057, 0.0
    %3488 = vadd.xlane.f32.xlu0 %v3487
    %v3489 = vpop.xlane.xlu0 %3488
    %v3490 = vsel %vm1008, %v3058, 0.0
    %3491 = vadd.xlane.f32.xlu0 %v3490
    %v3492 = vpop.xlane.xlu0 %3491
    %v3493 = vsel %vm1008, %v3059, 0.0
    %3494 = vadd.xlane.f32.xlu0 %v3493
    %v3495 = vpop.xlane.xlu0 %3494
    %v3496 = vsel %vm1008, %v3060, 0.0
    %3497 = vadd.xlane.f32.xlu0 %v3496
    %v3498 = vpop.xlane.xlu0 %3497
    %v3499 = vsel %vm1008, %v3061, 0.0
    %3500 = vadd.xlane.f32.xlu0 %v3499
    %v3501 = vpop.xlane.xlu0 %3500
    %v3502 = vsel %vm1008, %v3062, 0.0
    %3503 = vadd.xlane.f32.xlu0 %v3502
    %v3504 = vpop.xlane.xlu0 %3503
    %v3505 = vsel %vm1008, %v3063, 0.0
    %3506 = vadd.xlane.f32.xlu0 %v3505
    %v3507 = vpop.xlane.xlu0 %3506
    %v3508 = vsel %vm1008, %v3064, 0.0
    %3509 = vadd.xlane.f32.xlu0 %v3508
    %v3510 = vpop.xlane.xlu0 %3509
    %v3511 = vsel %vm1008, %v3065, 0.0
    %3512 = vadd.xlane.f32.xlu0 %v3511
    %v3513 = vpop.xlane.xlu0 %3512
    %v3514 = vsel %vm1008, %v3066, 0.0
    %3515 = vadd.xlane.f32.xlu0 %v3514
    %v3516 = vpop.xlane.xlu0 %3515
    %v3517 = vsel %vm1008, %v3067, 0.0
    %3518 = vadd.xlane.f32.xlu0 %v3517
    %v3519 = vpop.xlane.xlu0 %3518
    %v3520 = vsel %vm1008, %v3068, 0.0
    %3521 = vadd.xlane.f32.xlu0 %v3520
    %v3522 = vpop.xlane.xlu0 %3521
    %v3523 = vsel %vm1008, %v3069, 0.0
    %3524 = vadd.xlane.f32.xlu0 %v3523
    %v3525 = vpop.xlane.xlu0 %3524
    %v3526 = vsel %vm1008, %v3070, 0.0
    %3527 = vadd.xlane.f32.xlu0 %v3526
    %v3528 = vpop.xlane.xlu0 %3527
    %v3529 = vsel %vm1008, %v3071, 0.0
    %3530 = vadd.xlane.f32.xlu0 %v3529
    %v3531 = vpop.xlane.xlu0 %3530
    %v3532 = vsel %vm1008, %v3072, 0.0
    %3533 = vadd.xlane.f32.xlu0 %v3532
    %v3534 = vpop.xlane.xlu0 %3533
    %v3535 = vsel %vm1008, %v3073, 0.0
    %3536 = vadd.xlane.f32.xlu0 %v3535
    %v3537 = vpop.xlane.xlu0 %3536
    %v3538 = vsel %vm1008, %v3074, 0.0
    %3539 = vadd.xlane.f32.xlu0 %v3538
    %v3540 = vpop.xlane.xlu0 %3539
    %v3541 = vsel %vm1008, %v3075, 0.0
    %3542 = vadd.xlane.f32.xlu0 %v3541
    %v3543 = vpop.xlane.xlu0 %3542
    %v3544 = vsel %vm1008, %v3076, 0.0
    %3545 = vadd.xlane.f32.xlu0 %v3544
    %v3546 = vpop.xlane.xlu0 %3545
    %v3547 = vsel %vm1008, %v3077, 0.0
    %3548 = vadd.xlane.f32.xlu0 %v3547
    %v3549 = vpop.xlane.xlu0 %3548
    %v3550 = vsel %vm1008, %v3078, 0.0
    %3551 = vadd.xlane.f32.xlu0 %v3550
    %v3552 = vpop.xlane.xlu0 %3551
    %v3553 = vsel %vm1008, %v3079, 0.0
    %3554 = vadd.xlane.f32.xlu0 %v3553
    %v3555 = vpop.xlane.xlu0 %3554
    %v3556 = vsel %vm1008, %v3080, 0.0
    %3557 = vadd.xlane.f32.xlu0 %v3556
    %v3558 = vpop.xlane.xlu0 %3557
    %v3559 = vsel %vm1008, %v3081, 0.0
    %3560 = vadd.xlane.f32.xlu0 %v3559
    %v3561 = vpop.xlane.xlu0 %3560
    %v3562 = vsel %vm1008, %v3082, 0.0
    %3563 = vadd.xlane.f32.xlu0 %v3562
    %v3564 = vpop.xlane.xlu0 %3563
    %v3565 = vsel %vm1008, %v3083, 0.0
    %3566 = vadd.xlane.f32.xlu0 %v3565
    %v3567 = vpop.xlane.xlu0 %3566
    %v3568 = vsel %vm1008, %v3084, 0.0
    %3569 = vadd.xlane.f32.xlu0 %v3568
    %v3570 = vpop.xlane.xlu0 %3569
    %v3571 = vsel %vm1008, %v3085, 0.0
    %3572 = vadd.xlane.f32.xlu0 %v3571
    %v3573 = vpop.xlane.xlu0 %3572
    %v3574 = vsel %vm1008, %v3086, 0.0
    %3575 = vadd.xlane.f32.xlu0 %v3574
    %v3576 = vpop.xlane.xlu0 %3575
    %v3577 = vsel %vm1008, %v3087, 0.0
    %3578 = vadd.xlane.f32.xlu0 %v3577
    %v3579 = vpop.xlane.xlu0 %3578
    %v3580 = vsel %vm1008, %v3088, 0.0
    %3581 = vadd.xlane.f32.xlu0 %v3580
    %v3582 = vpop.xlane.xlu0 %3581
    %v3583 = vsel %vm1008, %v3089, 0.0
    %3584 = vadd.xlane.f32.xlu0 %v3583
    %v3585 = vpop.xlane.xlu0 %3584
    %v3586 = vsel %vm1008, %v3090, 0.0
    %3587 = vadd.xlane.f32.xlu0 %v3586
    %v3588 = vpop.xlane.xlu0 %3587
    %v3589 = vsel %vm1008, %v3091, 0.0
    %3590 = vadd.xlane.f32.xlu0 %v3589
    %v3591 = vpop.xlane.xlu0 %3590
    %v3592 = vsel %vm1008, %v3092, 0.0
    %3593 = vadd.xlane.f32.xlu0 %v3592
    %v3594 = vpop.xlane.xlu0 %3593
    %v3595 = vsel %vm1008, %v3093, 0.0
    %3596 = vadd.xlane.f32.xlu0 %v3595
    %v3597 = vpop.xlane.xlu0 %3596
    %v3598 = vsel %vm1008, %v3094, 0.0
    %3599 = vadd.xlane.f32.xlu0 %v3598
    %v3600 = vpop.xlane.xlu0 %3599
    %v3601 = vsel %vm1008, %v3095, 0.0
    %3602 = vadd.xlane.f32.xlu0 %v3601
    %v3603 = vpop.xlane.xlu0 %3602
    %v3604 = vsel %vm1008, %v3096, 0.0
    %3605 = vadd.xlane.f32.xlu0 %v3604
    %v3606 = vpop.xlane.xlu0 %3605
    %v3607 = vsel %vm1008, %v3097, 0.0
    %3608 = vadd.xlane.f32.xlu0 %v3607
    %v3609 = vpop.xlane.xlu0 %3608
    %v3610 = vsel %vm1008, %v3098, 0.0
    %3611 = vadd.xlane.f32.xlu0 %v3610
    %v3612 = vpop.xlane.xlu0 %3611
    %v3613 = vsel %vm1008, %v3099, 0.0
    %3614 = vadd.xlane.f32.xlu0 %v3613
    %v3615 = vpop.xlane.xlu0 %3614
    %v3616 = vsel %vm1008, %v3100, 0.0
    %3617 = vadd.xlane.f32.xlu0 %v3616
    %v3618 = vpop.xlane.xlu0 %3617
    %v3619 = vsel %vm1008, %v3101, 0.0
    %3620 = vadd.xlane.f32.xlu0 %v3619
    %v3621 = vpop.xlane.xlu0 %3620
    %v3622 = vsel %vm1008, %v3102, 0.0
    %3623 = vadd.xlane.f32.xlu0 %v3622
    %v3624 = vpop.xlane.xlu0 %3623
    %v3625 = vsel %vm1008, %v3103, 0.0
    %3626 = vadd.xlane.f32.xlu0 %v3625
    %v3627 = vpop.xlane.xlu0 %3626
    %v3628 = vsel %vm1008, %v3104, 0.0
    %3629 = vadd.xlane.f32.xlu0 %v3628
    %v3630 = vpop.xlane.xlu0 %3629
    %v3631 = vsel %vm1008, %v3105, 0.0
    %3632 = vadd.xlane.f32.xlu0 %v3631
    %v3633 = vpop.xlane.xlu0 %3632
    %v3634 = vsel %vm1008, %v3106, 0.0
    %3635 = vadd.xlane.f32.xlu0 %v3634
    %v3636 = vpop.xlane.xlu0 %3635
    %v3637 = vsel %vm1008, %v3107, 0.0
    %3638 = vadd.xlane.f32.xlu0 %v3637
    %v3639 = vpop.xlane.xlu0 %3638
    %v3640 = vsel %vm1008, %v3108, 0.0
    %3641 = vadd.xlane.f32.xlu0 %v3640
    %v3642 = vpop.xlane.xlu0 %3641
    %v3643 = vsel %vm1008, %v3109, 0.0
    %3644 = vadd.xlane.f32.xlu0 %v3643
    %v3645 = vpop.xlane.xlu0 %3644
    %v3646 = vsel %vm1008, %v3110, 0.0
    %3647 = vadd.xlane.f32.xlu0 %v3646
    %v3648 = vpop.xlane.xlu0 %3647
    %v3649 = vsel %vm1008, %v3111, 0.0
    %3650 = vadd.xlane.f32.xlu0 %v3649
    %v3651 = vpop.xlane.xlu0 %3650
    %v3652 = vsel %vm1008, %v3112, 0.0
    %3653 = vadd.xlane.f32.xlu0 %v3652
    %v3654 = vpop.xlane.xlu0 %3653
    %v3655 = vsel %vm1008, %v3113, 0.0
    %3656 = vadd.xlane.f32.xlu0 %v3655
    %v3657 = vpop.xlane.xlu0 %3656
    %v3658 = vsel %vm1008, %v3114, 0.0
    %3659 = vadd.xlane.f32.xlu0 %v3658
    %v3660 = vpop.xlane.xlu0 %3659
    %v3661 = vsel %vm1008, %v3115, 0.0
    %3662 = vadd.xlane.f32.xlu0 %v3661
    %v3663 = vpop.xlane.xlu0 %3662
    %v3664 = vsel %vm1008, %v3116, 0.0
    %3665 = vadd.xlane.f32.xlu0 %v3664
    %v3666 = vpop.xlane.xlu0 %3665
    %v3667 = vsel %vm1008, %v3117, 0.0
    %3668 = vadd.xlane.f32.xlu0 %v3667
    %v3669 = vpop.xlane.xlu0 %3668
    %v3670 = vsel %vm1008, %v3118, 0.0
    %3671 = vadd.xlane.f32.xlu0 %v3670
    %v3672 = vpop.xlane.xlu0 %3671
    %v3673 = vsel %vm1008, %v3119, 0.0
    %3674 = vadd.xlane.f32.xlu0 %v3673
    %v3675 = vpop.xlane.xlu0 %3674
    %v3676 = vsel %vm1008, %v3120, 0.0
    %3677 = vadd.xlane.f32.xlu0 %v3676
    %v3678 = vpop.xlane.xlu0 %3677
    %v3679 = vsel %vm1008, %v3121, 0.0
    %3680 = vadd.xlane.f32.xlu0 %v3679
    %v3681 = vpop.xlane.xlu0 %3680
    %v3682 = vsel %vm1008, %v3122, 0.0
    %3683 = vadd.xlane.f32.xlu0 %v3682
    %v3684 = vpop.xlane.xlu0 %3683
    %v3685 = vsel %vm1008, %v3123, 0.0
    %3686 = vadd.xlane.f32.xlu0 %v3685
    %v3687 = vpop.xlane.xlu0 %3686
    %v3688 = vsel %vm1008, %v3124, 0.0
    %3689 = vadd.xlane.f32.xlu0 %v3688
    %v3690 = vpop.xlane.xlu0 %3689
    %v3691 = vsel %vm1008, %v3125, 0.0
    %3692 = vadd.xlane.f32.xlu0 %v3691
    %v3693 = vpop.xlane.xlu0 %3692
    %v3694 = vsel %vm1008, %v3126, 0.0
    %3695 = vadd.xlane.f32.xlu0 %v3694
    %v3696 = vpop.xlane.xlu0 %3695
    %v3697 = vsel %vm1008, %v3127, 0.0
    %3698 = vadd.xlane.f32.xlu0 %v3697
    %v3699 = vpop.xlane.xlu0 %3698
    %v3700 = vsel %vm1008, %v3128, 0.0
    %3701 = vadd.xlane.f32.xlu0 %v3700
    %v3702 = vpop.xlane.xlu0 %3701
    %v3703 = vsel %vm1008, %v3129, 0.0
    %3704 = vadd.xlane.f32.xlu0 %v3703
    %v3705 = vpop.xlane.xlu0 %3704
    %v3706 = vsel %vm1008, %v3130, 0.0
    %3707 = vadd.xlane.f32.xlu0 %v3706
    %v3708 = vpop.xlane.xlu0 %3707
    %v3709 = vsel %vm1008, %v3131, 0.0
    %3710 = vadd.xlane.f32.xlu0 %v3709
    %v3711 = vpop.xlane.xlu0 %3710
    %v3712 = vsel %vm1008, %v3132, 0.0
    %3713 = vadd.xlane.f32.xlu0 %v3712
    %v3714 = vpop.xlane.xlu0 %3713
    %v3715 = vsel %vm1008, %v3133, 0.0
    %3716 = vadd.xlane.f32.xlu0 %v3715
    %v3717 = vpop.xlane.xlu0 %3716
    %v3718 = vsel %vm1008, %v3134, 0.0
    %3719 = vadd.xlane.f32.xlu0 %v3718
    %v3720 = vpop.xlane.xlu0 %3719
    %v3721 = vsel %vm1008, %v3135, 0.0
    %3722 = vadd.xlane.f32.xlu0 %v3721
    %v3723 = vpop.xlane.xlu0 %3722
    %v3724 = vsel %vm1008, %v3136, 0.0
    %3725 = vadd.xlane.f32.xlu0 %v3724
    %v3726 = vpop.xlane.xlu0 %3725
    %v3727 = vsel %vm1008, %v3137, 0.0
    %3728 = vadd.xlane.f32.xlu0 %v3727
    %v3729 = vpop.xlane.xlu0 %3728
    %v3730 = vsel %vm1008, %v3138, 0.0
    %3731 = vadd.xlane.f32.xlu0 %v3730
    %v3732 = vpop.xlane.xlu0 %3731
    %v3733 = vsel %vm1008, %v3139, 0.0
    %3734 = vadd.xlane.f32.xlu0 %v3733
    %v3735 = vpop.xlane.xlu0 %3734
    %v3736 = vsel %vm1008, %v3140, 0.0
    %3737 = vadd.xlane.f32.xlu0 %v3736
    %v3738 = vpop.xlane.xlu0 %3737
    %v3739 = vsel %vm1008, %v3141, 0.0
    %3740 = vadd.xlane.f32.xlu0 %v3739
    %v3741 = vpop.xlane.xlu0 %3740
    %v3742 = vsel %vm1008, %v3142, 0.0
    %3743 = vadd.xlane.f32.xlu0 %v3742
    %v3744 = vpop.xlane.xlu0 %3743
    %v3745 = vsel %vm1008, %v3143, 0.0
    %3746 = vadd.xlane.f32.xlu0 %v3745
    %v3747 = vpop.xlane.xlu0 %3746
    %v3748 = vsel %vm1008, %v3144, 0.0
    %3749 = vadd.xlane.f32.xlu0 %v3748
    %v3750 = vpop.xlane.xlu0 %3749
    %v3751 = vsel %vm1008, %v3145, 0.0
    %3752 = vadd.xlane.f32.xlu0 %v3751
    %v3753 = vpop.xlane.xlu0 %3752
    %v3754 = vsel %vm1008, %v3146, 0.0
    %3755 = vadd.xlane.f32.xlu0 %v3754
    %v3756 = vpop.xlane.xlu0 %3755
    %v3757 = vsel %vm1008, %v3147, 0.0
    %3758 = vadd.xlane.f32.xlu0 %v3757
    %v3759 = vpop.xlane.xlu0 %3758
    %v3760 = vsel %vm1008, %v3148, 0.0
    %3761 = vadd.xlane.f32.xlu0 %v3760
    %v3762 = vpop.xlane.xlu0 %3761
    %v3763 = vsel %vm1008, %v3149, 0.0
    %3764 = vadd.xlane.f32.xlu0 %v3763
    %v3765 = vpop.xlane.xlu0 %3764
    %v3766 = vsel %vm1008, %v3150, 0.0
    %3767 = vadd.xlane.f32.xlu0 %v3766
    %v3768 = vpop.xlane.xlu0 %3767
    %v3769 = vsel %vm1008, %v3151, 0.0
    %3770 = vadd.xlane.f32.xlu0 %v3769
    %v3771 = vpop.xlane.xlu0 %3770
    %v3772 = vsel %vm1008, %v3152, 0.0
    %3773 = vadd.xlane.f32.xlu0 %v3772
    %v3774 = vpop.xlane.xlu0 %3773
    %v3775 = vsel %vm1008, %v3153, 0.0
    %3776 = vadd.xlane.f32.xlu0 %v3775
    %v3777 = vpop.xlane.xlu0 %3776
    %v3778 = vsel %vm1008, %v3154, 0.0
    %3779 = vadd.xlane.f32.xlu0 %v3778
    %v3780 = vpop.xlane.xlu0 %3779
    %v3781 = vsel %vm1008, %v3155, 0.0
    %3782 = vadd.xlane.f32.xlu0 %v3781
    %v3783 = vpop.xlane.xlu0 %3782
    %v3784 = vsel %vm1008, %v3156, 0.0
    %3785 = vadd.xlane.f32.xlu0 %v3784
    %v3786 = vpop.xlane.xlu0 %3785
    %v3787 = vsel %vm1008, %v3157, 0.0
    %3788 = vadd.xlane.f32.xlu0 %v3787
    %v3789 = vpop.xlane.xlu0 %3788
    %v3790 = vsel %vm1008, %v3158, 0.0
    %3791 = vadd.xlane.f32.xlu0 %v3790
    %v3792 = vpop.xlane.xlu0 %3791
    %v3793 = vsel %vm1008, %v3159, 0.0
    %3794 = vadd.xlane.f32.xlu0 %v3793
    %v3795 = vpop.xlane.xlu0 %3794
    %v3796 = vsel %vm1008, %v3160, 0.0
    %3797 = vadd.xlane.f32.xlu0 %v3796
    %v3798 = vpop.xlane.xlu0 %3797
    %v3799 = vsel %vm1008, %v3161, 0.0
    %3800 = vadd.xlane.f32.xlu0 %v3799
    %v3801 = vpop.xlane.xlu0 %3800
    %v3802 = vsel %vm1008, %v3162, 0.0
    %3803 = vadd.xlane.f32.xlu0 %v3802
    %v3804 = vpop.xlane.xlu0 %3803
    %v3805 = vsel %vm1008, %v3163, 0.0
    %3806 = vadd.xlane.f32.xlu0 %v3805
    %v3807 = vpop.xlane.xlu0 %3806
    %v3808 = vsel %vm1008, %v3164, 0.0
    %3809 = vadd.xlane.f32.xlu0 %v3808
    %v3810 = vpop.xlane.xlu0 %3809
    %v3811 = vsel %vm1008, %v3165, 0.0
    %3812 = vadd.xlane.f32.xlu0 %v3811
    %v3813 = vpop.xlane.xlu0 %3812
    %v3814 = vsel %vm1008, %v3166, 0.0
    %3815 = vadd.xlane.f32.xlu0 %v3814
    %v3816 = vpop.xlane.xlu0 %3815
    %v3817 = vsel %vm1008, %v3167, 0.0
    %3818 = vadd.xlane.f32.xlu0 %v3817
    %v3819 = vpop.xlane.xlu0 %3818
    %v3820 = vsel %vm1008, %v3168, 0.0
    %3821 = vadd.xlane.f32.xlu0 %v3820
    %v3822 = vpop.xlane.xlu0 %3821
    %v3823 = vsel %vm1008, %v3169, 0.0
    %3824 = vadd.xlane.f32.xlu0 %v3823
    %v3825 = vpop.xlane.xlu0 %3824
    %v3826 = vsel %vm1008, %v3170, 0.0
    %3827 = vadd.xlane.f32.xlu0 %v3826
    %v3828 = vpop.xlane.xlu0 %3827
    %v3829 = vsel %vm1008, %v3171, 0.0
    %3830 = vadd.xlane.f32.xlu0 %v3829
    %v3831 = vpop.xlane.xlu0 %3830
    %v3832 = vsel %vm1008, %v3172, 0.0
    %3833 = vadd.xlane.f32.xlu0 %v3832
    %v3834 = vpop.xlane.xlu0 %3833
    %v3835 = vsel %vm1008, %v3173, 0.0
    %3836 = vadd.xlane.f32.xlu0 %v3835
    %v3837 = vpop.xlane.xlu0 %3836
    %v3838 = vsel %vm1008, %v3174, 0.0
    %3839 = vadd.xlane.f32.xlu0 %v3838
    %v3840 = vpop.xlane.xlu0 %3839
    %v3841 = vsel %vm1008, %v3175, 0.0
    %3842 = vadd.xlane.f32.xlu0 %v3841
    %v3843 = vpop.xlane.xlu0 %3842
    %v3844 = vsel %vm1008, %v3176, 0.0
    %3845 = vadd.xlane.f32.xlu0 %v3844
    %v3846 = vpop.xlane.xlu0 %3845
    %v3847 = vsel %vm1008, %v3177, 0.0
    %3848 = vadd.xlane.f32.xlu0 %v3847
    %v3849 = vpop.xlane.xlu0 %3848
    %v3850 = vsel %vm1008, %v3178, 0.0
    %3851 = vadd.xlane.f32.xlu0 %v3850
    %v3852 = vpop.xlane.xlu0 %3851
    %v3853 = vsel %vm1008, %v3179, 0.0
    %3854 = vadd.xlane.f32.xlu0 %v3853
    %v3855 = vpop.xlane.xlu0 %3854
    %v3856 = vsel %vm1008, %v3180, 0.0
    %3857 = vadd.xlane.f32.xlu0 %v3856
    %v3858 = vpop.xlane.xlu0 %3857
    %v3859 = vsel %vm1008, %v3181, 0.0
    %3860 = vadd.xlane.f32.xlu0 %v3859
    %v3861 = vpop.xlane.xlu0 %3860
    %v3862 = vsel %vm1008, %v3182, 0.0
    %3863 = vadd.xlane.f32.xlu0 %v3862
    %v3864 = vpop.xlane.xlu0 %3863
    %v3865 = vsel %vm1008, %v3183, 0.0
    %3866 = vadd.xlane.f32.xlu0 %v3865
    %v3867 = vpop.xlane.xlu0 %3866
    %v3868 = vsel %vm1008, %v3184, 0.0
    %3869 = vadd.xlane.f32.xlu0 %v3868
    %v3870 = vpop.xlane.xlu0 %3869
    %v3871 = vsel %vm1008, %v3185, 0.0
    %3872 = vadd.xlane.f32.xlu0 %v3871
    %v3873 = vpop.xlane.xlu0 %3872
    %v3874 = vsel %vm1008, %v3186, 0.0
    %3875 = vadd.xlane.f32.xlu0 %v3874
    %v3876 = vpop.xlane.xlu0 %3875
    %v3877 = vsel %vm1008, %v3187, 0.0
    %3878 = vadd.xlane.f32.xlu0 %v3877
    %v3879 = vpop.xlane.xlu0 %3878
    %v3880 = vsel %vm1008, %v3188, 0.0
    %3881 = vadd.xlane.f32.xlu0 %v3880
    %v3882 = vpop.xlane.xlu0 %3881
    %v3883 = vsel %vm1008, %v3189, 0.0
    %3884 = vadd.xlane.f32.xlu0 %v3883
    %v3885 = vpop.xlane.xlu0 %3884
    %v3886 = vsel %vm1008, %v3190, 0.0
    %3887 = vadd.xlane.f32.xlu0 %v3886
    %v3888 = vpop.xlane.xlu0 %3887
    %v3889 = vsel %vm1008, %v3191, 0.0
    %3890 = vadd.xlane.f32.xlu0 %v3889
    %v3891 = vpop.xlane.xlu0 %3890
    %v3892 = vsel %vm1008, %v3192, 0.0
    %3893 = vadd.xlane.f32.xlu0 %v3892
    %v3894 = vpop.xlane.xlu0 %3893
    %v3895 = vsel %vm1008, %v3193, 0.0
    %3896 = vadd.xlane.f32.xlu0 %v3895
    %v3897 = vpop.xlane.xlu0 %3896
    %v3898 = vsel %vm1008, %v3194, 0.0
    %3899 = vadd.xlane.f32.xlu0 %v3898
    %v3900 = vpop.xlane.xlu0 %3899
    %v3901 = vsel %vm1008, %v3195, 0.0
    %3902 = vadd.xlane.f32.xlu0 %v3901
    %v3903 = vpop.xlane.xlu0 %3902
    %v3904 = vsel %vm1008, %v3196, 0.0
    %3905 = vadd.xlane.f32.xlu0 %v3904
    %v3906 = vpop.xlane.xlu0 %3905
    %v3907 = vsel %vm1008, %v3197, 0.0
    %3908 = vadd.xlane.f32.xlu0 %v3907
    %v3909 = vpop.xlane.xlu0 %3908
    %v3910 = vsel %vm1008, %v3198, 0.0
    %3911 = vadd.xlane.f32.xlu0 %v3910
    %v3912 = vpop.xlane.xlu0 %3911
    %v3913 = vsel %vm1008, %v3199, 0.0
    %3914 = vadd.xlane.f32.xlu0 %v3913
    %v3915 = vpop.xlane.xlu0 %3914
    %v3916 = vsel %vm1008, %v3200, 0.0
    %3917 = vadd.xlane.f32.xlu0 %v3916
    %v3918 = vpop.xlane.xlu0 %3917
    %v3919 = vsel %vm1008, %v3201, 0.0
    %3920 = vadd.xlane.f32.xlu0 %v3919
    %v3921 = vpop.xlane.xlu0 %3920
    %v3922 = vsel %vm1008, %v3202, 0.0
    %3923 = vadd.xlane.f32.xlu0 %v3922
    %v3924 = vpop.xlane.xlu0 %3923
    %v3925 = vsel %vm1008, %v3203, 0.0
    %3926 = vadd.xlane.f32.xlu0 %v3925
    %v3927 = vpop.xlane.xlu0 %3926
    %v3928 = vsel %vm1008, %v3204, 0.0
    %3929 = vadd.xlane.f32.xlu0 %v3928
    %v3930 = vpop.xlane.xlu0 %3929
    %v3931 = vsel %vm1008, %v3205, 0.0
    %3932 = vadd.xlane.f32.xlu0 %v3931
    %v3933 = vpop.xlane.xlu0 %3932
    %v3934 = vsel %vm1008, %v3206, 0.0
    %3935 = vadd.xlane.f32.xlu0 %v3934
    %v3936 = vpop.xlane.xlu0 %3935
    %v3937 = vsel %vm1008, %v3207, 0.0
    %3938 = vadd.xlane.f32.xlu0 %v3937
    %v3939 = vpop.xlane.xlu0 %3938
    %v3940 = vsel %vm1008, %v3208, 0.0
    %3941 = vadd.xlane.f32.xlu0 %v3940
    %v3942 = vpop.xlane.xlu0 %3941
    %v3943 = vsel %vm1008, %v3209, 0.0
    %3944 = vadd.xlane.f32.xlu0 %v3943
    %v3945 = vpop.xlane.xlu0 %3944
    %v3946 = vsel %vm1008, %v3210, 0.0
    %3947 = vadd.xlane.f32.xlu0 %v3946
    %v3948 = vpop.xlane.xlu0 %3947
    %v3949 = vsel %vm1008, %v3211, 0.0
    %3950 = vadd.xlane.f32.xlu0 %v3949
    %v3951 = vpop.xlane.xlu0 %3950
    %v3952 = vsel %vm1008, %v3212, 0.0
    %3953 = vadd.xlane.f32.xlu0 %v3952
    %v3954 = vpop.xlane.xlu0 %3953
    %v3955 = vsel %vm1008, %v3213, 0.0
    %3956 = vadd.xlane.f32.xlu0 %v3955
    %v3957 = vpop.xlane.xlu0 %3956
    %v3958 = vsel %vm1008, %v3214, 0.0
    %3959 = vadd.xlane.f32.xlu0 %v3958
    %v3960 = vpop.xlane.xlu0 %3959
    %v3961 = vsel %vm1008, %v3215, 0.0
    %3962 = vadd.xlane.f32.xlu0 %v3961
    %v3963 = vpop.xlane.xlu0 %3962
    %v3964 = vsel %vm1008, %v3216, 0.0
    %3965 = vadd.xlane.f32.xlu0 %v3964
    %v3966 = vpop.xlane.xlu0 %3965
    %v3967 = vsel %vm1008, %v3217, 0.0
    %3968 = vadd.xlane.f32.xlu0 %v3967
    %v3969 = vpop.xlane.xlu0 %3968
    %v3970 = vsel %vm1008, %v3218, 0.0
    %3971 = vadd.xlane.f32.xlu0 %v3970
    %v3972 = vpop.xlane.xlu0 %3971
    %v3973 = vsel %vm1008, %v3219, 0.0
    %3974 = vadd.xlane.f32.xlu0 %v3973
    %v3975 = vpop.xlane.xlu0 %3974
    %v3976 = vsel %vm1008, %v3220, 0.0
    %3977 = vadd.xlane.f32.xlu0 %v3976
    %v3978 = vpop.xlane.xlu0 %3977
    %v3979 = vsel %vm1008, %v3221, 0.0
    %3980 = vadd.xlane.f32.xlu0 %v3979
    %v3981 = vpop.xlane.xlu0 %3980
    %v3982 = vsel %vm1008, %v3222, 0.0
    %3983 = vadd.xlane.f32.xlu0 %v3982
    %v3984 = vpop.xlane.xlu0 %3983
    %v3985 = vsel %vm1008, %v3223, 0.0
    %3986 = vadd.xlane.f32.xlu0 %v3985
    %v3987 = vpop.xlane.xlu0 %3986
    %v3988 = vsel %vm1008, %v3224, 0.0
    %3989 = vadd.xlane.f32.xlu0 %v3988
    %v3990 = vpop.xlane.xlu0 %3989
    %v3991 = vsel %vm1008, %v3225, 0.0
    %3992 = vadd.xlane.f32.xlu0 %v3991
    %v3993 = vpop.xlane.xlu0 %3992
    %s3994 = smul.u32 0, 128
    %v4251 = vlaneseq
    %v4252 = vand.u32 %v4251, 127
    %v4253 = vlaneseq
    %v4254 = vshrl.u32 %v4253, 7
    %v4255 = vsub.s32 %v4252, %v4254
    %v4256 = vrot.slane %v3228, %v4255
    %v4257 = vadd.s32 %v4252, 4294967288
    %v4258 = vlaneseq
    %v4259 = vshrl.u32 %v4258, 7
    %v4260 = vsub.s32 %v4257, %v4259
    %v4261 = vrot.slane %v3231, %v4260
    %vm4262 = vcmask 130112
    %v4263 = vsel %vm4262, %v4261, %v4256
    %v4264 = vlaneseq
    %v4265 = vshrl.u32 %v4264, 7
    %v4266 = vsub.s32 %v4252, %v4265
    %v4267 = vrot.slane %v3234, %v4266
    %v4268 = vlaneseq
    %v4269 = vshrl.u32 %v4268, 7
    %v4270 = vsub.s32 %v4257, %v4269
    %v4271 = vrot.slane %v3237, %v4270
    %v4272 = vsel %vm4262, %v4271, %v4267
    %v4273 = vlaneseq
    %v4274 = vshrl.u32 %v4273, 7
    %v4275 = vsub.s32 %v4252, %v4274
    %v4276 = vrot.slane %v3240, %v4275
    %v4277 = vlaneseq
    %v4278 = vshrl.u32 %v4277, 7
    %v4279 = vsub.s32 %v4257, %v4278
    %v4280 = vrot.slane %v3243, %v4279
    %v4281 = vsel %vm4262, %v4280, %v4276
    %v4282 = vlaneseq
    %v4283 = vshrl.u32 %v4282, 7
    %v4284 = vsub.s32 %v4252, %v4283
    %v4285 = vrot.slane %v3246, %v4284
    %v4286 = vlaneseq
    %v4287 = vshrl.u32 %v4286, 7
    %v4288 = vsub.s32 %v4257, %v4287
    %v4289 = vrot.slane %v3249, %v4288
    %v4290 = vsel %vm4262, %v4289, %v4285
    %v4291 = vlaneseq
    %v4292 = vshrl.u32 %v4291, 7
    %v4293 = vsub.s32 %v4252, %v4292
    %v4294 = vrot.slane %v3252, %v4293
    %v4295 = vlaneseq
    %v4296 = vshrl.u32 %v4295, 7
    %v4297 = vsub.s32 %v4257, %v4296
    %v4298 = vrot.slane %v3255, %v4297
    %v4299 = vsel %vm4262, %v4298, %v4294
    %v4300 = vlaneseq
    %v4301 = vshrl.u32 %v4300, 7
    %v4302 = vsub.s32 %v4252, %v4301
    %v4303 = vrot.slane %v3258, %v4302
    %v4304 = vlaneseq
    %v4305 = vshrl.u32 %v4304, 7
    %v4306 = vsub.s32 %v4257, %v4305
    %v4307 = vrot.slane %v3261, %v4306
    %v4308 = vsel %vm4262, %v4307, %v4303
    %v4309 = vlaneseq
    %v4310 = vshrl.u32 %v4309, 7
    %v4311 = vsub.s32 %v4252, %v4310
    %v4312 = vrot.slane %v3264, %v4311
    %v4313 = vlaneseq
    %v4314 = vshrl.u32 %v4313, 7
    %v4315 = vsub.s32 %v4257, %v4314
    %v4316 = vrot.slane %v3267, %v4315
    %v4317 = vsel %vm4262, %v4316, %v4312
    %v4318 = vlaneseq
    %v4319 = vshrl.u32 %v4318, 7
    %v4320 = vsub.s32 %v4252, %v4319
    %v4321 = vrot.slane %v3270, %v4320
    %v4322 = vlaneseq
    %v4323 = vshrl.u32 %v4322, 7
    %v4324 = vsub.s32 %v4257, %v4323
    %v4325 = vrot.slane %v3273, %v4324
    %v4326 = vsel %vm4262, %v4325, %v4321
    %v4327 = vlaneseq
    %v4328 = vshrl.u32 %v4327, 7
    %v4329 = vsub.s32 %v4252, %v4328
    %v4330 = vrot.slane %v3276, %v4329
    %v4331 = vlaneseq
    %v4332 = vshrl.u32 %v4331, 7
    %v4333 = vsub.s32 %v4257, %v4332
    %v4334 = vrot.slane %v3279, %v4333
    %v4335 = vsel %vm4262, %v4334, %v4330
    %v4336 = vlaneseq
    %v4337 = vshrl.u32 %v4336, 7
    %v4338 = vsub.s32 %v4252, %v4337
    %v4339 = vrot.slane %v3282, %v4338
    %v4340 = vlaneseq
    %v4341 = vshrl.u32 %v4340, 7
    %v4342 = vsub.s32 %v4257, %v4341
    %v4343 = vrot.slane %v3285, %v4342
    %v4344 = vsel %vm4262, %v4343, %v4339
    %v4345 = vlaneseq
    %v4346 = vshrl.u32 %v4345, 7
    %v4347 = vsub.s32 %v4252, %v4346
    %v4348 = vrot.slane %v3288, %v4347
    %v4349 = vlaneseq
    %v4350 = vshrl.u32 %v4349, 7
    %v4351 = vsub.s32 %v4257, %v4350
    %v4352 = vrot.slane %v3291, %v4351
    %v4353 = vsel %vm4262, %v4352, %v4348
    %v4354 = vlaneseq
    %v4355 = vshrl.u32 %v4354, 7
    %v4356 = vsub.s32 %v4252, %v4355
    %v4357 = vrot.slane %v3294, %v4356
    %v4358 = vlaneseq
    %v4359 = vshrl.u32 %v4358, 7
    %v4360 = vsub.s32 %v4257, %v4359
    %v4361 = vrot.slane %v3297, %v4360
    %v4362 = vsel %vm4262, %v4361, %v4357
    %v4363 = vlaneseq
    %v4364 = vshrl.u32 %v4363, 7
    %v4365 = vsub.s32 %v4252, %v4364
    %v4366 = vrot.slane %v3300, %v4365
    %v4367 = vlaneseq
    %v4368 = vshrl.u32 %v4367, 7
    %v4369 = vsub.s32 %v4257, %v4368
    %v4370 = vrot.slane %v3303, %v4369
    %v4371 = vsel %vm4262, %v4370, %v4366
    %v4372 = vlaneseq
    %v4373 = vshrl.u32 %v4372, 7
    %v4374 = vsub.s32 %v4252, %v4373
    %v4375 = vrot.slane %v3306, %v4374
    %v4376 = vlaneseq
    %v4377 = vshrl.u32 %v4376, 7
    %v4378 = vsub.s32 %v4257, %v4377
    %v4379 = vrot.slane %v3309, %v4378
    %v4380 = vsel %vm4262, %v4379, %v4375
    %v4381 = vlaneseq
    %v4382 = vshrl.u32 %v4381, 7
    %v4383 = vsub.s32 %v4252, %v4382
    %v4384 = vrot.slane %v3312, %v4383
    %v4385 = vlaneseq
    %v4386 = vshrl.u32 %v4385, 7
    %v4387 = vsub.s32 %v4257, %v4386
    %v4388 = vrot.slane %v3315, %v4387
    %v4389 = vsel %vm4262, %v4388, %v4384
    %v4390 = vlaneseq
    %v4391 = vshrl.u32 %v4390, 7
    %v4392 = vsub.s32 %v4252, %v4391
    %v4393 = vrot.slane %v3318, %v4392
    %v4394 = vlaneseq
    %v4395 = vshrl.u32 %v4394, 7
    %v4396 = vsub.s32 %v4257, %v4395
    %v4397 = vrot.slane %v3321, %v4396
    %v4398 = vsel %vm4262, %v4397, %v4393
    %v4399 = vlaneseq
    %v4400 = vshrl.u32 %v4399, 7
    %v4401 = vsub.s32 %v4252, %v4400
    %v4402 = vrot.slane %v3324, %v4401
    %v4403 = vlaneseq
    %v4404 = vshrl.u32 %v4403, 7
    %v4405 = vsub.s32 %v4257, %v4404
    %v4406 = vrot.slane %v3327, %v4405
    %v4407 = vsel %vm4262, %v4406, %v4402
    %v4408 = vlaneseq
    %v4409 = vshrl.u32 %v4408, 7
    %v4410 = vsub.s32 %v4252, %v4409
    %v4411 = vrot.slane %v3330, %v4410
    %v4412 = vlaneseq
    %v4413 = vshrl.u32 %v4412, 7
    %v4414 = vsub.s32 %v4257, %v4413
    %v4415 = vrot.slane %v3333, %v4414
    %v4416 = vsel %vm4262, %v4415, %v4411
    %v4417 = vlaneseq
    %v4418 = vshrl.u32 %v4417, 7
    %v4419 = vsub.s32 %v4252, %v4418
    %v4420 = vrot.slane %v3336, %v4419
    %v4421 = vlaneseq
    %v4422 = vshrl.u32 %v4421, 7
    %v4423 = vsub.s32 %v4257, %v4422
    %v4424 = vrot.slane %v3339, %v4423
    %v4425 = vsel %vm4262, %v4424, %v4420
    %v4426 = vlaneseq
    %v4427 = vshrl.u32 %v4426, 7
    %v4428 = vsub.s32 %v4252, %v4427
    %v4429 = vrot.slane %v3342, %v4428
    %v4430 = vlaneseq
    %v4431 = vshrl.u32 %v4430, 7
    %v4432 = vsub.s32 %v4257, %v4431
    %v4433 = vrot.slane %v3345, %v4432
    %v4434 = vsel %vm4262, %v4433, %v4429
    %v4435 = vlaneseq
    %v4436 = vshrl.u32 %v4435, 7
    %v4437 = vsub.s32 %v4252, %v4436
    %v4438 = vrot.slane %v3348, %v4437
    %v4439 = vlaneseq
    %v4440 = vshrl.u32 %v4439, 7
    %v4441 = vsub.s32 %v4257, %v4440
    %v4442 = vrot.slane %v3351, %v4441
    %v4443 = vsel %vm4262, %v4442, %v4438
    %v4444 = vlaneseq
    %v4445 = vshrl.u32 %v4444, 7
    %v4446 = vsub.s32 %v4252, %v4445
    %v4447 = vrot.slane %v3354, %v4446
    %v4448 = vlaneseq
    %v4449 = vshrl.u32 %v4448, 7
    %v4450 = vsub.s32 %v4257, %v4449
    %v4451 = vrot.slane %v3357, %v4450
    %v4452 = vsel %vm4262, %v4451, %v4447
    %v4453 = vlaneseq
    %v4454 = vshrl.u32 %v4453, 7
    %v4455 = vsub.s32 %v4252, %v4454
    %v4456 = vrot.slane %v3360, %v4455
    %v4457 = vlaneseq
    %v4458 = vshrl.u32 %v4457, 7
    %v4459 = vsub.s32 %v4257, %v4458
    %v4460 = vrot.slane %v3363, %v4459
    %v4461 = vsel %vm4262, %v4460, %v4456
    %v4462 = vlaneseq
    %v4463 = vshrl.u32 %v4462, 7
    %v4464 = vsub.s32 %v4252, %v4463
    %v4465 = vrot.slane %v3366, %v4464
    %v4466 = vlaneseq
    %v4467 = vshrl.u32 %v4466, 7
    %v4468 = vsub.s32 %v4257, %v4467
    %v4469 = vrot.slane %v3369, %v4468
    %v4470 = vsel %vm4262, %v4469, %v4465
    %v4471 = vlaneseq
    %v4472 = vshrl.u32 %v4471, 7
    %v4473 = vsub.s32 %v4252, %v4472
    %v4474 = vrot.slane %v3372, %v4473
    %v4475 = vlaneseq
    %v4476 = vshrl.u32 %v4475, 7
    %v4477 = vsub.s32 %v4257, %v4476
    %v4478 = vrot.slane %v3375, %v4477
    %v4479 = vsel %vm4262, %v4478, %v4474
    %v4480 = vlaneseq
    %v4481 = vshrl.u32 %v4480, 7
    %v4482 = vsub.s32 %v4252, %v4481
    %v4483 = vrot.slane %v3378, %v4482
    %v4484 = vlaneseq
    %v4485 = vshrl.u32 %v4484, 7
    %v4486 = vsub.s32 %v4257, %v4485
    %v4487 = vrot.slane %v3381, %v4486
    %v4488 = vsel %vm4262, %v4487, %v4483
    %v4489 = vlaneseq
    %v4490 = vshrl.u32 %v4489, 7
    %v4491 = vsub.s32 %v4252, %v4490
    %v4492 = vrot.slane %v3384, %v4491
    %v4493 = vlaneseq
    %v4494 = vshrl.u32 %v4493, 7
    %v4495 = vsub.s32 %v4257, %v4494
    %v4496 = vrot.slane %v3387, %v4495
    %v4497 = vsel %vm4262, %v4496, %v4492
    %v4498 = vlaneseq
    %v4499 = vshrl.u32 %v4498, 7
    %v4500 = vsub.s32 %v4252, %v4499
    %v4501 = vrot.slane %v3390, %v4500
    %v4502 = vlaneseq
    %v4503 = vshrl.u32 %v4502, 7
    %v4504 = vsub.s32 %v4257, %v4503
    %v4505 = vrot.slane %v3393, %v4504
    %v4506 = vsel %vm4262, %v4505, %v4501
    %v4507 = vlaneseq
    %v4508 = vshrl.u32 %v4507, 7
    %v4509 = vsub.s32 %v4252, %v4508
    %v4510 = vrot.slane %v3396, %v4509
    %v4511 = vlaneseq
    %v4512 = vshrl.u32 %v4511, 7
    %v4513 = vsub.s32 %v4257, %v4512
    %v4514 = vrot.slane %v3399, %v4513
    %v4515 = vsel %vm4262, %v4514, %v4510
    %v4516 = vlaneseq
    %v4517 = vshrl.u32 %v4516, 7
    %v4518 = vsub.s32 %v4252, %v4517
    %v4519 = vrot.slane %v3402, %v4518
    %v4520 = vlaneseq
    %v4521 = vshrl.u32 %v4520, 7
    %v4522 = vsub.s32 %v4257, %v4521
    %v4523 = vrot.slane %v3405, %v4522
    %v4524 = vsel %vm4262, %v4523, %v4519
    %v4525 = vlaneseq
    %v4526 = vshrl.u32 %v4525, 7
    %v4527 = vsub.s32 %v4252, %v4526
    %v4528 = vrot.slane %v3408, %v4527
    %v4529 = vlaneseq
    %v4530 = vshrl.u32 %v4529, 7
    %v4531 = vsub.s32 %v4257, %v4530
    %v4532 = vrot.slane %v3411, %v4531
    %v4533 = vsel %vm4262, %v4532, %v4528
    %v4534 = vlaneseq
    %v4535 = vshrl.u32 %v4534, 7
    %v4536 = vsub.s32 %v4252, %v4535
    %v4537 = vrot.slane %v3414, %v4536
    %v4538 = vlaneseq
    %v4539 = vshrl.u32 %v4538, 7
    %v4540 = vsub.s32 %v4257, %v4539
    %v4541 = vrot.slane %v3417, %v4540
    %v4542 = vsel %vm4262, %v4541, %v4537
    %v4543 = vlaneseq
    %v4544 = vshrl.u32 %v4543, 7
    %v4545 = vsub.s32 %v4252, %v4544
    %v4546 = vrot.slane %v3420, %v4545
    %v4547 = vlaneseq
    %v4548 = vshrl.u32 %v4547, 7
    %v4549 = vsub.s32 %v4257, %v4548
    %v4550 = vrot.slane %v3423, %v4549
    %v4551 = vsel %vm4262, %v4550, %v4546
    %v4552 = vlaneseq
    %v4553 = vshrl.u32 %v4552, 7
    %v4554 = vsub.s32 %v4252, %v4553
    %v4555 = vrot.slane %v3426, %v4554
    %v4556 = vlaneseq
    %v4557 = vshrl.u32 %v4556, 7
    %v4558 = vsub.s32 %v4257, %v4557
    %v4559 = vrot.slane %v3429, %v4558
    %v4560 = vsel %vm4262, %v4559, %v4555
    %v4561 = vlaneseq
    %v4562 = vshrl.u32 %v4561, 7
    %v4563 = vsub.s32 %v4252, %v4562
    %v4564 = vrot.slane %v3432, %v4563
    %v4565 = vlaneseq
    %v4566 = vshrl.u32 %v4565, 7
    %v4567 = vsub.s32 %v4257, %v4566
    %v4568 = vrot.slane %v3435, %v4567
    %v4569 = vsel %vm4262, %v4568, %v4564
    %v4570 = vlaneseq
    %v4571 = vshrl.u32 %v4570, 7
    %v4572 = vsub.s32 %v4252, %v4571
    %v4573 = vrot.slane %v3438, %v4572
    %v4574 = vlaneseq
    %v4575 = vshrl.u32 %v4574, 7
    %v4576 = vsub.s32 %v4257, %v4575
    %v4577 = vrot.slane %v3441, %v4576
    %v4578 = vsel %vm4262, %v4577, %v4573
    %v4579 = vlaneseq
    %v4580 = vshrl.u32 %v4579, 7
    %v4581 = vsub.s32 %v4252, %v4580
    %v4582 = vrot.slane %v3444, %v4581
    %v4583 = vlaneseq
    %v4584 = vshrl.u32 %v4583, 7
    %v4585 = vsub.s32 %v4257, %v4584
    %v4586 = vrot.slane %v3447, %v4585
    %v4587 = vsel %vm4262, %v4586, %v4582
    %v4588 = vlaneseq
    %v4589 = vshrl.u32 %v4588, 7
    %v4590 = vsub.s32 %v4252, %v4589
    %v4591 = vrot.slane %v3450, %v4590
    %v4592 = vlaneseq
    %v4593 = vshrl.u32 %v4592, 7
    %v4594 = vsub.s32 %v4257, %v4593
    %v4595 = vrot.slane %v3453, %v4594
    %v4596 = vsel %vm4262, %v4595, %v4591
    %v4597 = vlaneseq
    %v4598 = vshrl.u32 %v4597, 7
    %v4599 = vsub.s32 %v4252, %v4598
    %v4600 = vrot.slane %v3456, %v4599
    %v4601 = vlaneseq
    %v4602 = vshrl.u32 %v4601, 7
    %v4603 = vsub.s32 %v4257, %v4602
    %v4604 = vrot.slane %v3459, %v4603
    %v4605 = vsel %vm4262, %v4604, %v4600
    %v4606 = vlaneseq
    %v4607 = vshrl.u32 %v4606, 7
    %v4608 = vsub.s32 %v4252, %v4607
    %v4609 = vrot.slane %v3462, %v4608
    %v4610 = vlaneseq
    %v4611 = vshrl.u32 %v4610, 7
    %v4612 = vsub.s32 %v4257, %v4611
    %v4613 = vrot.slane %v3465, %v4612
    %v4614 = vsel %vm4262, %v4613, %v4609
    %v4615 = vlaneseq
    %v4616 = vshrl.u32 %v4615, 7
    %v4617 = vsub.s32 %v4252, %v4616
    %v4618 = vrot.slane %v3468, %v4617
    %v4619 = vlaneseq
    %v4620 = vshrl.u32 %v4619, 7
    %v4621 = vsub.s32 %v4257, %v4620
    %v4622 = vrot.slane %v3471, %v4621
    %v4623 = vsel %vm4262, %v4622, %v4618
    %v4624 = vlaneseq
    %v4625 = vshrl.u32 %v4624, 7
    %v4626 = vsub.s32 %v4252, %v4625
    %v4627 = vrot.slane %v3474, %v4626
    %v4628 = vlaneseq
    %v4629 = vshrl.u32 %v4628, 7
    %v4630 = vsub.s32 %v4257, %v4629
    %v4631 = vrot.slane %v3477, %v4630
    %v4632 = vsel %vm4262, %v4631, %v4627
    %v4633 = vlaneseq
    %v4634 = vshrl.u32 %v4633, 7
    %v4635 = vsub.s32 %v4252, %v4634
    %v4636 = vrot.slane %v3480, %v4635
    %v4637 = vlaneseq
    %v4638 = vshrl.u32 %v4637, 7
    %v4639 = vsub.s32 %v4257, %v4638
    %v4640 = vrot.slane %v3483, %v4639
    %v4641 = vsel %vm4262, %v4640, %v4636
    %v4642 = vlaneseq
    %v4643 = vshrl.u32 %v4642, 7
    %v4644 = vsub.s32 %v4252, %v4643
    %v4645 = vrot.slane %v3486, %v4644
    %v4646 = vlaneseq
    %v4647 = vshrl.u32 %v4646, 7
    %v4648 = vsub.s32 %v4257, %v4647
    %v4649 = vrot.slane %v3489, %v4648
    %v4650 = vsel %vm4262, %v4649, %v4645
    %v4651 = vlaneseq
    %v4652 = vshrl.u32 %v4651, 7
    %v4653 = vsub.s32 %v4252, %v4652
    %v4654 = vrot.slane %v3492, %v4653
    %v4655 = vlaneseq
    %v4656 = vshrl.u32 %v4655, 7
    %v4657 = vsub.s32 %v4257, %v4656
    %v4658 = vrot.slane %v3495, %v4657
    %v4659 = vsel %vm4262, %v4658, %v4654
    %v4660 = vlaneseq
    %v4661 = vshrl.u32 %v4660, 7
    %v4662 = vsub.s32 %v4252, %v4661
    %v4663 = vrot.slane %v3498, %v4662
    %v4664 = vlaneseq
    %v4665 = vshrl.u32 %v4664, 7
    %v4666 = vsub.s32 %v4257, %v4665
    %v4667 = vrot.slane %v3501, %v4666
    %v4668 = vsel %vm4262, %v4667, %v4663
    %v4669 = vlaneseq
    %v4670 = vshrl.u32 %v4669, 7
    %v4671 = vsub.s32 %v4252, %v4670
    %v4672 = vrot.slane %v3504, %v4671
    %v4673 = vlaneseq
    %v4674 = vshrl.u32 %v4673, 7
    %v4675 = vsub.s32 %v4257, %v4674
    %v4676 = vrot.slane %v3507, %v4675
    %v4677 = vsel %vm4262, %v4676, %v4672
    %v4678 = vlaneseq
    %v4679 = vshrl.u32 %v4678, 7
    %v4680 = vsub.s32 %v4252, %v4679
    %v4681 = vrot.slane %v3510, %v4680
    %v4682 = vlaneseq
    %v4683 = vshrl.u32 %v4682, 7
    %v4684 = vsub.s32 %v4257, %v4683
    %v4685 = vrot.slane %v3513, %v4684
    %v4686 = vsel %vm4262, %v4685, %v4681
    %v4687 = vlaneseq
    %v4688 = vshrl.u32 %v4687, 7
    %v4689 = vsub.s32 %v4252, %v4688
    %v4690 = vrot.slane %v3516, %v4689
    %v4691 = vlaneseq
    %v4692 = vshrl.u32 %v4691, 7
    %v4693 = vsub.s32 %v4257, %v4692
    %v4694 = vrot.slane %v3519, %v4693
    %v4695 = vsel %vm4262, %v4694, %v4690
    %v4696 = vlaneseq
    %v4697 = vshrl.u32 %v4696, 7
    %v4698 = vsub.s32 %v4252, %v4697
    %v4699 = vrot.slane %v3522, %v4698
    %v4700 = vlaneseq
    %v4701 = vshrl.u32 %v4700, 7
    %v4702 = vsub.s32 %v4257, %v4701
    %v4703 = vrot.slane %v3525, %v4702
    %v4704 = vsel %vm4262, %v4703, %v4699
    %v4705 = vlaneseq
    %v4706 = vshrl.u32 %v4705, 7
    %v4707 = vsub.s32 %v4252, %v4706
    %v4708 = vrot.slane %v3528, %v4707
    %v4709 = vlaneseq
    %v4710 = vshrl.u32 %v4709, 7
    %v4711 = vsub.s32 %v4257, %v4710
    %v4712 = vrot.slane %v3531, %v4711
    %v4713 = vsel %vm4262, %v4712, %v4708
    %v4714 = vlaneseq
    %v4715 = vshrl.u32 %v4714, 7
    %v4716 = vsub.s32 %v4252, %v4715
    %v4717 = vrot.slane %v3534, %v4716
    %v4718 = vlaneseq
    %v4719 = vshrl.u32 %v4718, 7
    %v4720 = vsub.s32 %v4257, %v4719
    %v4721 = vrot.slane %v3537, %v4720
    %v4722 = vsel %vm4262, %v4721, %v4717
    %v4723 = vlaneseq
    %v4724 = vshrl.u32 %v4723, 7
    %v4725 = vsub.s32 %v4252, %v4724
    %v4726 = vrot.slane %v3540, %v4725
    %v4727 = vlaneseq
    %v4728 = vshrl.u32 %v4727, 7
    %v4729 = vsub.s32 %v4257, %v4728
    %v4730 = vrot.slane %v3543, %v4729
    %v4731 = vsel %vm4262, %v4730, %v4726
    %v4732 = vlaneseq
    %v4733 = vshrl.u32 %v4732, 7
    %v4734 = vsub.s32 %v4252, %v4733
    %v4735 = vrot.slane %v3546, %v4734
    %v4736 = vlaneseq
    %v4737 = vshrl.u32 %v4736, 7
    %v4738 = vsub.s32 %v4257, %v4737
    %v4739 = vrot.slane %v3549, %v4738
    %v4740 = vsel %vm4262, %v4739, %v4735
    %v4741 = vlaneseq
    %v4742 = vshrl.u32 %v4741, 7
    %v4743 = vsub.s32 %v4252, %v4742
    %v4744 = vrot.slane %v3552, %v4743
    %v4745 = vlaneseq
    %v4746 = vshrl.u32 %v4745, 7
    %v4747 = vsub.s32 %v4257, %v4746
    %v4748 = vrot.slane %v3555, %v4747
    %v4749 = vsel %vm4262, %v4748, %v4744
    %v4750 = vlaneseq
    %v4751 = vshrl.u32 %v4750, 7
    %v4752 = vsub.s32 %v4252, %v4751
    %v4753 = vrot.slane %v3558, %v4752
    %v4754 = vlaneseq
    %v4755 = vshrl.u32 %v4754, 7
    %v4756 = vsub.s32 %v4257, %v4755
    %v4757 = vrot.slane %v3561, %v4756
    %v4758 = vsel %vm4262, %v4757, %v4753
    %v4759 = vlaneseq
    %v4760 = vshrl.u32 %v4759, 7
    %v4761 = vsub.s32 %v4252, %v4760
    %v4762 = vrot.slane %v3564, %v4761
    %v4763 = vlaneseq
    %v4764 = vshrl.u32 %v4763, 7
    %v4765 = vsub.s32 %v4257, %v4764
    %v4766 = vrot.slane %v3567, %v4765
    %v4767 = vsel %vm4262, %v4766, %v4762
    %v4768 = vlaneseq
    %v4769 = vshrl.u32 %v4768, 7
    %v4770 = vsub.s32 %v4252, %v4769
    %v4771 = vrot.slane %v3570, %v4770
    %v4772 = vlaneseq
    %v4773 = vshrl.u32 %v4772, 7
    %v4774 = vsub.s32 %v4257, %v4773
    %v4775 = vrot.slane %v3573, %v4774
    %v4776 = vsel %vm4262, %v4775, %v4771
    %v4777 = vlaneseq
    %v4778 = vshrl.u32 %v4777, 7
    %v4779 = vsub.s32 %v4252, %v4778
    %v4780 = vrot.slane %v3576, %v4779
    %v4781 = vlaneseq
    %v4782 = vshrl.u32 %v4781, 7
    %v4783 = vsub.s32 %v4257, %v4782
    %v4784 = vrot.slane %v3579, %v4783
    %v4785 = vsel %vm4262, %v4784, %v4780
    %v4786 = vlaneseq
    %v4787 = vshrl.u32 %v4786, 7
    %v4788 = vsub.s32 %v4252, %v4787
    %v4789 = vrot.slane %v3582, %v4788
    %v4790 = vlaneseq
    %v4791 = vshrl.u32 %v4790, 7
    %v4792 = vsub.s32 %v4257, %v4791
    %v4793 = vrot.slane %v3585, %v4792
    %v4794 = vsel %vm4262, %v4793, %v4789
    %v4795 = vlaneseq
    %v4796 = vshrl.u32 %v4795, 7
    %v4797 = vsub.s32 %v4252, %v4796
    %v4798 = vrot.slane %v3588, %v4797
    %v4799 = vlaneseq
    %v4800 = vshrl.u32 %v4799, 7
    %v4801 = vsub.s32 %v4257, %v4800
    %v4802 = vrot.slane %v3591, %v4801
    %v4803 = vsel %vm4262, %v4802, %v4798
    %v4804 = vlaneseq
    %v4805 = vshrl.u32 %v4804, 7
    %v4806 = vsub.s32 %v4252, %v4805
    %v4807 = vrot.slane %v3594, %v4806
    %v4808 = vlaneseq
    %v4809 = vshrl.u32 %v4808, 7
    %v4810 = vsub.s32 %v4257, %v4809
    %v4811 = vrot.slane %v3597, %v4810
    %v4812 = vsel %vm4262, %v4811, %v4807
    %v4813 = vlaneseq
    %v4814 = vshrl.u32 %v4813, 7
    %v4815 = vsub.s32 %v4252, %v4814
    %v4816 = vrot.slane %v3600, %v4815
    %v4817 = vlaneseq
    %v4818 = vshrl.u32 %v4817, 7
    %v4819 = vsub.s32 %v4257, %v4818
    %v4820 = vrot.slane %v3603, %v4819
    %v4821 = vsel %vm4262, %v4820, %v4816
    %v4822 = vlaneseq
    %v4823 = vshrl.u32 %v4822, 7
    %v4824 = vsub.s32 %v4252, %v4823
    %v4825 = vrot.slane %v3606, %v4824
    %v4826 = vlaneseq
    %v4827 = vshrl.u32 %v4826, 7
    %v4828 = vsub.s32 %v4257, %v4827
    %v4829 = vrot.slane %v3609, %v4828
    %v4830 = vsel %vm4262, %v4829, %v4825
    %v4831 = vlaneseq
    %v4832 = vshrl.u32 %v4831, 7
    %v4833 = vsub.s32 %v4252, %v4832
    %v4834 = vrot.slane %v3612, %v4833
    %v4835 = vlaneseq
    %v4836 = vshrl.u32 %v4835, 7
    %v4837 = vsub.s32 %v4257, %v4836
    %v4838 = vrot.slane %v3615, %v4837
    %v4839 = vsel %vm4262, %v4838, %v4834
    %v4840 = vlaneseq
    %v4841 = vshrl.u32 %v4840, 7
    %v4842 = vsub.s32 %v4252, %v4841
    %v4843 = vrot.slane %v3618, %v4842
    %v4844 = vlaneseq
    %v4845 = vshrl.u32 %v4844, 7
    %v4846 = vsub.s32 %v4257, %v4845
    %v4847 = vrot.slane %v3621, %v4846
    %v4848 = vsel %vm4262, %v4847, %v4843
    %v4849 = vlaneseq
    %v4850 = vshrl.u32 %v4849, 7
    %v4851 = vsub.s32 %v4252, %v4850
    %v4852 = vrot.slane %v3624, %v4851
    %v4853 = vlaneseq
    %v4854 = vshrl.u32 %v4853, 7
    %v4855 = vsub.s32 %v4257, %v4854
    %v4856 = vrot.slane %v3627, %v4855
    %v4857 = vsel %vm4262, %v4856, %v4852
    %v4858 = vlaneseq
    %v4859 = vshrl.u32 %v4858, 7
    %v4860 = vsub.s32 %v4252, %v4859
    %v4861 = vrot.slane %v3630, %v4860
    %v4862 = vlaneseq
    %v4863 = vshrl.u32 %v4862, 7
    %v4864 = vsub.s32 %v4257, %v4863
    %v4865 = vrot.slane %v3633, %v4864
    %v4866 = vsel %vm4262, %v4865, %v4861
    %v4867 = vlaneseq
    %v4868 = vshrl.u32 %v4867, 7
    %v4869 = vsub.s32 %v4252, %v4868
    %v4870 = vrot.slane %v3636, %v4869
    %v4871 = vlaneseq
    %v4872 = vshrl.u32 %v4871, 7
    %v4873 = vsub.s32 %v4257, %v4872
    %v4874 = vrot.slane %v3639, %v4873
    %v4875 = vsel %vm4262, %v4874, %v4870
    %v4876 = vlaneseq
    %v4877 = vshrl.u32 %v4876, 7
    %v4878 = vsub.s32 %v4252, %v4877
    %v4879 = vrot.slane %v3642, %v4878
    %v4880 = vlaneseq
    %v4881 = vshrl.u32 %v4880, 7
    %v4882 = vsub.s32 %v4257, %v4881
    %v4883 = vrot.slane %v3645, %v4882
    %v4884 = vsel %vm4262, %v4883, %v4879
    %v4885 = vlaneseq
    %v4886 = vshrl.u32 %v4885, 7
    %v4887 = vsub.s32 %v4252, %v4886
    %v4888 = vrot.slane %v3648, %v4887
    %v4889 = vlaneseq
    %v4890 = vshrl.u32 %v4889, 7
    %v4891 = vsub.s32 %v4257, %v4890
    %v4892 = vrot.slane %v3651, %v4891
    %v4893 = vsel %vm4262, %v4892, %v4888
    %v4894 = vlaneseq
    %v4895 = vshrl.u32 %v4894, 7
    %v4896 = vsub.s32 %v4252, %v4895
    %v4897 = vrot.slane %v3654, %v4896
    %v4898 = vlaneseq
    %v4899 = vshrl.u32 %v4898, 7
    %v4900 = vsub.s32 %v4257, %v4899
    %v4901 = vrot.slane %v3657, %v4900
    %v4902 = vsel %vm4262, %v4901, %v4897
    %v4903 = vlaneseq
    %v4904 = vshrl.u32 %v4903, 7
    %v4905 = vsub.s32 %v4252, %v4904
    %v4906 = vrot.slane %v3660, %v4905
    %v4907 = vlaneseq
    %v4908 = vshrl.u32 %v4907, 7
    %v4909 = vsub.s32 %v4257, %v4908
    %v4910 = vrot.slane %v3663, %v4909
    %v4911 = vsel %vm4262, %v4910, %v4906
    %v4912 = vlaneseq
    %v4913 = vshrl.u32 %v4912, 7
    %v4914 = vsub.s32 %v4252, %v4913
    %v4915 = vrot.slane %v3666, %v4914
    %v4916 = vlaneseq
    %v4917 = vshrl.u32 %v4916, 7
    %v4918 = vsub.s32 %v4257, %v4917
    %v4919 = vrot.slane %v3669, %v4918
    %v4920 = vsel %vm4262, %v4919, %v4915
    %v4921 = vlaneseq
    %v4922 = vshrl.u32 %v4921, 7
    %v4923 = vsub.s32 %v4252, %v4922
    %v4924 = vrot.slane %v3672, %v4923
    %v4925 = vlaneseq
    %v4926 = vshrl.u32 %v4925, 7
    %v4927 = vsub.s32 %v4257, %v4926
    %v4928 = vrot.slane %v3675, %v4927
    %v4929 = vsel %vm4262, %v4928, %v4924
    %v4930 = vlaneseq
    %v4931 = vshrl.u32 %v4930, 7
    %v4932 = vsub.s32 %v4252, %v4931
    %v4933 = vrot.slane %v3678, %v4932
    %v4934 = vlaneseq
    %v4935 = vshrl.u32 %v4934, 7
    %v4936 = vsub.s32 %v4257, %v4935
    %v4937 = vrot.slane %v3681, %v4936
    %v4938 = vsel %vm4262, %v4937, %v4933
    %v4939 = vlaneseq
    %v4940 = vshrl.u32 %v4939, 7
    %v4941 = vsub.s32 %v4252, %v4940
    %v4942 = vrot.slane %v3684, %v4941
    %v4943 = vlaneseq
    %v4944 = vshrl.u32 %v4943, 7
    %v4945 = vsub.s32 %v4257, %v4944
    %v4946 = vrot.slane %v3687, %v4945
    %v4947 = vsel %vm4262, %v4946, %v4942
    %v4948 = vlaneseq
    %v4949 = vshrl.u32 %v4948, 7
    %v4950 = vsub.s32 %v4252, %v4949
    %v4951 = vrot.slane %v3690, %v4950
    %v4952 = vlaneseq
    %v4953 = vshrl.u32 %v4952, 7
    %v4954 = vsub.s32 %v4257, %v4953
    %v4955 = vrot.slane %v3693, %v4954
    %v4956 = vsel %vm4262, %v4955, %v4951
    %v4957 = vlaneseq
    %v4958 = vshrl.u32 %v4957, 7
    %v4959 = vsub.s32 %v4252, %v4958
    %v4960 = vrot.slane %v3696, %v4959
    %v4961 = vlaneseq
    %v4962 = vshrl.u32 %v4961, 7
    %v4963 = vsub.s32 %v4257, %v4962
    %v4964 = vrot.slane %v3699, %v4963
    %v4965 = vsel %vm4262, %v4964, %v4960
    %v4966 = vlaneseq
    %v4967 = vshrl.u32 %v4966, 7
    %v4968 = vsub.s32 %v4252, %v4967
    %v4969 = vrot.slane %v3702, %v4968
    %v4970 = vlaneseq
    %v4971 = vshrl.u32 %v4970, 7
    %v4972 = vsub.s32 %v4257, %v4971
    %v4973 = vrot.slane %v3705, %v4972
    %v4974 = vsel %vm4262, %v4973, %v4969
    %v4975 = vlaneseq
    %v4976 = vshrl.u32 %v4975, 7
    %v4977 = vsub.s32 %v4252, %v4976
    %v4978 = vrot.slane %v3708, %v4977
    %v4979 = vlaneseq
    %v4980 = vshrl.u32 %v4979, 7
    %v4981 = vsub.s32 %v4257, %v4980
    %v4982 = vrot.slane %v3711, %v4981
    %v4983 = vsel %vm4262, %v4982, %v4978
    %v4984 = vlaneseq
    %v4985 = vshrl.u32 %v4984, 7
    %v4986 = vsub.s32 %v4252, %v4985
    %v4987 = vrot.slane %v3714, %v4986
    %v4988 = vlaneseq
    %v4989 = vshrl.u32 %v4988, 7
    %v4990 = vsub.s32 %v4257, %v4989
    %v4991 = vrot.slane %v3717, %v4990
    %v4992 = vsel %vm4262, %v4991, %v4987
    %v4993 = vlaneseq
    %v4994 = vshrl.u32 %v4993, 7
    %v4995 = vsub.s32 %v4252, %v4994
    %v4996 = vrot.slane %v3720, %v4995
    %v4997 = vlaneseq
    %v4998 = vshrl.u32 %v4997, 7
    %v4999 = vsub.s32 %v4257, %v4998
    %v5000 = vrot.slane %v3723, %v4999
    %v5001 = vsel %vm4262, %v5000, %v4996
    %v5002 = vlaneseq
    %v5003 = vshrl.u32 %v5002, 7
    %v5004 = vsub.s32 %v4252, %v5003
    %v5005 = vrot.slane %v3726, %v5004
    %v5006 = vlaneseq
    %v5007 = vshrl.u32 %v5006, 7
    %v5008 = vsub.s32 %v4257, %v5007
    %v5009 = vrot.slane %v3729, %v5008
    %v5010 = vsel %vm4262, %v5009, %v5005
    %v5011 = vlaneseq
    %v5012 = vshrl.u32 %v5011, 7
    %v5013 = vsub.s32 %v4252, %v5012
    %v5014 = vrot.slane %v3732, %v5013
    %v5015 = vlaneseq
    %v5016 = vshrl.u32 %v5015, 7
    %v5017 = vsub.s32 %v4257, %v5016
    %v5018 = vrot.slane %v3735, %v5017
    %v5019 = vsel %vm4262, %v5018, %v5014
    %v5020 = vlaneseq
    %v5021 = vshrl.u32 %v5020, 7
    %v5022 = vsub.s32 %v4252, %v5021
    %v5023 = vrot.slane %v3738, %v5022
    %v5024 = vlaneseq
    %v5025 = vshrl.u32 %v5024, 7
    %v5026 = vsub.s32 %v4257, %v5025
    %v5027 = vrot.slane %v3741, %v5026
    %v5028 = vsel %vm4262, %v5027, %v5023
    %v5029 = vlaneseq
    %v5030 = vshrl.u32 %v5029, 7
    %v5031 = vsub.s32 %v4252, %v5030
    %v5032 = vrot.slane %v3744, %v5031
    %v5033 = vlaneseq
    %v5034 = vshrl.u32 %v5033, 7
    %v5035 = vsub.s32 %v4257, %v5034
    %v5036 = vrot.slane %v3747, %v5035
    %v5037 = vsel %vm4262, %v5036, %v5032
    %v5038 = vlaneseq
    %v5039 = vshrl.u32 %v5038, 7
    %v5040 = vsub.s32 %v4252, %v5039
    %v5041 = vrot.slane %v3750, %v5040
    %v5042 = vlaneseq
    %v5043 = vshrl.u32 %v5042, 7
    %v5044 = vsub.s32 %v4257, %v5043
    %v5045 = vrot.slane %v3753, %v5044
    %v5046 = vsel %vm4262, %v5045, %v5041
    %v5047 = vlaneseq
    %v5048 = vshrl.u32 %v5047, 7
    %v5049 = vsub.s32 %v4252, %v5048
    %v5050 = vrot.slane %v3756, %v5049
    %v5051 = vlaneseq
    %v5052 = vshrl.u32 %v5051, 7
    %v5053 = vsub.s32 %v4257, %v5052
    %v5054 = vrot.slane %v3759, %v5053
    %v5055 = vsel %vm4262, %v5054, %v5050
    %v5056 = vlaneseq
    %v5057 = vshrl.u32 %v5056, 7
    %v5058 = vsub.s32 %v4252, %v5057
    %v5059 = vrot.slane %v3762, %v5058
    %v5060 = vlaneseq
    %v5061 = vshrl.u32 %v5060, 7
    %v5062 = vsub.s32 %v4257, %v5061
    %v5063 = vrot.slane %v3765, %v5062
    %v5064 = vsel %vm4262, %v5063, %v5059
    %v5065 = vlaneseq
    %v5066 = vshrl.u32 %v5065, 7
    %v5067 = vsub.s32 %v4252, %v5066
    %v5068 = vrot.slane %v3768, %v5067
    %v5069 = vlaneseq
    %v5070 = vshrl.u32 %v5069, 7
    %v5071 = vsub.s32 %v4257, %v5070
    %v5072 = vrot.slane %v3771, %v5071
    %v5073 = vsel %vm4262, %v5072, %v5068
    %v5074 = vlaneseq
    %v5075 = vshrl.u32 %v5074, 7
    %v5076 = vsub.s32 %v4252, %v5075
    %v5077 = vrot.slane %v3774, %v5076
    %v5078 = vlaneseq
    %v5079 = vshrl.u32 %v5078, 7
    %v5080 = vsub.s32 %v4257, %v5079
    %v5081 = vrot.slane %v3777, %v5080
    %v5082 = vsel %vm4262, %v5081, %v5077
    %v5083 = vlaneseq
    %v5084 = vshrl.u32 %v5083, 7
    %v5085 = vsub.s32 %v4252, %v5084
    %v5086 = vrot.slane %v3780, %v5085
    %v5087 = vlaneseq
    %v5088 = vshrl.u32 %v5087, 7
    %v5089 = vsub.s32 %v4257, %v5088
    %v5090 = vrot.slane %v3783, %v5089
    %v5091 = vsel %vm4262, %v5090, %v5086
    %v5092 = vlaneseq
    %v5093 = vshrl.u32 %v5092, 7
    %v5094 = vsub.s32 %v4252, %v5093
    %v5095 = vrot.slane %v3786, %v5094
    %v5096 = vlaneseq
    %v5097 = vshrl.u32 %v5096, 7
    %v5098 = vsub.s32 %v4257, %v5097
    %v5099 = vrot.slane %v3789, %v5098
    %v5100 = vsel %vm4262, %v5099, %v5095
    %v5101 = vlaneseq
    %v5102 = vshrl.u32 %v5101, 7
    %v5103 = vsub.s32 %v4252, %v5102
    %v5104 = vrot.slane %v3792, %v5103
    %v5105 = vlaneseq
    %v5106 = vshrl.u32 %v5105, 7
    %v5107 = vsub.s32 %v4257, %v5106
    %v5108 = vrot.slane %v3795, %v5107
    %v5109 = vsel %vm4262, %v5108, %v5104
    %v5110 = vlaneseq
    %v5111 = vshrl.u32 %v5110, 7
    %v5112 = vsub.s32 %v4252, %v5111
    %v5113 = vrot.slane %v3798, %v5112
    %v5114 = vlaneseq
    %v5115 = vshrl.u32 %v5114, 7
    %v5116 = vsub.s32 %v4257, %v5115
    %v5117 = vrot.slane %v3801, %v5116
    %v5118 = vsel %vm4262, %v5117, %v5113
    %v5119 = vlaneseq
    %v5120 = vshrl.u32 %v5119, 7
    %v5121 = vsub.s32 %v4252, %v5120
    %v5122 = vrot.slane %v3804, %v5121
    %v5123 = vlaneseq
    %v5124 = vshrl.u32 %v5123, 7
    %v5125 = vsub.s32 %v4257, %v5124
    %v5126 = vrot.slane %v3807, %v5125
    %v5127 = vsel %vm4262, %v5126, %v5122
    %v5128 = vlaneseq
    %v5129 = vshrl.u32 %v5128, 7
    %v5130 = vsub.s32 %v4252, %v5129
    %v5131 = vrot.slane %v3810, %v5130
    %v5132 = vlaneseq
    %v5133 = vshrl.u32 %v5132, 7
    %v5134 = vsub.s32 %v4257, %v5133
    %v5135 = vrot.slane %v3813, %v5134
    %v5136 = vsel %vm4262, %v5135, %v5131
    %v5137 = vlaneseq
    %v5138 = vshrl.u32 %v5137, 7
    %v5139 = vsub.s32 %v4252, %v5138
    %v5140 = vrot.slane %v3816, %v5139
    %v5141 = vlaneseq
    %v5142 = vshrl.u32 %v5141, 7
    %v5143 = vsub.s32 %v4257, %v5142
    %v5144 = vrot.slane %v3819, %v5143
    %v5145 = vsel %vm4262, %v5144, %v5140
    %v5146 = vlaneseq
    %v5147 = vshrl.u32 %v5146, 7
    %v5148 = vsub.s32 %v4252, %v5147
    %v5149 = vrot.slane %v3822, %v5148
    %v5150 = vlaneseq
    %v5151 = vshrl.u32 %v5150, 7
    %v5152 = vsub.s32 %v4257, %v5151
    %v5153 = vrot.slane %v3825, %v5152
    %v5154 = vsel %vm4262, %v5153, %v5149
    %v5155 = vlaneseq
    %v5156 = vshrl.u32 %v5155, 7
    %v5157 = vsub.s32 %v4252, %v5156
    %v5158 = vrot.slane %v3828, %v5157
    %v5159 = vlaneseq
    %v5160 = vshrl.u32 %v5159, 7
    %v5161 = vsub.s32 %v4257, %v5160
    %v5162 = vrot.slane %v3831, %v5161
    %v5163 = vsel %vm4262, %v5162, %v5158
    %v5164 = vlaneseq
    %v5165 = vshrl.u32 %v5164, 7
    %v5166 = vsub.s32 %v4252, %v5165
    %v5167 = vrot.slane %v3834, %v5166
    %v5168 = vlaneseq
    %v5169 = vshrl.u32 %v5168, 7
    %v5170 = vsub.s32 %v4257, %v5169
    %v5171 = vrot.slane %v3837, %v5170
    %v5172 = vsel %vm4262, %v5171, %v5167
    %v5173 = vlaneseq
    %v5174 = vshrl.u32 %v5173, 7
    %v5175 = vsub.s32 %v4252, %v5174
    %v5176 = vrot.slane %v3840, %v5175
    %v5177 = vlaneseq
    %v5178 = vshrl.u32 %v5177, 7
    %v5179 = vsub.s32 %v4257, %v5178
    %v5180 = vrot.slane %v3843, %v5179
    %v5181 = vsel %vm4262, %v5180, %v5176
    %v5182 = vlaneseq
    %v5183 = vshrl.u32 %v5182, 7
    %v5184 = vsub.s32 %v4252, %v5183
    %v5185 = vrot.slane %v3846, %v5184
    %v5186 = vlaneseq
    %v5187 = vshrl.u32 %v5186, 7
    %v5188 = vsub.s32 %v4257, %v5187
    %v5189 = vrot.slane %v3849, %v5188
    %v5190 = vsel %vm4262, %v5189, %v5185
    %v5191 = vlaneseq
    %v5192 = vshrl.u32 %v5191, 7
    %v5193 = vsub.s32 %v4252, %v5192
    %v5194 = vrot.slane %v3852, %v5193
    %v5195 = vlaneseq
    %v5196 = vshrl.u32 %v5195, 7
    %v5197 = vsub.s32 %v4257, %v5196
    %v5198 = vrot.slane %v3855, %v5197
    %v5199 = vsel %vm4262, %v5198, %v5194
    %v5200 = vlaneseq
    %v5201 = vshrl.u32 %v5200, 7
    %v5202 = vsub.s32 %v4252, %v5201
    %v5203 = vrot.slane %v3858, %v5202
    %v5204 = vlaneseq
    %v5205 = vshrl.u32 %v5204, 7
    %v5206 = vsub.s32 %v4257, %v5205
    %v5207 = vrot.slane %v3861, %v5206
    %v5208 = vsel %vm4262, %v5207, %v5203
    %v5209 = vlaneseq
    %v5210 = vshrl.u32 %v5209, 7
    %v5211 = vsub.s32 %v4252, %v5210
    %v5212 = vrot.slane %v3864, %v5211
    %v5213 = vlaneseq
    %v5214 = vshrl.u32 %v5213, 7
    %v5215 = vsub.s32 %v4257, %v5214
    %v5216 = vrot.slane %v3867, %v5215
    %v5217 = vsel %vm4262, %v5216, %v5212
    %v5218 = vlaneseq
    %v5219 = vshrl.u32 %v5218, 7
    %v5220 = vsub.s32 %v4252, %v5219
    %v5221 = vrot.slane %v3870, %v5220
    %v5222 = vlaneseq
    %v5223 = vshrl.u32 %v5222, 7
    %v5224 = vsub.s32 %v4257, %v5223
    %v5225 = vrot.slane %v3873, %v5224
    %v5226 = vsel %vm4262, %v5225, %v5221
    %v5227 = vlaneseq
    %v5228 = vshrl.u32 %v5227, 7
    %v5229 = vsub.s32 %v4252, %v5228
    %v5230 = vrot.slane %v3876, %v5229
    %v5231 = vlaneseq
    %v5232 = vshrl.u32 %v5231, 7
    %v5233 = vsub.s32 %v4257, %v5232
    %v5234 = vrot.slane %v3879, %v5233
    %v5235 = vsel %vm4262, %v5234, %v5230
    %v5236 = vlaneseq
    %v5237 = vshrl.u32 %v5236, 7
    %v5238 = vsub.s32 %v4252, %v5237
    %v5239 = vrot.slane %v3882, %v5238
    %v5240 = vlaneseq
    %v5241 = vshrl.u32 %v5240, 7
    %v5242 = vsub.s32 %v4257, %v5241
    %v5243 = vrot.slane %v3885, %v5242
    %v5244 = vsel %vm4262, %v5243, %v5239
    %v5245 = vlaneseq
    %v5246 = vshrl.u32 %v5245, 7
    %v5247 = vsub.s32 %v4252, %v5246
    %v5248 = vrot.slane %v3888, %v5247
    %v5249 = vlaneseq
    %v5250 = vshrl.u32 %v5249, 7
    %v5251 = vsub.s32 %v4257, %v5250
    %v5252 = vrot.slane %v3891, %v5251
    %v5253 = vsel %vm4262, %v5252, %v5248
    %v5254 = vlaneseq
    %v5255 = vshrl.u32 %v5254, 7
    %v5256 = vsub.s32 %v4252, %v5255
    %v5257 = vrot.slane %v3894, %v5256
    %v5258 = vlaneseq
    %v5259 = vshrl.u32 %v5258, 7
    %v5260 = vsub.s32 %v4257, %v5259
    %v5261 = vrot.slane %v3897, %v5260
    %v5262 = vsel %vm4262, %v5261, %v5257
    %v5263 = vlaneseq
    %v5264 = vshrl.u32 %v5263, 7
    %v5265 = vsub.s32 %v4252, %v5264
    %v5266 = vrot.slane %v3900, %v5265
    %v5267 = vlaneseq
    %v5268 = vshrl.u32 %v5267, 7
    %v5269 = vsub.s32 %v4257, %v5268
    %v5270 = vrot.slane %v3903, %v5269
    %v5271 = vsel %vm4262, %v5270, %v5266
    %v5272 = vlaneseq
    %v5273 = vshrl.u32 %v5272, 7
    %v5274 = vsub.s32 %v4252, %v5273
    %v5275 = vrot.slane %v3906, %v5274
    %v5276 = vlaneseq
    %v5277 = vshrl.u32 %v5276, 7
    %v5278 = vsub.s32 %v4257, %v5277
    %v5279 = vrot.slane %v3909, %v5278
    %v5280 = vsel %vm4262, %v5279, %v5275
    %v5281 = vlaneseq
    %v5282 = vshrl.u32 %v5281, 7
    %v5283 = vsub.s32 %v4252, %v5282
    %v5284 = vrot.slane %v3912, %v5283
    %v5285 = vlaneseq
    %v5286 = vshrl.u32 %v5285, 7
    %v5287 = vsub.s32 %v4257, %v5286
    %v5288 = vrot.slane %v3915, %v5287
    %v5289 = vsel %vm4262, %v5288, %v5284
    %v5290 = vlaneseq
    %v5291 = vshrl.u32 %v5290, 7
    %v5292 = vsub.s32 %v4252, %v5291
    %v5293 = vrot.slane %v3918, %v5292
    %v5294 = vlaneseq
    %v5295 = vshrl.u32 %v5294, 7
    %v5296 = vsub.s32 %v4257, %v5295
    %v5297 = vrot.slane %v3921, %v5296
    %v5298 = vsel %vm4262, %v5297, %v5293
    %v5299 = vlaneseq
    %v5300 = vshrl.u32 %v5299, 7
    %v5301 = vsub.s32 %v4252, %v5300
    %v5302 = vrot.slane %v3924, %v5301
    %v5303 = vlaneseq
    %v5304 = vshrl.u32 %v5303, 7
    %v5305 = vsub.s32 %v4257, %v5304
    %v5306 = vrot.slane %v3927, %v5305
    %v5307 = vsel %vm4262, %v5306, %v5302
    %v5308 = vlaneseq
    %v5309 = vshrl.u32 %v5308, 7
    %v5310 = vsub.s32 %v4252, %v5309
    %v5311 = vrot.slane %v3930, %v5310
    %v5312 = vlaneseq
    %v5313 = vshrl.u32 %v5312, 7
    %v5314 = vsub.s32 %v4257, %v5313
    %v5315 = vrot.slane %v3933, %v5314
    %v5316 = vsel %vm4262, %v5315, %v5311
    %v5317 = vlaneseq
    %v5318 = vshrl.u32 %v5317, 7
    %v5319 = vsub.s32 %v4252, %v5318
    %v5320 = vrot.slane %v3936, %v5319
    %v5321 = vlaneseq
    %v5322 = vshrl.u32 %v5321, 7
    %v5323 = vsub.s32 %v4257, %v5322
    %v5324 = vrot.slane %v3939, %v5323
    %v5325 = vsel %vm4262, %v5324, %v5320
    %v5326 = vlaneseq
    %v5327 = vshrl.u32 %v5326, 7
    %v5328 = vsub.s32 %v4252, %v5327
    %v5329 = vrot.slane %v3942, %v5328
    %v5330 = vlaneseq
    %v5331 = vshrl.u32 %v5330, 7
    %v5332 = vsub.s32 %v4257, %v5331
    %v5333 = vrot.slane %v3945, %v5332
    %v5334 = vsel %vm4262, %v5333, %v5329
    %v5335 = vlaneseq
    %v5336 = vshrl.u32 %v5335, 7
    %v5337 = vsub.s32 %v4252, %v5336
    %v5338 = vrot.slane %v3948, %v5337
    %v5339 = vlaneseq
    %v5340 = vshrl.u32 %v5339, 7
    %v5341 = vsub.s32 %v4257, %v5340
    %v5342 = vrot.slane %v3951, %v5341
    %v5343 = vsel %vm4262, %v5342, %v5338
    %v5344 = vlaneseq
    %v5345 = vshrl.u32 %v5344, 7
    %v5346 = vsub.s32 %v4252, %v5345
    %v5347 = vrot.slane %v3954, %v5346
    %v5348 = vlaneseq
    %v5349 = vshrl.u32 %v5348, 7
    %v5350 = vsub.s32 %v4257, %v5349
    %v5351 = vrot.slane %v3957, %v5350
    %v5352 = vsel %vm4262, %v5351, %v5347
    %v5353 = vlaneseq
    %v5354 = vshrl.u32 %v5353, 7
    %v5355 = vsub.s32 %v4252, %v5354
    %v5356 = vrot.slane %v3960, %v5355
    %v5357 = vlaneseq
    %v5358 = vshrl.u32 %v5357, 7
    %v5359 = vsub.s32 %v4257, %v5358
    %v5360 = vrot.slane %v3963, %v5359
    %v5361 = vsel %vm4262, %v5360, %v5356
    %v5362 = vlaneseq
    %v5363 = vshrl.u32 %v5362, 7
    %v5364 = vsub.s32 %v4252, %v5363
    %v5365 = vrot.slane %v3966, %v5364
    %v5366 = vlaneseq
    %v5367 = vshrl.u32 %v5366, 7
    %v5368 = vsub.s32 %v4257, %v5367
    %v5369 = vrot.slane %v3969, %v5368
    %v5370 = vsel %vm4262, %v5369, %v5365
    %v5371 = vlaneseq
    %v5372 = vshrl.u32 %v5371, 7
    %v5373 = vsub.s32 %v4252, %v5372
    %v5374 = vrot.slane %v3972, %v5373
    %v5375 = vlaneseq
    %v5376 = vshrl.u32 %v5375, 7
    %v5377 = vsub.s32 %v4257, %v5376
    %v5378 = vrot.slane %v3975, %v5377
    %v5379 = vsel %vm4262, %v5378, %v5374
    %v5380 = vlaneseq
    %v5381 = vshrl.u32 %v5380, 7
    %v5382 = vsub.s32 %v4252, %v5381
    %v5383 = vrot.slane %v3978, %v5382
    %v5384 = vlaneseq
    %v5385 = vshrl.u32 %v5384, 7
    %v5386 = vsub.s32 %v4257, %v5385
    %v5387 = vrot.slane %v3981, %v5386
    %v5388 = vsel %vm4262, %v5387, %v5383
    %v5389 = vlaneseq
    %v5390 = vshrl.u32 %v5389, 7
    %v5391 = vsub.s32 %v4252, %v5390
    %v5392 = vrot.slane %v3984, %v5391
    %v5393 = vlaneseq
    %v5394 = vshrl.u32 %v5393, 7
    %v5395 = vsub.s32 %v4257, %v5394
    %v5396 = vrot.slane %v3987, %v5395
    %v5397 = vsel %vm4262, %v5396, %v5392
    %v5398 = vlaneseq
    %v5399 = vshrl.u32 %v5398, 7
    %v5400 = vsub.s32 %v4252, %v5399
    %v5401 = vrot.slane %v3990, %v5400
    %v5402 = vlaneseq
    %v5403 = vshrl.u32 %v5402, 7
    %v5404 = vsub.s32 %v4257, %v5403
    %v5405 = vrot.slane %v3993, %v5404
    %v5406 = vsel %vm4262, %v5405, %v5401
    %vm5407 = vcmask 1041409
    %v5408 = vsel %vm5407, %v4272, %v4263
    %vm5409 = vcmask 1042434
    %v5410 = vsel %vm5409, %v4281, %v5408
    %vm5411 = vcmask 1043459
    %v5412 = vsel %vm5411, %v4290, %v5410
    %vm5413 = vcmask 1044484
    %v5414 = vsel %vm5413, %v4299, %v5412
    %vm5415 = vcmask 1045509
    %v5416 = vsel %vm5415, %v4308, %v5414
    %vm5417 = vcmask 1046534
    %v5418 = vsel %vm5417, %v4317, %v5416
    %vm5419 = vcmask 1047559
    %v5420 = vsel %vm5419, %v4326, %v5418
    %v5421 = vsel %vm5407, %v4344, %v4335
    %v5422 = vsel %vm5409, %v4353, %v5421
    %v5423 = vsel %vm5411, %v4362, %v5422
    %v5424 = vsel %vm5413, %v4371, %v5423
    %v5425 = vsel %vm5415, %v4380, %v5424
    %v5426 = vsel %vm5417, %v4389, %v5425
    %v5427 = vsel %vm5419, %v4398, %v5426
    %v5428 = vsel %vm5407, %v4416, %v4407
    %v5429 = vsel %vm5409, %v4425, %v5428
    %v5430 = vsel %vm5411, %v4434, %v5429
    %v5431 = vsel %vm5413, %v4443, %v5430
    %v5432 = vsel %vm5415, %v4452, %v5431
    %v5433 = vsel %vm5417, %v4461, %v5432
    %v5434 = vsel %vm5419, %v4470, %v5433
    %v5435 = vsel %vm5407, %v4488, %v4479
    %v5436 = vsel %vm5409, %v4497, %v5435
    %v5437 = vsel %vm5411, %v4506, %v5436
    %v5438 = vsel %vm5413, %v4515, %v5437
    %v5439 = vsel %vm5415, %v4524, %v5438
    %v5440 = vsel %vm5417, %v4533, %v5439
    %v5441 = vsel %vm5419, %v4542, %v5440
    %v5442 = vsel %vm5407, %v4560, %v4551
    %v5443 = vsel %vm5409, %v4569, %v5442
    %v5444 = vsel %vm5411, %v4578, %v5443
    %v5445 = vsel %vm5413, %v4587, %v5444
    %v5446 = vsel %vm5415, %v4596, %v5445
    %v5447 = vsel %vm5417, %v4605, %v5446
    %v5448 = vsel %vm5419, %v4614, %v5447
    %v5449 = vsel %vm5407, %v4632, %v4623
    %v5450 = vsel %vm5409, %v4641, %v5449
    %v5451 = vsel %vm5411, %v4650, %v5450
    %v5452 = vsel %vm5413, %v4659, %v5451
    %v5453 = vsel %vm5415, %v4668, %v5452
    %v5454 = vsel %vm5417, %v4677, %v5453
    %v5455 = vsel %vm5419, %v4686, %v5454
    %v5456 = vsel %vm5407, %v4704, %v4695
    %v5457 = vsel %vm5409, %v4713, %v5456
    %v5458 = vsel %vm5411, %v4722, %v5457
    %v5459 = vsel %vm5413, %v4731, %v5458
    %v5460 = vsel %vm5415, %v4740, %v5459
    %v5461 = vsel %vm5417, %v4749, %v5460
    %v5462 = vsel %vm5419, %v4758, %v5461
    %v5463 = vsel %vm5407, %v4776, %v4767
    %v5464 = vsel %vm5409, %v4785, %v5463
    %v5465 = vsel %vm5411, %v4794, %v5464
    %v5466 = vsel %vm5413, %v4803, %v5465
    %v5467 = vsel %vm5415, %v4812, %v5466
    %v5468 = vsel %vm5417, %v4821, %v5467
    %v5469 = vsel %vm5419, %v4830, %v5468
    %v5470 = vsel %vm5407, %v4848, %v4839
    %v5471 = vsel %vm5409, %v4857, %v5470
    %v5472 = vsel %vm5411, %v4866, %v5471
    %v5473 = vsel %vm5413, %v4875, %v5472
    %v5474 = vsel %vm5415, %v4884, %v5473
    %v5475 = vsel %vm5417, %v4893, %v5474
    %v5476 = vsel %vm5419, %v4902, %v5475
    %v5477 = vsel %vm5407, %v4920, %v4911
    %v5478 = vsel %vm5409, %v4929, %v5477
    %v5479 = vsel %vm5411, %v4938, %v5478
    %v5480 = vsel %vm5413, %v4947, %v5479
    %v5481 = vsel %vm5415, %v4956, %v5480
    %v5482 = vsel %vm5417, %v4965, %v5481
    %v5483 = vsel %vm5419, %v4974, %v5482
    %v5484 = vsel %vm5407, %v4992, %v4983
    %v5485 = vsel %vm5409, %v5001, %v5484
    %v5486 = vsel %vm5411, %v5010, %v5485
    %v5487 = vsel %vm5413, %v5019, %v5486
    %v5488 = vsel %vm5415, %v5028, %v5487
    %v5489 = vsel %vm5417, %v5037, %v5488
    %v5490 = vsel %vm5419, %v5046, %v5489
    %v5491 = vsel %vm5407, %v5064, %v5055
    %v5492 = vsel %vm5409, %v5073, %v5491
    %v5493 = vsel %vm5411, %v5082, %v5492
    %v5494 = vsel %vm5413, %v5091, %v5493
    %v5495 = vsel %vm5415, %v5100, %v5494
    %v5496 = vsel %vm5417, %v5109, %v5495
    %v5497 = vsel %vm5419, %v5118, %v5496
    %v5498 = vsel %vm5407, %v5136, %v5127
    %v5499 = vsel %vm5409, %v5145, %v5498
    %v5500 = vsel %vm5411, %v5154, %v5499
    %v5501 = vsel %vm5413, %v5163, %v5500
    %v5502 = vsel %vm5415, %v5172, %v5501
    %v5503 = vsel %vm5417, %v5181, %v5502
    %v5504 = vsel %vm5419, %v5190, %v5503
    %v5505 = vsel %vm5407, %v5208, %v5199
    %v5506 = vsel %vm5409, %v5217, %v5505
    %v5507 = vsel %vm5411, %v5226, %v5506
    %v5508 = vsel %vm5413, %v5235, %v5507
    %v5509 = vsel %vm5415, %v5244, %v5508
    %v5510 = vsel %vm5417, %v5253, %v5509
    %v5511 = vsel %vm5419, %v5262, %v5510
    %v5512 = vsel %vm5407, %v5280, %v5271
    %v5513 = vsel %vm5409, %v5289, %v5512
    %v5514 = vsel %vm5411, %v5298, %v5513
    %v5515 = vsel %vm5413, %v5307, %v5514
    %v5516 = vsel %vm5415, %v5316, %v5515
    %v5517 = vsel %vm5417, %v5325, %v5516
    %v5518 = vsel %vm5419, %v5334, %v5517
    %v5519 = vsel %vm5407, %v5352, %v5343
    %v5520 = vsel %vm5409, %v5361, %v5519
    %v5521 = vsel %vm5411, %v5370, %v5520
    %v5522 = vsel %vm5413, %v5379, %v5521
    %v5523 = vsel %vm5415, %v5388, %v5522
    %v5524 = vsel %vm5417, %v5397, %v5523
    %v5525 = vsel %vm5419, %v5406, %v5524
    %s5542 = scalar_lea.vmem [#allocation3], %s3994
    %vm5543 = vcmask 130048
    %5544 = vst.msk [vmem:[%s5542] sm:$0xff] %vm5543, %v5420
    %5545 = vst.msk [vmem:[%s5542 + $0x8] sm:$0xff] %vm5543, %v5427
    %5546 = vst.msk [vmem:[%s5542 + $0x10] sm:$0xff] %vm5543, %v5434
    %5547 = vst.msk [vmem:[%s5542 + $0x18] sm:$0xff] %vm5543, %v5441
    %5548 = vst.msk [vmem:[%s5542 + $0x20] sm:$0xff] %vm5543, %v5448
    %5549 = vst.msk [vmem:[%s5542 + $0x28] sm:$0xff] %vm5543, %v5455
    %5550 = vst.msk [vmem:[%s5542 + $0x30] sm:$0xff] %vm5543, %v5462
    %5551 = vst.msk [vmem:[%s5542 + $0x38] sm:$0xff] %vm5543, %v5469
    %5552 = vst.msk [vmem:[%s5542 + $0x40] sm:$0xff] %vm5543, %v5476
    %5553 = vst.msk [vmem:[%s5542 + $0x48] sm:$0xff] %vm5543, %v5483
    %5554 = vst.msk [vmem:[%s5542 + $0x50] sm:$0xff] %vm5543, %v5490
    %5555 = vst.msk [vmem:[%s5542 + $0x58] sm:$0xff] %vm5543, %v5497
    %5556 = vst.msk [vmem:[%s5542 + $0x60] sm:$0xff] %vm5543, %v5504
    %5557 = vst.msk [vmem:[%s5542 + $0x68] sm:$0xff] %vm5543, %v5511
    %5558 = vst.msk [vmem:[%s5542 + $0x70] sm:$0xff] %vm5543, %v5518
    %5559 = vst.msk [vmem:[%s5542 + $0x78] sm:$0xff] %vm5543, %v5525
    // Predicated region
    $region26: #{tpu_custom_call.1} parent=1 // pred_check
      %p5560 = pneg %p22
    $region27: #{tpu_custom_call.1} parent=1 // pred_check_branch
      %5562 = sbr.rel (%p5560) target = $region29
    $region28: #{tpu_custom_call.1} parent=1 // pred_region
      %v5563 = vld [vmem:[#allocation3] sm:$0xff]
      %v5564 = vld [vmem:[#allocation3 + $0x8] sm:$0xff]
      %v5565 = vld [vmem:[#allocation3 + $0x10] sm:$0xff]
      %v5566 = vld [vmem:[#allocation3 + $0x18] sm:$0xff]
      %v5567 = vld [vmem:[#allocation3 + $0x20] sm:$0xff]
      %v5568 = vld [vmem:[#allocation3 + $0x28] sm:$0xff]
      %v5569 = vld [vmem:[#allocation3 + $0x30] sm:$0xff]
      %v5570 = vld [vmem:[#allocation3 + $0x38] sm:$0xff]
      %v5571 = vld [vmem:[#allocation3 + $0x40] sm:$0xff]
      %v5572 = vld [vmem:[#allocation3 + $0x48] sm:$0xff]
      %v5573 = vld [vmem:[#allocation3 + $0x50] sm:$0xff]
      %v5574 = vld [vmem:[#allocation3 + $0x58] sm:$0xff]
      %v5575 = vld [vmem:[#allocation3 + $0x60] sm:$0xff]
      %v5576 = vld [vmem:[#allocation3 + $0x68] sm:$0xff]
      %v5577 = vld [vmem:[#allocation3 + $0x70] sm:$0xff]
      %v5578 = vld [vmem:[#allocation3 + $0x78] sm:$0xff]
      %5579 = vxpose.xlu0.b32.start [1/16] %v5563, 128
      %5580 = vxpose.xlu0.b32.cont [2/16] %v5564, 128
      %5581 = vxpose.xlu0.b32.cont [3/16] %v5565, 128
      %5582 = vxpose.xlu0.b32.cont [4/16] %v5566, 128
      %5583 = vxpose.xlu0.b32.cont [5/16] %v5567, 128
      %5584 = vxpose.xlu0.b32.cont [6/16] %v5568, 128
      %5585 = vxpose.xlu0.b32.cont [7/16] %v5569, 128
      %5586 = vxpose.xlu0.b32.cont [8/16] %v5570, 128
      %5587 = vxpose.xlu0.b32.cont [9/16] %v5571, 128
      %5588 = vxpose.xlu0.b32.cont [10/16] %v5572, 128
      %5589 = vxpose.xlu0.b32.cont [11/16] %v5573, 128
      %5590 = vxpose.xlu0.b32.cont [12/16] %v5574, 128
      %5591 = vxpose.xlu0.b32.cont [13/16] %v5575, 128
      %5592 = vxpose.xlu0.b32.cont [14/16] %v5576, 128
      %5593 = vxpose.xlu0.b32.cont [15/16] %v5577, 128
      %5594 = vxpose.xlu0.b32.end [16/16] %v5578, 128
      %v5595 = vpop.trf.xlu0
      %v5596 = vpop.trf.xlu0
      %v5597 = vpop.trf.xlu0
      %v5598 = vpop.trf.xlu0
      %v5599 = vpop.trf.xlu0
      %v5600 = vpop.trf.xlu0
      %v5601 = vpop.trf.xlu0
      %v5602 = vpop.trf.xlu0
      %v5603 = vpop.trf.xlu0
      %v5604 = vpop.trf.xlu0
      %v5605 = vpop.trf.xlu0
      %v5606 = vpop.trf.xlu0
      %v5607 = vpop.trf.xlu0
      %v5608 = vpop.trf.xlu0
      %v5609 = vpop.trf.xlu0
      %v5610 = vpop.trf.xlu0
      %vm5611 = vcmp.lt.s32.totalorder %v4252, 8
      %v5612 = vsel %vm5611, %v5595, -1e+30
      %v5613 = vsel %vm5611, %v5596, -1e+30
      %5614 = vmax.xlane.f32.xlu0 %v5612
      %v5615 = vpop.xlane.xlu0 %5614
      %5616 = vmax.xlane.f32.xlu0 %v5613
      %v5617 = vpop.xlane.xlu0 %5616
      %v5618 = vsub.f32 %v5612, %v5615
      %v5619 = vsub.f32 %v5613, %v5617
      %v5620 = vmul.f32 %v5618, 1.442695
      %v5621 = vpow.pop %v5620
      %v5622 = vmul.f32 %v5619, 1.442695
      %v5623 = vpow.pop %v5622
      %5624 = vadd.xlane.f32.xlu0 %v5621
      %v5625 = vpop.xlane.xlu0 %5624
      %5626 = vadd.xlane.f32.xlu0 %v5623
      %v5627 = vpop.xlane.xlu0 %5626
      %v5628 = vrcp.pop %v5625
      %v5629 = vmul.f32 %v5621, %v5628
      %v5630 = vrcp.pop %v5627
      %v5631 = vmul.f32 %v5623, %v5630
      %5632 = vst [vmem:[#allocation4] sm:$0xff] %v5629
      %5633 = vst [vmem:[#allocation4 + $0x8] sm:$0xff] %v5631
    $region29: #{tpu_custom_call.1} parent=1 // pred_fallthru
      _
    // Predicated region
    $region30: #{tpu_custom_call.1} parent=1 // pred_check
      _
    $region31: #{tpu_custom_call.1} parent=1 // pred_check_branch
      %5635 = sbr.rel (0) target = $region33
    $region32: #{tpu_custom_call.1} parent=1 // pred_region
      %s5637 = ssub.s32 256, 256
      %5638 = vsyncadd [#allocation5], %s5637
      %s5639 = sshll.u32 [#allocation4], 4
      %s5640 = int_to_ptr.vmem [resolvable:$true] %s5639
      %5645 = dma.vmem_to_hbm [thread:$0]  %s5640, 256, %s5, [#allocation5], 128, 128, 8
    $region33: #{tpu_custom_call.1} parent=1 // pred_fallthru
      _
    // Predicated region
    $region34: #{tpu_custom_call.1} parent=1 // pred_check
      _
    $region35: #{tpu_custom_call.1} parent=1 // pred_check_branch
      %5647 = sbr.rel (0) target = $region37
    $region36: #{tpu_custom_call.1} parent=1 // pred_region
      %5648 = dma.done [#allocation5], 256
    $region37: #{tpu_custom_call.1} parent=1 // pred_fallthru
      _
    %5649 = vsyncpa [#allocation5], 1

</llo_original>
